<compile_context>
chip_gen: v5e
topology: v5e:2x2
jax: 0.10.0
libtpu: 0.0.40
codegen_flags: <defaults>
</compile_context>

<pallas_src>
import jax
import jax.numpy as jnp
from jax import lax
from jax.experimental import pallas as pl
from jax.experimental.pallas import tpu as pltpu


_CHUNK = 512                      # inner compute sub-chunk width (lanes)
_VMEM_LIMIT = 32 * 1024 * 1024    # safe on v5e/v6e (128 MiB) and v7x (64 MiB physical)


def _cdiv(a, b):
    return (a + b - 1) // b


def _dma_budget_bytes():
    """Per-step x-tile DMA budget, scaled to the generation's VMEM size."""
    try:
        vmem = int(getattr(pltpu.get_tpu_info(), "vmem_capacity_bytes", 64 << 20))
    except Exception:
        vmem = 64 << 20
    # ~8 MiB on v5e/v6e (128 MiB VMEM), ~4 MiB on v7x (64 MiB); double-buffered
    # x tiles + acc + intermediates stay well inside the 32 MiB scoped request.
    return max(1 << 20, min(8 << 20, vmem // 16))


def _plan_tiles(S, N, Cin, *, dma_budget_bytes, npar):
    """Split flattened spatial axis S into (npar, n_blocks) DMA tiles of
    chunks_per_tile * _CHUNK lanes each (x shipped as bf16)."""
    n_chunks = _cdiv(S, _CHUNK)
    npar = npar if n_chunks >= 2 else 1
    chunks_per_par = _cdiv(n_chunks, npar)
    bytes_per_chunk = N * Cin * _CHUNK * 2            # bf16 x
    max_chunks_per_tile = max(1, dma_budget_bytes // bytes_per_chunk)
    n_blocks = _cdiv(chunks_per_par, max_chunks_per_tile)
    chunks_per_tile = _cdiv(chunks_per_par, n_blocks)
    tile_s = chunks_per_tile * _CHUNK
    s_pad = npar * n_blocks * tile_s
    return npar, n_blocks, chunks_per_tile, tile_s, s_pad


# ----------------------------------------------------------------------------
# Kernel 1: per-voxel 1x1x1 conv + ReLU, spatially-tiled partial pooled sums.
# Grid: (npar [parallel], n_blocks [arbitrary reduction over S]).
# ----------------------------------------------------------------------------
def _make_conv_pool_kernel(N, chunks_per_tile):
    def kernel(x_ref, wc_ref, bc_ref, partial_ref, acc_ref):
        s = pl.program_id(1)

        @pl.when(s == 0)
        def _init():
            acc_ref[...] = jnp.zeros_like(acc_ref)

        wc = wc_ref[...]                      # (Cout, Cin) bf16
        bc = bc_ref[...]                      # (Cout, 1)  f32

        def chunk_body(j, carry):
            off = pl.multiple_of(j * _CHUNK, _CHUNK)
            # N is tiny; the live conv intermediate is only (Cout, _CHUNK) f32
            # per batch element regardless of tile_s (the fori body bounds it).
            for n in range(N):
                xn = x_ref[n, :, pl.ds(off, _CHUNK)]                      # (Cin, _CHUNK) bf16
                y = jnp.dot(wc, xn, preferred_element_type=jnp.float32)   # MXU bf16 -> f32
                y = jnp.maximum(y + bc, 0.0)                              # conv bias + ReLU
                acc_ref[n] += y       # lane-parallel VPU accumulate; no per-step reduce
            return carry

        lax.fori_loop(0, chunks_per_tile, chunk_body, 0)

        @pl.when(s == pl.num_programs(1) - 1)
        def _finalize():
            # single cross-lane (XLU) reduction per parallel block
            partial_ref[...] = jnp.sum(acc_ref[...], axis=-1)[None, :, :]

    return kernel


# ----------------------------------------------------------------------------
# Kernel 2: combine partial sums, pad-correction, avg-pool, dense_1 -> ReLU -> dense_2.
# One-shot; keeps the ~2 MiB head weights out of the long reduction pipeline.
# ----------------------------------------------------------------------------
def _make_head_kernel(n_pad_voxels, inv_S):
    def kernel(partial_ref, bc_ref, w1t_ref, b1_ref, w2t_ref, b2_ref, o_ref):
        psum = jnp.sum(partial_ref[...], axis=0)                      # (N, Cout)
        # Zero-padded voxels each contributed relu(0*wc + bc) = relu(bc): remove exactly.
        pooled = (psum - float(n_pad_voxels) * jnp.maximum(bc_ref[...], 0.0)) * inv_S
        h = jnp.dot(pooled, w1t_ref[...],
                    preferred_element_type=jnp.float32) + b1_ref[...]  # dense_1
        h = jnp.maximum(h, 0.0)
        # TODO(synk): dropout (dropout_prob > 0) omitted — module default is p=0.
        out = jnp.dot(h, w2t_ref[...],
                      preferred_element_type=jnp.float32) + b2_ref[...]  # dense_2
        o_ref[...] = out.astype(o_ref.dtype)

    return kernel


# ----------------------------------------------------------------------------
# Forward wrapper
# ----------------------------------------------------------------------------
def resnet3d_cls_forward(x_ncdhw, params, *, dma_budget_bytes=None, npar=2):
    N, Cin, D, H, W = x_ncdhw.shape
    S = D * H * W

    wc = params["wc"]                       # (Cout, Cin)  PyTorch conv layout
    Cout = wc.shape[0]
    w1 = params["w1"]                       # (H1, Cout)   PyTorch Linear layout
    H1 = w1.shape[0]
    w2 = params["w2"]                       # (n_class, H1)
    n_class = w2.shape[0]

    if dma_budget_bytes is None:
        dma_budget_bytes = _dma_budget_bytes()
    npar, n_blocks, chunks_per_tile, tile_s, s_pad = _plan_tiles(
        S, N, Cin, dma_budget_bytes=dma_budget_bytes, npar=npar)
    n_pad_voxels = s_pad - S

    # free reshape; bf16 halves HBM traffic on the dominant input
    x3 = x_ncdhw.reshape(N, Cin, S).astype(jnp.bfloat16)
    if n_pad_voxels:
        x3 = jnp.pad(x3, ((0, 0), (0, 0), (0, n_pad_voxels)))

    wc_bf = wc.astype(jnp.bfloat16)
    bc_col = params["bc"].reshape(Cout, 1).astype(jnp.float32)

    conv_cost = pl.CostEstimate(
        flops=2 * N * s_pad * Cout * Cin,
        transcendentals=0,
        bytes_accessed=(N * Cin * s_pad * 2 + Cout * Cin * 2 + Cout * 4
                        + npar * N * Cout * 4))

    partial = pl.pallas_call(
        _make_conv_pool_kernel(N, chunks_per_tile),
        out_shape=jax.ShapeDtypeStruct((npar, N, Cout), jnp.float32),
        grid_spec=pltpu.PrefetchScalarGridSpec(
            num_scalar_prefetch=0,
            grid=(npar, n_blocks),
            in_specs=[
                pl.BlockSpec((N, Cin, tile_s),
                             lambda p, s: (0, 0, p * n_blocks + s)),   # x tile
                pl.BlockSpec((Cout, Cin), lambda p, s: (0, 0)),        # conv weight (4 KiB)
                pl.BlockSpec((Cout, 1), lambda p, s: (0, 0)),          # conv bias
            ],
            out_specs=pl.BlockSpec((1, N, Cout), lambda p, s: (p, 0, 0)),
            scratch_shapes=[pltpu.VMEM((N, Cout, _CHUNK), jnp.float32)],
        ),
        compiler_params=pltpu.CompilerParams(
            dimension_semantics=("parallel", "arbitrary"),
            vmem_limit_bytes=_VMEM_LIMIT),
        cost_estimate=conv_cost,
    )(x3, wc_bf, bc_col)

    bc_row = params["bc"].reshape(1, Cout).astype(jnp.float32)
    w1t = w1.T                                   # (Cout, H1)
    b1 = params["b1"].reshape(1, H1)
    w2t = w2.T                                   # (H1, n_class)
    b2 = params["b2"].reshape(1, n_class)

    out = pl.pallas_call(
        _make_head_kernel(n_pad_voxels, 1.0 / float(S)),
        out_shape=jax.ShapeDtypeStruct((N, n_class), jnp.float32),
        grid_spec=pltpu.PrefetchScalarGridSpec(
            num_scalar_prefetch=0,
            grid=(1,),
            in_specs=[
                pl.BlockSpec((npar, N, Cout), lambda i: (0, 0, 0)),    # partial pooled sums
                pl.BlockSpec((1, Cout), lambda i: (0, 0)),             # conv bias (pad fix)
                pl.BlockSpec((Cout, H1), lambda i: (0, 0)),            # dense_1 weight^T
                pl.BlockSpec((1, H1), lambda i: (0, 0)),               # dense_1 bias
                pl.BlockSpec((H1, n_class), lambda i: (0, 0)),         # dense_2 weight^T
                pl.BlockSpec((1, n_class), lambda i: (0, 0)),          # dense_2 bias
            ],
            out_specs=pl.BlockSpec((N, n_class), lambda i: (0, 0)),
        ),
        compiler_params=pltpu.CompilerParams(
            dimension_semantics=("arbitrary",),
            vmem_limit_bytes=_VMEM_LIMIT),
    )(partial, bc_row, w1t, b1, w2t, b2)

    return out                                  # (N, n_class), matches PyTorch output


# ----------------------------------------------------------------------------
# Params (PyTorch layouts: Linear.weight is (out_features, in_features))
# ----------------------------------------------------------------------------
def make_params(key, cin, n_class=1, feat=512, hidden=1024):
    k = jax.random.split(key, 6)
    scale = 0.05
    return {
        # stand-in backbone: 1x1x1 conv Cin -> feat
        "wc": scale * jax.random.normal(k[0], (feat, cin), jnp.float32),
        "bc": scale * jax.random.normal(k[1], (feat,), jnp.float32),
        # dense_1: feat -> hidden   (BasicBlock, add_dense1=True)
        "w1": scale * jax.random.normal(k[2], (hidden, feat), jnp.float32),
        "b1": scale * jax.random.normal(k[3], (hidden,), jnp.float32),
        # dense_2: hidden -> n_class
        "w2": scale * jax.random.normal(k[4], (n_class, hidden), jnp.float32),
        "b2": scale * jax.random.normal(k[5], (n_class,), jnp.float32),
    }


def reference_forward(x_ncdhw, params):
    """Pure-JAX f32 reference mirroring the PyTorch forward."""
    N, Cin, D, H, W = x_ncdhw.shape
    x3 = x_ncdhw.reshape(N, Cin, -1)
    feat = jnp.einsum("ncs,oc->nos", x3, params["wc"]) + params["bc"][None, :, None]
    feat = jnp.maximum(feat, 0.0)
    pooled = jnp.mean(feat, axis=-1)                  # F.avg_pool3d(...).view(N, -1)
    h = jnp.maximum(pooled @ params["w1"].T + params["b1"], 0.0)
    return h @ params["w2"].T + params["b2"]


if __name__ == "__main__":
    key = jax.random.PRNGKey(0)
    kx1, kx2, kp = jax.random.split(key, 3)

    params = make_params(kp, cin=4, n_class=1)

    # Tolerances are loose-ish because x / conv weight are fed to the MXU in bf16
    # (f32 accumulation); the f32 reference differs by O(1e-3) on O(0.1) outputs.
    ATOL, RTOL = 5e-3, 1e-2

    # Case 1: aligned volume, default (large-tile) plan -> grid (2, 1),
    # multi-chunk inner fori_loop.
    x1 = jax.random.normal(kx1, (2, 4, 16, 16, 16), jnp.float32)   # S = 4096
    out1 = jax.block_until_ready(resnet3d_cls_forward(x1, params))
    ref1 = reference_forward(x1, params)
    assert out1.shape == (2, 1), out1.shape
    assert jnp.allclose(out1, ref1, atol=ATOL, rtol=RTOL), (out1, ref1)

    # Case 2: same volume, tiny forced DMA budget -> grid (2, 4): exercises the
    # parallel axis plus the multi-step init / accumulate / finalize reduction.
    out2 = jax.block_until_ready(
        resnet3d_cls_forward(x1, params, dma_budget_bytes=8 * 1024))
    assert jnp.allclose(out2, ref1, atol=ATOL, rtol=RTOL), (out2, ref1)

    # Case 3: non-128-aligned volume -> zero-pad + relu(bias) correction path.
    x2 = jax.random.normal(kx2, (1, 4, 5, 7, 9), jnp.float32)       # S = 315
    out3 = jax.block_until_ready(resnet3d_cls_forward(x2, params))
    ref3 = reference_forward(x2, params)
    assert out3.shape == (1, 1), out3.shape
    assert jnp.allclose(out3, ref3, atol=ATOL, rtol=RTOL), (out3, ref3)

    print("KERNEL_OK")
</pallas_src>

<mosaic_0001>
module attributes {stable_mosaic.version = 11 : i64} {
  func.func @kernel(%arg0: i32, %arg1: i32, %arg2: memref<2x4x2048xbf16, #tpu.memory_space<vmem>>, %arg3: memref<512x4xbf16, #tpu.memory_space<vmem>>, %arg4: memref<512x1xf32, #tpu.memory_space<vmem>>, %arg5: memref<1x2x512xf32, #tpu.memory_space<vmem>>, %arg6: memref<2x512x512xf32, #tpu.memory_space<vmem>>) attributes {dimension_semantics = [#tpu.dimension_semantics<parallel>, #tpu.dimension_semantics<arbitrary>], iteration_bounds = array<i64: 2, 1>, scalar_prefetch = 0 : i64, scratch_operands = 1 : i64, tpu.core_type = #tpu.core_type<tc>, window_params = [{transform_indices = @transform_0, window_bounds = array<i64: 2, 4, 2048>}, {pipeline_mode = #tpu.pipeline_mode<synchronous>, transform_indices = @transform_1, window_bounds = array<i64: 512, 4>}, {pipeline_mode = #tpu.pipeline_mode<synchronous>, transform_indices = @transform_2, window_bounds = array<i64: 512, 1>}, {transform_indices = @transform_3, window_bounds = array<i64: 1, 2, 512>}]} {
    %c0_i32 = arith.constant 0 : i32
    %0 = arith.cmpi eq, %arg1, %c0_i32 : i32
    %1 = arith.extui %0 : i1 to i32
    %c0_i32_0 = arith.constant 0 : i32
    %2 = arith.cmpi ne, %1, %c0_i32_0 : i32
    scf.if %2 {
      %cst = arith.constant 0.000000e+00 : f32
      %9 = vector.broadcast %cst : f32 to vector<2x512x512xf32>
      %c0_8 = arith.constant 0 : index
      %c0_9 = arith.constant 0 : index
      %c0_10 = arith.constant 0 : index
      %10 = vector.load %arg6[%c0_8, %c0_9, %c0_10] : memref<2x512x512xf32, #tpu.memory_space<vmem>>, vector<2x512x512xf32>
      tpu.vector_store %arg6[%c0_8, %c0_9, %c0_10], %9 {strides = array<i32>} : memref<2x512x512xf32, #tpu.memory_space<vmem>>, vector<2x512x512xf32>,
    } else {
    }
    %c0 = arith.constant 0 : index
    %c0_1 = arith.constant 0 : index
    %3 = vector.load %arg3[%c0, %c0_1] : memref<512x4xbf16, #tpu.memory_space<vmem>>, vector<512x4xbf16>
    %c0_2 = arith.constant 0 : index
    %c0_3 = arith.constant 0 : index
    %4 = vector.load %arg4[%c0_2, %c0_3] : memref<512x1xf32, #tpu.memory_space<vmem>>, vector<512x1xf32>
    %c0_i32_4 = arith.constant 0 : i32
    %c4_i32 = arith.constant 4 : i32
    %5 = arith.addi %c0_i32_4, %c4_i32 : i32
    %c1_i32 = arith.constant 1 : i32
    scf.for %arg7 = %c0_i32_4 to %5 step %c1_i32  : i32 {
      %c512_i32 = arith.constant 512 : i32
      %9 = arith.muli %arg7, %c512_i32 : i32
      %10 = tpu.assume_multiple %9, 512 : i32
      %c0_8 = arith.constant 0 : index
      %c0_9 = arith.constant 0 : index
      %11 = arith.index_cast %10 : i32 to index
      %12 = vector.load %arg2[%c0_8, %c0_9, %11] : memref<2x4x2048xbf16, #tpu.memory_space<vmem>>, vector<1x4x512xbf16>
      %13 = vector.shape_cast %12 : vector<1x4x512xbf16> to vector<4x512xbf16>
      %cst = arith.constant dense<0.000000e+00> : vector<512x512xf32>
      %14 = tpu.matmul %3, %13, %cst {dimension_numbers = #tpu.dot_dimension_numbers<[1], [0], [0], [1], [0, 0, 1, 1], [], []>} : vector<512x4xbf16>, vector<4x512xbf16>, vector<512x512xf32> -> vector<512x512xf32>
      %15 = vector.broadcast %4 : vector<512x1xf32> to vector<512x512xf32>
      %16 = arith.addf %14, %15 : vector<512x512xf32>
      %cst_10 = arith.constant 0.000000e+00 : f32
      %17 = vector.broadcast %cst_10 : f32 to vector<512x512xf32>
      %18 = arith.maximumf %16, %17 : vector<512x512xf32>
      %c0_11 = arith.constant 0 : index
      %c0_12 = arith.constant 0 : index
      %c0_13 = arith.constant 0 : index
      %19 = vector.load %arg6[%c0_11, %c0_12, %c0_13] : memref<2x512x512xf32, #tpu.memory_space<vmem>>, vector<1x512x512xf32>
      %20 = vector.shape_cast %19 : vector<1x512x512xf32> to vector<512x512xf32>
      %21 = arith.addf %20, %18 : vector<512x512xf32>
      %c0_14 = arith.constant 0 : index
      %c0_15 = arith.constant 0 : index
      %c0_16 = arith.constant 0 : index
      %22 = vector.load %arg6[%c0_14, %c0_15, %c0_16] : memref<2x512x512xf32, #tpu.memory_space<vmem>>, vector<1x512x512xf32>
      %23 = vector.shape_cast %22 : vector<1x512x512xf32> to vector<512x512xf32>
      %24 = vector.shape_cast %21 : vector<512x512xf32> to vector<1x512x512xf32>
      tpu.vector_store %arg6[%c0_14, %c0_15, %c0_16], %24 {strides = array<i32>} : memref<2x512x512xf32, #tpu.memory_space<vmem>>, vector<1x512x512xf32>,
      %c1 = arith.constant 1 : index
      %c0_17 = arith.constant 0 : index
      %25 = arith.index_cast %10 : i32 to index
      %26 = vector.load %arg2[%c1, %c0_17, %25] : memref<2x4x2048xbf16, #tpu.memory_space<vmem>>, vector<1x4x512xbf16>
      %27 = vector.shape_cast %26 : vector<1x4x512xbf16> to vector<4x512xbf16>
      %cst_18 = arith.constant dense<0.000000e+00> : vector<512x512xf32>
      %28 = tpu.matmul %3, %27, %cst_18 {dimension_numbers = #tpu.dot_dimension_numbers<[1], [0], [0], [1], [0, 0, 1, 1], [], []>} : vector<512x4xbf16>, vector<4x512xbf16>, vector<512x512xf32> -> vector<512x512xf32>
      %29 = vector.broadcast %4 : vector<512x1xf32> to vector<512x512xf32>
      %30 = arith.addf %28, %29 : vector<512x512xf32>
      %cst_19 = arith.constant 0.000000e+00 : f32
      %31 = vector.broadcast %cst_19 : f32 to vector<512x512xf32>
      %32 = arith.maximumf %30, %31 : vector<512x512xf32>
      %c1_20 = arith.constant 1 : index
      %c0_21 = arith.constant 0 : index
      %c0_22 = arith.constant 0 : index
      %33 = vector.load %arg6[%c1_20, %c0_21, %c0_22] : memref<2x512x512xf32, #tpu.memory_space<vmem>>, vector<1x512x512xf32>
      %34 = vector.shape_cast %33 : vector<1x512x512xf32> to vector<512x512xf32>
      %35 = arith.addf %34, %32 : vector<512x512xf32>
      %c1_23 = arith.constant 1 : index
      %c0_24 = arith.constant 0 : index
      %c0_25 = arith.constant 0 : index
      %36 = vector.load %arg6[%c1_23, %c0_24, %c0_25] : memref<2x512x512xf32, #tpu.memory_space<vmem>>, vector<1x512x512xf32>
      %37 = vector.shape_cast %36 : vector<1x512x512xf32> to vector<512x512xf32>
      %38 = vector.shape_cast %35 : vector<512x512xf32> to vector<1x512x512xf32>
      tpu.vector_store %arg6[%c1_23, %c0_24, %c0_25], %38 {strides = array<i32>} : memref<2x512x512xf32, #tpu.memory_space<vmem>>, vector<1x512x512xf32>,
    }
    %c4_i32_5 = arith.constant 4 : i32
    %c0_i32_6 = arith.constant 0 : i32
    %6 = arith.cmpi eq, %arg1, %c0_i32_6 : i32
    %7 = arith.extui %6 : i1 to i32
    %c0_i32_7 = arith.constant 0 : i32
    %8 = arith.cmpi ne, %7, %c0_i32_7 : i32
    scf.if %8 {
      %c0_8 = arith.constant 0 : index
      %c0_9 = arith.constant 0 : index
      %c0_10 = arith.constant 0 : index
      %9 = vector.load %arg6[%c0_8, %c0_9, %c0_10] : memref<2x512x512xf32, #tpu.memory_space<vmem>>, vector<2x512x512xf32>
      %cst = arith.constant dense<0.000000e+00> : vector<2x512xf32>
      %10 = vector.multi_reduction <add>, %9, %cst [2] : vector<2x512x512xf32> to vector<2x512xf32>
      %11 = vector.shape_cast %10 : vector<2x512xf32> to vector<1x2x512xf32>
      %c0_11 = arith.constant 0 : index
      %c0_12 = arith.constant 0 : index
      %c0_13 = arith.constant 0 : index
      %12 = vector.load %arg5[%c0_11, %c0_12, %c0_13] : memref<1x2x512xf32, #tpu.memory_space<vmem>>, vector<1x2x512xf32>
      tpu.vector_store %arg5[%c0_11, %c0_12, %c0_13], %11 {strides = array<i32>} : memref<1x2x512xf32, #tpu.memory_space<vmem>>, vector<1x2x512xf32>,
    } else {
    }
    return
  }
  func.func @transform_0(%arg0: i32, %arg1: i32) -> (i32, i32, i32) {
    %c1_i32 = arith.constant 1 : i32
    %0 = arith.muli %arg0, %c1_i32 : i32
    %1 = arith.addi %0, %arg1 : i32
    %c0_i32 = arith.constant 0 : i32
    %c0_i32_0 = arith.constant 0 : i32
    %c0_i32_1 = arith.constant 0 : i32
    return %c0_i32, %c0_i32_0, %1 : i32, i32, i32
  }
  func.func @transform_1(%arg0: i32, %arg1: i32) -> (i32, i32) {
    %c0_i32 = arith.constant 0 : i32
    %c0_i32_0 = arith.constant 0 : i32
    %c0_i32_1 = arith.constant 0 : i32
    return %c0_i32, %c0_i32_0 : i32, i32
  }
  func.func @transform_2(%arg0: i32, %arg1: i32) -> (i32, i32) {
    %c0_i32 = arith.constant 0 : i32
    %c0_i32_0 = arith.constant 0 : i32
    %c0_i32_1 = arith.constant 0 : i32
    return %c0_i32, %c0_i32_0 : i32, i32
  }
  func.func @transform_3(%arg0: i32, %arg1: i32) -> (i32, i32, i32) {
    %c0_i32 = arith.constant 0 : i32
    %c0_i32_0 = arith.constant 0 : i32
    %c0_i32_1 = arith.constant 0 : i32
    return %arg0, %c0_i32, %c0_i32_0 : i32, i32, i32
  }
}

</mosaic_0001>

<llo_original>
// kernel: tpu_custom_call.1
$region0: #{tpu_custom_call.1}
  #allocation0 [shape = 'u32[]', space=smem, size = 0x4, offset = 0x4, fixed_abs, tag = 'smem constant byte address 0x4 - core index']
  #allocation1 [shape = 'u32[72,128]{1,0:T(1,128)}', space=vmem, size = 0x9000, scoped, tag = 'internal scratch']
  #allocation2 [shape = 'f32[2,512,512]{2,1,0:T(8,128)}', space=vmem, size = 0x200000, scoped, tag = 'scratch operand']
  %s0 = inlined_call_operand.vmem [shape: bf16[2,4,4096], index: 0, kind: input, shape index: {}]
  %s1 = inlined_call_operand.vmem [shape: bf16[512,4], index: 1, kind: input, shape index: {}]
  %s2 = inlined_call_operand.vmem [shape: f32[512,1], index: 2, kind: input, shape index: {}]
  %s3 = inlined_call_operand.hbm [shape: f32[2,2,512], index: 3, kind: output, shape index: {}]
  %s4 = sld [smem:[#allocation0]]
  $region83: #{tpu_custom_call.1} parent=0
    _
  %s6 = ssub.s32 1, %s4
  %s7 = scalar_select 0, %s6, %s4
  $region1: #{tpu_custom_call.1} parent=0
    #allocation3 [shape = 'u8[65536]{0}', space=vmem, size = 0x10000, scoped, tag = 'input window, operand 0']
    #allocation4 [shape = 'u8[8192]{0}', space=vmem, size = 0x2000, scoped, tag = 'output window, operand 0']
    #allocation5 [shape = 's32[2]{0}', space=sflag, size = 0x8, scoped, tag = 'scoped memory for tpu_custom_call.1']
    %8 = vsyncpa [#allocation5], 0
    %s9 = scalar_lea.sflag [#allocation5], 1
    %10 = vsyncpa %s9, 0
    loop: start=0, step=1, limit=4
    $region2: #{tpu_custom_call.1} parent=1 // loop_pre_header
      _
    $region3: #{tpu_custom_call.1} parent=1 // loop_header
      %s12 = sphi 0, %s16
      %p13 = scmp.ge.s32.totalorder %s12, 4
      %s19 = sphi 0, %s31
      %s20 = sphi 0, %s27
      %s21 = sphi 0, %s19
      %s22 = sphi 0, %s20
      %s23 = sphi 0, %s21
      %s24 = sphi 0, %s22
      %s36 = sphi 0, %s38
      %s39 = sphi 0, %s36
      %s40 = sphi 0, %s39
      %s56 = sphi 0, %s40
      %s60 = sphi 0, %s60
      %s62 = sphi 0, %s60
      %s63 = sphi 0, %s62
      %s77 = sphi 0, %s63
      %s81 = sphi 0, %s81
      %s83 = sphi 0, %s81
      %s84 = sphi 0, %s83
      %s98 = sphi 0, %s84
      %s104 = sphi 0, %s106
      %s107 = sphi 0, %s104
      %s108 = sphi 0, %s107
      %s124 = sphi 0, %s108
    $region4: #{tpu_custom_call.1} parent=1 // loop_header_branch
      %15 = sbr.rel (%p13) target = $region8
    $region5: #{tpu_custom_call.1} parent=1 // loop_body
      %s17 = ssub.s32 %s12, 1
      %s18 = ssub.s32 %s12, 2
      %s25 = sadd.s32 1, %s20
      %p26 = scmp.ge.s32.totalorder %s25, 1
      %s27 = scalar_select %p26, 0, %s25
      %s28 = sadd.s32 1, %s19
      %s29 = scalar_select %p26, %s28, %s19
      %p30 = scmp.ge.s32.totalorder %s29, 2
      %s31 = scalar_select %p30, 0, %s29
      %s32 = sadd.s32 %s19, %s20
      %s33 = sadd.s32 %s31, %s27
      %s34 = ssub.s32 %s32, %s33
      %p35 = scmp.eq.s32.totalorder %s34, 0
      %s37 = sadd.s32 %s36, 1
      %s38 = scalar_select %p35, %s36, %s37
      %p41 = pneg %p35
      %p42 = scmp.eq.s32.totalorder %s12, 1
      %p43 = por %p41, %p42
      %p44 = scmp.ne.s32.totalorder %s36, %s39
      %p45 = scmp.eq.s32.totalorder %s12, 0
      %p46 = por %p44, %p45
      %p47 = scmp.ne.s32.totalorder %s36, %s39
      %p48 = scmp.eq.s32.totalorder %s17, 1
      %p49 = por %p47, %p48
      %p50 = scmp.ne.s32.totalorder %s39, %s40
      %p51 = scmp.eq.s32.totalorder %s17, 0
      %p52 = por %p50, %p51
      %p53 = scmp.ne.s32.totalorder %s39, %s40
      %p54 = scmp.eq.s32.totalorder %s18, 1
      %p55 = por %p53, %p54
      %p57 = scmp.ne.s32.totalorder %s40, %s56
      %p58 = scmp.eq.s32.totalorder %s18, 0
      %p59 = por %p57, %p58
      %s61 = sadd.s32 %s60, 1
      %p64 = scmp.eq.s32.totalorder %s12, 1
      %p65 = scmp.ne.s32.totalorder %s60, %s62
      %p66 = scmp.eq.s32.totalorder %s12, 0
      %p67 = por %p65, %p66
      %p68 = scmp.ne.s32.totalorder %s60, %s62
      %p69 = scmp.eq.s32.totalorder %s17, 1
      %p70 = por %p68, %p69
      %p71 = scmp.ne.s32.totalorder %s62, %s63
      %p72 = scmp.eq.s32.totalorder %s17, 0
      %p73 = por %p71, %p72
      %p74 = scmp.ne.s32.totalorder %s62, %s63
      %p75 = scmp.eq.s32.totalorder %s18, 1
      %p76 = por %p74, %p75
      %p78 = scmp.ne.s32.totalorder %s63, %s77
      %p79 = scmp.eq.s32.totalorder %s18, 0
      %p80 = por %p78, %p79
      %s82 = sadd.s32 %s81, 1
      %p85 = scmp.eq.s32.totalorder %s12, 1
      %p86 = scmp.ne.s32.totalorder %s81, %s83
      %p87 = scmp.eq.s32.totalorder %s12, 0
      %p88 = por %p86, %p87
      %p89 = scmp.ne.s32.totalorder %s81, %s83
      %p90 = scmp.eq.s32.totalorder %s17, 1
      %p91 = por %p89, %p90
      %p92 = scmp.ne.s32.totalorder %s83, %s84
      %p93 = scmp.eq.s32.totalorder %s17, 0
      %p94 = por %p92, %p93
      %p95 = scmp.ne.s32.totalorder %s83, %s84
      %p96 = scmp.eq.s32.totalorder %s18, 1
      %p97 = por %p95, %p96
      %p99 = scmp.ne.s32.totalorder %s84, %s98
      %p100 = scmp.eq.s32.totalorder %s18, 0
      %p101 = por %p99, %p100
      %s102 = ssub.s32 %s19, %s31
      %p103 = scmp.eq.s32.totalorder %s102, 0
      %s105 = sadd.s32 %s104, 1
      %s106 = scalar_select %p103, %s104, %s105
      %p109 = pneg %p103
      %p110 = scmp.eq.s32.totalorder %s12, 1
      %p111 = por %p109, %p110
      %p112 = scmp.ne.s32.totalorder %s104, %s107
      %p113 = scmp.eq.s32.totalorder %s12, 0
      %p114 = por %p112, %p113
      %p115 = scmp.ne.s32.totalorder %s104, %s107
      %p116 = scmp.eq.s32.totalorder %s17, 1
      %p117 = por %p115, %p116
      %p118 = scmp.ne.s32.totalorder %s107, %s108
      %p119 = scmp.eq.s32.totalorder %s17, 0
      %p120 = por %p118, %p119
      %p121 = scmp.ne.s32.totalorder %s107, %s108
      %p122 = scmp.eq.s32.totalorder %s18, 1
      %p123 = por %p121, %p122
      %p125 = scmp.ne.s32.totalorder %s108, %s124
      %p126 = scmp.eq.s32.totalorder %s18, 0
      %p127 = por %p125, %p126
      %p128 = scmp.le.s32.totalorder 1, %s12
      %p129 = scmp.lt.s32.totalorder %s12, 3
      %p130 = pnand %p128, %p129
      %p131 = pneg %p130
      // Predicated region
      $region9: #{tpu_custom_call.1} parent=5 // pred_check
        _
      $region10: #{tpu_custom_call.1} parent=5 // pred_check_branch
        %133 = sbr.rel (%p130) target = $region12
      $region11: #{tpu_custom_call.1} parent=5 // pred_region
        %s134 = ssub.s32 %s12, 1
        // Predicated region
        $region13: #{tpu_custom_call.1} parent=11 // pred_check
          %p135 = pneg %p73
        $region14: #{tpu_custom_call.1} parent=11 // pred_check_branch
          %137 = sbr.rel (%p135) target = $region16
        $region15: #{tpu_custom_call.1} parent=11 // pred_region
          _
        $region16: #{tpu_custom_call.1} parent=11 // pred_fallthru
          _
        // Predicated region
        $region17: #{tpu_custom_call.1} parent=11 // pred_check
          %p138 = pneg %p94
        $region18: #{tpu_custom_call.1} parent=11 // pred_check_branch
          %140 = sbr.rel (%p138) target = $region20
        $region19: #{tpu_custom_call.1} parent=11 // pred_region
          _
        $region20: #{tpu_custom_call.1} parent=11 // pred_fallthru
          _
      $region12: #{tpu_custom_call.1} parent=5 // pred_fallthru
        _
      %p141 = scmp.lt.s32.totalorder %s12, 2
      // Predicated region
      $region21: #{tpu_custom_call.1} parent=5 // pred_check
        %p142 = pneg %p141
      $region22: #{tpu_custom_call.1} parent=5 // pred_check_branch
        %144 = sbr.rel (%p142) target = $region24
      $region23: #{tpu_custom_call.1} parent=5 // pred_region
        // Predicated region
        $region25: #{tpu_custom_call.1} parent=23 // pred_check
          %p145 = pneg %p46
        $region26: #{tpu_custom_call.1} parent=23 // pred_check_branch
          %147 = sbr.rel (%p145) target = $region28
        $region27: #{tpu_custom_call.1} parent=23 // pred_region
          %s148 = sand.u32 %s36, 1
          %s149 = sand.u32 %s36, 1
          %s150 = smul.addr %s149, 64
          %s151 = scalar_lea.vmem [#allocation3], %s150
          %s152 = sadd.s32 %s19, %s20
          %s153 = smul.u32 16, %s152
          %s154 = smul.addr %s153, 2
          %s155 = scalar_lea.vmem %s0, %s154
          // Predicated region
          $region29: #{tpu_custom_call.1} parent=27 // pred_check
            _
          $region30: #{tpu_custom_call.1} parent=27 // pred_check_branch
            %157 = sbr.rel (0) target = $region32
          $region31: #{tpu_custom_call.1} parent=27 // pred_region
            // Predicated region
            $region33: #{tpu_custom_call.1} parent=31 // pred_check
              _
            $region34: #{tpu_custom_call.1} parent=31 // pred_check_branch
              %159 = sbr.rel (0) target = $region36
            $region35: #{tpu_custom_call.1} parent=31 // pred_region
              loop: start=0, step=1, limit=1
              $region37: #{tpu_custom_call.1} parent=35 // loop_pre_header
                _
              $region38: #{tpu_custom_call.1} parent=35 // loop_header
                %s161 = sphi 0, %s165
                %p162 = scmp.ge.s32.totalorder %s161, 1
                %s166 = sphi %s155, %s155
                %s167 = sphi %s151, %s151
              $region39: #{tpu_custom_call.1} parent=35 // loop_header_branch
                %164 = sbr.rel (%p162) target = $region43
              $region40: #{tpu_custom_call.1} parent=35 // loop_body
                %v168 = vld [vmem:[%s166] sm:$0xff]
                %169 = vst [vmem:[%s167] sm:$0xff] %v168
                %v170 = vld [vmem:[%s166 + $0x8] sm:$0xff]
                %171 = vst [vmem:[%s167 + $0x8] sm:$0xff] %v170
                %v172 = vld [vmem:[%s166 + $0x10] sm:$0xff]
                %173 = vst [vmem:[%s167 + $0x10] sm:$0xff] %v172
                %v174 = vld [vmem:[%s166 + $0x18] sm:$0xff]
                %175 = vst [vmem:[%s167 + $0x18] sm:$0xff] %v174
                %v176 = vld [vmem:[%s166 + $0x40] sm:$0xff]
                %177 = vst [vmem:[%s167 + $0x20] sm:$0xff] %v176
                %v178 = vld [vmem:[%s166 + $0x48] sm:$0xff]
                %179 = vst [vmem:[%s167 + $0x28] sm:$0xff] %v178
                %v180 = vld [vmem:[%s166 + $0x50] sm:$0xff]
                %181 = vst [vmem:[%s167 + $0x30] sm:$0xff] %v180
                %v182 = vld [vmem:[%s166 + $0x58] sm:$0xff]
                %183 = vst [vmem:[%s167 + $0x38] sm:$0xff] %v182
              $region41: #{tpu_custom_call.1} parent=35 // loop_footer
                %s165 = sadd.s32 1, %s161
              $region42: #{tpu_custom_call.1} parent=35 // loop_footer_branch
                %160 = sbr.rel target = $region38
              $region43: #{tpu_custom_call.1} parent=35 // loop_exit
                _
            $region36: #{tpu_custom_call.1} parent=31 // pred_fallthru
              _
            // Predicated region
            $region44: #{tpu_custom_call.1} parent=31 // pred_check
              _
            $region45: #{tpu_custom_call.1} parent=31 // pred_check_branch
              %185 = sbr.rel target = $region47
            $region46: #{tpu_custom_call.1} parent=31 // pred_region
              _
            $region47: #{tpu_custom_call.1} parent=31 // pred_fallthru
              _
          $region32: #{tpu_custom_call.1} parent=27 // pred_fallthru
            _
          %186 = vnop
        $region28: #{tpu_custom_call.1} parent=23 // pred_fallthru
          _
      $region24: #{tpu_custom_call.1} parent=5 // pred_fallthru
        _
      %p187 = scmp.le.s32.totalorder 1, %s12
      %p188 = scmp.lt.s32.totalorder %s12, 3
      %p189 = pnand %p187, %p188
      %p190 = pneg %p189
      // Predicated region
      $region48: #{tpu_custom_call.1} parent=5 // pred_check
        _
      $region49: #{tpu_custom_call.1} parent=5 // pred_check_branch
        %192 = sbr.rel (%p189) target = $region51
      $region50: #{tpu_custom_call.1} parent=5 // pred_region
        %s193 = ssub.s32 %s12, 1
        %s194 = sand.u32 %s39, 1
        %s195 = sand.u32 %s39, 1
        %s196 = smul.addr %s195, 64
        %s197 = scalar_lea.vmem [#allocation3], %s196
        // Predicated region
        $region52: #{tpu_custom_call.1} parent=50 // pred_check
          %p198 = pneg %p52
        $region53: #{tpu_custom_call.1} parent=50 // pred_check_branch
          %200 = sbr.rel (%p198) target = $region55
        $region54: #{tpu_custom_call.1} parent=50 // pred_region
          _
        $region55: #{tpu_custom_call.1} parent=50 // pred_fallthru
          _
        %s201 = sand.u32 %s39, 1
        %s202 = sand.u32 %s39, 1
        %s203 = smul.addr %s202, 64
        %s204 = scalar_lea.vmem [#allocation3], %s203
        %p205 = pneg %p52
        %p206 = pneg %p49
        %p207 = pneg %p73
        %p208 = pneg %p70
        %p209 = pneg %p94
        %p210 = pneg %p91
        %p211 = pneg %p120
        %p212 = pneg %p117
        %s213 = sand.u32 %s107, 1
        %s214 = scalar_lea.sflag [#allocation5], %s213
        %s215 = sand.u32 %s107, 1
        %s216 = smul.addr %s215, 8
        %s217 = scalar_lea.vmem [#allocation4], %s216
        %s218 = sadd.s32 %s21, %s22
        %s219 = smul.u32 16, %s218
        %p221 = scmp.eq.s32.totalorder %s22, 0
        // Predicated region
        $region56: #{tpu_custom_call.1} parent=50 // pred_check
          %p222 = pneg %p221
        $region57: #{tpu_custom_call.1} parent=50 // pred_check_branch
          %224 = sbr.rel (%p222) target = $region59
        $region58: #{tpu_custom_call.1} parent=50 // pred_region
          %225 = vst [vmem:[#allocation2] sm:$0xff] 0.0
          %226 = vst [vmem:[#allocation2 + $0x8] sm:$0xff] 0.0
          %227 = vst [vmem:[#allocation2 + $0x10] sm:$0xff] 0.0
          %228 = vst [vmem:[#allocation2 + $0x18] sm:$0xff] 0.0
          %229 = vst [vmem:[#allocation2 + $0x20] sm:$0xff] 0.0
          %230 = vst [vmem:[#allocation2 + $0x28] sm:$0xff] 0.0
          %231 = vst [vmem:[#allocation2 + $0x30] sm:$0xff] 0.0
          %232 = vst [vmem:[#allocation2 + $0x38] sm:$0xff] 0.0
          %233 = vst [vmem:[#allocation2 + $0x40] sm:$0xff] 0.0
          %234 = vst [vmem:[#allocation2 + $0x48] sm:$0xff] 0.0
          %235 = vst [vmem:[#allocation2 + $0x50] sm:$0xff] 0.0
          %236 = vst [vmem:[#allocation2 + $0x58] sm:$0xff] 0.0
          %237 = vst [vmem:[#allocation2 + $0x60] sm:$0xff] 0.0
          %238 = vst [vmem:[#allocation2 + $0x68] sm:$0xff] 0.0
          %239 = vst [vmem:[#allocation2 + $0x70] sm:$0xff] 0.0
          %240 = vst [vmem:[#allocation2 + $0x78] sm:$0xff] 0.0
          %241 = vst [vmem:[#allocation2 + $0x80] sm:$0xff] 0.0
          %242 = vst [vmem:[#allocation2 + $0x88] sm:$0xff] 0.0
          %243 = vst [vmem:[#allocation2 + $0x90] sm:$0xff] 0.0
          %244 = vst [vmem:[#allocation2 + $0x98] sm:$0xff] 0.0
          %245 = vst [vmem:[#allocation2 + $0xa0] sm:$0xff] 0.0
          %246 = vst [vmem:[#allocation2 + $0xa8] sm:$0xff] 0.0
          %247 = vst [vmem:[#allocation2 + $0xb0] sm:$0xff] 0.0
          %248 = vst [vmem:[#allocation2 + $0xb8] sm:$0xff] 0.0
          %249 = vst [vmem:[#allocation2 + $0xc0] sm:$0xff] 0.0
          %250 = vst [vmem:[#allocation2 + $0xc8] sm:$0xff] 0.0
          %251 = vst [vmem:[#allocation2 + $0xd0] sm:$0xff] 0.0
          %252 = vst [vmem:[#allocation2 + $0xd8] sm:$0xff] 0.0
          %253 = vst [vmem:[#allocation2 + $0xe0] sm:$0xff] 0.0
          %254 = vst [vmem:[#allocation2 + $0xe8] sm:$0xff] 0.0
          %255 = vst [vmem:[#allocation2 + $0xf0] sm:$0xff] 0.0
          %256 = vst [vmem:[#allocation2 + $0xf8] sm:$0xff] 0.0
          %257 = vst [vmem:[#allocation2 + $0x100] sm:$0xff] 0.0
          %258 = vst [vmem:[#allocation2 + $0x108] sm:$0xff] 0.0
          %259 = vst [vmem:[#allocation2 + $0x110] sm:$0xff] 0.0
          %260 = vst [vmem:[#allocation2 + $0x118] sm:$0xff] 0.0
          %261 = vst [vmem:[#allocation2 + $0x120] sm:$0xff] 0.0
          %262 = vst [vmem:[#allocation2 + $0x128] sm:$0xff] 0.0
          %263 = vst [vmem:[#allocation2 + $0x130] sm:$0xff] 0.0
          %264 = vst [vmem:[#allocation2 + $0x138] sm:$0xff] 0.0
          %265 = vst [vmem:[#allocation2 + $0x140] sm:$0xff] 0.0
          %266 = vst [vmem:[#allocation2 + $0x148] sm:$0xff] 0.0
          %267 = vst [vmem:[#allocation2 + $0x150] sm:$0xff] 0.0
          %268 = vst [vmem:[#allocation2 + $0x158] sm:$0xff] 0.0
          %269 = vst [vmem:[#allocation2 + $0x160] sm:$0xff] 0.0
          %270 = vst [vmem:[#allocation2 + $0x168] sm:$0xff] 0.0
          %271 = vst [vmem:[#allocation2 + $0x170] sm:$0xff] 0.0
          %272 = vst [vmem:[#allocation2 + $0x178] sm:$0xff] 0.0
          %273 = vst [vmem:[#allocation2 + $0x180] sm:$0xff] 0.0
          %274 = vst [vmem:[#allocation2 + $0x188] sm:$0xff] 0.0
          %275 = vst [vmem:[#allocation2 + $0x190] sm:$0xff] 0.0
          %276 = vst [vmem:[#allocation2 + $0x198] sm:$0xff] 0.0
          %277 = vst [vmem:[#allocation2 + $0x1a0] sm:$0xff] 0.0
          %278 = vst [vmem:[#allocation2 + $0x1a8] sm:$0xff] 0.0
          %279 = vst [vmem:[#allocation2 + $0x1b0] sm:$0xff] 0.0
          %280 = vst [vmem:[#allocation2 + $0x1b8] sm:$0xff] 0.0
          %281 = vst [vmem:[#allocation2 + $0x1c0] sm:$0xff] 0.0
          %282 = vst [vmem:[#allocation2 + $0x1c8] sm:$0xff] 0.0
          %283 = vst [vmem:[#allocation2 + $0x1d0] sm:$0xff] 0.0
          %284 = vst [vmem:[#allocation2 + $0x1d8] sm:$0xff] 0.0
          %285 = vst [vmem:[#allocation2 + $0x1e0] sm:$0xff] 0.0
          %286 = vst [vmem:[#allocation2 + $0x1e8] sm:$0xff] 0.0
          %287 = vst [vmem:[#allocation2 + $0x1f0] sm:$0xff] 0.0
          %288 = vst [vmem:[#allocation2 + $0x1f8] sm:$0xff] 0.0
          %289 = vst [vmem:[#allocation2 + $0x200] sm:$0xff] 0.0
          %290 = vst [vmem:[#allocation2 + $0x208] sm:$0xff] 0.0
          %291 = vst [vmem:[#allocation2 + $0x210] sm:$0xff] 0.0
          %292 = vst [vmem:[#allocation2 + $0x218] sm:$0xff] 0.0
          %293 = vst [vmem:[#allocation2 + $0x220] sm:$0xff] 0.0
          %294 = vst [vmem:[#allocation2 + $0x228] sm:$0xff] 0.0
          %295 = vst [vmem:[#allocation2 + $0x230] sm:$0xff] 0.0
          %296 = vst [vmem:[#allocation2 + $0x238] sm:$0xff] 0.0
          %297 = vst [vmem:[#allocation2 + $0x240] sm:$0xff] 0.0
          %298 = vst [vmem:[#allocation2 + $0x248] sm:$0xff] 0.0
          %299 = vst [vmem:[#allocation2 + $0x250] sm:$0xff] 0.0
          %300 = vst [vmem:[#allocation2 + $0x258] sm:$0xff] 0.0
          %301 = vst [vmem:[#allocation2 + $0x260] sm:$0xff] 0.0
          %302 = vst [vmem:[#allocation2 + $0x268] sm:$0xff] 0.0
          %303 = vst [vmem:[#allocation2 + $0x270] sm:$0xff] 0.0
          %304 = vst [vmem:[#allocation2 + $0x278] sm:$0xff] 0.0
          %305 = vst [vmem:[#allocation2 + $0x280] sm:$0xff] 0.0
          %306 = vst [vmem:[#allocation2 + $0x288] sm:$0xff] 0.0
          %307 = vst [vmem:[#allocation2 + $0x290] sm:$0xff] 0.0
          %308 = vst [vmem:[#allocation2 + $0x298] sm:$0xff] 0.0
          %309 = vst [vmem:[#allocation2 + $0x2a0] sm:$0xff] 0.0
          %310 = vst [vmem:[#allocation2 + $0x2a8] sm:$0xff] 0.0
          %311 = vst [vmem:[#allocation2 + $0x2b0] sm:$0xff] 0.0
          %312 = vst [vmem:[#allocation2 + $0x2b8] sm:$0xff] 0.0
          %313 = vst [vmem:[#allocation2 + $0x2c0] sm:$0xff] 0.0
          %314 = vst [vmem:[#allocation2 + $0x2c8] sm:$0xff] 0.0
          %315 = vst [vmem:[#allocation2 + $0x2d0] sm:$0xff] 0.0
          %316 = vst [vmem:[#allocation2 + $0x2d8] sm:$0xff] 0.0
          %317 = vst [vmem:[#allocation2 + $0x2e0] sm:$0xff] 0.0
          %318 = vst [vmem:[#allocation2 + $0x2e8] sm:$0xff] 0.0
          %319 = vst [vmem:[#allocation2 + $0x2f0] sm:$0xff] 0.0
          %320 = vst [vmem:[#allocation2 + $0x2f8] sm:$0xff] 0.0
          %321 = vst [vmem:[#allocation2 + $0x300] sm:$0xff] 0.0
          %322 = vst [vmem:[#allocation2 + $0x308] sm:$0xff] 0.0
          %323 = vst [vmem:[#allocation2 + $0x310] sm:$0xff] 0.0
          %324 = vst [vmem:[#allocation2 + $0x318] sm:$0xff] 0.0
          %325 = vst [vmem:[#allocation2 + $0x320] sm:$0xff] 0.0
          %326 = vst [vmem:[#allocation2 + $0x328] sm:$0xff] 0.0
          %327 = vst [vmem:[#allocation2 + $0x330] sm:$0xff] 0.0
          %328 = vst [vmem:[#allocation2 + $0x338] sm:$0xff] 0.0
          %329 = vst [vmem:[#allocation2 + $0x340] sm:$0xff] 0.0
          %330 = vst [vmem:[#allocation2 + $0x348] sm:$0xff] 0.0
          %331 = vst [vmem:[#allocation2 + $0x350] sm:$0xff] 0.0
          %332 = vst [vmem:[#allocation2 + $0x358] sm:$0xff] 0.0
          %333 = vst [vmem:[#allocation2 + $0x360] sm:$0xff] 0.0
          %334 = vst [vmem:[#allocation2 + $0x368] sm:$0xff] 0.0
          %335 = vst [vmem:[#allocation2 + $0x370] sm:$0xff] 0.0
          %336 = vst [vmem:[#allocation2 + $0x378] sm:$0xff] 0.0
          %337 = vst [vmem:[#allocation2 + $0x380] sm:$0xff] 0.0
          %338 = vst [vmem:[#allocation2 + $0x388] sm:$0xff] 0.0
          %339 = vst [vmem:[#allocation2 + $0x390] sm:$0xff] 0.0
          %340 = vst [vmem:[#allocation2 + $0x398] sm:$0xff] 0.0
          %341 = vst [vmem:[#allocation2 + $0x3a0] sm:$0xff] 0.0
          %342 = vst [vmem:[#allocation2 + $0x3a8] sm:$0xff] 0.0
          %343 = vst [vmem:[#allocation2 + $0x3b0] sm:$0xff] 0.0
          %344 = vst [vmem:[#allocation2 + $0x3b8] sm:$0xff] 0.0
          %345 = vst [vmem:[#allocation2 + $0x3c0] sm:$0xff] 0.0
          %346 = vst [vmem:[#allocation2 + $0x3c8] sm:$0xff] 0.0
          %347 = vst [vmem:[#allocation2 + $0x3d0] sm:$0xff] 0.0
          %348 = vst [vmem:[#allocation2 + $0x3d8] sm:$0xff] 0.0
          %349 = vst [vmem:[#allocation2 + $0x3e0] sm:$0xff] 0.0
          %350 = vst [vmem:[#allocation2 + $0x3e8] sm:$0xff] 0.0
          %351 = vst [vmem:[#allocation2 + $0x3f0] sm:$0xff] 0.0
          %352 = vst [vmem:[#allocation2 + $0x3f8] sm:$0xff] 0.0
          %353 = vst [vmem:[#allocation2 + $0x400] sm:$0xff] 0.0
          %354 = vst [vmem:[#allocation2 + $0x408] sm:$0xff] 0.0
          %355 = vst [vmem:[#allocation2 + $0x410] sm:$0xff] 0.0
          %356 = vst [vmem:[#allocation2 + $0x418] sm:$0xff] 0.0
          %357 = vst [vmem:[#allocation2 + $0x420] sm:$0xff] 0.0
          %358 = vst [vmem:[#allocation2 + $0x428] sm:$0xff] 0.0
          %359 = vst [vmem:[#allocation2 + $0x430] sm:$0xff] 0.0
          %360 = vst [vmem:[#allocation2 + $0x438] sm:$0xff] 0.0
          %361 = vst [vmem:[#allocation2 + $0x440] sm:$0xff] 0.0
          %362 = vst [vmem:[#allocation2 + $0x448] sm:$0xff] 0.0
          %363 = vst [vmem:[#allocation2 + $0x450] sm:$0xff] 0.0
          %364 = vst [vmem:[#allocation2 + $0x458] sm:$0xff] 0.0
          %365 = vst [vmem:[#allocation2 + $0x460] sm:$0xff] 0.0
          %366 = vst [vmem:[#allocation2 + $0x468] sm:$0xff] 0.0
          %367 = vst [vmem:[#allocation2 + $0x470] sm:$0xff] 0.0
          %368 = vst [vmem:[#allocation2 + $0x478] sm:$0xff] 0.0
          %369 = vst [vmem:[#allocation2 + $0x480] sm:$0xff] 0.0
          %370 = vst [vmem:[#allocation2 + $0x488] sm:$0xff] 0.0
          %371 = vst [vmem:[#allocation2 + $0x490] sm:$0xff] 0.0
          %372 = vst [vmem:[#allocation2 + $0x498] sm:$0xff] 0.0
          %373 = vst [vmem:[#allocation2 + $0x4a0] sm:$0xff] 0.0
          %374 = vst [vmem:[#allocation2 + $0x4a8] sm:$0xff] 0.0
          %375 = vst [vmem:[#allocation2 + $0x4b0] sm:$0xff] 0.0
          %376 = vst [vmem:[#allocation2 + $0x4b8] sm:$0xff] 0.0
          %377 = vst [vmem:[#allocation2 + $0x4c0] sm:$0xff] 0.0
          %378 = vst [vmem:[#allocation2 + $0x4c8] sm:$0xff] 0.0
          %379 = vst [vmem:[#allocation2 + $0x4d0] sm:$0xff] 0.0
          %380 = vst [vmem:[#allocation2 + $0x4d8] sm:$0xff] 0.0
          %381 = vst [vmem:[#allocation2 + $0x4e0] sm:$0xff] 0.0
          %382 = vst [vmem:[#allocation2 + $0x4e8] sm:$0xff] 0.0
          %383 = vst [vmem:[#allocation2 + $0x4f0] sm:$0xff] 0.0
          %384 = vst [vmem:[#allocation2 + $0x4f8] sm:$0xff] 0.0
          %385 = vst [vmem:[#allocation2 + $0x500] sm:$0xff] 0.0
          %386 = vst [vmem:[#allocation2 + $0x508] sm:$0xff] 0.0
          %387 = vst [vmem:[#allocation2 + $0x510] sm:$0xff] 0.0
          %388 = vst [vmem:[#allocation2 + $0x518] sm:$0xff] 0.0
          %389 = vst [vmem:[#allocation2 + $0x520] sm:$0xff] 0.0
          %390 = vst [vmem:[#allocation2 + $0x528] sm:$0xff] 0.0
          %391 = vst [vmem:[#allocation2 + $0x530] sm:$0xff] 0.0
          %392 = vst [vmem:[#allocation2 + $0x538] sm:$0xff] 0.0
          %393 = vst [vmem:[#allocation2 + $0x540] sm:$0xff] 0.0
          %394 = vst [vmem:[#allocation2 + $0x548] sm:$0xff] 0.0
          %395 = vst [vmem:[#allocation2 + $0x550] sm:$0xff] 0.0
          %396 = vst [vmem:[#allocation2 + $0x558] sm:$0xff] 0.0
          %397 = vst [vmem:[#allocation2 + $0x560] sm:$0xff] 0.0
          %398 = vst [vmem:[#allocation2 + $0x568] sm:$0xff] 0.0
          %399 = vst [vmem:[#allocation2 + $0x570] sm:$0xff] 0.0
          %400 = vst [vmem:[#allocation2 + $0x578] sm:$0xff] 0.0
          %401 = vst [vmem:[#allocation2 + $0x580] sm:$0xff] 0.0
          %402 = vst [vmem:[#allocation2 + $0x588] sm:$0xff] 0.0
          %403 = vst [vmem:[#allocation2 + $0x590] sm:$0xff] 0.0
          %404 = vst [vmem:[#allocation2 + $0x598] sm:$0xff] 0.0
          %405 = vst [vmem:[#allocation2 + $0x5a0] sm:$0xff] 0.0
          %406 = vst [vmem:[#allocation2 + $0x5a8] sm:$0xff] 0.0
          %407 = vst [vmem:[#allocation2 + $0x5b0] sm:$0xff] 0.0
          %408 = vst [vmem:[#allocation2 + $0x5b8] sm:$0xff] 0.0
          %409 = vst [vmem:[#allocation2 + $0x5c0] sm:$0xff] 0.0
          %410 = vst [vmem:[#allocation2 + $0x5c8] sm:$0xff] 0.0
          %411 = vst [vmem:[#allocation2 + $0x5d0] sm:$0xff] 0.0
          %412 = vst [vmem:[#allocation2 + $0x5d8] sm:$0xff] 0.0
          %413 = vst [vmem:[#allocation2 + $0x5e0] sm:$0xff] 0.0
          %414 = vst [vmem:[#allocation2 + $0x5e8] sm:$0xff] 0.0
          %415 = vst [vmem:[#allocation2 + $0x5f0] sm:$0xff] 0.0
          %416 = vst [vmem:[#allocation2 + $0x5f8] sm:$0xff] 0.0
          %417 = vst [vmem:[#allocation2 + $0x600] sm:$0xff] 0.0
          %418 = vst [vmem:[#allocation2 + $0x608] sm:$0xff] 0.0
          %419 = vst [vmem:[#allocation2 + $0x610] sm:$0xff] 0.0
          %420 = vst [vmem:[#allocation2 + $0x618] sm:$0xff] 0.0
          %421 = vst [vmem:[#allocation2 + $0x620] sm:$0xff] 0.0
          %422 = vst [vmem:[#allocation2 + $0x628] sm:$0xff] 0.0
          %423 = vst [vmem:[#allocation2 + $0x630] sm:$0xff] 0.0
          %424 = vst [vmem:[#allocation2 + $0x638] sm:$0xff] 0.0
          %425 = vst [vmem:[#allocation2 + $0x640] sm:$0xff] 0.0
          %426 = vst [vmem:[#allocation2 + $0x648] sm:$0xff] 0.0
          %427 = vst [vmem:[#allocation2 + $0x650] sm:$0xff] 0.0
          %428 = vst [vmem:[#allocation2 + $0x658] sm:$0xff] 0.0
          %429 = vst [vmem:[#allocation2 + $0x660] sm:$0xff] 0.0
          %430 = vst [vmem:[#allocation2 + $0x668] sm:$0xff] 0.0
          %431 = vst [vmem:[#allocation2 + $0x670] sm:$0xff] 0.0
          %432 = vst [vmem:[#allocation2 + $0x678] sm:$0xff] 0.0
          %433 = vst [vmem:[#allocation2 + $0x680] sm:$0xff] 0.0
          %434 = vst [vmem:[#allocation2 + $0x688] sm:$0xff] 0.0
          %435 = vst [vmem:[#allocation2 + $0x690] sm:$0xff] 0.0
          %436 = vst [vmem:[#allocation2 + $0x698] sm:$0xff] 0.0
          %437 = vst [vmem:[#allocation2 + $0x6a0] sm:$0xff] 0.0
          %438 = vst [vmem:[#allocation2 + $0x6a8] sm:$0xff] 0.0
          %439 = vst [vmem:[#allocation2 + $0x6b0] sm:$0xff] 0.0
          %440 = vst [vmem:[#allocation2 + $0x6b8] sm:$0xff] 0.0
          %441 = vst [vmem:[#allocation2 + $0x6c0] sm:$0xff] 0.0
          %442 = vst [vmem:[#allocation2 + $0x6c8] sm:$0xff] 0.0
          %443 = vst [vmem:[#allocation2 + $0x6d0] sm:$0xff] 0.0
          %444 = vst [vmem:[#allocation2 + $0x6d8] sm:$0xff] 0.0
          %445 = vst [vmem:[#allocation2 + $0x6e0] sm:$0xff] 0.0
          %446 = vst [vmem:[#allocation2 + $0x6e8] sm:$0xff] 0.0
          %447 = vst [vmem:[#allocation2 + $0x6f0] sm:$0xff] 0.0
          %448 = vst [vmem:[#allocation2 + $0x6f8] sm:$0xff] 0.0
          %449 = vst [vmem:[#allocation2 + $0x700] sm:$0xff] 0.0
          %450 = vst [vmem:[#allocation2 + $0x708] sm:$0xff] 0.0
          %451 = vst [vmem:[#allocation2 + $0x710] sm:$0xff] 0.0
          %452 = vst [vmem:[#allocation2 + $0x718] sm:$0xff] 0.0
          %453 = vst [vmem:[#allocation2 + $0x720] sm:$0xff] 0.0
          %454 = vst [vmem:[#allocation2 + $0x728] sm:$0xff] 0.0
          %455 = vst [vmem:[#allocation2 + $0x730] sm:$0xff] 0.0
          %456 = vst [vmem:[#allocation2 + $0x738] sm:$0xff] 0.0
          %457 = vst [vmem:[#allocation2 + $0x740] sm:$0xff] 0.0
          %458 = vst [vmem:[#allocation2 + $0x748] sm:$0xff] 0.0
          %459 = vst [vmem:[#allocation2 + $0x750] sm:$0xff] 0.0
          %460 = vst [vmem:[#allocation2 + $0x758] sm:$0xff] 0.0
          %461 = vst [vmem:[#allocation2 + $0x760] sm:$0xff] 0.0
          %462 = vst [vmem:[#allocation2 + $0x768] sm:$0xff] 0.0
          %463 = vst [vmem:[#allocation2 + $0x770] sm:$0xff] 0.0
          %464 = vst [vmem:[#allocation2 + $0x778] sm:$0xff] 0.0
          %465 = vst [vmem:[#allocation2 + $0x780] sm:$0xff] 0.0
          %466 = vst [vmem:[#allocation2 + $0x788] sm:$0xff] 0.0
          %467 = vst [vmem:[#allocation2 + $0x790] sm:$0xff] 0.0
          %468 = vst [vmem:[#allocation2 + $0x798] sm:$0xff] 0.0
          %469 = vst [vmem:[#allocation2 + $0x7a0] sm:$0xff] 0.0
          %470 = vst [vmem:[#allocation2 + $0x7a8] sm:$0xff] 0.0
          %471 = vst [vmem:[#allocation2 + $0x7b0] sm:$0xff] 0.0
          %472 = vst [vmem:[#allocation2 + $0x7b8] sm:$0xff] 0.0
          %473 = vst [vmem:[#allocation2 + $0x7c0] sm:$0xff] 0.0
          %474 = vst [vmem:[#allocation2 + $0x7c8] sm:$0xff] 0.0
          %475 = vst [vmem:[#allocation2 + $0x7d0] sm:$0xff] 0.0
          %476 = vst [vmem:[#allocation2 + $0x7d8] sm:$0xff] 0.0
          %477 = vst [vmem:[#allocation2 + $0x7e0] sm:$0xff] 0.0
          %478 = vst [vmem:[#allocation2 + $0x7e8] sm:$0xff] 0.0
          %479 = vst [vmem:[#allocation2 + $0x7f0] sm:$0xff] 0.0
          %480 = vst [vmem:[#allocation2 + $0x7f8] sm:$0xff] 0.0
          %481 = vst [vmem:[#allocation2 + $0x800] sm:$0xff] 0.0
          %482 = vst [vmem:[#allocation2 + $0x808] sm:$0xff] 0.0
          %483 = vst [vmem:[#allocation2 + $0x810] sm:$0xff] 0.0
          %484 = vst [vmem:[#allocation2 + $0x818] sm:$0xff] 0.0
          %485 = vst [vmem:[#allocation2 + $0x820] sm:$0xff] 0.0
          %486 = vst [vmem:[#allocation2 + $0x828] sm:$0xff] 0.0
          %487 = vst [vmem:[#allocation2 + $0x830] sm:$0xff] 0.0
          %488 = vst [vmem:[#allocation2 + $0x838] sm:$0xff] 0.0
          %489 = vst [vmem:[#allocation2 + $0x840] sm:$0xff] 0.0
          %490 = vst [vmem:[#allocation2 + $0x848] sm:$0xff] 0.0
          %491 = vst [vmem:[#allocation2 + $0x850] sm:$0xff] 0.0
          %492 = vst [vmem:[#allocation2 + $0x858] sm:$0xff] 0.0
          %493 = vst [vmem:[#allocation2 + $0x860] sm:$0xff] 0.0
          %494 = vst [vmem:[#allocation2 + $0x868] sm:$0xff] 0.0
          %495 = vst [vmem:[#allocation2 + $0x870] sm:$0xff] 0.0
          %496 = vst [vmem:[#allocation2 + $0x878] sm:$0xff] 0.0
          %497 = vst [vmem:[#allocation2 + $0x880] sm:$0xff] 0.0
          %498 = vst [vmem:[#allocation2 + $0x888] sm:$0xff] 0.0
          %499 = vst [vmem:[#allocation2 + $0x890] sm:$0xff] 0.0
          %500 = vst [vmem:[#allocation2 + $0x898] sm:$0xff] 0.0
          %501 = vst [vmem:[#allocation2 + $0x8a0] sm:$0xff] 0.0
          %502 = vst [vmem:[#allocation2 + $0x8a8] sm:$0xff] 0.0
          %503 = vst [vmem:[#allocation2 + $0x8b0] sm:$0xff] 0.0
          %504 = vst [vmem:[#allocation2 + $0x8b8] sm:$0xff] 0.0
          %505 = vst [vmem:[#allocation2 + $0x8c0] sm:$0xff] 0.0
          %506 = vst [vmem:[#allocation2 + $0x8c8] sm:$0xff] 0.0
          %507 = vst [vmem:[#allocation2 + $0x8d0] sm:$0xff] 0.0
          %508 = vst [vmem:[#allocation2 + $0x8d8] sm:$0xff] 0.0
          %509 = vst [vmem:[#allocation2 + $0x8e0] sm:$0xff] 0.0
          %510 = vst [vmem:[#allocation2 + $0x8e8] sm:$0xff] 0.0
          %511 = vst [vmem:[#allocation2 + $0x8f0] sm:$0xff] 0.0
          %512 = vst [vmem:[#allocation2 + $0x8f8] sm:$0xff] 0.0
          %513 = vst [vmem:[#allocation2 + $0x900] sm:$0xff] 0.0
          %514 = vst [vmem:[#allocation2 + $0x908] sm:$0xff] 0.0
          %515 = vst [vmem:[#allocation2 + $0x910] sm:$0xff] 0.0
          %516 = vst [vmem:[#allocation2 + $0x918] sm:$0xff] 0.0
          %517 = vst [vmem:[#allocation2 + $0x920] sm:$0xff] 0.0
          %518 = vst [vmem:[#allocation2 + $0x928] sm:$0xff] 0.0
          %519 = vst [vmem:[#allocation2 + $0x930] sm:$0xff] 0.0
          %520 = vst [vmem:[#allocation2 + $0x938] sm:$0xff] 0.0
          %521 = vst [vmem:[#allocation2 + $0x940] sm:$0xff] 0.0
          %522 = vst [vmem:[#allocation2 + $0x948] sm:$0xff] 0.0
          %523 = vst [vmem:[#allocation2 + $0x950] sm:$0xff] 0.0
          %524 = vst [vmem:[#allocation2 + $0x958] sm:$0xff] 0.0
          %525 = vst [vmem:[#allocation2 + $0x960] sm:$0xff] 0.0
          %526 = vst [vmem:[#allocation2 + $0x968] sm:$0xff] 0.0
          %527 = vst [vmem:[#allocation2 + $0x970] sm:$0xff] 0.0
          %528 = vst [vmem:[#allocation2 + $0x978] sm:$0xff] 0.0
          %529 = vst [vmem:[#allocation2 + $0x980] sm:$0xff] 0.0
          %530 = vst [vmem:[#allocation2 + $0x988] sm:$0xff] 0.0
          %531 = vst [vmem:[#allocation2 + $0x990] sm:$0xff] 0.0
          %532 = vst [vmem:[#allocation2 + $0x998] sm:$0xff] 0.0
          %533 = vst [vmem:[#allocation2 + $0x9a0] sm:$0xff] 0.0
          %534 = vst [vmem:[#allocation2 + $0x9a8] sm:$0xff] 0.0
          %535 = vst [vmem:[#allocation2 + $0x9b0] sm:$0xff] 0.0
          %536 = vst [vmem:[#allocation2 + $0x9b8] sm:$0xff] 0.0
          %537 = vst [vmem:[#allocation2 + $0x9c0] sm:$0xff] 0.0
          %538 = vst [vmem:[#allocation2 + $0x9c8] sm:$0xff] 0.0
          %539 = vst [vmem:[#allocation2 + $0x9d0] sm:$0xff] 0.0
          %540 = vst [vmem:[#allocation2 + $0x9d8] sm:$0xff] 0.0
          %541 = vst [vmem:[#allocation2 + $0x9e0] sm:$0xff] 0.0
          %542 = vst [vmem:[#allocation2 + $0x9e8] sm:$0xff] 0.0
          %543 = vst [vmem:[#allocation2 + $0x9f0] sm:$0xff] 0.0
          %544 = vst [vmem:[#allocation2 + $0x9f8] sm:$0xff] 0.0
          %545 = vst [vmem:[#allocation2 + $0xa00] sm:$0xff] 0.0
          %546 = vst [vmem:[#allocation2 + $0xa08] sm:$0xff] 0.0
          %547 = vst [vmem:[#allocation2 + $0xa10] sm:$0xff] 0.0
          %548 = vst [vmem:[#allocation2 + $0xa18] sm:$0xff] 0.0
          %549 = vst [vmem:[#allocation2 + $0xa20] sm:$0xff] 0.0
          %550 = vst [vmem:[#allocation2 + $0xa28] sm:$0xff] 0.0
          %551 = vst [vmem:[#allocation2 + $0xa30] sm:$0xff] 0.0
          %552 = vst [vmem:[#allocation2 + $0xa38] sm:$0xff] 0.0
          %553 = vst [vmem:[#allocation2 + $0xa40] sm:$0xff] 0.0
          %554 = vst [vmem:[#allocation2 + $0xa48] sm:$0xff] 0.0
          %555 = vst [vmem:[#allocation2 + $0xa50] sm:$0xff] 0.0
          %556 = vst [vmem:[#allocation2 + $0xa58] sm:$0xff] 0.0
          %557 = vst [vmem:[#allocation2 + $0xa60] sm:$0xff] 0.0
          %558 = vst [vmem:[#allocation2 + $0xa68] sm:$0xff] 0.0
          %559 = vst [vmem:[#allocation2 + $0xa70] sm:$0xff] 0.0
          %560 = vst [vmem:[#allocation2 + $0xa78] sm:$0xff] 0.0
          %561 = vst [vmem:[#allocation2 + $0xa80] sm:$0xff] 0.0
          %562 = vst [vmem:[#allocation2 + $0xa88] sm:$0xff] 0.0
          %563 = vst [vmem:[#allocation2 + $0xa90] sm:$0xff] 0.0
          %564 = vst [vmem:[#allocation2 + $0xa98] sm:$0xff] 0.0
          %565 = vst [vmem:[#allocation2 + $0xaa0] sm:$0xff] 0.0
          %566 = vst [vmem:[#allocation2 + $0xaa8] sm:$0xff] 0.0
          %567 = vst [vmem:[#allocation2 + $0xab0] sm:$0xff] 0.0
          %568 = vst [vmem:[#allocation2 + $0xab8] sm:$0xff] 0.0
          %569 = vst [vmem:[#allocation2 + $0xac0] sm:$0xff] 0.0
          %570 = vst [vmem:[#allocation2 + $0xac8] sm:$0xff] 0.0
          %571 = vst [vmem:[#allocation2 + $0xad0] sm:$0xff] 0.0
          %572 = vst [vmem:[#allocation2 + $0xad8] sm:$0xff] 0.0
          %573 = vst [vmem:[#allocation2 + $0xae0] sm:$0xff] 0.0
          %574 = vst [vmem:[#allocation2 + $0xae8] sm:$0xff] 0.0
          %575 = vst [vmem:[#allocation2 + $0xaf0] sm:$0xff] 0.0
          %576 = vst [vmem:[#allocation2 + $0xaf8] sm:$0xff] 0.0
          %577 = vst [vmem:[#allocation2 + $0xb00] sm:$0xff] 0.0
          %578 = vst [vmem:[#allocation2 + $0xb08] sm:$0xff] 0.0
          %579 = vst [vmem:[#allocation2 + $0xb10] sm:$0xff] 0.0
          %580 = vst [vmem:[#allocation2 + $0xb18] sm:$0xff] 0.0
          %581 = vst [vmem:[#allocation2 + $0xb20] sm:$0xff] 0.0
          %582 = vst [vmem:[#allocation2 + $0xb28] sm:$0xff] 0.0
          %583 = vst [vmem:[#allocation2 + $0xb30] sm:$0xff] 0.0
          %584 = vst [vmem:[#allocation2 + $0xb38] sm:$0xff] 0.0
          %585 = vst [vmem:[#allocation2 + $0xb40] sm:$0xff] 0.0
          %586 = vst [vmem:[#allocation2 + $0xb48] sm:$0xff] 0.0
          %587 = vst [vmem:[#allocation2 + $0xb50] sm:$0xff] 0.0
          %588 = vst [vmem:[#allocation2 + $0xb58] sm:$0xff] 0.0
          %589 = vst [vmem:[#allocation2 + $0xb60] sm:$0xff] 0.0
          %590 = vst [vmem:[#allocation2 + $0xb68] sm:$0xff] 0.0
          %591 = vst [vmem:[#allocation2 + $0xb70] sm:$0xff] 0.0
          %592 = vst [vmem:[#allocation2 + $0xb78] sm:$0xff] 0.0
          %593 = vst [vmem:[#allocation2 + $0xb80] sm:$0xff] 0.0
          %594 = vst [vmem:[#allocation2 + $0xb88] sm:$0xff] 0.0
          %595 = vst [vmem:[#allocation2 + $0xb90] sm:$0xff] 0.0
          %596 = vst [vmem:[#allocation2 + $0xb98] sm:$0xff] 0.0
          %597 = vst [vmem:[#allocation2 + $0xba0] sm:$0xff] 0.0
          %598 = vst [vmem:[#allocation2 + $0xba8] sm:$0xff] 0.0
          %599 = vst [vmem:[#allocation2 + $0xbb0] sm:$0xff] 0.0
          %600 = vst [vmem:[#allocation2 + $0xbb8] sm:$0xff] 0.0
          %601 = vst [vmem:[#allocation2 + $0xbc0] sm:$0xff] 0.0
          %602 = vst [vmem:[#allocation2 + $0xbc8] sm:$0xff] 0.0
          %603 = vst [vmem:[#allocation2 + $0xbd0] sm:$0xff] 0.0
          %604 = vst [vmem:[#allocation2 + $0xbd8] sm:$0xff] 0.0
          %605 = vst [vmem:[#allocation2 + $0xbe0] sm:$0xff] 0.0
          %606 = vst [vmem:[#allocation2 + $0xbe8] sm:$0xff] 0.0
          %607 = vst [vmem:[#allocation2 + $0xbf0] sm:$0xff] 0.0
          %608 = vst [vmem:[#allocation2 + $0xbf8] sm:$0xff] 0.0
          %609 = vst [vmem:[#allocation2 + $0xc00] sm:$0xff] 0.0
          %610 = vst [vmem:[#allocation2 + $0xc08] sm:$0xff] 0.0
          %611 = vst [vmem:[#allocation2 + $0xc10] sm:$0xff] 0.0
          %612 = vst [vmem:[#allocation2 + $0xc18] sm:$0xff] 0.0
          %613 = vst [vmem:[#allocation2 + $0xc20] sm:$0xff] 0.0
          %614 = vst [vmem:[#allocation2 + $0xc28] sm:$0xff] 0.0
          %615 = vst [vmem:[#allocation2 + $0xc30] sm:$0xff] 0.0
          %616 = vst [vmem:[#allocation2 + $0xc38] sm:$0xff] 0.0
          %617 = vst [vmem:[#allocation2 + $0xc40] sm:$0xff] 0.0
          %618 = vst [vmem:[#allocation2 + $0xc48] sm:$0xff] 0.0
          %619 = vst [vmem:[#allocation2 + $0xc50] sm:$0xff] 0.0
          %620 = vst [vmem:[#allocation2 + $0xc58] sm:$0xff] 0.0
          %621 = vst [vmem:[#allocation2 + $0xc60] sm:$0xff] 0.0
          %622 = vst [vmem:[#allocation2 + $0xc68] sm:$0xff] 0.0
          %623 = vst [vmem:[#allocation2 + $0xc70] sm:$0xff] 0.0
          %624 = vst [vmem:[#allocation2 + $0xc78] sm:$0xff] 0.0
          %625 = vst [vmem:[#allocation2 + $0xc80] sm:$0xff] 0.0
          %626 = vst [vmem:[#allocation2 + $0xc88] sm:$0xff] 0.0
          %627 = vst [vmem:[#allocation2 + $0xc90] sm:$0xff] 0.0
          %628 = vst [vmem:[#allocation2 + $0xc98] sm:$0xff] 0.0
          %629 = vst [vmem:[#allocation2 + $0xca0] sm:$0xff] 0.0
          %630 = vst [vmem:[#allocation2 + $0xca8] sm:$0xff] 0.0
          %631 = vst [vmem:[#allocation2 + $0xcb0] sm:$0xff] 0.0
          %632 = vst [vmem:[#allocation2 + $0xcb8] sm:$0xff] 0.0
          %633 = vst [vmem:[#allocation2 + $0xcc0] sm:$0xff] 0.0
          %634 = vst [vmem:[#allocation2 + $0xcc8] sm:$0xff] 0.0
          %635 = vst [vmem:[#allocation2 + $0xcd0] sm:$0xff] 0.0
          %636 = vst [vmem:[#allocation2 + $0xcd8] sm:$0xff] 0.0
          %637 = vst [vmem:[#allocation2 + $0xce0] sm:$0xff] 0.0
          %638 = vst [vmem:[#allocation2 + $0xce8] sm:$0xff] 0.0
          %639 = vst [vmem:[#allocation2 + $0xcf0] sm:$0xff] 0.0
          %640 = vst [vmem:[#allocation2 + $0xcf8] sm:$0xff] 0.0
          %641 = vst [vmem:[#allocation2 + $0xd00] sm:$0xff] 0.0
          %642 = vst [vmem:[#allocation2 + $0xd08] sm:$0xff] 0.0
          %643 = vst [vmem:[#allocation2 + $0xd10] sm:$0xff] 0.0
          %644 = vst [vmem:[#allocation2 + $0xd18] sm:$0xff] 0.0
          %645 = vst [vmem:[#allocation2 + $0xd20] sm:$0xff] 0.0
          %646 = vst [vmem:[#allocation2 + $0xd28] sm:$0xff] 0.0
          %647 = vst [vmem:[#allocation2 + $0xd30] sm:$0xff] 0.0
          %648 = vst [vmem:[#allocation2 + $0xd38] sm:$0xff] 0.0
          %649 = vst [vmem:[#allocation2 + $0xd40] sm:$0xff] 0.0
          %650 = vst [vmem:[#allocation2 + $0xd48] sm:$0xff] 0.0
          %651 = vst [vmem:[#allocation2 + $0xd50] sm:$0xff] 0.0
          %652 = vst [vmem:[#allocation2 + $0xd58] sm:$0xff] 0.0
          %653 = vst [vmem:[#allocation2 + $0xd60] sm:$0xff] 0.0
          %654 = vst [vmem:[#allocation2 + $0xd68] sm:$0xff] 0.0
          %655 = vst [vmem:[#allocation2 + $0xd70] sm:$0xff] 0.0
          %656 = vst [vmem:[#allocation2 + $0xd78] sm:$0xff] 0.0
          %657 = vst [vmem:[#allocation2 + $0xd80] sm:$0xff] 0.0
          %658 = vst [vmem:[#allocation2 + $0xd88] sm:$0xff] 0.0
          %659 = vst [vmem:[#allocation2 + $0xd90] sm:$0xff] 0.0
          %660 = vst [vmem:[#allocation2 + $0xd98] sm:$0xff] 0.0
          %661 = vst [vmem:[#allocation2 + $0xda0] sm:$0xff] 0.0
          %662 = vst [vmem:[#allocation2 + $0xda8] sm:$0xff] 0.0
          %663 = vst [vmem:[#allocation2 + $0xdb0] sm:$0xff] 0.0
          %664 = vst [vmem:[#allocation2 + $0xdb8] sm:$0xff] 0.0
          %665 = vst [vmem:[#allocation2 + $0xdc0] sm:$0xff] 0.0
          %666 = vst [vmem:[#allocation2 + $0xdc8] sm:$0xff] 0.0
          %667 = vst [vmem:[#allocation2 + $0xdd0] sm:$0xff] 0.0
          %668 = vst [vmem:[#allocation2 + $0xdd8] sm:$0xff] 0.0
          %669 = vst [vmem:[#allocation2 + $0xde0] sm:$0xff] 0.0
          %670 = vst [vmem:[#allocation2 + $0xde8] sm:$0xff] 0.0
          %671 = vst [vmem:[#allocation2 + $0xdf0] sm:$0xff] 0.0
          %672 = vst [vmem:[#allocation2 + $0xdf8] sm:$0xff] 0.0
          %673 = vst [vmem:[#allocation2 + $0xe00] sm:$0xff] 0.0
          %674 = vst [vmem:[#allocation2 + $0xe08] sm:$0xff] 0.0
          %675 = vst [vmem:[#allocation2 + $0xe10] sm:$0xff] 0.0
          %676 = vst [vmem:[#allocation2 + $0xe18] sm:$0xff] 0.0
          %677 = vst [vmem:[#allocation2 + $0xe20] sm:$0xff] 0.0
          %678 = vst [vmem:[#allocation2 + $0xe28] sm:$0xff] 0.0
          %679 = vst [vmem:[#allocation2 + $0xe30] sm:$0xff] 0.0
          %680 = vst [vmem:[#allocation2 + $0xe38] sm:$0xff] 0.0
          %681 = vst [vmem:[#allocation2 + $0xe40] sm:$0xff] 0.0
          %682 = vst [vmem:[#allocation2 + $0xe48] sm:$0xff] 0.0
          %683 = vst [vmem:[#allocation2 + $0xe50] sm:$0xff] 0.0
          %684 = vst [vmem:[#allocation2 + $0xe58] sm:$0xff] 0.0
          %685 = vst [vmem:[#allocation2 + $0xe60] sm:$0xff] 0.0
          %686 = vst [vmem:[#allocation2 + $0xe68] sm:$0xff] 0.0
          %687 = vst [vmem:[#allocation2 + $0xe70] sm:$0xff] 0.0
          %688 = vst [vmem:[#allocation2 + $0xe78] sm:$0xff] 0.0
          %689 = vst [vmem:[#allocation2 + $0xe80] sm:$0xff] 0.0
          %690 = vst [vmem:[#allocation2 + $0xe88] sm:$0xff] 0.0
          %691 = vst [vmem:[#allocation2 + $0xe90] sm:$0xff] 0.0
          %692 = vst [vmem:[#allocation2 + $0xe98] sm:$0xff] 0.0
          %693 = vst [vmem:[#allocation2 + $0xea0] sm:$0xff] 0.0
          %694 = vst [vmem:[#allocation2 + $0xea8] sm:$0xff] 0.0
          %695 = vst [vmem:[#allocation2 + $0xeb0] sm:$0xff] 0.0
          %696 = vst [vmem:[#allocation2 + $0xeb8] sm:$0xff] 0.0
          %697 = vst [vmem:[#allocation2 + $0xec0] sm:$0xff] 0.0
          %698 = vst [vmem:[#allocation2 + $0xec8] sm:$0xff] 0.0
          %699 = vst [vmem:[#allocation2 + $0xed0] sm:$0xff] 0.0
          %700 = vst [vmem:[#allocation2 + $0xed8] sm:$0xff] 0.0
          %701 = vst [vmem:[#allocation2 + $0xee0] sm:$0xff] 0.0
          %702 = vst [vmem:[#allocation2 + $0xee8] sm:$0xff] 0.0
          %703 = vst [vmem:[#allocation2 + $0xef0] sm:$0xff] 0.0
          %704 = vst [vmem:[#allocation2 + $0xef8] sm:$0xff] 0.0
          %705 = vst [vmem:[#allocation2 + $0xf00] sm:$0xff] 0.0
          %706 = vst [vmem:[#allocation2 + $0xf08] sm:$0xff] 0.0
          %707 = vst [vmem:[#allocation2 + $0xf10] sm:$0xff] 0.0
          %708 = vst [vmem:[#allocation2 + $0xf18] sm:$0xff] 0.0
          %709 = vst [vmem:[#allocation2 + $0xf20] sm:$0xff] 0.0
          %710 = vst [vmem:[#allocation2 + $0xf28] sm:$0xff] 0.0
          %711 = vst [vmem:[#allocation2 + $0xf30] sm:$0xff] 0.0
          %712 = vst [vmem:[#allocation2 + $0xf38] sm:$0xff] 0.0
          %713 = vst [vmem:[#allocation2 + $0xf40] sm:$0xff] 0.0
          %714 = vst [vmem:[#allocation2 + $0xf48] sm:$0xff] 0.0
          %715 = vst [vmem:[#allocation2 + $0xf50] sm:$0xff] 0.0
          %716 = vst [vmem:[#allocation2 + $0xf58] sm:$0xff] 0.0
          %717 = vst [vmem:[#allocation2 + $0xf60] sm:$0xff] 0.0
          %718 = vst [vmem:[#allocation2 + $0xf68] sm:$0xff] 0.0
          %719 = vst [vmem:[#allocation2 + $0xf70] sm:$0xff] 0.0
          %720 = vst [vmem:[#allocation2 + $0xf78] sm:$0xff] 0.0
          %721 = vst [vmem:[#allocation2 + $0xf80] sm:$0xff] 0.0
          %722 = vst [vmem:[#allocation2 + $0xf88] sm:$0xff] 0.0
          %723 = vst [vmem:[#allocation2 + $0xf90] sm:$0xff] 0.0
          %724 = vst [vmem:[#allocation2 + $0xf98] sm:$0xff] 0.0
          %725 = vst [vmem:[#allocation2 + $0xfa0] sm:$0xff] 0.0
          %726 = vst [vmem:[#allocation2 + $0xfa8] sm:$0xff] 0.0
          %727 = vst [vmem:[#allocation2 + $0xfb0] sm:$0xff] 0.0
          %728 = vst [vmem:[#allocation2 + $0xfb8] sm:$0xff] 0.0
          %729 = vst [vmem:[#allocation2 + $0xfc0] sm:$0xff] 0.0
          %730 = vst [vmem:[#allocation2 + $0xfc8] sm:$0xff] 0.0
          %731 = vst [vmem:[#allocation2 + $0xfd0] sm:$0xff] 0.0
          %732 = vst [vmem:[#allocation2 + $0xfd8] sm:$0xff] 0.0
          %733 = vst [vmem:[#allocation2 + $0xfe0] sm:$0xff] 0.0
          %734 = vst [vmem:[#allocation2 + $0xfe8] sm:$0xff] 0.0
          %735 = vst [vmem:[#allocation2 + $0xff0] sm:$0xff] 0.0
          %736 = vst [vmem:[#allocation2 + $0xff8] sm:$0xff] 0.0
        $region59: #{tpu_custom_call.1} parent=50 // pred_fallthru
          _
        %v737 = vld [vmem:[%s1] sm:$0xf]
        %v738 = vld [vmem:[%s1 + $0x4] sm:$0xf]
        %v739 = vld [vmem:[%s1 + $0x8] sm:$0xf]
        %v740 = vld [vmem:[%s1 + $0xc] sm:$0xf]
        %v741 = vld [vmem:[%s1 + $0x10] sm:$0xf]
        %v742 = vld [vmem:[%s1 + $0x14] sm:$0xf]
        %v743 = vld [vmem:[%s1 + $0x18] sm:$0xf]
        %v744 = vld [vmem:[%s1 + $0x1c] sm:$0xf]
        %v745 = vld [vmem:[%s1 + $0x20] sm:$0xf]
        %v746 = vld [vmem:[%s1 + $0x24] sm:$0xf]
        %v747 = vld [vmem:[%s1 + $0x28] sm:$0xf]
        %v748 = vld [vmem:[%s1 + $0x2c] sm:$0xf]
        %v749 = vld [vmem:[%s1 + $0x30] sm:$0xf]
        %v750 = vld [vmem:[%s1 + $0x34] sm:$0xf]
        %v751 = vld [vmem:[%s1 + $0x38] sm:$0xf]
        %v752 = vld [vmem:[%s1 + $0x3c] sm:$0xf]
        %v753 = vld [vmem:[%s1 + $0x40] sm:$0xf]
        %v754 = vld [vmem:[%s1 + $0x44] sm:$0xf]
        %v755 = vld [vmem:[%s1 + $0x48] sm:$0xf]
        %v756 = vld [vmem:[%s1 + $0x4c] sm:$0xf]
        %v757 = vld [vmem:[%s1 + $0x50] sm:$0xf]
        %v758 = vld [vmem:[%s1 + $0x54] sm:$0xf]
        %v759 = vld [vmem:[%s1 + $0x58] sm:$0xf]
        %v760 = vld [vmem:[%s1 + $0x5c] sm:$0xf]
        %v761 = vld [vmem:[%s1 + $0x60] sm:$0xf]
        %v762 = vld [vmem:[%s1 + $0x64] sm:$0xf]
        %v763 = vld [vmem:[%s1 + $0x68] sm:$0xf]
        %v764 = vld [vmem:[%s1 + $0x6c] sm:$0xf]
        %v765 = vld [vmem:[%s1 + $0x70] sm:$0xf]
        %v766 = vld [vmem:[%s1 + $0x74] sm:$0xf]
        %v767 = vld [vmem:[%s1 + $0x78] sm:$0xf]
        %v768 = vld [vmem:[%s1 + $0x7c] sm:$0xf]
        %v769 = vld [vmem:[%s1 + $0x80] sm:$0xf]
        %v770 = vld [vmem:[%s1 + $0x84] sm:$0xf]
        %v771 = vld [vmem:[%s1 + $0x88] sm:$0xf]
        %v772 = vld [vmem:[%s1 + $0x8c] sm:$0xf]
        %v773 = vld [vmem:[%s1 + $0x90] sm:$0xf]
        %v774 = vld [vmem:[%s1 + $0x94] sm:$0xf]
        %v775 = vld [vmem:[%s1 + $0x98] sm:$0xf]
        %v776 = vld [vmem:[%s1 + $0x9c] sm:$0xf]
        %v777 = vld [vmem:[%s1 + $0xa0] sm:$0xf]
        %v778 = vld [vmem:[%s1 + $0xa4] sm:$0xf]
        %v779 = vld [vmem:[%s1 + $0xa8] sm:$0xf]
        %v780 = vld [vmem:[%s1 + $0xac] sm:$0xf]
        %v781 = vld [vmem:[%s1 + $0xb0] sm:$0xf]
        %v782 = vld [vmem:[%s1 + $0xb4] sm:$0xf]
        %v783 = vld [vmem:[%s1 + $0xb8] sm:$0xf]
        %v784 = vld [vmem:[%s1 + $0xbc] sm:$0xf]
        %v785 = vld [vmem:[%s1 + $0xc0] sm:$0xf]
        %v786 = vld [vmem:[%s1 + $0xc4] sm:$0xf]
        %v787 = vld [vmem:[%s1 + $0xc8] sm:$0xf]
        %v788 = vld [vmem:[%s1 + $0xcc] sm:$0xf]
        %v789 = vld [vmem:[%s1 + $0xd0] sm:$0xf]
        %v790 = vld [vmem:[%s1 + $0xd4] sm:$0xf]
        %v791 = vld [vmem:[%s1 + $0xd8] sm:$0xf]
        %v792 = vld [vmem:[%s1 + $0xdc] sm:$0xf]
        %v793 = vld [vmem:[%s1 + $0xe0] sm:$0xf]
        %v794 = vld [vmem:[%s1 + $0xe4] sm:$0xf]
        %v795 = vld [vmem:[%s1 + $0xe8] sm:$0xf]
        %v796 = vld [vmem:[%s1 + $0xec] sm:$0xf]
        %v797 = vld [vmem:[%s1 + $0xf0] sm:$0xf]
        %v798 = vld [vmem:[%s1 + $0xf4] sm:$0xf]
        %v799 = vld [vmem:[%s1 + $0xf8] sm:$0xf]
        %v800 = vld [vmem:[%s1 + $0xfc] sm:$0xf]
        %v801 = vld [vmem:[%s2] sm:$0xff]
        %v802 = vld [vmem:[%s2 + $0x8] sm:$0xff]
        %v803 = vld [vmem:[%s2 + $0x10] sm:$0xff]
        %v804 = vld [vmem:[%s2 + $0x18] sm:$0xff]
        %v805 = vld [vmem:[%s2 + $0x20] sm:$0xff]
        %v806 = vld [vmem:[%s2 + $0x28] sm:$0xff]
        %v807 = vld [vmem:[%s2 + $0x30] sm:$0xff]
        %v808 = vld [vmem:[%s2 + $0x38] sm:$0xff]
        %v809 = vld [vmem:[%s2 + $0x40] sm:$0xff]
        %v810 = vld [vmem:[%s2 + $0x48] sm:$0xff]
        %v811 = vld [vmem:[%s2 + $0x50] sm:$0xff]
        %v812 = vld [vmem:[%s2 + $0x58] sm:$0xff]
        %v813 = vld [vmem:[%s2 + $0x60] sm:$0xff]
        %v814 = vld [vmem:[%s2 + $0x68] sm:$0xff]
        %v815 = vld [vmem:[%s2 + $0x70] sm:$0xff]
        %v816 = vld [vmem:[%s2 + $0x78] sm:$0xff]
        %v817 = vld [vmem:[%s2 + $0x80] sm:$0xff]
        %v818 = vld [vmem:[%s2 + $0x88] sm:$0xff]
        %v819 = vld [vmem:[%s2 + $0x90] sm:$0xff]
        %v820 = vld [vmem:[%s2 + $0x98] sm:$0xff]
        %v821 = vld [vmem:[%s2 + $0xa0] sm:$0xff]
        %v822 = vld [vmem:[%s2 + $0xa8] sm:$0xff]
        %v823 = vld [vmem:[%s2 + $0xb0] sm:$0xff]
        %v824 = vld [vmem:[%s2 + $0xb8] sm:$0xff]
        %v825 = vld [vmem:[%s2 + $0xc0] sm:$0xff]
        %v826 = vld [vmem:[%s2 + $0xc8] sm:$0xff]
        %v827 = vld [vmem:[%s2 + $0xd0] sm:$0xff]
        %v828 = vld [vmem:[%s2 + $0xd8] sm:$0xff]
        %v829 = vld [vmem:[%s2 + $0xe0] sm:$0xff]
        %v830 = vld [vmem:[%s2 + $0xe8] sm:$0xff]
        %v831 = vld [vmem:[%s2 + $0xf0] sm:$0xff]
        %v832 = vld [vmem:[%s2 + $0xf8] sm:$0xff]
        %v833 = vld [vmem:[%s2 + $0x100] sm:$0xff]
        %v834 = vld [vmem:[%s2 + $0x108] sm:$0xff]
        %v835 = vld [vmem:[%s2 + $0x110] sm:$0xff]
        %v836 = vld [vmem:[%s2 + $0x118] sm:$0xff]
        %v837 = vld [vmem:[%s2 + $0x120] sm:$0xff]
        %v838 = vld [vmem:[%s2 + $0x128] sm:$0xff]
        %v839 = vld [vmem:[%s2 + $0x130] sm:$0xff]
        %v840 = vld [vmem:[%s2 + $0x138] sm:$0xff]
        %v841 = vld [vmem:[%s2 + $0x140] sm:$0xff]
        %v842 = vld [vmem:[%s2 + $0x148] sm:$0xff]
        %v843 = vld [vmem:[%s2 + $0x150] sm:$0xff]
        %v844 = vld [vmem:[%s2 + $0x158] sm:$0xff]
        %v845 = vld [vmem:[%s2 + $0x160] sm:$0xff]
        %v846 = vld [vmem:[%s2 + $0x168] sm:$0xff]
        %v847 = vld [vmem:[%s2 + $0x170] sm:$0xff]
        %v848 = vld [vmem:[%s2 + $0x178] sm:$0xff]
        %v849 = vld [vmem:[%s2 + $0x180] sm:$0xff]
        %v850 = vld [vmem:[%s2 + $0x188] sm:$0xff]
        %v851 = vld [vmem:[%s2 + $0x190] sm:$0xff]
        %v852 = vld [vmem:[%s2 + $0x198] sm:$0xff]
        %v853 = vld [vmem:[%s2 + $0x1a0] sm:$0xff]
        %v854 = vld [vmem:[%s2 + $0x1a8] sm:$0xff]
        %v855 = vld [vmem:[%s2 + $0x1b0] sm:$0xff]
        %v856 = vld [vmem:[%s2 + $0x1b8] sm:$0xff]
        %v857 = vld [vmem:[%s2 + $0x1c0] sm:$0xff]
        %v858 = vld [vmem:[%s2 + $0x1c8] sm:$0xff]
        %v859 = vld [vmem:[%s2 + $0x1d0] sm:$0xff]
        %v860 = vld [vmem:[%s2 + $0x1d8] sm:$0xff]
        %v861 = vld [vmem:[%s2 + $0x1e0] sm:$0xff]
        %v862 = vld [vmem:[%s2 + $0x1e8] sm:$0xff]
        %v863 = vld [vmem:[%s2 + $0x1f0] sm:$0xff]
        %v864 = vld [vmem:[%s2 + $0x1f8] sm:$0xff]
        loop: start=0, step=1, limit=4
        $region60: #{tpu_custom_call.1} parent=50 // loop_pre_header
          _
        $region61: #{tpu_custom_call.1} parent=50 // loop_header
          %s866 = sphi 0, %s870
          %p867 = scmp.ge.s32.totalorder %s866, 4
        $region62: #{tpu_custom_call.1} parent=50 // loop_header_branch
          %869 = sbr.rel (%p867) target = $region66
        $region63: #{tpu_custom_call.1} parent=50 // loop_body
          %s871 = smul.u32 %s866, 512
          %s872 = sshra.s32 %s871, 7
          %s873 = sand.u32 %s871, 127
          %s874 = smul.addr %s872, 2
          %s875 = scalar_lea.vmem %s197, %s874 [#allocation3]
          %v876 = vld [vmem:[%s875] sm:$0xff]
          %878 = vset.pattern.permute.xlu0 0
          %879 = vperm.xlu0 %878, %v801
          %v880 = vpop.permute.xlu0 %879
          %883 = vset.pattern.permute.xlu0 0
          %884 = vperm.xlu0 %883, %v802
          %v885 = vpop.permute.xlu0 %884
          %888 = vset.pattern.permute.xlu0 0
          %889 = vperm.xlu0 %888, %v803
          %v890 = vpop.permute.xlu0 %889
          %893 = vset.pattern.permute.xlu0 0
          %894 = vperm.xlu0 %893, %v804
          %v895 = vpop.permute.xlu0 %894
          %898 = vset.pattern.permute.xlu0 0
          %899 = vperm.xlu0 %898, %v805
          %v900 = vpop.permute.xlu0 %899
          %903 = vset.pattern.permute.xlu0 0
          %904 = vperm.xlu0 %903, %v806
          %v905 = vpop.permute.xlu0 %904
          %908 = vset.pattern.permute.xlu0 0
          %909 = vperm.xlu0 %908, %v807
          %v910 = vpop.permute.xlu0 %909
          %913 = vset.pattern.permute.xlu0 0
          %914 = vperm.xlu0 %913, %v808
          %v915 = vpop.permute.xlu0 %914
          %918 = vset.pattern.permute.xlu0 0
          %919 = vperm.xlu0 %918, %v809
          %v920 = vpop.permute.xlu0 %919
          %923 = vset.pattern.permute.xlu0 0
          %924 = vperm.xlu0 %923, %v810
          %v925 = vpop.permute.xlu0 %924
          %928 = vset.pattern.permute.xlu0 0
          %929 = vperm.xlu0 %928, %v811
          %v930 = vpop.permute.xlu0 %929
          %933 = vset.pattern.permute.xlu0 0
          %934 = vperm.xlu0 %933, %v812
          %v935 = vpop.permute.xlu0 %934
          %938 = vset.pattern.permute.xlu0 0
          %939 = vperm.xlu0 %938, %v813
          %v940 = vpop.permute.xlu0 %939
          %943 = vset.pattern.permute.xlu0 0
          %944 = vperm.xlu0 %943, %v814
          %v945 = vpop.permute.xlu0 %944
          %948 = vset.pattern.permute.xlu0 0
          %949 = vperm.xlu0 %948, %v815
          %v950 = vpop.permute.xlu0 %949
          %953 = vset.pattern.permute.xlu0 0
          %954 = vperm.xlu0 %953, %v816
          %v955 = vpop.permute.xlu0 %954
          %958 = vset.pattern.permute.xlu0 0
          %959 = vperm.xlu0 %958, %v817
          %v960 = vpop.permute.xlu0 %959
          %963 = vset.pattern.permute.xlu0 0
          %964 = vperm.xlu0 %963, %v818
          %v965 = vpop.permute.xlu0 %964
          %968 = vset.pattern.permute.xlu0 0
          %969 = vperm.xlu0 %968, %v819
          %v970 = vpop.permute.xlu0 %969
          %973 = vset.pattern.permute.xlu0 0
          %974 = vperm.xlu0 %973, %v820
          %v975 = vpop.permute.xlu0 %974
          %978 = vset.pattern.permute.xlu0 0
          %979 = vperm.xlu0 %978, %v821
          %v980 = vpop.permute.xlu0 %979
          %983 = vset.pattern.permute.xlu0 0
          %984 = vperm.xlu0 %983, %v822
          %v985 = vpop.permute.xlu0 %984
          %988 = vset.pattern.permute.xlu0 0
          %989 = vperm.xlu0 %988, %v823
          %v990 = vpop.permute.xlu0 %989
          %993 = vset.pattern.permute.xlu0 0
          %994 = vperm.xlu0 %993, %v824
          %v995 = vpop.permute.xlu0 %994
          %998 = vset.pattern.permute.xlu0 0
          %999 = vperm.xlu0 %998, %v825
          %v1000 = vpop.permute.xlu0 %999
          %1003 = vset.pattern.permute.xlu0 0
          %1004 = vperm.xlu0 %1003, %v826
          %v1005 = vpop.permute.xlu0 %1004
          %1008 = vset.pattern.permute.xlu0 0
          %1009 = vperm.xlu0 %1008, %v827
          %v1010 = vpop.permute.xlu0 %1009
          %1013 = vset.pattern.permute.xlu0 0
          %1014 = vperm.xlu0 %1013, %v828
          %v1015 = vpop.permute.xlu0 %1014
          %1018 = vset.pattern.permute.xlu0 0
          %1019 = vperm.xlu0 %1018, %v829
          %v1020 = vpop.permute.xlu0 %1019
          %1023 = vset.pattern.permute.xlu0 0
          %1024 = vperm.xlu0 %1023, %v830
          %v1025 = vpop.permute.xlu0 %1024
          %1028 = vset.pattern.permute.xlu0 0
          %1029 = vperm.xlu0 %1028, %v831
          %v1030 = vpop.permute.xlu0 %1029
          %1033 = vset.pattern.permute.xlu0 0
          %1034 = vperm.xlu0 %1033, %v832
          %v1035 = vpop.permute.xlu0 %1034
          %1038 = vset.pattern.permute.xlu0 0
          %1039 = vperm.xlu0 %1038, %v833
          %v1040 = vpop.permute.xlu0 %1039
          %1043 = vset.pattern.permute.xlu0 0
          %1044 = vperm.xlu0 %1043, %v834
          %v1045 = vpop.permute.xlu0 %1044
          %1048 = vset.pattern.permute.xlu0 0
          %1049 = vperm.xlu0 %1048, %v835
          %v1050 = vpop.permute.xlu0 %1049
          %1053 = vset.pattern.permute.xlu0 0
          %1054 = vperm.xlu0 %1053, %v836
          %v1055 = vpop.permute.xlu0 %1054
          %1058 = vset.pattern.permute.xlu0 0
          %1059 = vperm.xlu0 %1058, %v837
          %v1060 = vpop.permute.xlu0 %1059
          %1063 = vset.pattern.permute.xlu0 0
          %1064 = vperm.xlu0 %1063, %v838
          %v1065 = vpop.permute.xlu0 %1064
          %1068 = vset.pattern.permute.xlu0 0
          %1069 = vperm.xlu0 %1068, %v839
          %v1070 = vpop.permute.xlu0 %1069
          %1073 = vset.pattern.permute.xlu0 0
          %1074 = vperm.xlu0 %1073, %v840
          %v1075 = vpop.permute.xlu0 %1074
          %1078 = vset.pattern.permute.xlu0 0
          %1079 = vperm.xlu0 %1078, %v841
          %v1080 = vpop.permute.xlu0 %1079
          %1083 = vset.pattern.permute.xlu0 0
          %1084 = vperm.xlu0 %1083, %v842
          %v1085 = vpop.permute.xlu0 %1084
          %1088 = vset.pattern.permute.xlu0 0
          %1089 = vperm.xlu0 %1088, %v843
          %v1090 = vpop.permute.xlu0 %1089
          %1093 = vset.pattern.permute.xlu0 0
          %1094 = vperm.xlu0 %1093, %v844
          %v1095 = vpop.permute.xlu0 %1094
          %1098 = vset.pattern.permute.xlu0 0
          %1099 = vperm.xlu0 %1098, %v845
          %v1100 = vpop.permute.xlu0 %1099
          %1103 = vset.pattern.permute.xlu0 0
          %1104 = vperm.xlu0 %1103, %v846
          %v1105 = vpop.permute.xlu0 %1104
          %1108 = vset.pattern.permute.xlu0 0
          %1109 = vperm.xlu0 %1108, %v847
          %v1110 = vpop.permute.xlu0 %1109
          %1113 = vset.pattern.permute.xlu0 0
          %1114 = vperm.xlu0 %1113, %v848
          %v1115 = vpop.permute.xlu0 %1114
          %1118 = vset.pattern.permute.xlu0 0
          %1119 = vperm.xlu0 %1118, %v849
          %v1120 = vpop.permute.xlu0 %1119
          %1123 = vset.pattern.permute.xlu0 0
          %1124 = vperm.xlu0 %1123, %v850
          %v1125 = vpop.permute.xlu0 %1124
          %1128 = vset.pattern.permute.xlu0 0
          %1129 = vperm.xlu0 %1128, %v851
          %v1130 = vpop.permute.xlu0 %1129
          %1133 = vset.pattern.permute.xlu0 0
          %1134 = vperm.xlu0 %1133, %v852
          %v1135 = vpop.permute.xlu0 %1134
          %1138 = vset.pattern.permute.xlu0 0
          %1139 = vperm.xlu0 %1138, %v853
          %v1140 = vpop.permute.xlu0 %1139
          %1143 = vset.pattern.permute.xlu0 0
          %1144 = vperm.xlu0 %1143, %v854
          %v1145 = vpop.permute.xlu0 %1144
          %1148 = vset.pattern.permute.xlu0 0
          %1149 = vperm.xlu0 %1148, %v855
          %v1150 = vpop.permute.xlu0 %1149
          %1153 = vset.pattern.permute.xlu0 0
          %1154 = vperm.xlu0 %1153, %v856
          %v1155 = vpop.permute.xlu0 %1154
          %1158 = vset.pattern.permute.xlu0 0
          %1159 = vperm.xlu0 %1158, %v857
          %v1160 = vpop.permute.xlu0 %1159
          %1163 = vset.pattern.permute.xlu0 0
          %1164 = vperm.xlu0 %1163, %v858
          %v1165 = vpop.permute.xlu0 %1164
          %1168 = vset.pattern.permute.xlu0 0
          %1169 = vperm.xlu0 %1168, %v859
          %v1170 = vpop.permute.xlu0 %1169
          %1173 = vset.pattern.permute.xlu0 0
          %1174 = vperm.xlu0 %1173, %v860
          %v1175 = vpop.permute.xlu0 %1174
          %1178 = vset.pattern.permute.xlu0 0
          %1179 = vperm.xlu0 %1178, %v861
          %v1180 = vpop.permute.xlu0 %1179
          %1183 = vset.pattern.permute.xlu0 0
          %1184 = vperm.xlu0 %1183, %v862
          %v1185 = vpop.permute.xlu0 %1184
          %1188 = vset.pattern.permute.xlu0 0
          %1189 = vperm.xlu0 %1188, %v863
          %v1190 = vpop.permute.xlu0 %1189
          %1193 = vset.pattern.permute.xlu0 0
          %1194 = vperm.xlu0 %1193, %v864
          %v1195 = vpop.permute.xlu0 %1194
          %v1261 = vunpack.c.l.b16 %v737
          %v1262 = vunpack.c.l.b16 %v738
          %v1263 = vunpack.c.l.b16 %v739
          %v1264 = vunpack.c.l.b16 %v740
          %v1265 = vunpack.c.l.b16 %v741
          %v1266 = vunpack.c.l.b16 %v742
          %v1267 = vunpack.c.l.b16 %v743
          %v1268 = vunpack.c.l.b16 %v744
          %v1269 = vunpack.c.l.b16 %v745
          %v1270 = vunpack.c.l.b16 %v746
          %v1271 = vunpack.c.l.b16 %v747
          %v1272 = vunpack.c.l.b16 %v748
          %v1273 = vunpack.c.l.b16 %v749
          %v1274 = vunpack.c.l.b16 %v750
          %v1275 = vunpack.c.l.b16 %v751
          %v1276 = vunpack.c.l.b16 %v752
          %v1277 = vunpack.c.l.b16 %v753
          %v1278 = vunpack.c.l.b16 %v754
          %v1279 = vunpack.c.l.b16 %v755
          %v1280 = vunpack.c.l.b16 %v756
          %v1281 = vunpack.c.l.b16 %v757
          %v1282 = vunpack.c.l.b16 %v758
          %v1283 = vunpack.c.l.b16 %v759
          %v1284 = vunpack.c.l.b16 %v760
          %v1285 = vunpack.c.l.b16 %v761
          %v1286 = vunpack.c.l.b16 %v762
          %v1287 = vunpack.c.l.b16 %v763
          %v1288 = vunpack.c.l.b16 %v764
          %v1289 = vunpack.c.l.b16 %v765
          %v1290 = vunpack.c.l.b16 %v766
          %v1291 = vunpack.c.l.b16 %v767
          %v1292 = vunpack.c.l.b16 %v768
          %v1293 = vunpack.c.l.b16 %v769
          %v1294 = vunpack.c.l.b16 %v770
          %v1295 = vunpack.c.l.b16 %v771
          %v1296 = vunpack.c.l.b16 %v772
          %v1297 = vunpack.c.l.b16 %v773
          %v1298 = vunpack.c.l.b16 %v774
          %v1299 = vunpack.c.l.b16 %v775
          %v1300 = vunpack.c.l.b16 %v776
          %v1301 = vunpack.c.l.b16 %v777
          %v1302 = vunpack.c.l.b16 %v778
          %v1303 = vunpack.c.l.b16 %v779
          %v1304 = vunpack.c.l.b16 %v780
          %v1305 = vunpack.c.l.b16 %v781
          %v1306 = vunpack.c.l.b16 %v782
          %v1307 = vunpack.c.l.b16 %v783
          %v1308 = vunpack.c.l.b16 %v784
          %v1309 = vunpack.c.l.b16 %v785
          %v1310 = vunpack.c.l.b16 %v786
          %v1311 = vunpack.c.l.b16 %v787
          %v1312 = vunpack.c.l.b16 %v788
          %v1313 = vunpack.c.l.b16 %v789
          %v1314 = vunpack.c.l.b16 %v790
          %v1315 = vunpack.c.l.b16 %v791
          %v1316 = vunpack.c.l.b16 %v792
          %v1317 = vunpack.c.l.b16 %v793
          %v1318 = vunpack.c.l.b16 %v794
          %v1319 = vunpack.c.l.b16 %v795
          %v1320 = vunpack.c.l.b16 %v796
          %v1321 = vunpack.c.l.b16 %v797
          %v1322 = vunpack.c.l.b16 %v798
          %v1323 = vunpack.c.l.b16 %v799
          %v1324 = vunpack.c.l.b16 %v800
          %v1325 = vpack.c.b16 %v1262, %v1261
          %v1326 = vpack.c.b16 %v1264, %v1263
          %v1327 = vpack.c.b16 %v1266, %v1265
          %v1328 = vpack.c.b16 %v1268, %v1267
          %v1329 = vpack.c.b16 %v1270, %v1269
          %v1330 = vpack.c.b16 %v1272, %v1271
          %v1331 = vpack.c.b16 %v1274, %v1273
          %v1332 = vpack.c.b16 %v1276, %v1275
          %v1333 = vpack.c.b16 %v1278, %v1277
          %v1334 = vpack.c.b16 %v1280, %v1279
          %v1335 = vpack.c.b16 %v1282, %v1281
          %v1336 = vpack.c.b16 %v1284, %v1283
          %v1337 = vpack.c.b16 %v1286, %v1285
          %v1338 = vpack.c.b16 %v1288, %v1287
          %v1339 = vpack.c.b16 %v1290, %v1289
          %v1340 = vpack.c.b16 %v1292, %v1291
          %v1341 = vpack.c.b16 %v1294, %v1293
          %v1342 = vpack.c.b16 %v1296, %v1295
          %v1343 = vpack.c.b16 %v1298, %v1297
          %v1344 = vpack.c.b16 %v1300, %v1299
          %v1345 = vpack.c.b16 %v1302, %v1301
          %v1346 = vpack.c.b16 %v1304, %v1303
          %v1347 = vpack.c.b16 %v1306, %v1305
          %v1348 = vpack.c.b16 %v1308, %v1307
          %v1349 = vpack.c.b16 %v1310, %v1309
          %v1350 = vpack.c.b16 %v1312, %v1311
          %v1351 = vpack.c.b16 %v1314, %v1313
          %v1352 = vpack.c.b16 %v1316, %v1315
          %v1353 = vpack.c.b16 %v1318, %v1317
          %v1354 = vpack.c.b16 %v1320, %v1319
          %v1355 = vpack.c.b16 %v1322, %v1321
          %v1356 = vpack.c.b16 %v1324, %v1323
          %1358 = vst [vmem:[#allocation1] ss:$4 sm:$0xff] %v876
          %v1359 = vld.sshfl [vmem:[#allocation1] sm:$0xff pattern:$0x73625140]
          %v1360 = vld.sshfl [vmem:[#allocation1 + $0x8] sm:$0xff pattern:$0x73625140]
          %v1361 = vld.sshfl [vmem:[#allocation1 + $0x10] sm:$0xff pattern:$0x73625140]
          %v1362 = vld.sshfl [vmem:[#allocation1 + $0x18] sm:$0xff pattern:$0x73625140]
          %vm1363 = vcmask 31744
          %v1365 = vsel %vm1363, %v1325, 0
          %v1368 = vsel %vm1363, %v1326, 0
          %v1371 = vsel %vm1363, %v1327, 0
          %v1374 = vsel %vm1363, %v1328, 0
          %v1377 = vsel %vm1363, %v1329, 0
          %v1380 = vsel %vm1363, %v1330, 0
          %v1383 = vsel %vm1363, %v1331, 0
          %v1386 = vsel %vm1363, %v1332, 0
          %v1389 = vsel %vm1363, %v1333, 0
          %v1392 = vsel %vm1363, %v1334, 0
          %v1395 = vsel %vm1363, %v1335, 0
          %v1398 = vsel %vm1363, %v1336, 0
          %v1401 = vsel %vm1363, %v1337, 0
          %v1404 = vsel %vm1363, %v1338, 0
          %v1407 = vsel %vm1363, %v1339, 0
          %v1410 = vsel %vm1363, %v1340, 0
          %v1413 = vsel %vm1363, %v1341, 0
          %v1416 = vsel %vm1363, %v1342, 0
          %v1419 = vsel %vm1363, %v1343, 0
          %v1422 = vsel %vm1363, %v1344, 0
          %v1425 = vsel %vm1363, %v1345, 0
          %v1428 = vsel %vm1363, %v1346, 0
          %v1431 = vsel %vm1363, %v1347, 0
          %v1434 = vsel %vm1363, %v1348, 0
          %v1437 = vsel %vm1363, %v1349, 0
          %v1440 = vsel %vm1363, %v1350, 0
          %v1443 = vsel %vm1363, %v1351, 0
          %v1446 = vsel %vm1363, %v1352, 0
          %v1449 = vsel %vm1363, %v1353, 0
          %v1452 = vsel %vm1363, %v1354, 0
          %v1455 = vsel %vm1363, %v1355, 0
          %v1458 = vsel %vm1363, %v1356, 0
          %vm1460 = vcmask 1041408
          %v1461 = vsel %vm1460, %v1359, 0
          %v1463 = vsel %vm1460, %v1360, 0
          %v1465 = vsel %vm1460, %v1361, 0
          %v1467 = vsel %vm1460, %v1362, 0
          %1469 = vmatpush.bf16.msra.mxu0 0
          %1470 = vmatpush.bf16.msra.mxu0 0
          %1471 = vmatpush.bf16.msra.mxu0 0
          %1472 = vmatpush.bf16.msra.mxu0 0
          %1473 = vmatpush.bf16.msra.mxu0 0
          %1474 = vmatpush.bf16.msra.mxu0 0
          %1475 = vmatpush.bf16.msra.mxu0 0
          %1476 = vmatpush.bf16.msra.mxu0 %v1461
          %1477 = vmatmul.bf16.gmra.mxu0 %v1365
          %v1478 = vpop.f32.mrf.mxu0
          %v1479 = vadd.f32 %v880, %v1478
          %v1480 = vpop.f32.mrf.mxu0
          %v1481 = vadd.f32 %v885, %v1480
          %1482 = vmatmul.bf16.gmra.mxu0 %v1368
          %v1483 = vpop.f32.mrf.mxu0
          %v1484 = vadd.f32 %v890, %v1483
          %v1485 = vpop.f32.mrf.mxu0
          %v1486 = vadd.f32 %v895, %v1485
          %1487 = vmatmul.bf16.gmra.mxu0 %v1371
          %v1488 = vpop.f32.mrf.mxu0
          %v1489 = vadd.f32 %v900, %v1488
          %v1490 = vpop.f32.mrf.mxu0
          %v1491 = vadd.f32 %v905, %v1490
          %1492 = vmatmul.bf16.gmra.mxu0 %v1374
          %v1493 = vpop.f32.mrf.mxu0
          %v1494 = vadd.f32 %v910, %v1493
          %v1495 = vpop.f32.mrf.mxu0
          %v1496 = vadd.f32 %v915, %v1495
          %1497 = vmatmul.bf16.gmra.mxu0 %v1377
          %v1498 = vpop.f32.mrf.mxu0
          %v1499 = vadd.f32 %v920, %v1498
          %v1500 = vpop.f32.mrf.mxu0
          %v1501 = vadd.f32 %v925, %v1500
          %1502 = vmatmul.bf16.gmra.mxu0 %v1380
          %v1503 = vpop.f32.mrf.mxu0
          %v1504 = vadd.f32 %v930, %v1503
          %v1505 = vpop.f32.mrf.mxu0
          %v1506 = vadd.f32 %v935, %v1505
          %1507 = vmatmul.bf16.gmra.mxu0 %v1383
          %v1508 = vpop.f32.mrf.mxu0
          %v1509 = vadd.f32 %v940, %v1508
          %v1510 = vpop.f32.mrf.mxu0
          %v1511 = vadd.f32 %v945, %v1510
          %1512 = vmatmul.bf16.gmra.mxu0 %v1386
          %v1513 = vpop.f32.mrf.mxu0
          %v1514 = vadd.f32 %v950, %v1513
          %v1515 = vpop.f32.mrf.mxu0
          %v1516 = vadd.f32 %v955, %v1515
          %1517 = vmatmul.bf16.gmra.mxu0 %v1389
          %v1518 = vpop.f32.mrf.mxu0
          %v1519 = vadd.f32 %v960, %v1518
          %v1520 = vpop.f32.mrf.mxu0
          %v1521 = vadd.f32 %v965, %v1520
          %1522 = vmatmul.bf16.gmra.mxu0 %v1392
          %v1523 = vpop.f32.mrf.mxu0
          %v1524 = vadd.f32 %v970, %v1523
          %v1525 = vpop.f32.mrf.mxu0
          %v1526 = vadd.f32 %v975, %v1525
          %1527 = vmatmul.bf16.gmra.mxu0 %v1395
          %v1528 = vpop.f32.mrf.mxu0
          %v1529 = vadd.f32 %v980, %v1528
          %v1530 = vpop.f32.mrf.mxu0
          %v1531 = vadd.f32 %v985, %v1530
          %1532 = vmatmul.bf16.gmra.mxu0 %v1398
          %v1533 = vpop.f32.mrf.mxu0
          %v1534 = vadd.f32 %v990, %v1533
          %v1535 = vpop.f32.mrf.mxu0
          %v1536 = vadd.f32 %v995, %v1535
          %1537 = vmatmul.bf16.gmra.mxu0 %v1401
          %v1538 = vpop.f32.mrf.mxu0
          %v1539 = vadd.f32 %v1000, %v1538
          %v1540 = vpop.f32.mrf.mxu0
          %v1541 = vadd.f32 %v1005, %v1540
          %1542 = vmatmul.bf16.gmra.mxu0 %v1404
          %v1543 = vpop.f32.mrf.mxu0
          %v1544 = vadd.f32 %v1010, %v1543
          %v1545 = vpop.f32.mrf.mxu0
          %v1546 = vadd.f32 %v1015, %v1545
          %1547 = vmatmul.bf16.gmra.mxu0 %v1407
          %v1548 = vpop.f32.mrf.mxu0
          %v1549 = vadd.f32 %v1020, %v1548
          %v1550 = vpop.f32.mrf.mxu0
          %v1551 = vadd.f32 %v1025, %v1550
          %1552 = vmatmul.bf16.gmra.mxu0 %v1410
          %v1553 = vpop.f32.mrf.mxu0
          %v1554 = vadd.f32 %v1030, %v1553
          %v1555 = vpop.f32.mrf.mxu0
          %v1556 = vadd.f32 %v1035, %v1555
          %1557 = vmatmul.bf16.gmra.mxu0 %v1413
          %v1558 = vpop.f32.mrf.mxu0
          %v1559 = vadd.f32 %v1040, %v1558
          %v1560 = vpop.f32.mrf.mxu0
          %v1561 = vadd.f32 %v1045, %v1560
          %1562 = vmatmul.bf16.gmra.mxu0 %v1416
          %v1563 = vpop.f32.mrf.mxu0
          %v1564 = vadd.f32 %v1050, %v1563
          %v1565 = vpop.f32.mrf.mxu0
          %v1566 = vadd.f32 %v1055, %v1565
          %1567 = vmatmul.bf16.gmra.mxu0 %v1419
          %v1568 = vpop.f32.mrf.mxu0
          %v1569 = vadd.f32 %v1060, %v1568
          %v1570 = vpop.f32.mrf.mxu0
          %v1571 = vadd.f32 %v1065, %v1570
          %1572 = vmatmul.bf16.gmra.mxu0 %v1422
          %v1573 = vpop.f32.mrf.mxu0
          %v1574 = vadd.f32 %v1070, %v1573
          %v1575 = vpop.f32.mrf.mxu0
          %v1576 = vadd.f32 %v1075, %v1575
          %1577 = vmatmul.bf16.gmra.mxu0 %v1425
          %v1578 = vpop.f32.mrf.mxu0
          %v1579 = vadd.f32 %v1080, %v1578
          %v1580 = vpop.f32.mrf.mxu0
          %v1581 = vadd.f32 %v1085, %v1580
          %1582 = vmatmul.bf16.gmra.mxu0 %v1428
          %v1583 = vpop.f32.mrf.mxu0
          %v1584 = vadd.f32 %v1090, %v1583
          %v1585 = vpop.f32.mrf.mxu0
          %v1586 = vadd.f32 %v1095, %v1585
          %1587 = vmatmul.bf16.gmra.mxu0 %v1431
          %v1588 = vpop.f32.mrf.mxu0
          %v1589 = vadd.f32 %v1100, %v1588
          %v1590 = vpop.f32.mrf.mxu0
          %v1591 = vadd.f32 %v1105, %v1590
          %1592 = vmatmul.bf16.gmra.mxu0 %v1434
          %v1593 = vpop.f32.mrf.mxu0
          %v1594 = vadd.f32 %v1110, %v1593
          %v1595 = vpop.f32.mrf.mxu0
          %v1596 = vadd.f32 %v1115, %v1595
          %1597 = vmatmul.bf16.gmra.mxu0 %v1437
          %v1598 = vpop.f32.mrf.mxu0
          %v1599 = vadd.f32 %v1120, %v1598
          %v1600 = vpop.f32.mrf.mxu0
          %v1601 = vadd.f32 %v1125, %v1600
          %1602 = vmatmul.bf16.gmra.mxu0 %v1440
          %v1603 = vpop.f32.mrf.mxu0
          %v1604 = vadd.f32 %v1130, %v1603
          %v1605 = vpop.f32.mrf.mxu0
          %v1606 = vadd.f32 %v1135, %v1605
          %1607 = vmatmul.bf16.gmra.mxu0 %v1443
          %v1608 = vpop.f32.mrf.mxu0
          %v1609 = vadd.f32 %v1140, %v1608
          %v1610 = vpop.f32.mrf.mxu0
          %v1611 = vadd.f32 %v1145, %v1610
          %1612 = vmatmul.bf16.gmra.mxu0 %v1446
          %v1613 = vpop.f32.mrf.mxu0
          %v1614 = vadd.f32 %v1150, %v1613
          %v1615 = vpop.f32.mrf.mxu0
          %v1616 = vadd.f32 %v1155, %v1615
          %1617 = vmatmul.bf16.gmra.mxu0 %v1449
          %v1618 = vpop.f32.mrf.mxu0
          %v1619 = vadd.f32 %v1160, %v1618
          %v1620 = vpop.f32.mrf.mxu0
          %v1621 = vadd.f32 %v1165, %v1620
          %1622 = vmatmul.bf16.gmra.mxu0 %v1452
          %v1623 = vpop.f32.mrf.mxu0
          %v1624 = vadd.f32 %v1170, %v1623
          %v1625 = vpop.f32.mrf.mxu0
          %v1626 = vadd.f32 %v1175, %v1625
          %1627 = vmatmul.bf16.gmra.mxu0 %v1455
          %v1628 = vpop.f32.mrf.mxu0
          %v1629 = vadd.f32 %v1180, %v1628
          %v1630 = vpop.f32.mrf.mxu0
          %v1631 = vadd.f32 %v1185, %v1630
          %1632 = vmatmul.bf16.gmra.mxu0 %v1458
          %v1633 = vpop.f32.mrf.mxu0
          %v1634 = vadd.f32 %v1190, %v1633
          %v1635 = vpop.f32.mrf.mxu0
          %v1636 = vadd.f32 %v1195, %v1635
          %1637 = vdwg.mxu0
          %1638 = vmatpush.bf16.msra.mxu0 0
          %1639 = vmatpush.bf16.msra.mxu0 0
          %1640 = vmatpush.bf16.msra.mxu0 0
          %1641 = vmatpush.bf16.msra.mxu0 0
          %1642 = vmatpush.bf16.msra.mxu0 0
          %1643 = vmatpush.bf16.msra.mxu0 0
          %1644 = vmatpush.bf16.msra.mxu0 0
          %1645 = vmatpush.bf16.msra.mxu0 %v1463
          %1646 = vmatmul.bf16.gmra.mxu0 %v1365
          %v1647 = vpop.f32.mrf.mxu0
          %v1648 = vadd.f32 %v880, %v1647
          %v1649 = vpop.f32.mrf.mxu0
          %v1650 = vadd.f32 %v885, %v1649
          %1651 = vmatmul.bf16.gmra.mxu0 %v1368
          %v1652 = vpop.f32.mrf.mxu0
          %v1653 = vadd.f32 %v890, %v1652
          %v1654 = vpop.f32.mrf.mxu0
          %v1655 = vadd.f32 %v895, %v1654
          %1656 = vmatmul.bf16.gmra.mxu0 %v1371
          %v1657 = vpop.f32.mrf.mxu0
          %v1658 = vadd.f32 %v900, %v1657
          %v1659 = vpop.f32.mrf.mxu0
          %v1660 = vadd.f32 %v905, %v1659
          %1661 = vmatmul.bf16.gmra.mxu0 %v1374
          %v1662 = vpop.f32.mrf.mxu0
          %v1663 = vadd.f32 %v910, %v1662
          %v1664 = vpop.f32.mrf.mxu0
          %v1665 = vadd.f32 %v915, %v1664
          %1666 = vmatmul.bf16.gmra.mxu0 %v1377
          %v1667 = vpop.f32.mrf.mxu0
          %v1668 = vadd.f32 %v920, %v1667
          %v1669 = vpop.f32.mrf.mxu0
          %v1670 = vadd.f32 %v925, %v1669
          %1671 = vmatmul.bf16.gmra.mxu0 %v1380
          %v1672 = vpop.f32.mrf.mxu0
          %v1673 = vadd.f32 %v930, %v1672
          %v1674 = vpop.f32.mrf.mxu0
          %v1675 = vadd.f32 %v935, %v1674
          %1676 = vmatmul.bf16.gmra.mxu0 %v1383
          %v1677 = vpop.f32.mrf.mxu0
          %v1678 = vadd.f32 %v940, %v1677
          %v1679 = vpop.f32.mrf.mxu0
          %v1680 = vadd.f32 %v945, %v1679
          %1681 = vmatmul.bf16.gmra.mxu0 %v1386
          %v1682 = vpop.f32.mrf.mxu0
          %v1683 = vadd.f32 %v950, %v1682
          %v1684 = vpop.f32.mrf.mxu0
          %v1685 = vadd.f32 %v955, %v1684
          %1686 = vmatmul.bf16.gmra.mxu0 %v1389
          %v1687 = vpop.f32.mrf.mxu0
          %v1688 = vadd.f32 %v960, %v1687
          %v1689 = vpop.f32.mrf.mxu0
          %v1690 = vadd.f32 %v965, %v1689
          %1691 = vmatmul.bf16.gmra.mxu0 %v1392
          %v1692 = vpop.f32.mrf.mxu0
          %v1693 = vadd.f32 %v970, %v1692
          %v1694 = vpop.f32.mrf.mxu0
          %v1695 = vadd.f32 %v975, %v1694
          %1696 = vmatmul.bf16.gmra.mxu0 %v1395
          %v1697 = vpop.f32.mrf.mxu0
          %v1698 = vadd.f32 %v980, %v1697
          %v1699 = vpop.f32.mrf.mxu0
          %v1700 = vadd.f32 %v985, %v1699
          %1701 = vmatmul.bf16.gmra.mxu0 %v1398
          %v1702 = vpop.f32.mrf.mxu0
          %v1703 = vadd.f32 %v990, %v1702
          %v1704 = vpop.f32.mrf.mxu0
          %v1705 = vadd.f32 %v995, %v1704
          %1706 = vmatmul.bf16.gmra.mxu0 %v1401
          %v1707 = vpop.f32.mrf.mxu0
          %v1708 = vadd.f32 %v1000, %v1707
          %v1709 = vpop.f32.mrf.mxu0
          %v1710 = vadd.f32 %v1005, %v1709
          %1711 = vmatmul.bf16.gmra.mxu0 %v1404
          %v1712 = vpop.f32.mrf.mxu0
          %v1713 = vadd.f32 %v1010, %v1712
          %v1714 = vpop.f32.mrf.mxu0
          %v1715 = vadd.f32 %v1015, %v1714
          %1716 = vmatmul.bf16.gmra.mxu0 %v1407
          %v1717 = vpop.f32.mrf.mxu0
          %v1718 = vadd.f32 %v1020, %v1717
          %v1719 = vpop.f32.mrf.mxu0
          %v1720 = vadd.f32 %v1025, %v1719
          %1721 = vmatmul.bf16.gmra.mxu0 %v1410
          %v1722 = vpop.f32.mrf.mxu0
          %v1723 = vadd.f32 %v1030, %v1722
          %v1724 = vpop.f32.mrf.mxu0
          %v1725 = vadd.f32 %v1035, %v1724
          %1726 = vmatmul.bf16.gmra.mxu0 %v1413
          %v1727 = vpop.f32.mrf.mxu0
          %v1728 = vadd.f32 %v1040, %v1727
          %v1729 = vpop.f32.mrf.mxu0
          %v1730 = vadd.f32 %v1045, %v1729
          %1731 = vmatmul.bf16.gmra.mxu0 %v1416
          %v1732 = vpop.f32.mrf.mxu0
          %v1733 = vadd.f32 %v1050, %v1732
          %v1734 = vpop.f32.mrf.mxu0
          %v1735 = vadd.f32 %v1055, %v1734
          %1736 = vmatmul.bf16.gmra.mxu0 %v1419
          %v1737 = vpop.f32.mrf.mxu0
          %v1738 = vadd.f32 %v1060, %v1737
          %v1739 = vpop.f32.mrf.mxu0
          %v1740 = vadd.f32 %v1065, %v1739
          %1741 = vmatmul.bf16.gmra.mxu0 %v1422
          %v1742 = vpop.f32.mrf.mxu0
          %v1743 = vadd.f32 %v1070, %v1742
          %v1744 = vpop.f32.mrf.mxu0
          %v1745 = vadd.f32 %v1075, %v1744
          %1746 = vmatmul.bf16.gmra.mxu0 %v1425
          %v1747 = vpop.f32.mrf.mxu0
          %v1748 = vadd.f32 %v1080, %v1747
          %v1749 = vpop.f32.mrf.mxu0
          %v1750 = vadd.f32 %v1085, %v1749
          %1751 = vmatmul.bf16.gmra.mxu0 %v1428
          %v1752 = vpop.f32.mrf.mxu0
          %v1753 = vadd.f32 %v1090, %v1752
          %v1754 = vpop.f32.mrf.mxu0
          %v1755 = vadd.f32 %v1095, %v1754
          %1756 = vmatmul.bf16.gmra.mxu0 %v1431
          %v1757 = vpop.f32.mrf.mxu0
          %v1758 = vadd.f32 %v1100, %v1757
          %v1759 = vpop.f32.mrf.mxu0
          %v1760 = vadd.f32 %v1105, %v1759
          %1761 = vmatmul.bf16.gmra.mxu0 %v1434
          %v1762 = vpop.f32.mrf.mxu0
          %v1763 = vadd.f32 %v1110, %v1762
          %v1764 = vpop.f32.mrf.mxu0
          %v1765 = vadd.f32 %v1115, %v1764
          %1766 = vmatmul.bf16.gmra.mxu0 %v1437
          %v1767 = vpop.f32.mrf.mxu0
          %v1768 = vadd.f32 %v1120, %v1767
          %v1769 = vpop.f32.mrf.mxu0
          %v1770 = vadd.f32 %v1125, %v1769
          %1771 = vmatmul.bf16.gmra.mxu0 %v1440
          %v1772 = vpop.f32.mrf.mxu0
          %v1773 = vadd.f32 %v1130, %v1772
          %v1774 = vpop.f32.mrf.mxu0
          %v1775 = vadd.f32 %v1135, %v1774
          %1776 = vmatmul.bf16.gmra.mxu0 %v1443
          %v1777 = vpop.f32.mrf.mxu0
          %v1778 = vadd.f32 %v1140, %v1777
          %v1779 = vpop.f32.mrf.mxu0
          %v1780 = vadd.f32 %v1145, %v1779
          %1781 = vmatmul.bf16.gmra.mxu0 %v1446
          %v1782 = vpop.f32.mrf.mxu0
          %v1783 = vadd.f32 %v1150, %v1782
          %v1784 = vpop.f32.mrf.mxu0
          %v1785 = vadd.f32 %v1155, %v1784
          %1786 = vmatmul.bf16.gmra.mxu0 %v1449
          %v1787 = vpop.f32.mrf.mxu0
          %v1788 = vadd.f32 %v1160, %v1787
          %v1789 = vpop.f32.mrf.mxu0
          %v1790 = vadd.f32 %v1165, %v1789
          %1791 = vmatmul.bf16.gmra.mxu0 %v1452
          %v1792 = vpop.f32.mrf.mxu0
          %v1793 = vadd.f32 %v1170, %v1792
          %v1794 = vpop.f32.mrf.mxu0
          %v1795 = vadd.f32 %v1175, %v1794
          %1796 = vmatmul.bf16.gmra.mxu0 %v1455
          %v1797 = vpop.f32.mrf.mxu0
          %v1798 = vadd.f32 %v1180, %v1797
          %v1799 = vpop.f32.mrf.mxu0
          %v1800 = vadd.f32 %v1185, %v1799
          %1801 = vmatmul.bf16.gmra.mxu0 %v1458
          %v1802 = vpop.f32.mrf.mxu0
          %v1803 = vadd.f32 %v1190, %v1802
          %v1804 = vpop.f32.mrf.mxu0
          %v1805 = vadd.f32 %v1195, %v1804
          %1806 = vdwg.mxu0
          %1807 = vmatpush.bf16.msra.mxu0 0
          %1808 = vmatpush.bf16.msra.mxu0 0
          %1809 = vmatpush.bf16.msra.mxu0 0
          %1810 = vmatpush.bf16.msra.mxu0 0
          %1811 = vmatpush.bf16.msra.mxu0 0
          %1812 = vmatpush.bf16.msra.mxu0 0
          %1813 = vmatpush.bf16.msra.mxu0 0
          %1814 = vmatpush.bf16.msra.mxu0 %v1465
          %1815 = vmatmul.bf16.gmra.mxu0 %v1365
          %v1816 = vpop.f32.mrf.mxu0
          %v1817 = vadd.f32 %v880, %v1816
          %v1818 = vpop.f32.mrf.mxu0
          %v1819 = vadd.f32 %v885, %v1818
          %1820 = vmatmul.bf16.gmra.mxu0 %v1368
          %v1821 = vpop.f32.mrf.mxu0
          %v1822 = vadd.f32 %v890, %v1821
          %v1823 = vpop.f32.mrf.mxu0
          %v1824 = vadd.f32 %v895, %v1823
          %1825 = vmatmul.bf16.gmra.mxu0 %v1371
          %v1826 = vpop.f32.mrf.mxu0
          %v1827 = vadd.f32 %v900, %v1826
          %v1828 = vpop.f32.mrf.mxu0
          %v1829 = vadd.f32 %v905, %v1828
          %1830 = vmatmul.bf16.gmra.mxu0 %v1374
          %v1831 = vpop.f32.mrf.mxu0
          %v1832 = vadd.f32 %v910, %v1831
          %v1833 = vpop.f32.mrf.mxu0
          %v1834 = vadd.f32 %v915, %v1833
          %1835 = vmatmul.bf16.gmra.mxu0 %v1377
          %v1836 = vpop.f32.mrf.mxu0
          %v1837 = vadd.f32 %v920, %v1836
          %v1838 = vpop.f32.mrf.mxu0
          %v1839 = vadd.f32 %v925, %v1838
          %1840 = vmatmul.bf16.gmra.mxu0 %v1380
          %v1841 = vpop.f32.mrf.mxu0
          %v1842 = vadd.f32 %v930, %v1841
          %v1843 = vpop.f32.mrf.mxu0
          %v1844 = vadd.f32 %v935, %v1843
          %1845 = vmatmul.bf16.gmra.mxu0 %v1383
          %v1846 = vpop.f32.mrf.mxu0
          %v1847 = vadd.f32 %v940, %v1846
          %v1848 = vpop.f32.mrf.mxu0
          %v1849 = vadd.f32 %v945, %v1848
          %1850 = vmatmul.bf16.gmra.mxu0 %v1386
          %v1851 = vpop.f32.mrf.mxu0
          %v1852 = vadd.f32 %v950, %v1851
          %v1853 = vpop.f32.mrf.mxu0
          %v1854 = vadd.f32 %v955, %v1853
          %1855 = vmatmul.bf16.gmra.mxu0 %v1389
          %v1856 = vpop.f32.mrf.mxu0
          %v1857 = vadd.f32 %v960, %v1856
          %v1858 = vpop.f32.mrf.mxu0
          %v1859 = vadd.f32 %v965, %v1858
          %1860 = vmatmul.bf16.gmra.mxu0 %v1392
          %v1861 = vpop.f32.mrf.mxu0
          %v1862 = vadd.f32 %v970, %v1861
          %v1863 = vpop.f32.mrf.mxu0
          %v1864 = vadd.f32 %v975, %v1863
          %1865 = vmatmul.bf16.gmra.mxu0 %v1395
          %v1866 = vpop.f32.mrf.mxu0
          %v1867 = vadd.f32 %v980, %v1866
          %v1868 = vpop.f32.mrf.mxu0
          %v1869 = vadd.f32 %v985, %v1868
          %1870 = vmatmul.bf16.gmra.mxu0 %v1398
          %v1871 = vpop.f32.mrf.mxu0
          %v1872 = vadd.f32 %v990, %v1871
          %v1873 = vpop.f32.mrf.mxu0
          %v1874 = vadd.f32 %v995, %v1873
          %1875 = vmatmul.bf16.gmra.mxu0 %v1401
          %v1876 = vpop.f32.mrf.mxu0
          %v1877 = vadd.f32 %v1000, %v1876
          %v1878 = vpop.f32.mrf.mxu0
          %v1879 = vadd.f32 %v1005, %v1878
          %1880 = vmatmul.bf16.gmra.mxu0 %v1404
          %v1881 = vpop.f32.mrf.mxu0
          %v1882 = vadd.f32 %v1010, %v1881
          %v1883 = vpop.f32.mrf.mxu0
          %v1884 = vadd.f32 %v1015, %v1883
          %1885 = vmatmul.bf16.gmra.mxu0 %v1407
          %v1886 = vpop.f32.mrf.mxu0
          %v1887 = vadd.f32 %v1020, %v1886
          %v1888 = vpop.f32.mrf.mxu0
          %v1889 = vadd.f32 %v1025, %v1888
          %1890 = vmatmul.bf16.gmra.mxu0 %v1410
          %v1891 = vpop.f32.mrf.mxu0
          %v1892 = vadd.f32 %v1030, %v1891
          %v1893 = vpop.f32.mrf.mxu0
          %v1894 = vadd.f32 %v1035, %v1893
          %1895 = vmatmul.bf16.gmra.mxu0 %v1413
          %v1896 = vpop.f32.mrf.mxu0
          %v1897 = vadd.f32 %v1040, %v1896
          %v1898 = vpop.f32.mrf.mxu0
          %v1899 = vadd.f32 %v1045, %v1898
          %1900 = vmatmul.bf16.gmra.mxu0 %v1416
          %v1901 = vpop.f32.mrf.mxu0
          %v1902 = vadd.f32 %v1050, %v1901
          %v1903 = vpop.f32.mrf.mxu0
          %v1904 = vadd.f32 %v1055, %v1903
          %1905 = vmatmul.bf16.gmra.mxu0 %v1419
          %v1906 = vpop.f32.mrf.mxu0
          %v1907 = vadd.f32 %v1060, %v1906
          %v1908 = vpop.f32.mrf.mxu0
          %v1909 = vadd.f32 %v1065, %v1908
          %1910 = vmatmul.bf16.gmra.mxu0 %v1422
          %v1911 = vpop.f32.mrf.mxu0
          %v1912 = vadd.f32 %v1070, %v1911
          %v1913 = vpop.f32.mrf.mxu0
          %v1914 = vadd.f32 %v1075, %v1913
          %1915 = vmatmul.bf16.gmra.mxu0 %v1425
          %v1916 = vpop.f32.mrf.mxu0
          %v1917 = vadd.f32 %v1080, %v1916
          %v1918 = vpop.f32.mrf.mxu0
          %v1919 = vadd.f32 %v1085, %v1918
          %1920 = vmatmul.bf16.gmra.mxu0 %v1428
          %v1921 = vpop.f32.mrf.mxu0
          %v1922 = vadd.f32 %v1090, %v1921
          %v1923 = vpop.f32.mrf.mxu0
          %v1924 = vadd.f32 %v1095, %v1923
          %1925 = vmatmul.bf16.gmra.mxu0 %v1431
          %v1926 = vpop.f32.mrf.mxu0
          %v1927 = vadd.f32 %v1100, %v1926
          %v1928 = vpop.f32.mrf.mxu0
          %v1929 = vadd.f32 %v1105, %v1928
          %1930 = vmatmul.bf16.gmra.mxu0 %v1434
          %v1931 = vpop.f32.mrf.mxu0
          %v1932 = vadd.f32 %v1110, %v1931
          %v1933 = vpop.f32.mrf.mxu0
          %v1934 = vadd.f32 %v1115, %v1933
          %1935 = vmatmul.bf16.gmra.mxu0 %v1437
          %v1936 = vpop.f32.mrf.mxu0
          %v1937 = vadd.f32 %v1120, %v1936
          %v1938 = vpop.f32.mrf.mxu0
          %v1939 = vadd.f32 %v1125, %v1938
          %1940 = vmatmul.bf16.gmra.mxu0 %v1440
          %v1941 = vpop.f32.mrf.mxu0
          %v1942 = vadd.f32 %v1130, %v1941
          %v1943 = vpop.f32.mrf.mxu0
          %v1944 = vadd.f32 %v1135, %v1943
          %1945 = vmatmul.bf16.gmra.mxu0 %v1443
          %v1946 = vpop.f32.mrf.mxu0
          %v1947 = vadd.f32 %v1140, %v1946
          %v1948 = vpop.f32.mrf.mxu0
          %v1949 = vadd.f32 %v1145, %v1948
          %1950 = vmatmul.bf16.gmra.mxu0 %v1446
          %v1951 = vpop.f32.mrf.mxu0
          %v1952 = vadd.f32 %v1150, %v1951
          %v1953 = vpop.f32.mrf.mxu0
          %v1954 = vadd.f32 %v1155, %v1953
          %1955 = vmatmul.bf16.gmra.mxu0 %v1449
          %v1956 = vpop.f32.mrf.mxu0
          %v1957 = vadd.f32 %v1160, %v1956
          %v1958 = vpop.f32.mrf.mxu0
          %v1959 = vadd.f32 %v1165, %v1958
          %1960 = vmatmul.bf16.gmra.mxu0 %v1452
          %v1961 = vpop.f32.mrf.mxu0
          %v1962 = vadd.f32 %v1170, %v1961
          %v1963 = vpop.f32.mrf.mxu0
          %v1964 = vadd.f32 %v1175, %v1963
          %1965 = vmatmul.bf16.gmra.mxu0 %v1455
          %v1966 = vpop.f32.mrf.mxu0
          %v1967 = vadd.f32 %v1180, %v1966
          %v1968 = vpop.f32.mrf.mxu0
          %v1969 = vadd.f32 %v1185, %v1968
          %1970 = vmatmul.bf16.gmra.mxu0 %v1458
          %v1971 = vpop.f32.mrf.mxu0
          %v1972 = vadd.f32 %v1190, %v1971
          %v1973 = vpop.f32.mrf.mxu0
          %v1974 = vadd.f32 %v1195, %v1973
          %1975 = vdwg.mxu0
          %1976 = vmatpush.bf16.msra.mxu0 0
          %1977 = vmatpush.bf16.msra.mxu0 0
          %1978 = vmatpush.bf16.msra.mxu0 0
          %1979 = vmatpush.bf16.msra.mxu0 0
          %1980 = vmatpush.bf16.msra.mxu0 0
          %1981 = vmatpush.bf16.msra.mxu0 0
          %1982 = vmatpush.bf16.msra.mxu0 0
          %1983 = vmatpush.bf16.msra.mxu0 %v1467
          %1984 = vmatmul.bf16.gmra.mxu0 %v1365
          %v1985 = vpop.f32.mrf.mxu0
          %v1986 = vadd.f32 %v880, %v1985
          %v1987 = vpop.f32.mrf.mxu0
          %v1988 = vadd.f32 %v885, %v1987
          %1989 = vmatmul.bf16.gmra.mxu0 %v1368
          %v1990 = vpop.f32.mrf.mxu0
          %v1991 = vadd.f32 %v890, %v1990
          %v1992 = vpop.f32.mrf.mxu0
          %v1993 = vadd.f32 %v895, %v1992
          %1994 = vmatmul.bf16.gmra.mxu0 %v1371
          %v1995 = vpop.f32.mrf.mxu0
          %v1996 = vadd.f32 %v900, %v1995
          %v1997 = vpop.f32.mrf.mxu0
          %v1998 = vadd.f32 %v905, %v1997
          %1999 = vmatmul.bf16.gmra.mxu0 %v1374
          %v2000 = vpop.f32.mrf.mxu0
          %v2001 = vadd.f32 %v910, %v2000
          %v2002 = vpop.f32.mrf.mxu0
          %v2003 = vadd.f32 %v915, %v2002
          %2004 = vmatmul.bf16.gmra.mxu0 %v1377
          %v2005 = vpop.f32.mrf.mxu0
          %v2006 = vadd.f32 %v920, %v2005
          %v2007 = vpop.f32.mrf.mxu0
          %v2008 = vadd.f32 %v925, %v2007
          %2009 = vmatmul.bf16.gmra.mxu0 %v1380
          %v2010 = vpop.f32.mrf.mxu0
          %v2011 = vadd.f32 %v930, %v2010
          %v2012 = vpop.f32.mrf.mxu0
          %v2013 = vadd.f32 %v935, %v2012
          %2014 = vmatmul.bf16.gmra.mxu0 %v1383
          %v2015 = vpop.f32.mrf.mxu0
          %v2016 = vadd.f32 %v940, %v2015
          %v2017 = vpop.f32.mrf.mxu0
          %v2018 = vadd.f32 %v945, %v2017
          %2019 = vmatmul.bf16.gmra.mxu0 %v1386
          %v2020 = vpop.f32.mrf.mxu0
          %v2021 = vadd.f32 %v950, %v2020
          %v2022 = vpop.f32.mrf.mxu0
          %v2023 = vadd.f32 %v955, %v2022
          %2024 = vmatmul.bf16.gmra.mxu0 %v1389
          %v2025 = vpop.f32.mrf.mxu0
          %v2026 = vadd.f32 %v960, %v2025
          %v2027 = vpop.f32.mrf.mxu0
          %v2028 = vadd.f32 %v965, %v2027
          %2029 = vmatmul.bf16.gmra.mxu0 %v1392
          %v2030 = vpop.f32.mrf.mxu0
          %v2031 = vadd.f32 %v970, %v2030
          %v2032 = vpop.f32.mrf.mxu0
          %v2033 = vadd.f32 %v975, %v2032
          %2034 = vmatmul.bf16.gmra.mxu0 %v1395
          %v2035 = vpop.f32.mrf.mxu0
          %v2036 = vadd.f32 %v980, %v2035
          %v2037 = vpop.f32.mrf.mxu0
          %v2038 = vadd.f32 %v985, %v2037
          %2039 = vmatmul.bf16.gmra.mxu0 %v1398
          %v2040 = vpop.f32.mrf.mxu0
          %v2041 = vadd.f32 %v990, %v2040
          %v2042 = vpop.f32.mrf.mxu0
          %v2043 = vadd.f32 %v995, %v2042
          %2044 = vmatmul.bf16.gmra.mxu0 %v1401
          %v2045 = vpop.f32.mrf.mxu0
          %v2046 = vadd.f32 %v1000, %v2045
          %v2047 = vpop.f32.mrf.mxu0
          %v2048 = vadd.f32 %v1005, %v2047
          %2049 = vmatmul.bf16.gmra.mxu0 %v1404
          %v2050 = vpop.f32.mrf.mxu0
          %v2051 = vadd.f32 %v1010, %v2050
          %v2052 = vpop.f32.mrf.mxu0
          %v2053 = vadd.f32 %v1015, %v2052
          %2054 = vmatmul.bf16.gmra.mxu0 %v1407
          %v2055 = vpop.f32.mrf.mxu0
          %v2056 = vadd.f32 %v1020, %v2055
          %v2057 = vpop.f32.mrf.mxu0
          %v2058 = vadd.f32 %v1025, %v2057
          %2059 = vmatmul.bf16.gmra.mxu0 %v1410
          %v2060 = vpop.f32.mrf.mxu0
          %v2061 = vadd.f32 %v1030, %v2060
          %v2062 = vpop.f32.mrf.mxu0
          %v2063 = vadd.f32 %v1035, %v2062
          %2064 = vmatmul.bf16.gmra.mxu0 %v1413
          %v2065 = vpop.f32.mrf.mxu0
          %v2066 = vadd.f32 %v1040, %v2065
          %v2067 = vpop.f32.mrf.mxu0
          %v2068 = vadd.f32 %v1045, %v2067
          %2069 = vmatmul.bf16.gmra.mxu0 %v1416
          %v2070 = vpop.f32.mrf.mxu0
          %v2071 = vadd.f32 %v1050, %v2070
          %v2072 = vpop.f32.mrf.mxu0
          %v2073 = vadd.f32 %v1055, %v2072
          %2074 = vmatmul.bf16.gmra.mxu0 %v1419
          %v2075 = vpop.f32.mrf.mxu0
          %v2076 = vadd.f32 %v1060, %v2075
          %v2077 = vpop.f32.mrf.mxu0
          %v2078 = vadd.f32 %v1065, %v2077
          %2079 = vmatmul.bf16.gmra.mxu0 %v1422
          %v2080 = vpop.f32.mrf.mxu0
          %v2081 = vadd.f32 %v1070, %v2080
          %v2082 = vpop.f32.mrf.mxu0
          %v2083 = vadd.f32 %v1075, %v2082
          %2084 = vmatmul.bf16.gmra.mxu0 %v1425
          %v2085 = vpop.f32.mrf.mxu0
          %v2086 = vadd.f32 %v1080, %v2085
          %v2087 = vpop.f32.mrf.mxu0
          %v2088 = vadd.f32 %v1085, %v2087
          %2089 = vmatmul.bf16.gmra.mxu0 %v1428
          %v2090 = vpop.f32.mrf.mxu0
          %v2091 = vadd.f32 %v1090, %v2090
          %v2092 = vpop.f32.mrf.mxu0
          %v2093 = vadd.f32 %v1095, %v2092
          %2094 = vmatmul.bf16.gmra.mxu0 %v1431
          %v2095 = vpop.f32.mrf.mxu0
          %v2096 = vadd.f32 %v1100, %v2095
          %v2097 = vpop.f32.mrf.mxu0
          %v2098 = vadd.f32 %v1105, %v2097
          %2099 = vmatmul.bf16.gmra.mxu0 %v1434
          %v2100 = vpop.f32.mrf.mxu0
          %v2101 = vadd.f32 %v1110, %v2100
          %v2102 = vpop.f32.mrf.mxu0
          %v2103 = vadd.f32 %v1115, %v2102
          %2104 = vmatmul.bf16.gmra.mxu0 %v1437
          %v2105 = vpop.f32.mrf.mxu0
          %v2106 = vadd.f32 %v1120, %v2105
          %v2107 = vpop.f32.mrf.mxu0
          %v2108 = vadd.f32 %v1125, %v2107
          %2109 = vmatmul.bf16.gmra.mxu0 %v1440
          %v2110 = vpop.f32.mrf.mxu0
          %v2111 = vadd.f32 %v1130, %v2110
          %v2112 = vpop.f32.mrf.mxu0
          %v2113 = vadd.f32 %v1135, %v2112
          %2114 = vmatmul.bf16.gmra.mxu0 %v1443
          %v2115 = vpop.f32.mrf.mxu0
          %v2116 = vadd.f32 %v1140, %v2115
          %v2117 = vpop.f32.mrf.mxu0
          %v2118 = vadd.f32 %v1145, %v2117
          %2119 = vmatmul.bf16.gmra.mxu0 %v1446
          %v2120 = vpop.f32.mrf.mxu0
          %v2121 = vadd.f32 %v1150, %v2120
          %v2122 = vpop.f32.mrf.mxu0
          %v2123 = vadd.f32 %v1155, %v2122
          %2124 = vmatmul.bf16.gmra.mxu0 %v1449
          %v2125 = vpop.f32.mrf.mxu0
          %v2126 = vadd.f32 %v1160, %v2125
          %v2127 = vpop.f32.mrf.mxu0
          %v2128 = vadd.f32 %v1165, %v2127
          %2129 = vmatmul.bf16.gmra.mxu0 %v1452
          %v2130 = vpop.f32.mrf.mxu0
          %v2131 = vadd.f32 %v1170, %v2130
          %v2132 = vpop.f32.mrf.mxu0
          %v2133 = vadd.f32 %v1175, %v2132
          %2134 = vmatmul.bf16.gmra.mxu0 %v1455
          %v2135 = vpop.f32.mrf.mxu0
          %v2136 = vadd.f32 %v1180, %v2135
          %v2137 = vpop.f32.mrf.mxu0
          %v2138 = vadd.f32 %v1185, %v2137
          %2139 = vmatmul.bf16.gmra.mxu0 %v1458
          %v2140 = vpop.f32.mrf.mxu0
          %v2141 = vadd.f32 %v1190, %v2140
          %v2142 = vpop.f32.mrf.mxu0
          %v2143 = vadd.f32 %v1195, %v2142
          %2144 = vdwg.mxu0
          %v2145 = vmax.f32 %v1479, 0.0
          %v2146 = vmax.f32 %v1648, 0.0
          %v2147 = vmax.f32 %v1817, 0.0
          %v2148 = vmax.f32 %v1986, 0.0
          %v2149 = vmax.f32 %v1481, 0.0
          %v2150 = vmax.f32 %v1650, 0.0
          %v2151 = vmax.f32 %v1819, 0.0
          %v2152 = vmax.f32 %v1988, 0.0
          %v2153 = vmax.f32 %v1484, 0.0
          %v2154 = vmax.f32 %v1653, 0.0
          %v2155 = vmax.f32 %v1822, 0.0
          %v2156 = vmax.f32 %v1991, 0.0
          %v2157 = vmax.f32 %v1486, 0.0
          %v2158 = vmax.f32 %v1655, 0.0
          %v2159 = vmax.f32 %v1824, 0.0
          %v2160 = vmax.f32 %v1993, 0.0
          %v2161 = vmax.f32 %v1489, 0.0
          %v2162 = vmax.f32 %v1658, 0.0
          %v2163 = vmax.f32 %v1827, 0.0
          %v2164 = vmax.f32 %v1996, 0.0
          %v2165 = vmax.f32 %v1491, 0.0
          %v2166 = vmax.f32 %v1660, 0.0
          %v2167 = vmax.f32 %v1829, 0.0
          %v2168 = vmax.f32 %v1998, 0.0
          %v2169 = vmax.f32 %v1494, 0.0
          %v2170 = vmax.f32 %v1663, 0.0
          %v2171 = vmax.f32 %v1832, 0.0
          %v2172 = vmax.f32 %v2001, 0.0
          %v2173 = vmax.f32 %v1496, 0.0
          %v2174 = vmax.f32 %v1665, 0.0
          %v2175 = vmax.f32 %v1834, 0.0
          %v2176 = vmax.f32 %v2003, 0.0
          %v2177 = vmax.f32 %v1499, 0.0
          %v2178 = vmax.f32 %v1668, 0.0
          %v2179 = vmax.f32 %v1837, 0.0
          %v2180 = vmax.f32 %v2006, 0.0
          %v2181 = vmax.f32 %v1501, 0.0
          %v2182 = vmax.f32 %v1670, 0.0
          %v2183 = vmax.f32 %v1839, 0.0
          %v2184 = vmax.f32 %v2008, 0.0
          %v2185 = vmax.f32 %v1504, 0.0
          %v2186 = vmax.f32 %v1673, 0.0
          %v2187 = vmax.f32 %v1842, 0.0
          %v2188 = vmax.f32 %v2011, 0.0
          %v2189 = vmax.f32 %v1506, 0.0
          %v2190 = vmax.f32 %v1675, 0.0
          %v2191 = vmax.f32 %v1844, 0.0
          %v2192 = vmax.f32 %v2013, 0.0
          %v2193 = vmax.f32 %v1509, 0.0
          %v2194 = vmax.f32 %v1678, 0.0
          %v2195 = vmax.f32 %v1847, 0.0
          %v2196 = vmax.f32 %v2016, 0.0
          %v2197 = vmax.f32 %v1511, 0.0
          %v2198 = vmax.f32 %v1680, 0.0
          %v2199 = vmax.f32 %v1849, 0.0
          %v2200 = vmax.f32 %v2018, 0.0
          %v2201 = vmax.f32 %v1514, 0.0
          %v2202 = vmax.f32 %v1683, 0.0
          %v2203 = vmax.f32 %v1852, 0.0
          %v2204 = vmax.f32 %v2021, 0.0
          %v2205 = vmax.f32 %v1516, 0.0
          %v2206 = vmax.f32 %v1685, 0.0
          %v2207 = vmax.f32 %v1854, 0.0
          %v2208 = vmax.f32 %v2023, 0.0
          %v2209 = vmax.f32 %v1519, 0.0
          %v2210 = vmax.f32 %v1688, 0.0
          %v2211 = vmax.f32 %v1857, 0.0
          %v2212 = vmax.f32 %v2026, 0.0
          %v2213 = vmax.f32 %v1521, 0.0
          %v2214 = vmax.f32 %v1690, 0.0
          %v2215 = vmax.f32 %v1859, 0.0
          %v2216 = vmax.f32 %v2028, 0.0
          %v2217 = vmax.f32 %v1524, 0.0
          %v2218 = vmax.f32 %v1693, 0.0
          %v2219 = vmax.f32 %v1862, 0.0
          %v2220 = vmax.f32 %v2031, 0.0
          %v2221 = vmax.f32 %v1526, 0.0
          %v2222 = vmax.f32 %v1695, 0.0
          %v2223 = vmax.f32 %v1864, 0.0
          %v2224 = vmax.f32 %v2033, 0.0
          %v2225 = vmax.f32 %v1529, 0.0
          %v2226 = vmax.f32 %v1698, 0.0
          %v2227 = vmax.f32 %v1867, 0.0
          %v2228 = vmax.f32 %v2036, 0.0
          %v2229 = vmax.f32 %v1531, 0.0
          %v2230 = vmax.f32 %v1700, 0.0
          %v2231 = vmax.f32 %v1869, 0.0
          %v2232 = vmax.f32 %v2038, 0.0
          %v2233 = vmax.f32 %v1534, 0.0
          %v2234 = vmax.f32 %v1703, 0.0
          %v2235 = vmax.f32 %v1872, 0.0
          %v2236 = vmax.f32 %v2041, 0.0
          %v2237 = vmax.f32 %v1536, 0.0
          %v2238 = vmax.f32 %v1705, 0.0
          %v2239 = vmax.f32 %v1874, 0.0
          %v2240 = vmax.f32 %v2043, 0.0
          %v2241 = vmax.f32 %v1539, 0.0
          %v2242 = vmax.f32 %v1708, 0.0
          %v2243 = vmax.f32 %v1877, 0.0
          %v2244 = vmax.f32 %v2046, 0.0
          %v2245 = vmax.f32 %v1541, 0.0
          %v2246 = vmax.f32 %v1710, 0.0
          %v2247 = vmax.f32 %v1879, 0.0
          %v2248 = vmax.f32 %v2048, 0.0
          %v2249 = vmax.f32 %v1544, 0.0
          %v2250 = vmax.f32 %v1713, 0.0
          %v2251 = vmax.f32 %v1882, 0.0
          %v2252 = vmax.f32 %v2051, 0.0
          %v2253 = vmax.f32 %v1546, 0.0
          %v2254 = vmax.f32 %v1715, 0.0
          %v2255 = vmax.f32 %v1884, 0.0
          %v2256 = vmax.f32 %v2053, 0.0
          %v2257 = vmax.f32 %v1549, 0.0
          %v2258 = vmax.f32 %v1718, 0.0
          %v2259 = vmax.f32 %v1887, 0.0
          %v2260 = vmax.f32 %v2056, 0.0
          %v2261 = vmax.f32 %v1551, 0.0
          %v2262 = vmax.f32 %v1720, 0.0
          %v2263 = vmax.f32 %v1889, 0.0
          %v2264 = vmax.f32 %v2058, 0.0
          %v2265 = vmax.f32 %v1554, 0.0
          %v2266 = vmax.f32 %v1723, 0.0
          %v2267 = vmax.f32 %v1892, 0.0
          %v2268 = vmax.f32 %v2061, 0.0
          %v2269 = vmax.f32 %v1556, 0.0
          %v2270 = vmax.f32 %v1725, 0.0
          %v2271 = vmax.f32 %v1894, 0.0
          %v2272 = vmax.f32 %v2063, 0.0
          %v2273 = vmax.f32 %v1559, 0.0
          %v2274 = vmax.f32 %v1728, 0.0
          %v2275 = vmax.f32 %v1897, 0.0
          %v2276 = vmax.f32 %v2066, 0.0
          %v2277 = vmax.f32 %v1561, 0.0
          %v2278 = vmax.f32 %v1730, 0.0
          %v2279 = vmax.f32 %v1899, 0.0
          %v2280 = vmax.f32 %v2068, 0.0
          %v2281 = vmax.f32 %v1564, 0.0
          %v2282 = vmax.f32 %v1733, 0.0
          %v2283 = vmax.f32 %v1902, 0.0
          %v2284 = vmax.f32 %v2071, 0.0
          %v2285 = vmax.f32 %v1566, 0.0
          %v2286 = vmax.f32 %v1735, 0.0
          %v2287 = vmax.f32 %v1904, 0.0
          %v2288 = vmax.f32 %v2073, 0.0
          %v2289 = vmax.f32 %v1569, 0.0
          %v2290 = vmax.f32 %v1738, 0.0
          %v2291 = vmax.f32 %v1907, 0.0
          %v2292 = vmax.f32 %v2076, 0.0
          %v2293 = vmax.f32 %v1571, 0.0
          %v2294 = vmax.f32 %v1740, 0.0
          %v2295 = vmax.f32 %v1909, 0.0
          %v2296 = vmax.f32 %v2078, 0.0
          %v2297 = vmax.f32 %v1574, 0.0
          %v2298 = vmax.f32 %v1743, 0.0
          %v2299 = vmax.f32 %v1912, 0.0
          %v2300 = vmax.f32 %v2081, 0.0
          %v2301 = vmax.f32 %v1576, 0.0
          %v2302 = vmax.f32 %v1745, 0.0
          %v2303 = vmax.f32 %v1914, 0.0
          %v2304 = vmax.f32 %v2083, 0.0
          %v2305 = vmax.f32 %v1579, 0.0
          %v2306 = vmax.f32 %v1748, 0.0
          %v2307 = vmax.f32 %v1917, 0.0
          %v2308 = vmax.f32 %v2086, 0.0
          %v2309 = vmax.f32 %v1581, 0.0
          %v2310 = vmax.f32 %v1750, 0.0
          %v2311 = vmax.f32 %v1919, 0.0
          %v2312 = vmax.f32 %v2088, 0.0
          %v2313 = vmax.f32 %v1584, 0.0
          %v2314 = vmax.f32 %v1753, 0.0
          %v2315 = vmax.f32 %v1922, 0.0
          %v2316 = vmax.f32 %v2091, 0.0
          %v2317 = vmax.f32 %v1586, 0.0
          %v2318 = vmax.f32 %v1755, 0.0
          %v2319 = vmax.f32 %v1924, 0.0
          %v2320 = vmax.f32 %v2093, 0.0
          %v2321 = vmax.f32 %v1589, 0.0
          %v2322 = vmax.f32 %v1758, 0.0
          %v2323 = vmax.f32 %v1927, 0.0
          %v2324 = vmax.f32 %v2096, 0.0
          %v2325 = vmax.f32 %v1591, 0.0
          %v2326 = vmax.f32 %v1760, 0.0
          %v2327 = vmax.f32 %v1929, 0.0
          %v2328 = vmax.f32 %v2098, 0.0
          %v2329 = vmax.f32 %v1594, 0.0
          %v2330 = vmax.f32 %v1763, 0.0
          %v2331 = vmax.f32 %v1932, 0.0
          %v2332 = vmax.f32 %v2101, 0.0
          %v2333 = vmax.f32 %v1596, 0.0
          %v2334 = vmax.f32 %v1765, 0.0
          %v2335 = vmax.f32 %v1934, 0.0
          %v2336 = vmax.f32 %v2103, 0.0
          %v2337 = vmax.f32 %v1599, 0.0
          %v2338 = vmax.f32 %v1768, 0.0
          %v2339 = vmax.f32 %v1937, 0.0
          %v2340 = vmax.f32 %v2106, 0.0
          %v2341 = vmax.f32 %v1601, 0.0
          %v2342 = vmax.f32 %v1770, 0.0
          %v2343 = vmax.f32 %v1939, 0.0
          %v2344 = vmax.f32 %v2108, 0.0
          %v2345 = vmax.f32 %v1604, 0.0
          %v2346 = vmax.f32 %v1773, 0.0
          %v2347 = vmax.f32 %v1942, 0.0
          %v2348 = vmax.f32 %v2111, 0.0
          %v2349 = vmax.f32 %v1606, 0.0
          %v2350 = vmax.f32 %v1775, 0.0
          %v2351 = vmax.f32 %v1944, 0.0
          %v2352 = vmax.f32 %v2113, 0.0
          %v2353 = vmax.f32 %v1609, 0.0
          %v2354 = vmax.f32 %v1778, 0.0
          %v2355 = vmax.f32 %v1947, 0.0
          %v2356 = vmax.f32 %v2116, 0.0
          %v2357 = vmax.f32 %v1611, 0.0
          %v2358 = vmax.f32 %v1780, 0.0
          %v2359 = vmax.f32 %v1949, 0.0
          %v2360 = vmax.f32 %v2118, 0.0
          %v2361 = vmax.f32 %v1614, 0.0
          %v2362 = vmax.f32 %v1783, 0.0
          %v2363 = vmax.f32 %v1952, 0.0
          %v2364 = vmax.f32 %v2121, 0.0
          %v2365 = vmax.f32 %v1616, 0.0
          %v2366 = vmax.f32 %v1785, 0.0
          %v2367 = vmax.f32 %v1954, 0.0
          %v2368 = vmax.f32 %v2123, 0.0
          %v2369 = vmax.f32 %v1619, 0.0
          %v2370 = vmax.f32 %v1788, 0.0
          %v2371 = vmax.f32 %v1957, 0.0
          %v2372 = vmax.f32 %v2126, 0.0
          %v2373 = vmax.f32 %v1621, 0.0
          %v2374 = vmax.f32 %v1790, 0.0
          %v2375 = vmax.f32 %v1959, 0.0
          %v2376 = vmax.f32 %v2128, 0.0
          %v2377 = vmax.f32 %v1624, 0.0
          %v2378 = vmax.f32 %v1793, 0.0
          %v2379 = vmax.f32 %v1962, 0.0
          %v2380 = vmax.f32 %v2131, 0.0
          %v2381 = vmax.f32 %v1626, 0.0
          %v2382 = vmax.f32 %v1795, 0.0
          %v2383 = vmax.f32 %v1964, 0.0
          %v2384 = vmax.f32 %v2133, 0.0
          %v2385 = vmax.f32 %v1629, 0.0
          %v2386 = vmax.f32 %v1798, 0.0
          %v2387 = vmax.f32 %v1967, 0.0
          %v2388 = vmax.f32 %v2136, 0.0
          %v2389 = vmax.f32 %v1631, 0.0
          %v2390 = vmax.f32 %v1800, 0.0
          %v2391 = vmax.f32 %v1969, 0.0
          %v2392 = vmax.f32 %v2138, 0.0
          %v2393 = vmax.f32 %v1634, 0.0
          %v2394 = vmax.f32 %v1803, 0.0
          %v2395 = vmax.f32 %v1972, 0.0
          %v2396 = vmax.f32 %v2141, 0.0
          %v2397 = vmax.f32 %v1636, 0.0
          %v2398 = vmax.f32 %v1805, 0.0
          %v2399 = vmax.f32 %v1974, 0.0
          %v2400 = vmax.f32 %v2143, 0.0
          %v2401 = vld [vmem:[#allocation2] sm:$0xff]
          %v2402 = vld [vmem:[#allocation2 + $0x8] sm:$0xff]
          %v2403 = vld [vmem:[#allocation2 + $0x10] sm:$0xff]
          %v2404 = vld [vmem:[#allocation2 + $0x18] sm:$0xff]
          %v2405 = vld [vmem:[#allocation2 + $0x20] sm:$0xff]
          %v2406 = vld [vmem:[#allocation2 + $0x28] sm:$0xff]
          %v2407 = vld [vmem:[#allocation2 + $0x30] sm:$0xff]
          %v2408 = vld [vmem:[#allocation2 + $0x38] sm:$0xff]
          %v2409 = vld [vmem:[#allocation2 + $0x40] sm:$0xff]
          %v2410 = vld [vmem:[#allocation2 + $0x48] sm:$0xff]
          %v2411 = vld [vmem:[#allocation2 + $0x50] sm:$0xff]
          %v2412 = vld [vmem:[#allocation2 + $0x58] sm:$0xff]
          %v2413 = vld [vmem:[#allocation2 + $0x60] sm:$0xff]
          %v2414 = vld [vmem:[#allocation2 + $0x68] sm:$0xff]
          %v2415 = vld [vmem:[#allocation2 + $0x70] sm:$0xff]
          %v2416 = vld [vmem:[#allocation2 + $0x78] sm:$0xff]
          %v2417 = vld [vmem:[#allocation2 + $0x80] sm:$0xff]
          %v2418 = vld [vmem:[#allocation2 + $0x88] sm:$0xff]
          %v2419 = vld [vmem:[#allocation2 + $0x90] sm:$0xff]
          %v2420 = vld [vmem:[#allocation2 + $0x98] sm:$0xff]
          %v2421 = vld [vmem:[#allocation2 + $0xa0] sm:$0xff]
          %v2422 = vld [vmem:[#allocation2 + $0xa8] sm:$0xff]
          %v2423 = vld [vmem:[#allocation2 + $0xb0] sm:$0xff]
          %v2424 = vld [vmem:[#allocation2 + $0xb8] sm:$0xff]
          %v2425 = vld [vmem:[#allocation2 + $0xc0] sm:$0xff]
          %v2426 = vld [vmem:[#allocation2 + $0xc8] sm:$0xff]
          %v2427 = vld [vmem:[#allocation2 + $0xd0] sm:$0xff]
          %v2428 = vld [vmem:[#allocation2 + $0xd8] sm:$0xff]
          %v2429 = vld [vmem:[#allocation2 + $0xe0] sm:$0xff]
          %v2430 = vld [vmem:[#allocation2 + $0xe8] sm:$0xff]
          %v2431 = vld [vmem:[#allocation2 + $0xf0] sm:$0xff]
          %v2432 = vld [vmem:[#allocation2 + $0xf8] sm:$0xff]
          %v2433 = vld [vmem:[#allocation2 + $0x100] sm:$0xff]
          %v2434 = vld [vmem:[#allocation2 + $0x108] sm:$0xff]
          %v2435 = vld [vmem:[#allocation2 + $0x110] sm:$0xff]
          %v2436 = vld [vmem:[#allocation2 + $0x118] sm:$0xff]
          %v2437 = vld [vmem:[#allocation2 + $0x120] sm:$0xff]
          %v2438 = vld [vmem:[#allocation2 + $0x128] sm:$0xff]
          %v2439 = vld [vmem:[#allocation2 + $0x130] sm:$0xff]
          %v2440 = vld [vmem:[#allocation2 + $0x138] sm:$0xff]
          %v2441 = vld [vmem:[#allocation2 + $0x140] sm:$0xff]
          %v2442 = vld [vmem:[#allocation2 + $0x148] sm:$0xff]
          %v2443 = vld [vmem:[#allocation2 + $0x150] sm:$0xff]
          %v2444 = vld [vmem:[#allocation2 + $0x158] sm:$0xff]
          %v2445 = vld [vmem:[#allocation2 + $0x160] sm:$0xff]
          %v2446 = vld [vmem:[#allocation2 + $0x168] sm:$0xff]
          %v2447 = vld [vmem:[#allocation2 + $0x170] sm:$0xff]
          %v2448 = vld [vmem:[#allocation2 + $0x178] sm:$0xff]
          %v2449 = vld [vmem:[#allocation2 + $0x180] sm:$0xff]
          %v2450 = vld [vmem:[#allocation2 + $0x188] sm:$0xff]
          %v2451 = vld [vmem:[#allocation2 + $0x190] sm:$0xff]
          %v2452 = vld [vmem:[#allocation2 + $0x198] sm:$0xff]
          %v2453 = vld [vmem:[#allocation2 + $0x1a0] sm:$0xff]
          %v2454 = vld [vmem:[#allocation2 + $0x1a8] sm:$0xff]
          %v2455 = vld [vmem:[#allocation2 + $0x1b0] sm:$0xff]
          %v2456 = vld [vmem:[#allocation2 + $0x1b8] sm:$0xff]
          %v2457 = vld [vmem:[#allocation2 + $0x1c0] sm:$0xff]
          %v2458 = vld [vmem:[#allocation2 + $0x1c8] sm:$0xff]
          %v2459 = vld [vmem:[#allocation2 + $0x1d0] sm:$0xff]
          %v2460 = vld [vmem:[#allocation2 + $0x1d8] sm:$0xff]
          %v2461 = vld [vmem:[#allocation2 + $0x1e0] sm:$0xff]
          %v2462 = vld [vmem:[#allocation2 + $0x1e8] sm:$0xff]
          %v2463 = vld [vmem:[#allocation2 + $0x1f0] sm:$0xff]
          %v2464 = vld [vmem:[#allocation2 + $0x1f8] sm:$0xff]
          %v2465 = vld [vmem:[#allocation2 + $0x200] sm:$0xff]
          %v2466 = vld [vmem:[#allocation2 + $0x208] sm:$0xff]
          %v2467 = vld [vmem:[#allocation2 + $0x210] sm:$0xff]
          %v2468 = vld [vmem:[#allocation2 + $0x218] sm:$0xff]
          %v2469 = vld [vmem:[#allocation2 + $0x220] sm:$0xff]
          %v2470 = vld [vmem:[#allocation2 + $0x228] sm:$0xff]
          %v2471 = vld [vmem:[#allocation2 + $0x230] sm:$0xff]
          %v2472 = vld [vmem:[#allocation2 + $0x238] sm:$0xff]
          %v2473 = vld [vmem:[#allocation2 + $0x240] sm:$0xff]
          %v2474 = vld [vmem:[#allocation2 + $0x248] sm:$0xff]
          %v2475 = vld [vmem:[#allocation2 + $0x250] sm:$0xff]
          %v2476 = vld [vmem:[#allocation2 + $0x258] sm:$0xff]
          %v2477 = vld [vmem:[#allocation2 + $0x260] sm:$0xff]
          %v2478 = vld [vmem:[#allocation2 + $0x268] sm:$0xff]
          %v2479 = vld [vmem:[#allocation2 + $0x270] sm:$0xff]
          %v2480 = vld [vmem:[#allocation2 + $0x278] sm:$0xff]
          %v2481 = vld [vmem:[#allocation2 + $0x280] sm:$0xff]
          %v2482 = vld [vmem:[#allocation2 + $0x288] sm:$0xff]
          %v2483 = vld [vmem:[#allocation2 + $0x290] sm:$0xff]
          %v2484 = vld [vmem:[#allocation2 + $0x298] sm:$0xff]
          %v2485 = vld [vmem:[#allocation2 + $0x2a0] sm:$0xff]
          %v2486 = vld [vmem:[#allocation2 + $0x2a8] sm:$0xff]
          %v2487 = vld [vmem:[#allocation2 + $0x2b0] sm:$0xff]
          %v2488 = vld [vmem:[#allocation2 + $0x2b8] sm:$0xff]
          %v2489 = vld [vmem:[#allocation2 + $0x2c0] sm:$0xff]
          %v2490 = vld [vmem:[#allocation2 + $0x2c8] sm:$0xff]
          %v2491 = vld [vmem:[#allocation2 + $0x2d0] sm:$0xff]
          %v2492 = vld [vmem:[#allocation2 + $0x2d8] sm:$0xff]
          %v2493 = vld [vmem:[#allocation2 + $0x2e0] sm:$0xff]
          %v2494 = vld [vmem:[#allocation2 + $0x2e8] sm:$0xff]
          %v2495 = vld [vmem:[#allocation2 + $0x2f0] sm:$0xff]
          %v2496 = vld [vmem:[#allocation2 + $0x2f8] sm:$0xff]
          %v2497 = vld [vmem:[#allocation2 + $0x300] sm:$0xff]
          %v2498 = vld [vmem:[#allocation2 + $0x308] sm:$0xff]
          %v2499 = vld [vmem:[#allocation2 + $0x310] sm:$0xff]
          %v2500 = vld [vmem:[#allocation2 + $0x318] sm:$0xff]
          %v2501 = vld [vmem:[#allocation2 + $0x320] sm:$0xff]
          %v2502 = vld [vmem:[#allocation2 + $0x328] sm:$0xff]
          %v2503 = vld [vmem:[#allocation2 + $0x330] sm:$0xff]
          %v2504 = vld [vmem:[#allocation2 + $0x338] sm:$0xff]
          %v2505 = vld [vmem:[#allocation2 + $0x340] sm:$0xff]
          %v2506 = vld [vmem:[#allocation2 + $0x348] sm:$0xff]
          %v2507 = vld [vmem:[#allocation2 + $0x350] sm:$0xff]
          %v2508 = vld [vmem:[#allocation2 + $0x358] sm:$0xff]
          %v2509 = vld [vmem:[#allocation2 + $0x360] sm:$0xff]
          %v2510 = vld [vmem:[#allocation2 + $0x368] sm:$0xff]
          %v2511 = vld [vmem:[#allocation2 + $0x370] sm:$0xff]
          %v2512 = vld [vmem:[#allocation2 + $0x378] sm:$0xff]
          %v2513 = vld [vmem:[#allocation2 + $0x380] sm:$0xff]
          %v2514 = vld [vmem:[#allocation2 + $0x388] sm:$0xff]
          %v2515 = vld [vmem:[#allocation2 + $0x390] sm:$0xff]
          %v2516 = vld [vmem:[#allocation2 + $0x398] sm:$0xff]
          %v2517 = vld [vmem:[#allocation2 + $0x3a0] sm:$0xff]
          %v2518 = vld [vmem:[#allocation2 + $0x3a8] sm:$0xff]
          %v2519 = vld [vmem:[#allocation2 + $0x3b0] sm:$0xff]
          %v2520 = vld [vmem:[#allocation2 + $0x3b8] sm:$0xff]
          %v2521 = vld [vmem:[#allocation2 + $0x3c0] sm:$0xff]
          %v2522 = vld [vmem:[#allocation2 + $0x3c8] sm:$0xff]
          %v2523 = vld [vmem:[#allocation2 + $0x3d0] sm:$0xff]
          %v2524 = vld [vmem:[#allocation2 + $0x3d8] sm:$0xff]
          %v2525 = vld [vmem:[#allocation2 + $0x3e0] sm:$0xff]
          %v2526 = vld [vmem:[#allocation2 + $0x3e8] sm:$0xff]
          %v2527 = vld [vmem:[#allocation2 + $0x3f0] sm:$0xff]
          %v2528 = vld [vmem:[#allocation2 + $0x3f8] sm:$0xff]
          %v2529 = vld [vmem:[#allocation2 + $0x400] sm:$0xff]
          %v2530 = vld [vmem:[#allocation2 + $0x408] sm:$0xff]
          %v2531 = vld [vmem:[#allocation2 + $0x410] sm:$0xff]
          %v2532 = vld [vmem:[#allocation2 + $0x418] sm:$0xff]
          %v2533 = vld [vmem:[#allocation2 + $0x420] sm:$0xff]
          %v2534 = vld [vmem:[#allocation2 + $0x428] sm:$0xff]
          %v2535 = vld [vmem:[#allocation2 + $0x430] sm:$0xff]
          %v2536 = vld [vmem:[#allocation2 + $0x438] sm:$0xff]
          %v2537 = vld [vmem:[#allocation2 + $0x440] sm:$0xff]
          %v2538 = vld [vmem:[#allocation2 + $0x448] sm:$0xff]
          %v2539 = vld [vmem:[#allocation2 + $0x450] sm:$0xff]
          %v2540 = vld [vmem:[#allocation2 + $0x458] sm:$0xff]
          %v2541 = vld [vmem:[#allocation2 + $0x460] sm:$0xff]
          %v2542 = vld [vmem:[#allocation2 + $0x468] sm:$0xff]
          %v2543 = vld [vmem:[#allocation2 + $0x470] sm:$0xff]
          %v2544 = vld [vmem:[#allocation2 + $0x478] sm:$0xff]
          %v2545 = vld [vmem:[#allocation2 + $0x480] sm:$0xff]
          %v2546 = vld [vmem:[#allocation2 + $0x488] sm:$0xff]
          %v2547 = vld [vmem:[#allocation2 + $0x490] sm:$0xff]
          %v2548 = vld [vmem:[#allocation2 + $0x498] sm:$0xff]
          %v2549 = vld [vmem:[#allocation2 + $0x4a0] sm:$0xff]
          %v2550 = vld [vmem:[#allocation2 + $0x4a8] sm:$0xff]
          %v2551 = vld [vmem:[#allocation2 + $0x4b0] sm:$0xff]
          %v2552 = vld [vmem:[#allocation2 + $0x4b8] sm:$0xff]
          %v2553 = vld [vmem:[#allocation2 + $0x4c0] sm:$0xff]
          %v2554 = vld [vmem:[#allocation2 + $0x4c8] sm:$0xff]
          %v2555 = vld [vmem:[#allocation2 + $0x4d0] sm:$0xff]
          %v2556 = vld [vmem:[#allocation2 + $0x4d8] sm:$0xff]
          %v2557 = vld [vmem:[#allocation2 + $0x4e0] sm:$0xff]
          %v2558 = vld [vmem:[#allocation2 + $0x4e8] sm:$0xff]
          %v2559 = vld [vmem:[#allocation2 + $0x4f0] sm:$0xff]
          %v2560 = vld [vmem:[#allocation2 + $0x4f8] sm:$0xff]
          %v2561 = vld [vmem:[#allocation2 + $0x500] sm:$0xff]
          %v2562 = vld [vmem:[#allocation2 + $0x508] sm:$0xff]
          %v2563 = vld [vmem:[#allocation2 + $0x510] sm:$0xff]
          %v2564 = vld [vmem:[#allocation2 + $0x518] sm:$0xff]
          %v2565 = vld [vmem:[#allocation2 + $0x520] sm:$0xff]
          %v2566 = vld [vmem:[#allocation2 + $0x528] sm:$0xff]
          %v2567 = vld [vmem:[#allocation2 + $0x530] sm:$0xff]
          %v2568 = vld [vmem:[#allocation2 + $0x538] sm:$0xff]
          %v2569 = vld [vmem:[#allocation2 + $0x540] sm:$0xff]
          %v2570 = vld [vmem:[#allocation2 + $0x548] sm:$0xff]
          %v2571 = vld [vmem:[#allocation2 + $0x550] sm:$0xff]
          %v2572 = vld [vmem:[#allocation2 + $0x558] sm:$0xff]
          %v2573 = vld [vmem:[#allocation2 + $0x560] sm:$0xff]
          %v2574 = vld [vmem:[#allocation2 + $0x568] sm:$0xff]
          %v2575 = vld [vmem:[#allocation2 + $0x570] sm:$0xff]
          %v2576 = vld [vmem:[#allocation2 + $0x578] sm:$0xff]
          %v2577 = vld [vmem:[#allocation2 + $0x580] sm:$0xff]
          %v2578 = vld [vmem:[#allocation2 + $0x588] sm:$0xff]
          %v2579 = vld [vmem:[#allocation2 + $0x590] sm:$0xff]
          %v2580 = vld [vmem:[#allocation2 + $0x598] sm:$0xff]
          %v2581 = vld [vmem:[#allocation2 + $0x5a0] sm:$0xff]
          %v2582 = vld [vmem:[#allocation2 + $0x5a8] sm:$0xff]
          %v2583 = vld [vmem:[#allocation2 + $0x5b0] sm:$0xff]
          %v2584 = vld [vmem:[#allocation2 + $0x5b8] sm:$0xff]
          %v2585 = vld [vmem:[#allocation2 + $0x5c0] sm:$0xff]
          %v2586 = vld [vmem:[#allocation2 + $0x5c8] sm:$0xff]
          %v2587 = vld [vmem:[#allocation2 + $0x5d0] sm:$0xff]
          %v2588 = vld [vmem:[#allocation2 + $0x5d8] sm:$0xff]
          %v2589 = vld [vmem:[#allocation2 + $0x5e0] sm:$0xff]
          %v2590 = vld [vmem:[#allocation2 + $0x5e8] sm:$0xff]
          %v2591 = vld [vmem:[#allocation2 + $0x5f0] sm:$0xff]
          %v2592 = vld [vmem:[#allocation2 + $0x5f8] sm:$0xff]
          %v2593 = vld [vmem:[#allocation2 + $0x600] sm:$0xff]
          %v2594 = vld [vmem:[#allocation2 + $0x608] sm:$0xff]
          %v2595 = vld [vmem:[#allocation2 + $0x610] sm:$0xff]
          %v2596 = vld [vmem:[#allocation2 + $0x618] sm:$0xff]
          %v2597 = vld [vmem:[#allocation2 + $0x620] sm:$0xff]
          %v2598 = vld [vmem:[#allocation2 + $0x628] sm:$0xff]
          %v2599 = vld [vmem:[#allocation2 + $0x630] sm:$0xff]
          %v2600 = vld [vmem:[#allocation2 + $0x638] sm:$0xff]
          %v2601 = vld [vmem:[#allocation2 + $0x640] sm:$0xff]
          %v2602 = vld [vmem:[#allocation2 + $0x648] sm:$0xff]
          %v2603 = vld [vmem:[#allocation2 + $0x650] sm:$0xff]
          %v2604 = vld [vmem:[#allocation2 + $0x658] sm:$0xff]
          %v2605 = vld [vmem:[#allocation2 + $0x660] sm:$0xff]
          %v2606 = vld [vmem:[#allocation2 + $0x668] sm:$0xff]
          %v2607 = vld [vmem:[#allocation2 + $0x670] sm:$0xff]
          %v2608 = vld [vmem:[#allocation2 + $0x678] sm:$0xff]
          %v2609 = vld [vmem:[#allocation2 + $0x680] sm:$0xff]
          %v2610 = vld [vmem:[#allocation2 + $0x688] sm:$0xff]
          %v2611 = vld [vmem:[#allocation2 + $0x690] sm:$0xff]
          %v2612 = vld [vmem:[#allocation2 + $0x698] sm:$0xff]
          %v2613 = vld [vmem:[#allocation2 + $0x6a0] sm:$0xff]
          %v2614 = vld [vmem:[#allocation2 + $0x6a8] sm:$0xff]
          %v2615 = vld [vmem:[#allocation2 + $0x6b0] sm:$0xff]
          %v2616 = vld [vmem:[#allocation2 + $0x6b8] sm:$0xff]
          %v2617 = vld [vmem:[#allocation2 + $0x6c0] sm:$0xff]
          %v2618 = vld [vmem:[#allocation2 + $0x6c8] sm:$0xff]
          %v2619 = vld [vmem:[#allocation2 + $0x6d0] sm:$0xff]
          %v2620 = vld [vmem:[#allocation2 + $0x6d8] sm:$0xff]
          %v2621 = vld [vmem:[#allocation2 + $0x6e0] sm:$0xff]
          %v2622 = vld [vmem:[#allocation2 + $0x6e8] sm:$0xff]
          %v2623 = vld [vmem:[#allocation2 + $0x6f0] sm:$0xff]
          %v2624 = vld [vmem:[#allocation2 + $0x6f8] sm:$0xff]
          %v2625 = vld [vmem:[#allocation2 + $0x700] sm:$0xff]
          %v2626 = vld [vmem:[#allocation2 + $0x708] sm:$0xff]
          %v2627 = vld [vmem:[#allocation2 + $0x710] sm:$0xff]
          %v2628 = vld [vmem:[#allocation2 + $0x718] sm:$0xff]
          %v2629 = vld [vmem:[#allocation2 + $0x720] sm:$0xff]
          %v2630 = vld [vmem:[#allocation2 + $0x728] sm:$0xff]
          %v2631 = vld [vmem:[#allocation2 + $0x730] sm:$0xff]
          %v2632 = vld [vmem:[#allocation2 + $0x738] sm:$0xff]
          %v2633 = vld [vmem:[#allocation2 + $0x740] sm:$0xff]
          %v2634 = vld [vmem:[#allocation2 + $0x748] sm:$0xff]
          %v2635 = vld [vmem:[#allocation2 + $0x750] sm:$0xff]
          %v2636 = vld [vmem:[#allocation2 + $0x758] sm:$0xff]
          %v2637 = vld [vmem:[#allocation2 + $0x760] sm:$0xff]
          %v2638 = vld [vmem:[#allocation2 + $0x768] sm:$0xff]
          %v2639 = vld [vmem:[#allocation2 + $0x770] sm:$0xff]
          %v2640 = vld [vmem:[#allocation2 + $0x778] sm:$0xff]
          %v2641 = vld [vmem:[#allocation2 + $0x780] sm:$0xff]
          %v2642 = vld [vmem:[#allocation2 + $0x788] sm:$0xff]
          %v2643 = vld [vmem:[#allocation2 + $0x790] sm:$0xff]
          %v2644 = vld [vmem:[#allocation2 + $0x798] sm:$0xff]
          %v2645 = vld [vmem:[#allocation2 + $0x7a0] sm:$0xff]
          %v2646 = vld [vmem:[#allocation2 + $0x7a8] sm:$0xff]
          %v2647 = vld [vmem:[#allocation2 + $0x7b0] sm:$0xff]
          %v2648 = vld [vmem:[#allocation2 + $0x7b8] sm:$0xff]
          %v2649 = vld [vmem:[#allocation2 + $0x7c0] sm:$0xff]
          %v2650 = vld [vmem:[#allocation2 + $0x7c8] sm:$0xff]
          %v2651 = vld [vmem:[#allocation2 + $0x7d0] sm:$0xff]
          %v2652 = vld [vmem:[#allocation2 + $0x7d8] sm:$0xff]
          %v2653 = vld [vmem:[#allocation2 + $0x7e0] sm:$0xff]
          %v2654 = vld [vmem:[#allocation2 + $0x7e8] sm:$0xff]
          %v2655 = vld [vmem:[#allocation2 + $0x7f0] sm:$0xff]
          %v2656 = vld [vmem:[#allocation2 + $0x7f8] sm:$0xff]
          %v2657 = vadd.f32 %v2401, %v2145
          %v2658 = vadd.f32 %v2402, %v2146
          %v2659 = vadd.f32 %v2403, %v2147
          %v2660 = vadd.f32 %v2404, %v2148
          %v2661 = vadd.f32 %v2405, %v2149
          %v2662 = vadd.f32 %v2406, %v2150
          %v2663 = vadd.f32 %v2407, %v2151
          %v2664 = vadd.f32 %v2408, %v2152
          %v2665 = vadd.f32 %v2409, %v2153
          %v2666 = vadd.f32 %v2410, %v2154
          %v2667 = vadd.f32 %v2411, %v2155
          %v2668 = vadd.f32 %v2412, %v2156
          %v2669 = vadd.f32 %v2413, %v2157
          %v2670 = vadd.f32 %v2414, %v2158
          %v2671 = vadd.f32 %v2415, %v2159
          %v2672 = vadd.f32 %v2416, %v2160
          %v2673 = vadd.f32 %v2417, %v2161
          %v2674 = vadd.f32 %v2418, %v2162
          %v2675 = vadd.f32 %v2419, %v2163
          %v2676 = vadd.f32 %v2420, %v2164
          %v2677 = vadd.f32 %v2421, %v2165
          %v2678 = vadd.f32 %v2422, %v2166
          %v2679 = vadd.f32 %v2423, %v2167
          %v2680 = vadd.f32 %v2424, %v2168
          %v2681 = vadd.f32 %v2425, %v2169
          %v2682 = vadd.f32 %v2426, %v2170
          %v2683 = vadd.f32 %v2427, %v2171
          %v2684 = vadd.f32 %v2428, %v2172
          %v2685 = vadd.f32 %v2429, %v2173
          %v2686 = vadd.f32 %v2430, %v2174
          %v2687 = vadd.f32 %v2431, %v2175
          %v2688 = vadd.f32 %v2432, %v2176
          %v2689 = vadd.f32 %v2433, %v2177
          %v2690 = vadd.f32 %v2434, %v2178
          %v2691 = vadd.f32 %v2435, %v2179
          %v2692 = vadd.f32 %v2436, %v2180
          %v2693 = vadd.f32 %v2437, %v2181
          %v2694 = vadd.f32 %v2438, %v2182
          %v2695 = vadd.f32 %v2439, %v2183
          %v2696 = vadd.f32 %v2440, %v2184
          %v2697 = vadd.f32 %v2441, %v2185
          %v2698 = vadd.f32 %v2442, %v2186
          %v2699 = vadd.f32 %v2443, %v2187
          %v2700 = vadd.f32 %v2444, %v2188
          %v2701 = vadd.f32 %v2445, %v2189
          %v2702 = vadd.f32 %v2446, %v2190
          %v2703 = vadd.f32 %v2447, %v2191
          %v2704 = vadd.f32 %v2448, %v2192
          %v2705 = vadd.f32 %v2449, %v2193
          %v2706 = vadd.f32 %v2450, %v2194
          %v2707 = vadd.f32 %v2451, %v2195
          %v2708 = vadd.f32 %v2452, %v2196
          %v2709 = vadd.f32 %v2453, %v2197
          %v2710 = vadd.f32 %v2454, %v2198
          %v2711 = vadd.f32 %v2455, %v2199
          %v2712 = vadd.f32 %v2456, %v2200
          %v2713 = vadd.f32 %v2457, %v2201
          %v2714 = vadd.f32 %v2458, %v2202
          %v2715 = vadd.f32 %v2459, %v2203
          %v2716 = vadd.f32 %v2460, %v2204
          %v2717 = vadd.f32 %v2461, %v2205
          %v2718 = vadd.f32 %v2462, %v2206
          %v2719 = vadd.f32 %v2463, %v2207
          %v2720 = vadd.f32 %v2464, %v2208
          %v2721 = vadd.f32 %v2465, %v2209
          %v2722 = vadd.f32 %v2466, %v2210
          %v2723 = vadd.f32 %v2467, %v2211
          %v2724 = vadd.f32 %v2468, %v2212
          %v2725 = vadd.f32 %v2469, %v2213
          %v2726 = vadd.f32 %v2470, %v2214
          %v2727 = vadd.f32 %v2471, %v2215
          %v2728 = vadd.f32 %v2472, %v2216
          %v2729 = vadd.f32 %v2473, %v2217
          %v2730 = vadd.f32 %v2474, %v2218
          %v2731 = vadd.f32 %v2475, %v2219
          %v2732 = vadd.f32 %v2476, %v2220
          %v2733 = vadd.f32 %v2477, %v2221
          %v2734 = vadd.f32 %v2478, %v2222
          %v2735 = vadd.f32 %v2479, %v2223
          %v2736 = vadd.f32 %v2480, %v2224
          %v2737 = vadd.f32 %v2481, %v2225
          %v2738 = vadd.f32 %v2482, %v2226
          %v2739 = vadd.f32 %v2483, %v2227
          %v2740 = vadd.f32 %v2484, %v2228
          %v2741 = vadd.f32 %v2485, %v2229
          %v2742 = vadd.f32 %v2486, %v2230
          %v2743 = vadd.f32 %v2487, %v2231
          %v2744 = vadd.f32 %v2488, %v2232
          %v2745 = vadd.f32 %v2489, %v2233
          %v2746 = vadd.f32 %v2490, %v2234
          %v2747 = vadd.f32 %v2491, %v2235
          %v2748 = vadd.f32 %v2492, %v2236
          %v2749 = vadd.f32 %v2493, %v2237
          %v2750 = vadd.f32 %v2494, %v2238
          %v2751 = vadd.f32 %v2495, %v2239
          %v2752 = vadd.f32 %v2496, %v2240
          %v2753 = vadd.f32 %v2497, %v2241
          %v2754 = vadd.f32 %v2498, %v2242
          %v2755 = vadd.f32 %v2499, %v2243
          %v2756 = vadd.f32 %v2500, %v2244
          %v2757 = vadd.f32 %v2501, %v2245
          %v2758 = vadd.f32 %v2502, %v2246
          %v2759 = vadd.f32 %v2503, %v2247
          %v2760 = vadd.f32 %v2504, %v2248
          %v2761 = vadd.f32 %v2505, %v2249
          %v2762 = vadd.f32 %v2506, %v2250
          %v2763 = vadd.f32 %v2507, %v2251
          %v2764 = vadd.f32 %v2508, %v2252
          %v2765 = vadd.f32 %v2509, %v2253
          %v2766 = vadd.f32 %v2510, %v2254
          %v2767 = vadd.f32 %v2511, %v2255
          %v2768 = vadd.f32 %v2512, %v2256
          %v2769 = vadd.f32 %v2513, %v2257
          %v2770 = vadd.f32 %v2514, %v2258
          %v2771 = vadd.f32 %v2515, %v2259
          %v2772 = vadd.f32 %v2516, %v2260
          %v2773 = vadd.f32 %v2517, %v2261
          %v2774 = vadd.f32 %v2518, %v2262
          %v2775 = vadd.f32 %v2519, %v2263
          %v2776 = vadd.f32 %v2520, %v2264
          %v2777 = vadd.f32 %v2521, %v2265
          %v2778 = vadd.f32 %v2522, %v2266
          %v2779 = vadd.f32 %v2523, %v2267
          %v2780 = vadd.f32 %v2524, %v2268
          %v2781 = vadd.f32 %v2525, %v2269
          %v2782 = vadd.f32 %v2526, %v2270
          %v2783 = vadd.f32 %v2527, %v2271
          %v2784 = vadd.f32 %v2528, %v2272
          %v2785 = vadd.f32 %v2529, %v2273
          %v2786 = vadd.f32 %v2530, %v2274
          %v2787 = vadd.f32 %v2531, %v2275
          %v2788 = vadd.f32 %v2532, %v2276
          %v2789 = vadd.f32 %v2533, %v2277
          %v2790 = vadd.f32 %v2534, %v2278
          %v2791 = vadd.f32 %v2535, %v2279
          %v2792 = vadd.f32 %v2536, %v2280
          %v2793 = vadd.f32 %v2537, %v2281
          %v2794 = vadd.f32 %v2538, %v2282
          %v2795 = vadd.f32 %v2539, %v2283
          %v2796 = vadd.f32 %v2540, %v2284
          %v2797 = vadd.f32 %v2541, %v2285
          %v2798 = vadd.f32 %v2542, %v2286
          %v2799 = vadd.f32 %v2543, %v2287
          %v2800 = vadd.f32 %v2544, %v2288
          %v2801 = vadd.f32 %v2545, %v2289
          %v2802 = vadd.f32 %v2546, %v2290
          %v2803 = vadd.f32 %v2547, %v2291
          %v2804 = vadd.f32 %v2548, %v2292
          %v2805 = vadd.f32 %v2549, %v2293
          %v2806 = vadd.f32 %v2550, %v2294
          %v2807 = vadd.f32 %v2551, %v2295
          %v2808 = vadd.f32 %v2552, %v2296
          %v2809 = vadd.f32 %v2553, %v2297
          %v2810 = vadd.f32 %v2554, %v2298
          %v2811 = vadd.f32 %v2555, %v2299
          %v2812 = vadd.f32 %v2556, %v2300
          %v2813 = vadd.f32 %v2557, %v2301
          %v2814 = vadd.f32 %v2558, %v2302
          %v2815 = vadd.f32 %v2559, %v2303
          %v2816 = vadd.f32 %v2560, %v2304
          %v2817 = vadd.f32 %v2561, %v2305
          %v2818 = vadd.f32 %v2562, %v2306
          %v2819 = vadd.f32 %v2563, %v2307
          %v2820 = vadd.f32 %v2564, %v2308
          %v2821 = vadd.f32 %v2565, %v2309
          %v2822 = vadd.f32 %v2566, %v2310
          %v2823 = vadd.f32 %v2567, %v2311
          %v2824 = vadd.f32 %v2568, %v2312
          %v2825 = vadd.f32 %v2569, %v2313
          %v2826 = vadd.f32 %v2570, %v2314
          %v2827 = vadd.f32 %v2571, %v2315
          %v2828 = vadd.f32 %v2572, %v2316
          %v2829 = vadd.f32 %v2573, %v2317
          %v2830 = vadd.f32 %v2574, %v2318
          %v2831 = vadd.f32 %v2575, %v2319
          %v2832 = vadd.f32 %v2576, %v2320
          %v2833 = vadd.f32 %v2577, %v2321
          %v2834 = vadd.f32 %v2578, %v2322
          %v2835 = vadd.f32 %v2579, %v2323
          %v2836 = vadd.f32 %v2580, %v2324
          %v2837 = vadd.f32 %v2581, %v2325
          %v2838 = vadd.f32 %v2582, %v2326
          %v2839 = vadd.f32 %v2583, %v2327
          %v2840 = vadd.f32 %v2584, %v2328
          %v2841 = vadd.f32 %v2585, %v2329
          %v2842 = vadd.f32 %v2586, %v2330
          %v2843 = vadd.f32 %v2587, %v2331
          %v2844 = vadd.f32 %v2588, %v2332
          %v2845 = vadd.f32 %v2589, %v2333
          %v2846 = vadd.f32 %v2590, %v2334
          %v2847 = vadd.f32 %v2591, %v2335
          %v2848 = vadd.f32 %v2592, %v2336
          %v2849 = vadd.f32 %v2593, %v2337
          %v2850 = vadd.f32 %v2594, %v2338
          %v2851 = vadd.f32 %v2595, %v2339
          %v2852 = vadd.f32 %v2596, %v2340
          %v2853 = vadd.f32 %v2597, %v2341
          %v2854 = vadd.f32 %v2598, %v2342
          %v2855 = vadd.f32 %v2599, %v2343
          %v2856 = vadd.f32 %v2600, %v2344
          %v2857 = vadd.f32 %v2601, %v2345
          %v2858 = vadd.f32 %v2602, %v2346
          %v2859 = vadd.f32 %v2603, %v2347
          %v2860 = vadd.f32 %v2604, %v2348
          %v2861 = vadd.f32 %v2605, %v2349
          %v2862 = vadd.f32 %v2606, %v2350
          %v2863 = vadd.f32 %v2607, %v2351
          %v2864 = vadd.f32 %v2608, %v2352
          %v2865 = vadd.f32 %v2609, %v2353
          %v2866 = vadd.f32 %v2610, %v2354
          %v2867 = vadd.f32 %v2611, %v2355
          %v2868 = vadd.f32 %v2612, %v2356
          %v2869 = vadd.f32 %v2613, %v2357
          %v2870 = vadd.f32 %v2614, %v2358
          %v2871 = vadd.f32 %v2615, %v2359
          %v2872 = vadd.f32 %v2616, %v2360
          %v2873 = vadd.f32 %v2617, %v2361
          %v2874 = vadd.f32 %v2618, %v2362
          %v2875 = vadd.f32 %v2619, %v2363
          %v2876 = vadd.f32 %v2620, %v2364
          %v2877 = vadd.f32 %v2621, %v2365
          %v2878 = vadd.f32 %v2622, %v2366
          %v2879 = vadd.f32 %v2623, %v2367
          %v2880 = vadd.f32 %v2624, %v2368
          %v2881 = vadd.f32 %v2625, %v2369
          %v2882 = vadd.f32 %v2626, %v2370
          %v2883 = vadd.f32 %v2627, %v2371
          %v2884 = vadd.f32 %v2628, %v2372
          %v2885 = vadd.f32 %v2629, %v2373
          %v2886 = vadd.f32 %v2630, %v2374
          %v2887 = vadd.f32 %v2631, %v2375
          %v2888 = vadd.f32 %v2632, %v2376
          %v2889 = vadd.f32 %v2633, %v2377
          %v2890 = vadd.f32 %v2634, %v2378
          %v2891 = vadd.f32 %v2635, %v2379
          %v2892 = vadd.f32 %v2636, %v2380
          %v2893 = vadd.f32 %v2637, %v2381
          %v2894 = vadd.f32 %v2638, %v2382
          %v2895 = vadd.f32 %v2639, %v2383
          %v2896 = vadd.f32 %v2640, %v2384
          %v2897 = vadd.f32 %v2641, %v2385
          %v2898 = vadd.f32 %v2642, %v2386
          %v2899 = vadd.f32 %v2643, %v2387
          %v2900 = vadd.f32 %v2644, %v2388
          %v2901 = vadd.f32 %v2645, %v2389
          %v2902 = vadd.f32 %v2646, %v2390
          %v2903 = vadd.f32 %v2647, %v2391
          %v2904 = vadd.f32 %v2648, %v2392
          %v2905 = vadd.f32 %v2649, %v2393
          %v2906 = vadd.f32 %v2650, %v2394
          %v2907 = vadd.f32 %v2651, %v2395
          %v2908 = vadd.f32 %v2652, %v2396
          %v2909 = vadd.f32 %v2653, %v2397
          %v2910 = vadd.f32 %v2654, %v2398
          %v2911 = vadd.f32 %v2655, %v2399
          %v2912 = vadd.f32 %v2656, %v2400
          %2913 = vst [vmem:[#allocation2] sm:$0xff] %v2657
          %2914 = vst [vmem:[#allocation2 + $0x8] sm:$0xff] %v2658
          %2915 = vst [vmem:[#allocation2 + $0x10] sm:$0xff] %v2659
          %2916 = vst [vmem:[#allocation2 + $0x18] sm:$0xff] %v2660
          %2917 = vst [vmem:[#allocation2 + $0x20] sm:$0xff] %v2661
          %2918 = vst [vmem:[#allocation2 + $0x28] sm:$0xff] %v2662
          %2919 = vst [vmem:[#allocation2 + $0x30] sm:$0xff] %v2663
          %2920 = vst [vmem:[#allocation2 + $0x38] sm:$0xff] %v2664
          %2921 = vst [vmem:[#allocation2 + $0x40] sm:$0xff] %v2665
          %2922 = vst [vmem:[#allocation2 + $0x48] sm:$0xff] %v2666
          %2923 = vst [vmem:[#allocation2 + $0x50] sm:$0xff] %v2667
          %2924 = vst [vmem:[#allocation2 + $0x58] sm:$0xff] %v2668
          %2925 = vst [vmem:[#allocation2 + $0x60] sm:$0xff] %v2669
          %2926 = vst [vmem:[#allocation2 + $0x68] sm:$0xff] %v2670
          %2927 = vst [vmem:[#allocation2 + $0x70] sm:$0xff] %v2671
          %2928 = vst [vmem:[#allocation2 + $0x78] sm:$0xff] %v2672
          %2929 = vst [vmem:[#allocation2 + $0x80] sm:$0xff] %v2673
          %2930 = vst [vmem:[#allocation2 + $0x88] sm:$0xff] %v2674
          %2931 = vst [vmem:[#allocation2 + $0x90] sm:$0xff] %v2675
          %2932 = vst [vmem:[#allocation2 + $0x98] sm:$0xff] %v2676
          %2933 = vst [vmem:[#allocation2 + $0xa0] sm:$0xff] %v2677
          %2934 = vst [vmem:[#allocation2 + $0xa8] sm:$0xff] %v2678
          %2935 = vst [vmem:[#allocation2 + $0xb0] sm:$0xff] %v2679
          %2936 = vst [vmem:[#allocation2 + $0xb8] sm:$0xff] %v2680
          %2937 = vst [vmem:[#allocation2 + $0xc0] sm:$0xff] %v2681
          %2938 = vst [vmem:[#allocation2 + $0xc8] sm:$0xff] %v2682
          %2939 = vst [vmem:[#allocation2 + $0xd0] sm:$0xff] %v2683
          %2940 = vst [vmem:[#allocation2 + $0xd8] sm:$0xff] %v2684
          %2941 = vst [vmem:[#allocation2 + $0xe0] sm:$0xff] %v2685
          %2942 = vst [vmem:[#allocation2 + $0xe8] sm:$0xff] %v2686
          %2943 = vst [vmem:[#allocation2 + $0xf0] sm:$0xff] %v2687
          %2944 = vst [vmem:[#allocation2 + $0xf8] sm:$0xff] %v2688
          %2945 = vst [vmem:[#allocation2 + $0x100] sm:$0xff] %v2689
          %2946 = vst [vmem:[#allocation2 + $0x108] sm:$0xff] %v2690
          %2947 = vst [vmem:[#allocation2 + $0x110] sm:$0xff] %v2691
          %2948 = vst [vmem:[#allocation2 + $0x118] sm:$0xff] %v2692
          %2949 = vst [vmem:[#allocation2 + $0x120] sm:$0xff] %v2693
          %2950 = vst [vmem:[#allocation2 + $0x128] sm:$0xff] %v2694
          %2951 = vst [vmem:[#allocation2 + $0x130] sm:$0xff] %v2695
          %2952 = vst [vmem:[#allocation2 + $0x138] sm:$0xff] %v2696
          %2953 = vst [vmem:[#allocation2 + $0x140] sm:$0xff] %v2697
          %2954 = vst [vmem:[#allocation2 + $0x148] sm:$0xff] %v2698
          %2955 = vst [vmem:[#allocation2 + $0x150] sm:$0xff] %v2699
          %2956 = vst [vmem:[#allocation2 + $0x158] sm:$0xff] %v2700
          %2957 = vst [vmem:[#allocation2 + $0x160] sm:$0xff] %v2701
          %2958 = vst [vmem:[#allocation2 + $0x168] sm:$0xff] %v2702
          %2959 = vst [vmem:[#allocation2 + $0x170] sm:$0xff] %v2703
          %2960 = vst [vmem:[#allocation2 + $0x178] sm:$0xff] %v2704
          %2961 = vst [vmem:[#allocation2 + $0x180] sm:$0xff] %v2705
          %2962 = vst [vmem:[#allocation2 + $0x188] sm:$0xff] %v2706
          %2963 = vst [vmem:[#allocation2 + $0x190] sm:$0xff] %v2707
          %2964 = vst [vmem:[#allocation2 + $0x198] sm:$0xff] %v2708
          %2965 = vst [vmem:[#allocation2 + $0x1a0] sm:$0xff] %v2709
          %2966 = vst [vmem:[#allocation2 + $0x1a8] sm:$0xff] %v2710
          %2967 = vst [vmem:[#allocation2 + $0x1b0] sm:$0xff] %v2711
          %2968 = vst [vmem:[#allocation2 + $0x1b8] sm:$0xff] %v2712
          %2969 = vst [vmem:[#allocation2 + $0x1c0] sm:$0xff] %v2713
          %2970 = vst [vmem:[#allocation2 + $0x1c8] sm:$0xff] %v2714
          %2971 = vst [vmem:[#allocation2 + $0x1d0] sm:$0xff] %v2715
          %2972 = vst [vmem:[#allocation2 + $0x1d8] sm:$0xff] %v2716
          %2973 = vst [vmem:[#allocation2 + $0x1e0] sm:$0xff] %v2717
          %2974 = vst [vmem:[#allocation2 + $0x1e8] sm:$0xff] %v2718
          %2975 = vst [vmem:[#allocation2 + $0x1f0] sm:$0xff] %v2719
          %2976 = vst [vmem:[#allocation2 + $0x1f8] sm:$0xff] %v2720
          %2977 = vst [vmem:[#allocation2 + $0x200] sm:$0xff] %v2721
          %2978 = vst [vmem:[#allocation2 + $0x208] sm:$0xff] %v2722
          %2979 = vst [vmem:[#allocation2 + $0x210] sm:$0xff] %v2723
          %2980 = vst [vmem:[#allocation2 + $0x218] sm:$0xff] %v2724
          %2981 = vst [vmem:[#allocation2 + $0x220] sm:$0xff] %v2725
          %2982 = vst [vmem:[#allocation2 + $0x228] sm:$0xff] %v2726
          %2983 = vst [vmem:[#allocation2 + $0x230] sm:$0xff] %v2727
          %2984 = vst [vmem:[#allocation2 + $0x238] sm:$0xff] %v2728
          %2985 = vst [vmem:[#allocation2 + $0x240] sm:$0xff] %v2729
          %2986 = vst [vmem:[#allocation2 + $0x248] sm:$0xff] %v2730
          %2987 = vst [vmem:[#allocation2 + $0x250] sm:$0xff] %v2731
          %2988 = vst [vmem:[#allocation2 + $0x258] sm:$0xff] %v2732
          %2989 = vst [vmem:[#allocation2 + $0x260] sm:$0xff] %v2733
          %2990 = vst [vmem:[#allocation2 + $0x268] sm:$0xff] %v2734
          %2991 = vst [vmem:[#allocation2 + $0x270] sm:$0xff] %v2735
          %2992 = vst [vmem:[#allocation2 + $0x278] sm:$0xff] %v2736
          %2993 = vst [vmem:[#allocation2 + $0x280] sm:$0xff] %v2737
          %2994 = vst [vmem:[#allocation2 + $0x288] sm:$0xff] %v2738
          %2995 = vst [vmem:[#allocation2 + $0x290] sm:$0xff] %v2739
          %2996 = vst [vmem:[#allocation2 + $0x298] sm:$0xff] %v2740
          %2997 = vst [vmem:[#allocation2 + $0x2a0] sm:$0xff] %v2741
          %2998 = vst [vmem:[#allocation2 + $0x2a8] sm:$0xff] %v2742
          %2999 = vst [vmem:[#allocation2 + $0x2b0] sm:$0xff] %v2743
          %3000 = vst [vmem:[#allocation2 + $0x2b8] sm:$0xff] %v2744
          %3001 = vst [vmem:[#allocation2 + $0x2c0] sm:$0xff] %v2745
          %3002 = vst [vmem:[#allocation2 + $0x2c8] sm:$0xff] %v2746
          %3003 = vst [vmem:[#allocation2 + $0x2d0] sm:$0xff] %v2747
          %3004 = vst [vmem:[#allocation2 + $0x2d8] sm:$0xff] %v2748
          %3005 = vst [vmem:[#allocation2 + $0x2e0] sm:$0xff] %v2749
          %3006 = vst [vmem:[#allocation2 + $0x2e8] sm:$0xff] %v2750
          %3007 = vst [vmem:[#allocation2 + $0x2f0] sm:$0xff] %v2751
          %3008 = vst [vmem:[#allocation2 + $0x2f8] sm:$0xff] %v2752
          %3009 = vst [vmem:[#allocation2 + $0x300] sm:$0xff] %v2753
          %3010 = vst [vmem:[#allocation2 + $0x308] sm:$0xff] %v2754
          %3011 = vst [vmem:[#allocation2 + $0x310] sm:$0xff] %v2755
          %3012 = vst [vmem:[#allocation2 + $0x318] sm:$0xff] %v2756
          %3013 = vst [vmem:[#allocation2 + $0x320] sm:$0xff] %v2757
          %3014 = vst [vmem:[#allocation2 + $0x328] sm:$0xff] %v2758
          %3015 = vst [vmem:[#allocation2 + $0x330] sm:$0xff] %v2759
          %3016 = vst [vmem:[#allocation2 + $0x338] sm:$0xff] %v2760
          %3017 = vst [vmem:[#allocation2 + $0x340] sm:$0xff] %v2761
          %3018 = vst [vmem:[#allocation2 + $0x348] sm:$0xff] %v2762
          %3019 = vst [vmem:[#allocation2 + $0x350] sm:$0xff] %v2763
          %3020 = vst [vmem:[#allocation2 + $0x358] sm:$0xff] %v2764
          %3021 = vst [vmem:[#allocation2 + $0x360] sm:$0xff] %v2765
          %3022 = vst [vmem:[#allocation2 + $0x368] sm:$0xff] %v2766
          %3023 = vst [vmem:[#allocation2 + $0x370] sm:$0xff] %v2767
          %3024 = vst [vmem:[#allocation2 + $0x378] sm:$0xff] %v2768
          %3025 = vst [vmem:[#allocation2 + $0x380] sm:$0xff] %v2769
          %3026 = vst [vmem:[#allocation2 + $0x388] sm:$0xff] %v2770
          %3027 = vst [vmem:[#allocation2 + $0x390] sm:$0xff] %v2771
          %3028 = vst [vmem:[#allocation2 + $0x398] sm:$0xff] %v2772
          %3029 = vst [vmem:[#allocation2 + $0x3a0] sm:$0xff] %v2773
          %3030 = vst [vmem:[#allocation2 + $0x3a8] sm:$0xff] %v2774
          %3031 = vst [vmem:[#allocation2 + $0x3b0] sm:$0xff] %v2775
          %3032 = vst [vmem:[#allocation2 + $0x3b8] sm:$0xff] %v2776
          %3033 = vst [vmem:[#allocation2 + $0x3c0] sm:$0xff] %v2777
          %3034 = vst [vmem:[#allocation2 + $0x3c8] sm:$0xff] %v2778
          %3035 = vst [vmem:[#allocation2 + $0x3d0] sm:$0xff] %v2779
          %3036 = vst [vmem:[#allocation2 + $0x3d8] sm:$0xff] %v2780
          %3037 = vst [vmem:[#allocation2 + $0x3e0] sm:$0xff] %v2781
          %3038 = vst [vmem:[#allocation2 + $0x3e8] sm:$0xff] %v2782
          %3039 = vst [vmem:[#allocation2 + $0x3f0] sm:$0xff] %v2783
          %3040 = vst [vmem:[#allocation2 + $0x3f8] sm:$0xff] %v2784
          %3041 = vst [vmem:[#allocation2 + $0x400] sm:$0xff] %v2785
          %3042 = vst [vmem:[#allocation2 + $0x408] sm:$0xff] %v2786
          %3043 = vst [vmem:[#allocation2 + $0x410] sm:$0xff] %v2787
          %3044 = vst [vmem:[#allocation2 + $0x418] sm:$0xff] %v2788
          %3045 = vst [vmem:[#allocation2 + $0x420] sm:$0xff] %v2789
          %3046 = vst [vmem:[#allocation2 + $0x428] sm:$0xff] %v2790
          %3047 = vst [vmem:[#allocation2 + $0x430] sm:$0xff] %v2791
          %3048 = vst [vmem:[#allocation2 + $0x438] sm:$0xff] %v2792
          %3049 = vst [vmem:[#allocation2 + $0x440] sm:$0xff] %v2793
          %3050 = vst [vmem:[#allocation2 + $0x448] sm:$0xff] %v2794
          %3051 = vst [vmem:[#allocation2 + $0x450] sm:$0xff] %v2795
          %3052 = vst [vmem:[#allocation2 + $0x458] sm:$0xff] %v2796
          %3053 = vst [vmem:[#allocation2 + $0x460] sm:$0xff] %v2797
          %3054 = vst [vmem:[#allocation2 + $0x468] sm:$0xff] %v2798
          %3055 = vst [vmem:[#allocation2 + $0x470] sm:$0xff] %v2799
          %3056 = vst [vmem:[#allocation2 + $0x478] sm:$0xff] %v2800
          %3057 = vst [vmem:[#allocation2 + $0x480] sm:$0xff] %v2801
          %3058 = vst [vmem:[#allocation2 + $0x488] sm:$0xff] %v2802
          %3059 = vst [vmem:[#allocation2 + $0x490] sm:$0xff] %v2803
          %3060 = vst [vmem:[#allocation2 + $0x498] sm:$0xff] %v2804
          %3061 = vst [vmem:[#allocation2 + $0x4a0] sm:$0xff] %v2805
          %3062 = vst [vmem:[#allocation2 + $0x4a8] sm:$0xff] %v2806
          %3063 = vst [vmem:[#allocation2 + $0x4b0] sm:$0xff] %v2807
          %3064 = vst [vmem:[#allocation2 + $0x4b8] sm:$0xff] %v2808
          %3065 = vst [vmem:[#allocation2 + $0x4c0] sm:$0xff] %v2809
          %3066 = vst [vmem:[#allocation2 + $0x4c8] sm:$0xff] %v2810
          %3067 = vst [vmem:[#allocation2 + $0x4d0] sm:$0xff] %v2811
          %3068 = vst [vmem:[#allocation2 + $0x4d8] sm:$0xff] %v2812
          %3069 = vst [vmem:[#allocation2 + $0x4e0] sm:$0xff] %v2813
          %3070 = vst [vmem:[#allocation2 + $0x4e8] sm:$0xff] %v2814
          %3071 = vst [vmem:[#allocation2 + $0x4f0] sm:$0xff] %v2815
          %3072 = vst [vmem:[#allocation2 + $0x4f8] sm:$0xff] %v2816
          %3073 = vst [vmem:[#allocation2 + $0x500] sm:$0xff] %v2817
          %3074 = vst [vmem:[#allocation2 + $0x508] sm:$0xff] %v2818
          %3075 = vst [vmem:[#allocation2 + $0x510] sm:$0xff] %v2819
          %3076 = vst [vmem:[#allocation2 + $0x518] sm:$0xff] %v2820
          %3077 = vst [vmem:[#allocation2 + $0x520] sm:$0xff] %v2821
          %3078 = vst [vmem:[#allocation2 + $0x528] sm:$0xff] %v2822
          %3079 = vst [vmem:[#allocation2 + $0x530] sm:$0xff] %v2823
          %3080 = vst [vmem:[#allocation2 + $0x538] sm:$0xff] %v2824
          %3081 = vst [vmem:[#allocation2 + $0x540] sm:$0xff] %v2825
          %3082 = vst [vmem:[#allocation2 + $0x548] sm:$0xff] %v2826
          %3083 = vst [vmem:[#allocation2 + $0x550] sm:$0xff] %v2827
          %3084 = vst [vmem:[#allocation2 + $0x558] sm:$0xff] %v2828
          %3085 = vst [vmem:[#allocation2 + $0x560] sm:$0xff] %v2829
          %3086 = vst [vmem:[#allocation2 + $0x568] sm:$0xff] %v2830
          %3087 = vst [vmem:[#allocation2 + $0x570] sm:$0xff] %v2831
          %3088 = vst [vmem:[#allocation2 + $0x578] sm:$0xff] %v2832
          %3089 = vst [vmem:[#allocation2 + $0x580] sm:$0xff] %v2833
          %3090 = vst [vmem:[#allocation2 + $0x588] sm:$0xff] %v2834
          %3091 = vst [vmem:[#allocation2 + $0x590] sm:$0xff] %v2835
          %3092 = vst [vmem:[#allocation2 + $0x598] sm:$0xff] %v2836
          %3093 = vst [vmem:[#allocation2 + $0x5a0] sm:$0xff] %v2837
          %3094 = vst [vmem:[#allocation2 + $0x5a8] sm:$0xff] %v2838
          %3095 = vst [vmem:[#allocation2 + $0x5b0] sm:$0xff] %v2839
          %3096 = vst [vmem:[#allocation2 + $0x5b8] sm:$0xff] %v2840
          %3097 = vst [vmem:[#allocation2 + $0x5c0] sm:$0xff] %v2841
          %3098 = vst [vmem:[#allocation2 + $0x5c8] sm:$0xff] %v2842
          %3099 = vst [vmem:[#allocation2 + $0x5d0] sm:$0xff] %v2843
          %3100 = vst [vmem:[#allocation2 + $0x5d8] sm:$0xff] %v2844
          %3101 = vst [vmem:[#allocation2 + $0x5e0] sm:$0xff] %v2845
          %3102 = vst [vmem:[#allocation2 + $0x5e8] sm:$0xff] %v2846
          %3103 = vst [vmem:[#allocation2 + $0x5f0] sm:$0xff] %v2847
          %3104 = vst [vmem:[#allocation2 + $0x5f8] sm:$0xff] %v2848
          %3105 = vst [vmem:[#allocation2 + $0x600] sm:$0xff] %v2849
          %3106 = vst [vmem:[#allocation2 + $0x608] sm:$0xff] %v2850
          %3107 = vst [vmem:[#allocation2 + $0x610] sm:$0xff] %v2851
          %3108 = vst [vmem:[#allocation2 + $0x618] sm:$0xff] %v2852
          %3109 = vst [vmem:[#allocation2 + $0x620] sm:$0xff] %v2853
          %3110 = vst [vmem:[#allocation2 + $0x628] sm:$0xff] %v2854
          %3111 = vst [vmem:[#allocation2 + $0x630] sm:$0xff] %v2855
          %3112 = vst [vmem:[#allocation2 + $0x638] sm:$0xff] %v2856
          %3113 = vst [vmem:[#allocation2 + $0x640] sm:$0xff] %v2857
          %3114 = vst [vmem:[#allocation2 + $0x648] sm:$0xff] %v2858
          %3115 = vst [vmem:[#allocation2 + $0x650] sm:$0xff] %v2859
          %3116 = vst [vmem:[#allocation2 + $0x658] sm:$0xff] %v2860
          %3117 = vst [vmem:[#allocation2 + $0x660] sm:$0xff] %v2861
          %3118 = vst [vmem:[#allocation2 + $0x668] sm:$0xff] %v2862
          %3119 = vst [vmem:[#allocation2 + $0x670] sm:$0xff] %v2863
          %3120 = vst [vmem:[#allocation2 + $0x678] sm:$0xff] %v2864
          %3121 = vst [vmem:[#allocation2 + $0x680] sm:$0xff] %v2865
          %3122 = vst [vmem:[#allocation2 + $0x688] sm:$0xff] %v2866
          %3123 = vst [vmem:[#allocation2 + $0x690] sm:$0xff] %v2867
          %3124 = vst [vmem:[#allocation2 + $0x698] sm:$0xff] %v2868
          %3125 = vst [vmem:[#allocation2 + $0x6a0] sm:$0xff] %v2869
          %3126 = vst [vmem:[#allocation2 + $0x6a8] sm:$0xff] %v2870
          %3127 = vst [vmem:[#allocation2 + $0x6b0] sm:$0xff] %v2871
          %3128 = vst [vmem:[#allocation2 + $0x6b8] sm:$0xff] %v2872
          %3129 = vst [vmem:[#allocation2 + $0x6c0] sm:$0xff] %v2873
          %3130 = vst [vmem:[#allocation2 + $0x6c8] sm:$0xff] %v2874
          %3131 = vst [vmem:[#allocation2 + $0x6d0] sm:$0xff] %v2875
          %3132 = vst [vmem:[#allocation2 + $0x6d8] sm:$0xff] %v2876
          %3133 = vst [vmem:[#allocation2 + $0x6e0] sm:$0xff] %v2877
          %3134 = vst [vmem:[#allocation2 + $0x6e8] sm:$0xff] %v2878
          %3135 = vst [vmem:[#allocation2 + $0x6f0] sm:$0xff] %v2879
          %3136 = vst [vmem:[#allocation2 + $0x6f8] sm:$0xff] %v2880
          %3137 = vst [vmem:[#allocation2 + $0x700] sm:$0xff] %v2881
          %3138 = vst [vmem:[#allocation2 + $0x708] sm:$0xff] %v2882
          %3139 = vst [vmem:[#allocation2 + $0x710] sm:$0xff] %v2883
          %3140 = vst [vmem:[#allocation2 + $0x718] sm:$0xff] %v2884
          %3141 = vst [vmem:[#allocation2 + $0x720] sm:$0xff] %v2885
          %3142 = vst [vmem:[#allocation2 + $0x728] sm:$0xff] %v2886
          %3143 = vst [vmem:[#allocation2 + $0x730] sm:$0xff] %v2887
          %3144 = vst [vmem:[#allocation2 + $0x738] sm:$0xff] %v2888
          %3145 = vst [vmem:[#allocation2 + $0x740] sm:$0xff] %v2889
          %3146 = vst [vmem:[#allocation2 + $0x748] sm:$0xff] %v2890
          %3147 = vst [vmem:[#allocation2 + $0x750] sm:$0xff] %v2891
          %3148 = vst [vmem:[#allocation2 + $0x758] sm:$0xff] %v2892
          %3149 = vst [vmem:[#allocation2 + $0x760] sm:$0xff] %v2893
          %3150 = vst [vmem:[#allocation2 + $0x768] sm:$0xff] %v2894
          %3151 = vst [vmem:[#allocation2 + $0x770] sm:$0xff] %v2895
          %3152 = vst [vmem:[#allocation2 + $0x778] sm:$0xff] %v2896
          %3153 = vst [vmem:[#allocation2 + $0x780] sm:$0xff] %v2897
          %3154 = vst [vmem:[#allocation2 + $0x788] sm:$0xff] %v2898
          %3155 = vst [vmem:[#allocation2 + $0x790] sm:$0xff] %v2899
          %3156 = vst [vmem:[#allocation2 + $0x798] sm:$0xff] %v2900
          %3157 = vst [vmem:[#allocation2 + $0x7a0] sm:$0xff] %v2901
          %3158 = vst [vmem:[#allocation2 + $0x7a8] sm:$0xff] %v2902
          %3159 = vst [vmem:[#allocation2 + $0x7b0] sm:$0xff] %v2903
          %3160 = vst [vmem:[#allocation2 + $0x7b8] sm:$0xff] %v2904
          %3161 = vst [vmem:[#allocation2 + $0x7c0] sm:$0xff] %v2905
          %3162 = vst [vmem:[#allocation2 + $0x7c8] sm:$0xff] %v2906
          %3163 = vst [vmem:[#allocation2 + $0x7d0] sm:$0xff] %v2907
          %3164 = vst [vmem:[#allocation2 + $0x7d8] sm:$0xff] %v2908
          %3165 = vst [vmem:[#allocation2 + $0x7e0] sm:$0xff] %v2909
          %3166 = vst [vmem:[#allocation2 + $0x7e8] sm:$0xff] %v2910
          %3167 = vst [vmem:[#allocation2 + $0x7f0] sm:$0xff] %v2911
          %3168 = vst [vmem:[#allocation2 + $0x7f8] sm:$0xff] %v2912
          %s3169 = sadd.s32 %s872, 16
          %s3170 = smul.addr %s3169, 2
          %s3171 = scalar_lea.vmem %s197, %s3170 [#allocation3]
          %v3172 = vld [vmem:[%s3171] sm:$0xff]
          %3174 = vst [vmem:[#allocation1] ss:$4 sm:$0xff] %v3172
          %v3175 = vld.sshfl [vmem:[#allocation1] sm:$0xff pattern:$0x73625140]
          %v3176 = vld.sshfl [vmem:[#allocation1 + $0x8] sm:$0xff pattern:$0x73625140]
          %v3177 = vld.sshfl [vmem:[#allocation1 + $0x10] sm:$0xff pattern:$0x73625140]
          %v3178 = vld.sshfl [vmem:[#allocation1 + $0x18] sm:$0xff pattern:$0x73625140]
          %v3179 = vsel %vm1460, %v3175, 0
          %v3181 = vsel %vm1460, %v3176, 0
          %v3183 = vsel %vm1460, %v3177, 0
          %v3185 = vsel %vm1460, %v3178, 0
          %3187 = vmatpush.bf16.msra.mxu0 0
          %3188 = vmatpush.bf16.msra.mxu0 0
          %3189 = vmatpush.bf16.msra.mxu0 0
          %3190 = vmatpush.bf16.msra.mxu0 0
          %3191 = vmatpush.bf16.msra.mxu0 0
          %3192 = vmatpush.bf16.msra.mxu0 0
          %3193 = vmatpush.bf16.msra.mxu0 0
          %3194 = vmatpush.bf16.msra.mxu0 %v3179
          %3195 = vmatmul.bf16.gmra.mxu0 %v1365
          %v3196 = vpop.f32.mrf.mxu0
          %v3197 = vadd.f32 %v880, %v3196
          %v3198 = vpop.f32.mrf.mxu0
          %v3199 = vadd.f32 %v885, %v3198
          %3200 = vmatmul.bf16.gmra.mxu0 %v1368
          %v3201 = vpop.f32.mrf.mxu0
          %v3202 = vadd.f32 %v890, %v3201
          %v3203 = vpop.f32.mrf.mxu0
          %v3204 = vadd.f32 %v895, %v3203
          %3205 = vmatmul.bf16.gmra.mxu0 %v1371
          %v3206 = vpop.f32.mrf.mxu0
          %v3207 = vadd.f32 %v900, %v3206
          %v3208 = vpop.f32.mrf.mxu0
          %v3209 = vadd.f32 %v905, %v3208
          %3210 = vmatmul.bf16.gmra.mxu0 %v1374
          %v3211 = vpop.f32.mrf.mxu0
          %v3212 = vadd.f32 %v910, %v3211
          %v3213 = vpop.f32.mrf.mxu0
          %v3214 = vadd.f32 %v915, %v3213
          %3215 = vmatmul.bf16.gmra.mxu0 %v1377
          %v3216 = vpop.f32.mrf.mxu0
          %v3217 = vadd.f32 %v920, %v3216
          %v3218 = vpop.f32.mrf.mxu0
          %v3219 = vadd.f32 %v925, %v3218
          %3220 = vmatmul.bf16.gmra.mxu0 %v1380
          %v3221 = vpop.f32.mrf.mxu0
          %v3222 = vadd.f32 %v930, %v3221
          %v3223 = vpop.f32.mrf.mxu0
          %v3224 = vadd.f32 %v935, %v3223
          %3225 = vmatmul.bf16.gmra.mxu0 %v1383
          %v3226 = vpop.f32.mrf.mxu0
          %v3227 = vadd.f32 %v940, %v3226
          %v3228 = vpop.f32.mrf.mxu0
          %v3229 = vadd.f32 %v945, %v3228
          %3230 = vmatmul.bf16.gmra.mxu0 %v1386
          %v3231 = vpop.f32.mrf.mxu0
          %v3232 = vadd.f32 %v950, %v3231
          %v3233 = vpop.f32.mrf.mxu0
          %v3234 = vadd.f32 %v955, %v3233
          %3235 = vmatmul.bf16.gmra.mxu0 %v1389
          %v3236 = vpop.f32.mrf.mxu0
          %v3237 = vadd.f32 %v960, %v3236
          %v3238 = vpop.f32.mrf.mxu0
          %v3239 = vadd.f32 %v965, %v3238
          %3240 = vmatmul.bf16.gmra.mxu0 %v1392
          %v3241 = vpop.f32.mrf.mxu0
          %v3242 = vadd.f32 %v970, %v3241
          %v3243 = vpop.f32.mrf.mxu0
          %v3244 = vadd.f32 %v975, %v3243
          %3245 = vmatmul.bf16.gmra.mxu0 %v1395
          %v3246 = vpop.f32.mrf.mxu0
          %v3247 = vadd.f32 %v980, %v3246
          %v3248 = vpop.f32.mrf.mxu0
          %v3249 = vadd.f32 %v985, %v3248
          %3250 = vmatmul.bf16.gmra.mxu0 %v1398
          %v3251 = vpop.f32.mrf.mxu0
          %v3252 = vadd.f32 %v990, %v3251
          %v3253 = vpop.f32.mrf.mxu0
          %v3254 = vadd.f32 %v995, %v3253
          %3255 = vmatmul.bf16.gmra.mxu0 %v1401
          %v3256 = vpop.f32.mrf.mxu0
          %v3257 = vadd.f32 %v1000, %v3256
          %v3258 = vpop.f32.mrf.mxu0
          %v3259 = vadd.f32 %v1005, %v3258
          %3260 = vmatmul.bf16.gmra.mxu0 %v1404
          %v3261 = vpop.f32.mrf.mxu0
          %v3262 = vadd.f32 %v1010, %v3261
          %v3263 = vpop.f32.mrf.mxu0
          %v3264 = vadd.f32 %v1015, %v3263
          %3265 = vmatmul.bf16.gmra.mxu0 %v1407
          %v3266 = vpop.f32.mrf.mxu0
          %v3267 = vadd.f32 %v1020, %v3266
          %v3268 = vpop.f32.mrf.mxu0
          %v3269 = vadd.f32 %v1025, %v3268
          %3270 = vmatmul.bf16.gmra.mxu0 %v1410
          %v3271 = vpop.f32.mrf.mxu0
          %v3272 = vadd.f32 %v1030, %v3271
          %v3273 = vpop.f32.mrf.mxu0
          %v3274 = vadd.f32 %v1035, %v3273
          %3275 = vmatmul.bf16.gmra.mxu0 %v1413
          %v3276 = vpop.f32.mrf.mxu0
          %v3277 = vadd.f32 %v1040, %v3276
          %v3278 = vpop.f32.mrf.mxu0
          %v3279 = vadd.f32 %v1045, %v3278
          %3280 = vmatmul.bf16.gmra.mxu0 %v1416
          %v3281 = vpop.f32.mrf.mxu0
          %v3282 = vadd.f32 %v1050, %v3281
          %v3283 = vpop.f32.mrf.mxu0
          %v3284 = vadd.f32 %v1055, %v3283
          %3285 = vmatmul.bf16.gmra.mxu0 %v1419
          %v3286 = vpop.f32.mrf.mxu0
          %v3287 = vadd.f32 %v1060, %v3286
          %v3288 = vpop.f32.mrf.mxu0
          %v3289 = vadd.f32 %v1065, %v3288
          %3290 = vmatmul.bf16.gmra.mxu0 %v1422
          %v3291 = vpop.f32.mrf.mxu0
          %v3292 = vadd.f32 %v1070, %v3291
          %v3293 = vpop.f32.mrf.mxu0
          %v3294 = vadd.f32 %v1075, %v3293
          %3295 = vmatmul.bf16.gmra.mxu0 %v1425
          %v3296 = vpop.f32.mrf.mxu0
          %v3297 = vadd.f32 %v1080, %v3296
          %v3298 = vpop.f32.mrf.mxu0
          %v3299 = vadd.f32 %v1085, %v3298
          %3300 = vmatmul.bf16.gmra.mxu0 %v1428
          %v3301 = vpop.f32.mrf.mxu0
          %v3302 = vadd.f32 %v1090, %v3301
          %v3303 = vpop.f32.mrf.mxu0
          %v3304 = vadd.f32 %v1095, %v3303
          %3305 = vmatmul.bf16.gmra.mxu0 %v1431
          %v3306 = vpop.f32.mrf.mxu0
          %v3307 = vadd.f32 %v1100, %v3306
          %v3308 = vpop.f32.mrf.mxu0
          %v3309 = vadd.f32 %v1105, %v3308
          %3310 = vmatmul.bf16.gmra.mxu0 %v1434
          %v3311 = vpop.f32.mrf.mxu0
          %v3312 = vadd.f32 %v1110, %v3311
          %v3313 = vpop.f32.mrf.mxu0
          %v3314 = vadd.f32 %v1115, %v3313
          %3315 = vmatmul.bf16.gmra.mxu0 %v1437
          %v3316 = vpop.f32.mrf.mxu0
          %v3317 = vadd.f32 %v1120, %v3316
          %v3318 = vpop.f32.mrf.mxu0
          %v3319 = vadd.f32 %v1125, %v3318
          %3320 = vmatmul.bf16.gmra.mxu0 %v1440
          %v3321 = vpop.f32.mrf.mxu0
          %v3322 = vadd.f32 %v1130, %v3321
          %v3323 = vpop.f32.mrf.mxu0
          %v3324 = vadd.f32 %v1135, %v3323
          %3325 = vmatmul.bf16.gmra.mxu0 %v1443
          %v3326 = vpop.f32.mrf.mxu0
          %v3327 = vadd.f32 %v1140, %v3326
          %v3328 = vpop.f32.mrf.mxu0
          %v3329 = vadd.f32 %v1145, %v3328
          %3330 = vmatmul.bf16.gmra.mxu0 %v1446
          %v3331 = vpop.f32.mrf.mxu0
          %v3332 = vadd.f32 %v1150, %v3331
          %v3333 = vpop.f32.mrf.mxu0
          %v3334 = vadd.f32 %v1155, %v3333
          %3335 = vmatmul.bf16.gmra.mxu0 %v1449
          %v3336 = vpop.f32.mrf.mxu0
          %v3337 = vadd.f32 %v1160, %v3336
          %v3338 = vpop.f32.mrf.mxu0
          %v3339 = vadd.f32 %v1165, %v3338
          %3340 = vmatmul.bf16.gmra.mxu0 %v1452
          %v3341 = vpop.f32.mrf.mxu0
          %v3342 = vadd.f32 %v1170, %v3341
          %v3343 = vpop.f32.mrf.mxu0
          %v3344 = vadd.f32 %v1175, %v3343
          %3345 = vmatmul.bf16.gmra.mxu0 %v1455
          %v3346 = vpop.f32.mrf.mxu0
          %v3347 = vadd.f32 %v1180, %v3346
          %v3348 = vpop.f32.mrf.mxu0
          %v3349 = vadd.f32 %v1185, %v3348
          %3350 = vmatmul.bf16.gmra.mxu0 %v1458
          %v3351 = vpop.f32.mrf.mxu0
          %v3352 = vadd.f32 %v1190, %v3351
          %v3353 = vpop.f32.mrf.mxu0
          %v3354 = vadd.f32 %v1195, %v3353
          %3355 = vdwg.mxu0
          %3356 = vmatpush.bf16.msra.mxu0 0
          %3357 = vmatpush.bf16.msra.mxu0 0
          %3358 = vmatpush.bf16.msra.mxu0 0
          %3359 = vmatpush.bf16.msra.mxu0 0
          %3360 = vmatpush.bf16.msra.mxu0 0
          %3361 = vmatpush.bf16.msra.mxu0 0
          %3362 = vmatpush.bf16.msra.mxu0 0
          %3363 = vmatpush.bf16.msra.mxu0 %v3181
          %3364 = vmatmul.bf16.gmra.mxu0 %v1365
          %v3365 = vpop.f32.mrf.mxu0
          %v3366 = vadd.f32 %v880, %v3365
          %v3367 = vpop.f32.mrf.mxu0
          %v3368 = vadd.f32 %v885, %v3367
          %3369 = vmatmul.bf16.gmra.mxu0 %v1368
          %v3370 = vpop.f32.mrf.mxu0
          %v3371 = vadd.f32 %v890, %v3370
          %v3372 = vpop.f32.mrf.mxu0
          %v3373 = vadd.f32 %v895, %v3372
          %3374 = vmatmul.bf16.gmra.mxu0 %v1371
          %v3375 = vpop.f32.mrf.mxu0
          %v3376 = vadd.f32 %v900, %v3375
          %v3377 = vpop.f32.mrf.mxu0
          %v3378 = vadd.f32 %v905, %v3377
          %3379 = vmatmul.bf16.gmra.mxu0 %v1374
          %v3380 = vpop.f32.mrf.mxu0
          %v3381 = vadd.f32 %v910, %v3380
          %v3382 = vpop.f32.mrf.mxu0
          %v3383 = vadd.f32 %v915, %v3382
          %3384 = vmatmul.bf16.gmra.mxu0 %v1377
          %v3385 = vpop.f32.mrf.mxu0
          %v3386 = vadd.f32 %v920, %v3385
          %v3387 = vpop.f32.mrf.mxu0
          %v3388 = vadd.f32 %v925, %v3387
          %3389 = vmatmul.bf16.gmra.mxu0 %v1380
          %v3390 = vpop.f32.mrf.mxu0
          %v3391 = vadd.f32 %v930, %v3390
          %v3392 = vpop.f32.mrf.mxu0
          %v3393 = vadd.f32 %v935, %v3392
          %3394 = vmatmul.bf16.gmra.mxu0 %v1383
          %v3395 = vpop.f32.mrf.mxu0
          %v3396 = vadd.f32 %v940, %v3395
          %v3397 = vpop.f32.mrf.mxu0
          %v3398 = vadd.f32 %v945, %v3397
          %3399 = vmatmul.bf16.gmra.mxu0 %v1386
          %v3400 = vpop.f32.mrf.mxu0
          %v3401 = vadd.f32 %v950, %v3400
          %v3402 = vpop.f32.mrf.mxu0
          %v3403 = vadd.f32 %v955, %v3402
          %3404 = vmatmul.bf16.gmra.mxu0 %v1389
          %v3405 = vpop.f32.mrf.mxu0
          %v3406 = vadd.f32 %v960, %v3405
          %v3407 = vpop.f32.mrf.mxu0
          %v3408 = vadd.f32 %v965, %v3407
          %3409 = vmatmul.bf16.gmra.mxu0 %v1392
          %v3410 = vpop.f32.mrf.mxu0
          %v3411 = vadd.f32 %v970, %v3410
          %v3412 = vpop.f32.mrf.mxu0
          %v3413 = vadd.f32 %v975, %v3412
          %3414 = vmatmul.bf16.gmra.mxu0 %v1395
          %v3415 = vpop.f32.mrf.mxu0
          %v3416 = vadd.f32 %v980, %v3415
          %v3417 = vpop.f32.mrf.mxu0
          %v3418 = vadd.f32 %v985, %v3417
          %3419 = vmatmul.bf16.gmra.mxu0 %v1398
          %v3420 = vpop.f32.mrf.mxu0
          %v3421 = vadd.f32 %v990, %v3420
          %v3422 = vpop.f32.mrf.mxu0
          %v3423 = vadd.f32 %v995, %v3422
          %3424 = vmatmul.bf16.gmra.mxu0 %v1401
          %v3425 = vpop.f32.mrf.mxu0
          %v3426 = vadd.f32 %v1000, %v3425
          %v3427 = vpop.f32.mrf.mxu0
          %v3428 = vadd.f32 %v1005, %v3427
          %3429 = vmatmul.bf16.gmra.mxu0 %v1404
          %v3430 = vpop.f32.mrf.mxu0
          %v3431 = vadd.f32 %v1010, %v3430
          %v3432 = vpop.f32.mrf.mxu0
          %v3433 = vadd.f32 %v1015, %v3432
          %3434 = vmatmul.bf16.gmra.mxu0 %v1407
          %v3435 = vpop.f32.mrf.mxu0
          %v3436 = vadd.f32 %v1020, %v3435
          %v3437 = vpop.f32.mrf.mxu0
          %v3438 = vadd.f32 %v1025, %v3437
          %3439 = vmatmul.bf16.gmra.mxu0 %v1410
          %v3440 = vpop.f32.mrf.mxu0
          %v3441 = vadd.f32 %v1030, %v3440
          %v3442 = vpop.f32.mrf.mxu0
          %v3443 = vadd.f32 %v1035, %v3442
          %3444 = vmatmul.bf16.gmra.mxu0 %v1413
          %v3445 = vpop.f32.mrf.mxu0
          %v3446 = vadd.f32 %v1040, %v3445
          %v3447 = vpop.f32.mrf.mxu0
          %v3448 = vadd.f32 %v1045, %v3447
          %3449 = vmatmul.bf16.gmra.mxu0 %v1416
          %v3450 = vpop.f32.mrf.mxu0
          %v3451 = vadd.f32 %v1050, %v3450
          %v3452 = vpop.f32.mrf.mxu0
          %v3453 = vadd.f32 %v1055, %v3452
          %3454 = vmatmul.bf16.gmra.mxu0 %v1419
          %v3455 = vpop.f32.mrf.mxu0
          %v3456 = vadd.f32 %v1060, %v3455
          %v3457 = vpop.f32.mrf.mxu0
          %v3458 = vadd.f32 %v1065, %v3457
          %3459 = vmatmul.bf16.gmra.mxu0 %v1422
          %v3460 = vpop.f32.mrf.mxu0
          %v3461 = vadd.f32 %v1070, %v3460
          %v3462 = vpop.f32.mrf.mxu0
          %v3463 = vadd.f32 %v1075, %v3462
          %3464 = vmatmul.bf16.gmra.mxu0 %v1425
          %v3465 = vpop.f32.mrf.mxu0
          %v3466 = vadd.f32 %v1080, %v3465
          %v3467 = vpop.f32.mrf.mxu0
          %v3468 = vadd.f32 %v1085, %v3467
          %3469 = vmatmul.bf16.gmra.mxu0 %v1428
          %v3470 = vpop.f32.mrf.mxu0
          %v3471 = vadd.f32 %v1090, %v3470
          %v3472 = vpop.f32.mrf.mxu0
          %v3473 = vadd.f32 %v1095, %v3472
          %3474 = vmatmul.bf16.gmra.mxu0 %v1431
          %v3475 = vpop.f32.mrf.mxu0
          %v3476 = vadd.f32 %v1100, %v3475
          %v3477 = vpop.f32.mrf.mxu0
          %v3478 = vadd.f32 %v1105, %v3477
          %3479 = vmatmul.bf16.gmra.mxu0 %v1434
          %v3480 = vpop.f32.mrf.mxu0
          %v3481 = vadd.f32 %v1110, %v3480
          %v3482 = vpop.f32.mrf.mxu0
          %v3483 = vadd.f32 %v1115, %v3482
          %3484 = vmatmul.bf16.gmra.mxu0 %v1437
          %v3485 = vpop.f32.mrf.mxu0
          %v3486 = vadd.f32 %v1120, %v3485
          %v3487 = vpop.f32.mrf.mxu0
          %v3488 = vadd.f32 %v1125, %v3487
          %3489 = vmatmul.bf16.gmra.mxu0 %v1440
          %v3490 = vpop.f32.mrf.mxu0
          %v3491 = vadd.f32 %v1130, %v3490
          %v3492 = vpop.f32.mrf.mxu0
          %v3493 = vadd.f32 %v1135, %v3492
          %3494 = vmatmul.bf16.gmra.mxu0 %v1443
          %v3495 = vpop.f32.mrf.mxu0
          %v3496 = vadd.f32 %v1140, %v3495
          %v3497 = vpop.f32.mrf.mxu0
          %v3498 = vadd.f32 %v1145, %v3497
          %3499 = vmatmul.bf16.gmra.mxu0 %v1446
          %v3500 = vpop.f32.mrf.mxu0
          %v3501 = vadd.f32 %v1150, %v3500
          %v3502 = vpop.f32.mrf.mxu0
          %v3503 = vadd.f32 %v1155, %v3502
          %3504 = vmatmul.bf16.gmra.mxu0 %v1449
          %v3505 = vpop.f32.mrf.mxu0
          %v3506 = vadd.f32 %v1160, %v3505
          %v3507 = vpop.f32.mrf.mxu0
          %v3508 = vadd.f32 %v1165, %v3507
          %3509 = vmatmul.bf16.gmra.mxu0 %v1452
          %v3510 = vpop.f32.mrf.mxu0
          %v3511 = vadd.f32 %v1170, %v3510
          %v3512 = vpop.f32.mrf.mxu0
          %v3513 = vadd.f32 %v1175, %v3512
          %3514 = vmatmul.bf16.gmra.mxu0 %v1455
          %v3515 = vpop.f32.mrf.mxu0
          %v3516 = vadd.f32 %v1180, %v3515
          %v3517 = vpop.f32.mrf.mxu0
          %v3518 = vadd.f32 %v1185, %v3517
          %3519 = vmatmul.bf16.gmra.mxu0 %v1458
          %v3520 = vpop.f32.mrf.mxu0
          %v3521 = vadd.f32 %v1190, %v3520
          %v3522 = vpop.f32.mrf.mxu0
          %v3523 = vadd.f32 %v1195, %v3522
          %3524 = vdwg.mxu0
          %3525 = vmatpush.bf16.msra.mxu0 0
          %3526 = vmatpush.bf16.msra.mxu0 0
          %3527 = vmatpush.bf16.msra.mxu0 0
          %3528 = vmatpush.bf16.msra.mxu0 0
          %3529 = vmatpush.bf16.msra.mxu0 0
          %3530 = vmatpush.bf16.msra.mxu0 0
          %3531 = vmatpush.bf16.msra.mxu0 0
          %3532 = vmatpush.bf16.msra.mxu0 %v3183
          %3533 = vmatmul.bf16.gmra.mxu0 %v1365
          %v3534 = vpop.f32.mrf.mxu0
          %v3535 = vadd.f32 %v880, %v3534
          %v3536 = vpop.f32.mrf.mxu0
          %v3537 = vadd.f32 %v885, %v3536
          %3538 = vmatmul.bf16.gmra.mxu0 %v1368
          %v3539 = vpop.f32.mrf.mxu0
          %v3540 = vadd.f32 %v890, %v3539
          %v3541 = vpop.f32.mrf.mxu0
          %v3542 = vadd.f32 %v895, %v3541
          %3543 = vmatmul.bf16.gmra.mxu0 %v1371
          %v3544 = vpop.f32.mrf.mxu0
          %v3545 = vadd.f32 %v900, %v3544
          %v3546 = vpop.f32.mrf.mxu0
          %v3547 = vadd.f32 %v905, %v3546
          %3548 = vmatmul.bf16.gmra.mxu0 %v1374
          %v3549 = vpop.f32.mrf.mxu0
          %v3550 = vadd.f32 %v910, %v3549
          %v3551 = vpop.f32.mrf.mxu0
          %v3552 = vadd.f32 %v915, %v3551
          %3553 = vmatmul.bf16.gmra.mxu0 %v1377
          %v3554 = vpop.f32.mrf.mxu0
          %v3555 = vadd.f32 %v920, %v3554
          %v3556 = vpop.f32.mrf.mxu0
          %v3557 = vadd.f32 %v925, %v3556
          %3558 = vmatmul.bf16.gmra.mxu0 %v1380
          %v3559 = vpop.f32.mrf.mxu0
          %v3560 = vadd.f32 %v930, %v3559
          %v3561 = vpop.f32.mrf.mxu0
          %v3562 = vadd.f32 %v935, %v3561
          %3563 = vmatmul.bf16.gmra.mxu0 %v1383
          %v3564 = vpop.f32.mrf.mxu0
          %v3565 = vadd.f32 %v940, %v3564
          %v3566 = vpop.f32.mrf.mxu0
          %v3567 = vadd.f32 %v945, %v3566
          %3568 = vmatmul.bf16.gmra.mxu0 %v1386
          %v3569 = vpop.f32.mrf.mxu0
          %v3570 = vadd.f32 %v950, %v3569
          %v3571 = vpop.f32.mrf.mxu0
          %v3572 = vadd.f32 %v955, %v3571
          %3573 = vmatmul.bf16.gmra.mxu0 %v1389
          %v3574 = vpop.f32.mrf.mxu0
          %v3575 = vadd.f32 %v960, %v3574
          %v3576 = vpop.f32.mrf.mxu0
          %v3577 = vadd.f32 %v965, %v3576
          %3578 = vmatmul.bf16.gmra.mxu0 %v1392
          %v3579 = vpop.f32.mrf.mxu0
          %v3580 = vadd.f32 %v970, %v3579
          %v3581 = vpop.f32.mrf.mxu0
          %v3582 = vadd.f32 %v975, %v3581
          %3583 = vmatmul.bf16.gmra.mxu0 %v1395
          %v3584 = vpop.f32.mrf.mxu0
          %v3585 = vadd.f32 %v980, %v3584
          %v3586 = vpop.f32.mrf.mxu0
          %v3587 = vadd.f32 %v985, %v3586
          %3588 = vmatmul.bf16.gmra.mxu0 %v1398
          %v3589 = vpop.f32.mrf.mxu0
          %v3590 = vadd.f32 %v990, %v3589
          %v3591 = vpop.f32.mrf.mxu0
          %v3592 = vadd.f32 %v995, %v3591
          %3593 = vmatmul.bf16.gmra.mxu0 %v1401
          %v3594 = vpop.f32.mrf.mxu0
          %v3595 = vadd.f32 %v1000, %v3594
          %v3596 = vpop.f32.mrf.mxu0
          %v3597 = vadd.f32 %v1005, %v3596
          %3598 = vmatmul.bf16.gmra.mxu0 %v1404
          %v3599 = vpop.f32.mrf.mxu0
          %v3600 = vadd.f32 %v1010, %v3599
          %v3601 = vpop.f32.mrf.mxu0
          %v3602 = vadd.f32 %v1015, %v3601
          %3603 = vmatmul.bf16.gmra.mxu0 %v1407
          %v3604 = vpop.f32.mrf.mxu0
          %v3605 = vadd.f32 %v1020, %v3604
          %v3606 = vpop.f32.mrf.mxu0
          %v3607 = vadd.f32 %v1025, %v3606
          %3608 = vmatmul.bf16.gmra.mxu0 %v1410
          %v3609 = vpop.f32.mrf.mxu0
          %v3610 = vadd.f32 %v1030, %v3609
          %v3611 = vpop.f32.mrf.mxu0
          %v3612 = vadd.f32 %v1035, %v3611
          %3613 = vmatmul.bf16.gmra.mxu0 %v1413
          %v3614 = vpop.f32.mrf.mxu0
          %v3615 = vadd.f32 %v1040, %v3614
          %v3616 = vpop.f32.mrf.mxu0
          %v3617 = vadd.f32 %v1045, %v3616
          %3618 = vmatmul.bf16.gmra.mxu0 %v1416
          %v3619 = vpop.f32.mrf.mxu0
          %v3620 = vadd.f32 %v1050, %v3619
          %v3621 = vpop.f32.mrf.mxu0
          %v3622 = vadd.f32 %v1055, %v3621
          %3623 = vmatmul.bf16.gmra.mxu0 %v1419
          %v3624 = vpop.f32.mrf.mxu0
          %v3625 = vadd.f32 %v1060, %v3624
          %v3626 = vpop.f32.mrf.mxu0
          %v3627 = vadd.f32 %v1065, %v3626
          %3628 = vmatmul.bf16.gmra.mxu0 %v1422
          %v3629 = vpop.f32.mrf.mxu0
          %v3630 = vadd.f32 %v1070, %v3629
          %v3631 = vpop.f32.mrf.mxu0
          %v3632 = vadd.f32 %v1075, %v3631
          %3633 = vmatmul.bf16.gmra.mxu0 %v1425
          %v3634 = vpop.f32.mrf.mxu0
          %v3635 = vadd.f32 %v1080, %v3634
          %v3636 = vpop.f32.mrf.mxu0
          %v3637 = vadd.f32 %v1085, %v3636
          %3638 = vmatmul.bf16.gmra.mxu0 %v1428
          %v3639 = vpop.f32.mrf.mxu0
          %v3640 = vadd.f32 %v1090, %v3639
          %v3641 = vpop.f32.mrf.mxu0
          %v3642 = vadd.f32 %v1095, %v3641
          %3643 = vmatmul.bf16.gmra.mxu0 %v1431
          %v3644 = vpop.f32.mrf.mxu0
          %v3645 = vadd.f32 %v1100, %v3644
          %v3646 = vpop.f32.mrf.mxu0
          %v3647 = vadd.f32 %v1105, %v3646
          %3648 = vmatmul.bf16.gmra.mxu0 %v1434
          %v3649 = vpop.f32.mrf.mxu0
          %v3650 = vadd.f32 %v1110, %v3649
          %v3651 = vpop.f32.mrf.mxu0
          %v3652 = vadd.f32 %v1115, %v3651
          %3653 = vmatmul.bf16.gmra.mxu0 %v1437
          %v3654 = vpop.f32.mrf.mxu0
          %v3655 = vadd.f32 %v1120, %v3654
          %v3656 = vpop.f32.mrf.mxu0
          %v3657 = vadd.f32 %v1125, %v3656
          %3658 = vmatmul.bf16.gmra.mxu0 %v1440
          %v3659 = vpop.f32.mrf.mxu0
          %v3660 = vadd.f32 %v1130, %v3659
          %v3661 = vpop.f32.mrf.mxu0
          %v3662 = vadd.f32 %v1135, %v3661
          %3663 = vmatmul.bf16.gmra.mxu0 %v1443
          %v3664 = vpop.f32.mrf.mxu0
          %v3665 = vadd.f32 %v1140, %v3664
          %v3666 = vpop.f32.mrf.mxu0
          %v3667 = vadd.f32 %v1145, %v3666
          %3668 = vmatmul.bf16.gmra.mxu0 %v1446
          %v3669 = vpop.f32.mrf.mxu0
          %v3670 = vadd.f32 %v1150, %v3669
          %v3671 = vpop.f32.mrf.mxu0
          %v3672 = vadd.f32 %v1155, %v3671
          %3673 = vmatmul.bf16.gmra.mxu0 %v1449
          %v3674 = vpop.f32.mrf.mxu0
          %v3675 = vadd.f32 %v1160, %v3674
          %v3676 = vpop.f32.mrf.mxu0
          %v3677 = vadd.f32 %v1165, %v3676
          %3678 = vmatmul.bf16.gmra.mxu0 %v1452
          %v3679 = vpop.f32.mrf.mxu0
          %v3680 = vadd.f32 %v1170, %v3679
          %v3681 = vpop.f32.mrf.mxu0
          %v3682 = vadd.f32 %v1175, %v3681
          %3683 = vmatmul.bf16.gmra.mxu0 %v1455
          %v3684 = vpop.f32.mrf.mxu0
          %v3685 = vadd.f32 %v1180, %v3684
          %v3686 = vpop.f32.mrf.mxu0
          %v3687 = vadd.f32 %v1185, %v3686
          %3688 = vmatmul.bf16.gmra.mxu0 %v1458
          %v3689 = vpop.f32.mrf.mxu0
          %v3690 = vadd.f32 %v1190, %v3689
          %v3691 = vpop.f32.mrf.mxu0
          %v3692 = vadd.f32 %v1195, %v3691
          %3693 = vdwg.mxu0
          %3694 = vmatpush.bf16.msra.mxu0 0
          %3695 = vmatpush.bf16.msra.mxu0 0
          %3696 = vmatpush.bf16.msra.mxu0 0
          %3697 = vmatpush.bf16.msra.mxu0 0
          %3698 = vmatpush.bf16.msra.mxu0 0
          %3699 = vmatpush.bf16.msra.mxu0 0
          %3700 = vmatpush.bf16.msra.mxu0 0
          %3701 = vmatpush.bf16.msra.mxu0 %v3185
          %3702 = vmatmul.bf16.gmra.mxu0 %v1365
          %v3703 = vpop.f32.mrf.mxu0
          %v3704 = vadd.f32 %v880, %v3703
          %v3705 = vpop.f32.mrf.mxu0
          %v3706 = vadd.f32 %v885, %v3705
          %3707 = vmatmul.bf16.gmra.mxu0 %v1368
          %v3708 = vpop.f32.mrf.mxu0
          %v3709 = vadd.f32 %v890, %v3708
          %v3710 = vpop.f32.mrf.mxu0
          %v3711 = vadd.f32 %v895, %v3710
          %3712 = vmatmul.bf16.gmra.mxu0 %v1371
          %v3713 = vpop.f32.mrf.mxu0
          %v3714 = vadd.f32 %v900, %v3713
          %v3715 = vpop.f32.mrf.mxu0
          %v3716 = vadd.f32 %v905, %v3715
          %3717 = vmatmul.bf16.gmra.mxu0 %v1374
          %v3718 = vpop.f32.mrf.mxu0
          %v3719 = vadd.f32 %v910, %v3718
          %v3720 = vpop.f32.mrf.mxu0
          %v3721 = vadd.f32 %v915, %v3720
          %3722 = vmatmul.bf16.gmra.mxu0 %v1377
          %v3723 = vpop.f32.mrf.mxu0
          %v3724 = vadd.f32 %v920, %v3723
          %v3725 = vpop.f32.mrf.mxu0
          %v3726 = vadd.f32 %v925, %v3725
          %3727 = vmatmul.bf16.gmra.mxu0 %v1380
          %v3728 = vpop.f32.mrf.mxu0
          %v3729 = vadd.f32 %v930, %v3728
          %v3730 = vpop.f32.mrf.mxu0
          %v3731 = vadd.f32 %v935, %v3730
          %3732 = vmatmul.bf16.gmra.mxu0 %v1383
          %v3733 = vpop.f32.mrf.mxu0
          %v3734 = vadd.f32 %v940, %v3733
          %v3735 = vpop.f32.mrf.mxu0
          %v3736 = vadd.f32 %v945, %v3735
          %3737 = vmatmul.bf16.gmra.mxu0 %v1386
          %v3738 = vpop.f32.mrf.mxu0
          %v3739 = vadd.f32 %v950, %v3738
          %v3740 = vpop.f32.mrf.mxu0
          %v3741 = vadd.f32 %v955, %v3740
          %3742 = vmatmul.bf16.gmra.mxu0 %v1389
          %v3743 = vpop.f32.mrf.mxu0
          %v3744 = vadd.f32 %v960, %v3743
          %v3745 = vpop.f32.mrf.mxu0
          %v3746 = vadd.f32 %v965, %v3745
          %3747 = vmatmul.bf16.gmra.mxu0 %v1392
          %v3748 = vpop.f32.mrf.mxu0
          %v3749 = vadd.f32 %v970, %v3748
          %v3750 = vpop.f32.mrf.mxu0
          %v3751 = vadd.f32 %v975, %v3750
          %3752 = vmatmul.bf16.gmra.mxu0 %v1395
          %v3753 = vpop.f32.mrf.mxu0
          %v3754 = vadd.f32 %v980, %v3753
          %v3755 = vpop.f32.mrf.mxu0
          %v3756 = vadd.f32 %v985, %v3755
          %3757 = vmatmul.bf16.gmra.mxu0 %v1398
          %v3758 = vpop.f32.mrf.mxu0
          %v3759 = vadd.f32 %v990, %v3758
          %v3760 = vpop.f32.mrf.mxu0
          %v3761 = vadd.f32 %v995, %v3760
          %3762 = vmatmul.bf16.gmra.mxu0 %v1401
          %v3763 = vpop.f32.mrf.mxu0
          %v3764 = vadd.f32 %v1000, %v3763
          %v3765 = vpop.f32.mrf.mxu0
          %v3766 = vadd.f32 %v1005, %v3765
          %3767 = vmatmul.bf16.gmra.mxu0 %v1404
          %v3768 = vpop.f32.mrf.mxu0
          %v3769 = vadd.f32 %v1010, %v3768
          %v3770 = vpop.f32.mrf.mxu0
          %v3771 = vadd.f32 %v1015, %v3770
          %3772 = vmatmul.bf16.gmra.mxu0 %v1407
          %v3773 = vpop.f32.mrf.mxu0
          %v3774 = vadd.f32 %v1020, %v3773
          %v3775 = vpop.f32.mrf.mxu0
          %v3776 = vadd.f32 %v1025, %v3775
          %3777 = vmatmul.bf16.gmra.mxu0 %v1410
          %v3778 = vpop.f32.mrf.mxu0
          %v3779 = vadd.f32 %v1030, %v3778
          %v3780 = vpop.f32.mrf.mxu0
          %v3781 = vadd.f32 %v1035, %v3780
          %3782 = vmatmul.bf16.gmra.mxu0 %v1413
          %v3783 = vpop.f32.mrf.mxu0
          %v3784 = vadd.f32 %v1040, %v3783
          %v3785 = vpop.f32.mrf.mxu0
          %v3786 = vadd.f32 %v1045, %v3785
          %3787 = vmatmul.bf16.gmra.mxu0 %v1416
          %v3788 = vpop.f32.mrf.mxu0
          %v3789 = vadd.f32 %v1050, %v3788
          %v3790 = vpop.f32.mrf.mxu0
          %v3791 = vadd.f32 %v1055, %v3790
          %3792 = vmatmul.bf16.gmra.mxu0 %v1419
          %v3793 = vpop.f32.mrf.mxu0
          %v3794 = vadd.f32 %v1060, %v3793
          %v3795 = vpop.f32.mrf.mxu0
          %v3796 = vadd.f32 %v1065, %v3795
          %3797 = vmatmul.bf16.gmra.mxu0 %v1422
          %v3798 = vpop.f32.mrf.mxu0
          %v3799 = vadd.f32 %v1070, %v3798
          %v3800 = vpop.f32.mrf.mxu0
          %v3801 = vadd.f32 %v1075, %v3800
          %3802 = vmatmul.bf16.gmra.mxu0 %v1425
          %v3803 = vpop.f32.mrf.mxu0
          %v3804 = vadd.f32 %v1080, %v3803
          %v3805 = vpop.f32.mrf.mxu0
          %v3806 = vadd.f32 %v1085, %v3805
          %3807 = vmatmul.bf16.gmra.mxu0 %v1428
          %v3808 = vpop.f32.mrf.mxu0
          %v3809 = vadd.f32 %v1090, %v3808
          %v3810 = vpop.f32.mrf.mxu0
          %v3811 = vadd.f32 %v1095, %v3810
          %3812 = vmatmul.bf16.gmra.mxu0 %v1431
          %v3813 = vpop.f32.mrf.mxu0
          %v3814 = vadd.f32 %v1100, %v3813
          %v3815 = vpop.f32.mrf.mxu0
          %v3816 = vadd.f32 %v1105, %v3815
          %3817 = vmatmul.bf16.gmra.mxu0 %v1434
          %v3818 = vpop.f32.mrf.mxu0
          %v3819 = vadd.f32 %v1110, %v3818
          %v3820 = vpop.f32.mrf.mxu0
          %v3821 = vadd.f32 %v1115, %v3820
          %3822 = vmatmul.bf16.gmra.mxu0 %v1437
          %v3823 = vpop.f32.mrf.mxu0
          %v3824 = vadd.f32 %v1120, %v3823
          %v3825 = vpop.f32.mrf.mxu0
          %v3826 = vadd.f32 %v1125, %v3825
          %3827 = vmatmul.bf16.gmra.mxu0 %v1440
          %v3828 = vpop.f32.mrf.mxu0
          %v3829 = vadd.f32 %v1130, %v3828
          %v3830 = vpop.f32.mrf.mxu0
          %v3831 = vadd.f32 %v1135, %v3830
          %3832 = vmatmul.bf16.gmra.mxu0 %v1443
          %v3833 = vpop.f32.mrf.mxu0
          %v3834 = vadd.f32 %v1140, %v3833
          %v3835 = vpop.f32.mrf.mxu0
          %v3836 = vadd.f32 %v1145, %v3835
          %3837 = vmatmul.bf16.gmra.mxu0 %v1446
          %v3838 = vpop.f32.mrf.mxu0
          %v3839 = vadd.f32 %v1150, %v3838
          %v3840 = vpop.f32.mrf.mxu0
          %v3841 = vadd.f32 %v1155, %v3840
          %3842 = vmatmul.bf16.gmra.mxu0 %v1449
          %v3843 = vpop.f32.mrf.mxu0
          %v3844 = vadd.f32 %v1160, %v3843
          %v3845 = vpop.f32.mrf.mxu0
          %v3846 = vadd.f32 %v1165, %v3845
          %3847 = vmatmul.bf16.gmra.mxu0 %v1452
          %v3848 = vpop.f32.mrf.mxu0
          %v3849 = vadd.f32 %v1170, %v3848
          %v3850 = vpop.f32.mrf.mxu0
          %v3851 = vadd.f32 %v1175, %v3850
          %3852 = vmatmul.bf16.gmra.mxu0 %v1455
          %v3853 = vpop.f32.mrf.mxu0
          %v3854 = vadd.f32 %v1180, %v3853
          %v3855 = vpop.f32.mrf.mxu0
          %v3856 = vadd.f32 %v1185, %v3855
          %3857 = vmatmul.bf16.gmra.mxu0 %v1458
          %v3858 = vpop.f32.mrf.mxu0
          %v3859 = vadd.f32 %v1190, %v3858
          %v3860 = vpop.f32.mrf.mxu0
          %v3861 = vadd.f32 %v1195, %v3860
          %3862 = vdwg.mxu0
          %v3863 = vmax.f32 %v3197, 0.0
          %v3864 = vmax.f32 %v3366, 0.0
          %v3865 = vmax.f32 %v3535, 0.0
          %v3866 = vmax.f32 %v3704, 0.0
          %v3867 = vmax.f32 %v3199, 0.0
          %v3868 = vmax.f32 %v3368, 0.0
          %v3869 = vmax.f32 %v3537, 0.0
          %v3870 = vmax.f32 %v3706, 0.0
          %v3871 = vmax.f32 %v3202, 0.0
          %v3872 = vmax.f32 %v3371, 0.0
          %v3873 = vmax.f32 %v3540, 0.0
          %v3874 = vmax.f32 %v3709, 0.0
          %v3875 = vmax.f32 %v3204, 0.0
          %v3876 = vmax.f32 %v3373, 0.0
          %v3877 = vmax.f32 %v3542, 0.0
          %v3878 = vmax.f32 %v3711, 0.0
          %v3879 = vmax.f32 %v3207, 0.0
          %v3880 = vmax.f32 %v3376, 0.0
          %v3881 = vmax.f32 %v3545, 0.0
          %v3882 = vmax.f32 %v3714, 0.0
          %v3883 = vmax.f32 %v3209, 0.0
          %v3884 = vmax.f32 %v3378, 0.0
          %v3885 = vmax.f32 %v3547, 0.0
          %v3886 = vmax.f32 %v3716, 0.0
          %v3887 = vmax.f32 %v3212, 0.0
          %v3888 = vmax.f32 %v3381, 0.0
          %v3889 = vmax.f32 %v3550, 0.0
          %v3890 = vmax.f32 %v3719, 0.0
          %v3891 = vmax.f32 %v3214, 0.0
          %v3892 = vmax.f32 %v3383, 0.0
          %v3893 = vmax.f32 %v3552, 0.0
          %v3894 = vmax.f32 %v3721, 0.0
          %v3895 = vmax.f32 %v3217, 0.0
          %v3896 = vmax.f32 %v3386, 0.0
          %v3897 = vmax.f32 %v3555, 0.0
          %v3898 = vmax.f32 %v3724, 0.0
          %v3899 = vmax.f32 %v3219, 0.0
          %v3900 = vmax.f32 %v3388, 0.0
          %v3901 = vmax.f32 %v3557, 0.0
          %v3902 = vmax.f32 %v3726, 0.0
          %v3903 = vmax.f32 %v3222, 0.0
          %v3904 = vmax.f32 %v3391, 0.0
          %v3905 = vmax.f32 %v3560, 0.0
          %v3906 = vmax.f32 %v3729, 0.0
          %v3907 = vmax.f32 %v3224, 0.0
          %v3908 = vmax.f32 %v3393, 0.0
          %v3909 = vmax.f32 %v3562, 0.0
          %v3910 = vmax.f32 %v3731, 0.0
          %v3911 = vmax.f32 %v3227, 0.0
          %v3912 = vmax.f32 %v3396, 0.0
          %v3913 = vmax.f32 %v3565, 0.0
          %v3914 = vmax.f32 %v3734, 0.0
          %v3915 = vmax.f32 %v3229, 0.0
          %v3916 = vmax.f32 %v3398, 0.0
          %v3917 = vmax.f32 %v3567, 0.0
          %v3918 = vmax.f32 %v3736, 0.0
          %v3919 = vmax.f32 %v3232, 0.0
          %v3920 = vmax.f32 %v3401, 0.0
          %v3921 = vmax.f32 %v3570, 0.0
          %v3922 = vmax.f32 %v3739, 0.0
          %v3923 = vmax.f32 %v3234, 0.0
          %v3924 = vmax.f32 %v3403, 0.0
          %v3925 = vmax.f32 %v3572, 0.0
          %v3926 = vmax.f32 %v3741, 0.0
          %v3927 = vmax.f32 %v3237, 0.0
          %v3928 = vmax.f32 %v3406, 0.0
          %v3929 = vmax.f32 %v3575, 0.0
          %v3930 = vmax.f32 %v3744, 0.0
          %v3931 = vmax.f32 %v3239, 0.0
          %v3932 = vmax.f32 %v3408, 0.0
          %v3933 = vmax.f32 %v3577, 0.0
          %v3934 = vmax.f32 %v3746, 0.0
          %v3935 = vmax.f32 %v3242, 0.0
          %v3936 = vmax.f32 %v3411, 0.0
          %v3937 = vmax.f32 %v3580, 0.0
          %v3938 = vmax.f32 %v3749, 0.0
          %v3939 = vmax.f32 %v3244, 0.0
          %v3940 = vmax.f32 %v3413, 0.0
          %v3941 = vmax.f32 %v3582, 0.0
          %v3942 = vmax.f32 %v3751, 0.0
          %v3943 = vmax.f32 %v3247, 0.0
          %v3944 = vmax.f32 %v3416, 0.0
          %v3945 = vmax.f32 %v3585, 0.0
          %v3946 = vmax.f32 %v3754, 0.0
          %v3947 = vmax.f32 %v3249, 0.0
          %v3948 = vmax.f32 %v3418, 0.0
          %v3949 = vmax.f32 %v3587, 0.0
          %v3950 = vmax.f32 %v3756, 0.0
          %v3951 = vmax.f32 %v3252, 0.0
          %v3952 = vmax.f32 %v3421, 0.0
          %v3953 = vmax.f32 %v3590, 0.0
          %v3954 = vmax.f32 %v3759, 0.0
          %v3955 = vmax.f32 %v3254, 0.0
          %v3956 = vmax.f32 %v3423, 0.0
          %v3957 = vmax.f32 %v3592, 0.0
          %v3958 = vmax.f32 %v3761, 0.0
          %v3959 = vmax.f32 %v3257, 0.0
          %v3960 = vmax.f32 %v3426, 0.0
          %v3961 = vmax.f32 %v3595, 0.0
          %v3962 = vmax.f32 %v3764, 0.0
          %v3963 = vmax.f32 %v3259, 0.0
          %v3964 = vmax.f32 %v3428, 0.0
          %v3965 = vmax.f32 %v3597, 0.0
          %v3966 = vmax.f32 %v3766, 0.0
          %v3967 = vmax.f32 %v3262, 0.0
          %v3968 = vmax.f32 %v3431, 0.0
          %v3969 = vmax.f32 %v3600, 0.0
          %v3970 = vmax.f32 %v3769, 0.0
          %v3971 = vmax.f32 %v3264, 0.0
          %v3972 = vmax.f32 %v3433, 0.0
          %v3973 = vmax.f32 %v3602, 0.0
          %v3974 = vmax.f32 %v3771, 0.0
          %v3975 = vmax.f32 %v3267, 0.0
          %v3976 = vmax.f32 %v3436, 0.0
          %v3977 = vmax.f32 %v3605, 0.0
          %v3978 = vmax.f32 %v3774, 0.0
          %v3979 = vmax.f32 %v3269, 0.0
          %v3980 = vmax.f32 %v3438, 0.0
          %v3981 = vmax.f32 %v3607, 0.0
          %v3982 = vmax.f32 %v3776, 0.0
          %v3983 = vmax.f32 %v3272, 0.0
          %v3984 = vmax.f32 %v3441, 0.0
          %v3985 = vmax.f32 %v3610, 0.0
          %v3986 = vmax.f32 %v3779, 0.0
          %v3987 = vmax.f32 %v3274, 0.0
          %v3988 = vmax.f32 %v3443, 0.0
          %v3989 = vmax.f32 %v3612, 0.0
          %v3990 = vmax.f32 %v3781, 0.0
          %v3991 = vmax.f32 %v3277, 0.0
          %v3992 = vmax.f32 %v3446, 0.0
          %v3993 = vmax.f32 %v3615, 0.0
          %v3994 = vmax.f32 %v3784, 0.0
          %v3995 = vmax.f32 %v3279, 0.0
          %v3996 = vmax.f32 %v3448, 0.0
          %v3997 = vmax.f32 %v3617, 0.0
          %v3998 = vmax.f32 %v3786, 0.0
          %v3999 = vmax.f32 %v3282, 0.0
          %v4000 = vmax.f32 %v3451, 0.0
          %v4001 = vmax.f32 %v3620, 0.0
          %v4002 = vmax.f32 %v3789, 0.0
          %v4003 = vmax.f32 %v3284, 0.0
          %v4004 = vmax.f32 %v3453, 0.0
          %v4005 = vmax.f32 %v3622, 0.0
          %v4006 = vmax.f32 %v3791, 0.0
          %v4007 = vmax.f32 %v3287, 0.0
          %v4008 = vmax.f32 %v3456, 0.0
          %v4009 = vmax.f32 %v3625, 0.0
          %v4010 = vmax.f32 %v3794, 0.0
          %v4011 = vmax.f32 %v3289, 0.0
          %v4012 = vmax.f32 %v3458, 0.0
          %v4013 = vmax.f32 %v3627, 0.0
          %v4014 = vmax.f32 %v3796, 0.0
          %v4015 = vmax.f32 %v3292, 0.0
          %v4016 = vmax.f32 %v3461, 0.0
          %v4017 = vmax.f32 %v3630, 0.0
          %v4018 = vmax.f32 %v3799, 0.0
          %v4019 = vmax.f32 %v3294, 0.0
          %v4020 = vmax.f32 %v3463, 0.0
          %v4021 = vmax.f32 %v3632, 0.0
          %v4022 = vmax.f32 %v3801, 0.0
          %v4023 = vmax.f32 %v3297, 0.0
          %v4024 = vmax.f32 %v3466, 0.0
          %v4025 = vmax.f32 %v3635, 0.0
          %v4026 = vmax.f32 %v3804, 0.0
          %v4027 = vmax.f32 %v3299, 0.0
          %v4028 = vmax.f32 %v3468, 0.0
          %v4029 = vmax.f32 %v3637, 0.0
          %v4030 = vmax.f32 %v3806, 0.0
          %v4031 = vmax.f32 %v3302, 0.0
          %v4032 = vmax.f32 %v3471, 0.0
          %v4033 = vmax.f32 %v3640, 0.0
          %v4034 = vmax.f32 %v3809, 0.0
          %v4035 = vmax.f32 %v3304, 0.0
          %v4036 = vmax.f32 %v3473, 0.0
          %v4037 = vmax.f32 %v3642, 0.0
          %v4038 = vmax.f32 %v3811, 0.0
          %v4039 = vmax.f32 %v3307, 0.0
          %v4040 = vmax.f32 %v3476, 0.0
          %v4041 = vmax.f32 %v3645, 0.0
          %v4042 = vmax.f32 %v3814, 0.0
          %v4043 = vmax.f32 %v3309, 0.0
          %v4044 = vmax.f32 %v3478, 0.0
          %v4045 = vmax.f32 %v3647, 0.0
          %v4046 = vmax.f32 %v3816, 0.0
          %v4047 = vmax.f32 %v3312, 0.0
          %v4048 = vmax.f32 %v3481, 0.0
          %v4049 = vmax.f32 %v3650, 0.0
          %v4050 = vmax.f32 %v3819, 0.0
          %v4051 = vmax.f32 %v3314, 0.0
          %v4052 = vmax.f32 %v3483, 0.0
          %v4053 = vmax.f32 %v3652, 0.0
          %v4054 = vmax.f32 %v3821, 0.0
          %v4055 = vmax.f32 %v3317, 0.0
          %v4056 = vmax.f32 %v3486, 0.0
          %v4057 = vmax.f32 %v3655, 0.0
          %v4058 = vmax.f32 %v3824, 0.0
          %v4059 = vmax.f32 %v3319, 0.0
          %v4060 = vmax.f32 %v3488, 0.0
          %v4061 = vmax.f32 %v3657, 0.0
          %v4062 = vmax.f32 %v3826, 0.0
          %v4063 = vmax.f32 %v3322, 0.0
          %v4064 = vmax.f32 %v3491, 0.0
          %v4065 = vmax.f32 %v3660, 0.0
          %v4066 = vmax.f32 %v3829, 0.0
          %v4067 = vmax.f32 %v3324, 0.0
          %v4068 = vmax.f32 %v3493, 0.0
          %v4069 = vmax.f32 %v3662, 0.0
          %v4070 = vmax.f32 %v3831, 0.0
          %v4071 = vmax.f32 %v3327, 0.0
          %v4072 = vmax.f32 %v3496, 0.0
          %v4073 = vmax.f32 %v3665, 0.0
          %v4074 = vmax.f32 %v3834, 0.0
          %v4075 = vmax.f32 %v3329, 0.0
          %v4076 = vmax.f32 %v3498, 0.0
          %v4077 = vmax.f32 %v3667, 0.0
          %v4078 = vmax.f32 %v3836, 0.0
          %v4079 = vmax.f32 %v3332, 0.0
          %v4080 = vmax.f32 %v3501, 0.0
          %v4081 = vmax.f32 %v3670, 0.0
          %v4082 = vmax.f32 %v3839, 0.0
          %v4083 = vmax.f32 %v3334, 0.0
          %v4084 = vmax.f32 %v3503, 0.0
          %v4085 = vmax.f32 %v3672, 0.0
          %v4086 = vmax.f32 %v3841, 0.0
          %v4087 = vmax.f32 %v3337, 0.0
          %v4088 = vmax.f32 %v3506, 0.0
          %v4089 = vmax.f32 %v3675, 0.0
          %v4090 = vmax.f32 %v3844, 0.0
          %v4091 = vmax.f32 %v3339, 0.0
          %v4092 = vmax.f32 %v3508, 0.0
          %v4093 = vmax.f32 %v3677, 0.0
          %v4094 = vmax.f32 %v3846, 0.0
          %v4095 = vmax.f32 %v3342, 0.0
          %v4096 = vmax.f32 %v3511, 0.0
          %v4097 = vmax.f32 %v3680, 0.0
          %v4098 = vmax.f32 %v3849, 0.0
          %v4099 = vmax.f32 %v3344, 0.0
          %v4100 = vmax.f32 %v3513, 0.0
          %v4101 = vmax.f32 %v3682, 0.0
          %v4102 = vmax.f32 %v3851, 0.0
          %v4103 = vmax.f32 %v3347, 0.0
          %v4104 = vmax.f32 %v3516, 0.0
          %v4105 = vmax.f32 %v3685, 0.0
          %v4106 = vmax.f32 %v3854, 0.0
          %v4107 = vmax.f32 %v3349, 0.0
          %v4108 = vmax.f32 %v3518, 0.0
          %v4109 = vmax.f32 %v3687, 0.0
          %v4110 = vmax.f32 %v3856, 0.0
          %v4111 = vmax.f32 %v3352, 0.0
          %v4112 = vmax.f32 %v3521, 0.0
          %v4113 = vmax.f32 %v3690, 0.0
          %v4114 = vmax.f32 %v3859, 0.0
          %v4115 = vmax.f32 %v3354, 0.0
          %v4116 = vmax.f32 %v3523, 0.0
          %v4117 = vmax.f32 %v3692, 0.0
          %v4118 = vmax.f32 %v3861, 0.0
          %s4119 = scalar_lea.vmem [#allocation2], 2048
          %v4120 = vld [vmem:[%s4119] sm:$0xff]
          %v4121 = vld [vmem:[%s4119 + $0x8] sm:$0xff]
          %v4122 = vld [vmem:[%s4119 + $0x10] sm:$0xff]
          %v4123 = vld [vmem:[%s4119 + $0x18] sm:$0xff]
          %v4124 = vld [vmem:[%s4119 + $0x20] sm:$0xff]
          %v4125 = vld [vmem:[%s4119 + $0x28] sm:$0xff]
          %v4126 = vld [vmem:[%s4119 + $0x30] sm:$0xff]
          %v4127 = vld [vmem:[%s4119 + $0x38] sm:$0xff]
          %v4128 = vld [vmem:[%s4119 + $0x40] sm:$0xff]
          %v4129 = vld [vmem:[%s4119 + $0x48] sm:$0xff]
          %v4130 = vld [vmem:[%s4119 + $0x50] sm:$0xff]
          %v4131 = vld [vmem:[%s4119 + $0x58] sm:$0xff]
          %v4132 = vld [vmem:[%s4119 + $0x60] sm:$0xff]
          %v4133 = vld [vmem:[%s4119 + $0x68] sm:$0xff]
          %v4134 = vld [vmem:[%s4119 + $0x70] sm:$0xff]
          %v4135 = vld [vmem:[%s4119 + $0x78] sm:$0xff]
          %v4136 = vld [vmem:[%s4119 + $0x80] sm:$0xff]
          %v4137 = vld [vmem:[%s4119 + $0x88] sm:$0xff]
          %v4138 = vld [vmem:[%s4119 + $0x90] sm:$0xff]
          %v4139 = vld [vmem:[%s4119 + $0x98] sm:$0xff]
          %v4140 = vld [vmem:[%s4119 + $0xa0] sm:$0xff]
          %v4141 = vld [vmem:[%s4119 + $0xa8] sm:$0xff]
          %v4142 = vld [vmem:[%s4119 + $0xb0] sm:$0xff]
          %v4143 = vld [vmem:[%s4119 + $0xb8] sm:$0xff]
          %v4144 = vld [vmem:[%s4119 + $0xc0] sm:$0xff]
          %v4145 = vld [vmem:[%s4119 + $0xc8] sm:$0xff]
          %v4146 = vld [vmem:[%s4119 + $0xd0] sm:$0xff]
          %v4147 = vld [vmem:[%s4119 + $0xd8] sm:$0xff]
          %v4148 = vld [vmem:[%s4119 + $0xe0] sm:$0xff]
          %v4149 = vld [vmem:[%s4119 + $0xe8] sm:$0xff]
          %v4150 = vld [vmem:[%s4119 + $0xf0] sm:$0xff]
          %v4151 = vld [vmem:[%s4119 + $0xf8] sm:$0xff]
          %v4152 = vld [vmem:[%s4119 + $0x100] sm:$0xff]
          %v4153 = vld [vmem:[%s4119 + $0x108] sm:$0xff]
          %v4154 = vld [vmem:[%s4119 + $0x110] sm:$0xff]
          %v4155 = vld [vmem:[%s4119 + $0x118] sm:$0xff]
          %v4156 = vld [vmem:[%s4119 + $0x120] sm:$0xff]
          %v4157 = vld [vmem:[%s4119 + $0x128] sm:$0xff]
          %v4158 = vld [vmem:[%s4119 + $0x130] sm:$0xff]
          %v4159 = vld [vmem:[%s4119 + $0x138] sm:$0xff]
          %v4160 = vld [vmem:[%s4119 + $0x140] sm:$0xff]
          %v4161 = vld [vmem:[%s4119 + $0x148] sm:$0xff]
          %v4162 = vld [vmem:[%s4119 + $0x150] sm:$0xff]
          %v4163 = vld [vmem:[%s4119 + $0x158] sm:$0xff]
          %v4164 = vld [vmem:[%s4119 + $0x160] sm:$0xff]
          %v4165 = vld [vmem:[%s4119 + $0x168] sm:$0xff]
          %v4166 = vld [vmem:[%s4119 + $0x170] sm:$0xff]
          %v4167 = vld [vmem:[%s4119 + $0x178] sm:$0xff]
          %v4168 = vld [vmem:[%s4119 + $0x180] sm:$0xff]
          %v4169 = vld [vmem:[%s4119 + $0x188] sm:$0xff]
          %v4170 = vld [vmem:[%s4119 + $0x190] sm:$0xff]
          %v4171 = vld [vmem:[%s4119 + $0x198] sm:$0xff]
          %v4172 = vld [vmem:[%s4119 + $0x1a0] sm:$0xff]
          %v4173 = vld [vmem:[%s4119 + $0x1a8] sm:$0xff]
          %v4174 = vld [vmem:[%s4119 + $0x1b0] sm:$0xff]
          %v4175 = vld [vmem:[%s4119 + $0x1b8] sm:$0xff]
          %v4176 = vld [vmem:[%s4119 + $0x1c0] sm:$0xff]
          %v4177 = vld [vmem:[%s4119 + $0x1c8] sm:$0xff]
          %v4178 = vld [vmem:[%s4119 + $0x1d0] sm:$0xff]
          %v4179 = vld [vmem:[%s4119 + $0x1d8] sm:$0xff]
          %v4180 = vld [vmem:[%s4119 + $0x1e0] sm:$0xff]
          %v4181 = vld [vmem:[%s4119 + $0x1e8] sm:$0xff]
          %v4182 = vld [vmem:[%s4119 + $0x1f0] sm:$0xff]
          %v4183 = vld [vmem:[%s4119 + $0x1f8] sm:$0xff]
          %v4184 = vld [vmem:[%s4119 + $0x200] sm:$0xff]
          %v4185 = vld [vmem:[%s4119 + $0x208] sm:$0xff]
          %v4186 = vld [vmem:[%s4119 + $0x210] sm:$0xff]
          %v4187 = vld [vmem:[%s4119 + $0x218] sm:$0xff]
          %v4188 = vld [vmem:[%s4119 + $0x220] sm:$0xff]
          %v4189 = vld [vmem:[%s4119 + $0x228] sm:$0xff]
          %v4190 = vld [vmem:[%s4119 + $0x230] sm:$0xff]
          %v4191 = vld [vmem:[%s4119 + $0x238] sm:$0xff]
          %v4192 = vld [vmem:[%s4119 + $0x240] sm:$0xff]
          %v4193 = vld [vmem:[%s4119 + $0x248] sm:$0xff]
          %v4194 = vld [vmem:[%s4119 + $0x250] sm:$0xff]
          %v4195 = vld [vmem:[%s4119 + $0x258] sm:$0xff]
          %v4196 = vld [vmem:[%s4119 + $0x260] sm:$0xff]
          %v4197 = vld [vmem:[%s4119 + $0x268] sm:$0xff]
          %v4198 = vld [vmem:[%s4119 + $0x270] sm:$0xff]
          %v4199 = vld [vmem:[%s4119 + $0x278] sm:$0xff]
          %v4200 = vld [vmem:[%s4119 + $0x280] sm:$0xff]
          %v4201 = vld [vmem:[%s4119 + $0x288] sm:$0xff]
          %v4202 = vld [vmem:[%s4119 + $0x290] sm:$0xff]
          %v4203 = vld [vmem:[%s4119 + $0x298] sm:$0xff]
          %v4204 = vld [vmem:[%s4119 + $0x2a0] sm:$0xff]
          %v4205 = vld [vmem:[%s4119 + $0x2a8] sm:$0xff]
          %v4206 = vld [vmem:[%s4119 + $0x2b0] sm:$0xff]
          %v4207 = vld [vmem:[%s4119 + $0x2b8] sm:$0xff]
          %v4208 = vld [vmem:[%s4119 + $0x2c0] sm:$0xff]
          %v4209 = vld [vmem:[%s4119 + $0x2c8] sm:$0xff]
          %v4210 = vld [vmem:[%s4119 + $0x2d0] sm:$0xff]
          %v4211 = vld [vmem:[%s4119 + $0x2d8] sm:$0xff]
          %v4212 = vld [vmem:[%s4119 + $0x2e0] sm:$0xff]
          %v4213 = vld [vmem:[%s4119 + $0x2e8] sm:$0xff]
          %v4214 = vld [vmem:[%s4119 + $0x2f0] sm:$0xff]
          %v4215 = vld [vmem:[%s4119 + $0x2f8] sm:$0xff]
          %v4216 = vld [vmem:[%s4119 + $0x300] sm:$0xff]
          %v4217 = vld [vmem:[%s4119 + $0x308] sm:$0xff]
          %v4218 = vld [vmem:[%s4119 + $0x310] sm:$0xff]
          %v4219 = vld [vmem:[%s4119 + $0x318] sm:$0xff]
          %v4220 = vld [vmem:[%s4119 + $0x320] sm:$0xff]
          %v4221 = vld [vmem:[%s4119 + $0x328] sm:$0xff]
          %v4222 = vld [vmem:[%s4119 + $0x330] sm:$0xff]
          %v4223 = vld [vmem:[%s4119 + $0x338] sm:$0xff]
          %v4224 = vld [vmem:[%s4119 + $0x340] sm:$0xff]
          %v4225 = vld [vmem:[%s4119 + $0x348] sm:$0xff]
          %v4226 = vld [vmem:[%s4119 + $0x350] sm:$0xff]
          %v4227 = vld [vmem:[%s4119 + $0x358] sm:$0xff]
          %v4228 = vld [vmem:[%s4119 + $0x360] sm:$0xff]
          %v4229 = vld [vmem:[%s4119 + $0x368] sm:$0xff]
          %v4230 = vld [vmem:[%s4119 + $0x370] sm:$0xff]
          %v4231 = vld [vmem:[%s4119 + $0x378] sm:$0xff]
          %v4232 = vld [vmem:[%s4119 + $0x380] sm:$0xff]
          %v4233 = vld [vmem:[%s4119 + $0x388] sm:$0xff]
          %v4234 = vld [vmem:[%s4119 + $0x390] sm:$0xff]
          %v4235 = vld [vmem:[%s4119 + $0x398] sm:$0xff]
          %v4236 = vld [vmem:[%s4119 + $0x3a0] sm:$0xff]
          %v4237 = vld [vmem:[%s4119 + $0x3a8] sm:$0xff]
          %v4238 = vld [vmem:[%s4119 + $0x3b0] sm:$0xff]
          %v4239 = vld [vmem:[%s4119 + $0x3b8] sm:$0xff]
          %v4240 = vld [vmem:[%s4119 + $0x3c0] sm:$0xff]
          %v4241 = vld [vmem:[%s4119 + $0x3c8] sm:$0xff]
          %v4242 = vld [vmem:[%s4119 + $0x3d0] sm:$0xff]
          %v4243 = vld [vmem:[%s4119 + $0x3d8] sm:$0xff]
          %v4244 = vld [vmem:[%s4119 + $0x3e0] sm:$0xff]
          %v4245 = vld [vmem:[%s4119 + $0x3e8] sm:$0xff]
          %v4246 = vld [vmem:[%s4119 + $0x3f0] sm:$0xff]
          %v4247 = vld [vmem:[%s4119 + $0x3f8] sm:$0xff]
          %v4248 = vld [vmem:[%s4119 + $0x400] sm:$0xff]
          %v4249 = vld [vmem:[%s4119 + $0x408] sm:$0xff]
          %v4250 = vld [vmem:[%s4119 + $0x410] sm:$0xff]
          %v4251 = vld [vmem:[%s4119 + $0x418] sm:$0xff]
          %v4252 = vld [vmem:[%s4119 + $0x420] sm:$0xff]
          %v4253 = vld [vmem:[%s4119 + $0x428] sm:$0xff]
          %v4254 = vld [vmem:[%s4119 + $0x430] sm:$0xff]
          %v4255 = vld [vmem:[%s4119 + $0x438] sm:$0xff]
          %v4256 = vld [vmem:[%s4119 + $0x440] sm:$0xff]
          %v4257 = vld [vmem:[%s4119 + $0x448] sm:$0xff]
          %v4258 = vld [vmem:[%s4119 + $0x450] sm:$0xff]
          %v4259 = vld [vmem:[%s4119 + $0x458] sm:$0xff]
          %v4260 = vld [vmem:[%s4119 + $0x460] sm:$0xff]
          %v4261 = vld [vmem:[%s4119 + $0x468] sm:$0xff]
          %v4262 = vld [vmem:[%s4119 + $0x470] sm:$0xff]
          %v4263 = vld [vmem:[%s4119 + $0x478] sm:$0xff]
          %v4264 = vld [vmem:[%s4119 + $0x480] sm:$0xff]
          %v4265 = vld [vmem:[%s4119 + $0x488] sm:$0xff]
          %v4266 = vld [vmem:[%s4119 + $0x490] sm:$0xff]
          %v4267 = vld [vmem:[%s4119 + $0x498] sm:$0xff]
          %v4268 = vld [vmem:[%s4119 + $0x4a0] sm:$0xff]
          %v4269 = vld [vmem:[%s4119 + $0x4a8] sm:$0xff]
          %v4270 = vld [vmem:[%s4119 + $0x4b0] sm:$0xff]
          %v4271 = vld [vmem:[%s4119 + $0x4b8] sm:$0xff]
          %v4272 = vld [vmem:[%s4119 + $0x4c0] sm:$0xff]
          %v4273 = vld [vmem:[%s4119 + $0x4c8] sm:$0xff]
          %v4274 = vld [vmem:[%s4119 + $0x4d0] sm:$0xff]
          %v4275 = vld [vmem:[%s4119 + $0x4d8] sm:$0xff]
          %v4276 = vld [vmem:[%s4119 + $0x4e0] sm:$0xff]
          %v4277 = vld [vmem:[%s4119 + $0x4e8] sm:$0xff]
          %v4278 = vld [vmem:[%s4119 + $0x4f0] sm:$0xff]
          %v4279 = vld [vmem:[%s4119 + $0x4f8] sm:$0xff]
          %v4280 = vld [vmem:[%s4119 + $0x500] sm:$0xff]
          %v4281 = vld [vmem:[%s4119 + $0x508] sm:$0xff]
          %v4282 = vld [vmem:[%s4119 + $0x510] sm:$0xff]
          %v4283 = vld [vmem:[%s4119 + $0x518] sm:$0xff]
          %v4284 = vld [vmem:[%s4119 + $0x520] sm:$0xff]
          %v4285 = vld [vmem:[%s4119 + $0x528] sm:$0xff]
          %v4286 = vld [vmem:[%s4119 + $0x530] sm:$0xff]
          %v4287 = vld [vmem:[%s4119 + $0x538] sm:$0xff]
          %v4288 = vld [vmem:[%s4119 + $0x540] sm:$0xff]
          %v4289 = vld [vmem:[%s4119 + $0x548] sm:$0xff]
          %v4290 = vld [vmem:[%s4119 + $0x550] sm:$0xff]
          %v4291 = vld [vmem:[%s4119 + $0x558] sm:$0xff]
          %v4292 = vld [vmem:[%s4119 + $0x560] sm:$0xff]
          %v4293 = vld [vmem:[%s4119 + $0x568] sm:$0xff]
          %v4294 = vld [vmem:[%s4119 + $0x570] sm:$0xff]
          %v4295 = vld [vmem:[%s4119 + $0x578] sm:$0xff]
          %v4296 = vld [vmem:[%s4119 + $0x580] sm:$0xff]
          %v4297 = vld [vmem:[%s4119 + $0x588] sm:$0xff]
          %v4298 = vld [vmem:[%s4119 + $0x590] sm:$0xff]
          %v4299 = vld [vmem:[%s4119 + $0x598] sm:$0xff]
          %v4300 = vld [vmem:[%s4119 + $0x5a0] sm:$0xff]
          %v4301 = vld [vmem:[%s4119 + $0x5a8] sm:$0xff]
          %v4302 = vld [vmem:[%s4119 + $0x5b0] sm:$0xff]
          %v4303 = vld [vmem:[%s4119 + $0x5b8] sm:$0xff]
          %v4304 = vld [vmem:[%s4119 + $0x5c0] sm:$0xff]
          %v4305 = vld [vmem:[%s4119 + $0x5c8] sm:$0xff]
          %v4306 = vld [vmem:[%s4119 + $0x5d0] sm:$0xff]
          %v4307 = vld [vmem:[%s4119 + $0x5d8] sm:$0xff]
          %v4308 = vld [vmem:[%s4119 + $0x5e0] sm:$0xff]
          %v4309 = vld [vmem:[%s4119 + $0x5e8] sm:$0xff]
          %v4310 = vld [vmem:[%s4119 + $0x5f0] sm:$0xff]
          %v4311 = vld [vmem:[%s4119 + $0x5f8] sm:$0xff]
          %v4312 = vld [vmem:[%s4119 + $0x600] sm:$0xff]
          %v4313 = vld [vmem:[%s4119 + $0x608] sm:$0xff]
          %v4314 = vld [vmem:[%s4119 + $0x610] sm:$0xff]
          %v4315 = vld [vmem:[%s4119 + $0x618] sm:$0xff]
          %v4316 = vld [vmem:[%s4119 + $0x620] sm:$0xff]
          %v4317 = vld [vmem:[%s4119 + $0x628] sm:$0xff]
          %v4318 = vld [vmem:[%s4119 + $0x630] sm:$0xff]
          %v4319 = vld [vmem:[%s4119 + $0x638] sm:$0xff]
          %v4320 = vld [vmem:[%s4119 + $0x640] sm:$0xff]
          %v4321 = vld [vmem:[%s4119 + $0x648] sm:$0xff]
          %v4322 = vld [vmem:[%s4119 + $0x650] sm:$0xff]
          %v4323 = vld [vmem:[%s4119 + $0x658] sm:$0xff]
          %v4324 = vld [vmem:[%s4119 + $0x660] sm:$0xff]
          %v4325 = vld [vmem:[%s4119 + $0x668] sm:$0xff]
          %v4326 = vld [vmem:[%s4119 + $0x670] sm:$0xff]
          %v4327 = vld [vmem:[%s4119 + $0x678] sm:$0xff]
          %v4328 = vld [vmem:[%s4119 + $0x680] sm:$0xff]
          %v4329 = vld [vmem:[%s4119 + $0x688] sm:$0xff]
          %v4330 = vld [vmem:[%s4119 + $0x690] sm:$0xff]
          %v4331 = vld [vmem:[%s4119 + $0x698] sm:$0xff]
          %v4332 = vld [vmem:[%s4119 + $0x6a0] sm:$0xff]
          %v4333 = vld [vmem:[%s4119 + $0x6a8] sm:$0xff]
          %v4334 = vld [vmem:[%s4119 + $0x6b0] sm:$0xff]
          %v4335 = vld [vmem:[%s4119 + $0x6b8] sm:$0xff]
          %v4336 = vld [vmem:[%s4119 + $0x6c0] sm:$0xff]
          %v4337 = vld [vmem:[%s4119 + $0x6c8] sm:$0xff]
          %v4338 = vld [vmem:[%s4119 + $0x6d0] sm:$0xff]
          %v4339 = vld [vmem:[%s4119 + $0x6d8] sm:$0xff]
          %v4340 = vld [vmem:[%s4119 + $0x6e0] sm:$0xff]
          %v4341 = vld [vmem:[%s4119 + $0x6e8] sm:$0xff]
          %v4342 = vld [vmem:[%s4119 + $0x6f0] sm:$0xff]
          %v4343 = vld [vmem:[%s4119 + $0x6f8] sm:$0xff]
          %v4344 = vld [vmem:[%s4119 + $0x700] sm:$0xff]
          %v4345 = vld [vmem:[%s4119 + $0x708] sm:$0xff]
          %v4346 = vld [vmem:[%s4119 + $0x710] sm:$0xff]
          %v4347 = vld [vmem:[%s4119 + $0x718] sm:$0xff]
          %v4348 = vld [vmem:[%s4119 + $0x720] sm:$0xff]
          %v4349 = vld [vmem:[%s4119 + $0x728] sm:$0xff]
          %v4350 = vld [vmem:[%s4119 + $0x730] sm:$0xff]
          %v4351 = vld [vmem:[%s4119 + $0x738] sm:$0xff]
          %v4352 = vld [vmem:[%s4119 + $0x740] sm:$0xff]
          %v4353 = vld [vmem:[%s4119 + $0x748] sm:$0xff]
          %v4354 = vld [vmem:[%s4119 + $0x750] sm:$0xff]
          %v4355 = vld [vmem:[%s4119 + $0x758] sm:$0xff]
          %v4356 = vld [vmem:[%s4119 + $0x760] sm:$0xff]
          %v4357 = vld [vmem:[%s4119 + $0x768] sm:$0xff]
          %v4358 = vld [vmem:[%s4119 + $0x770] sm:$0xff]
          %v4359 = vld [vmem:[%s4119 + $0x778] sm:$0xff]
          %v4360 = vld [vmem:[%s4119 + $0x780] sm:$0xff]
          %v4361 = vld [vmem:[%s4119 + $0x788] sm:$0xff]
          %v4362 = vld [vmem:[%s4119 + $0x790] sm:$0xff]
          %v4363 = vld [vmem:[%s4119 + $0x798] sm:$0xff]
          %v4364 = vld [vmem:[%s4119 + $0x7a0] sm:$0xff]
          %v4365 = vld [vmem:[%s4119 + $0x7a8] sm:$0xff]
          %v4366 = vld [vmem:[%s4119 + $0x7b0] sm:$0xff]
          %v4367 = vld [vmem:[%s4119 + $0x7b8] sm:$0xff]
          %v4368 = vld [vmem:[%s4119 + $0x7c0] sm:$0xff]
          %v4369 = vld [vmem:[%s4119 + $0x7c8] sm:$0xff]
          %v4370 = vld [vmem:[%s4119 + $0x7d0] sm:$0xff]
          %v4371 = vld [vmem:[%s4119 + $0x7d8] sm:$0xff]
          %v4372 = vld [vmem:[%s4119 + $0x7e0] sm:$0xff]
          %v4373 = vld [vmem:[%s4119 + $0x7e8] sm:$0xff]
          %v4374 = vld [vmem:[%s4119 + $0x7f0] sm:$0xff]
          %v4375 = vld [vmem:[%s4119 + $0x7f8] sm:$0xff]
          %v4376 = vadd.f32 %v4120, %v3863
          %v4377 = vadd.f32 %v4121, %v3864
          %v4378 = vadd.f32 %v4122, %v3865
          %v4379 = vadd.f32 %v4123, %v3866
          %v4380 = vadd.f32 %v4124, %v3867
          %v4381 = vadd.f32 %v4125, %v3868
          %v4382 = vadd.f32 %v4126, %v3869
          %v4383 = vadd.f32 %v4127, %v3870
          %v4384 = vadd.f32 %v4128, %v3871
          %v4385 = vadd.f32 %v4129, %v3872
          %v4386 = vadd.f32 %v4130, %v3873
          %v4387 = vadd.f32 %v4131, %v3874
          %v4388 = vadd.f32 %v4132, %v3875
          %v4389 = vadd.f32 %v4133, %v3876
          %v4390 = vadd.f32 %v4134, %v3877
          %v4391 = vadd.f32 %v4135, %v3878
          %v4392 = vadd.f32 %v4136, %v3879
          %v4393 = vadd.f32 %v4137, %v3880
          %v4394 = vadd.f32 %v4138, %v3881
          %v4395 = vadd.f32 %v4139, %v3882
          %v4396 = vadd.f32 %v4140, %v3883
          %v4397 = vadd.f32 %v4141, %v3884
          %v4398 = vadd.f32 %v4142, %v3885
          %v4399 = vadd.f32 %v4143, %v3886
          %v4400 = vadd.f32 %v4144, %v3887
          %v4401 = vadd.f32 %v4145, %v3888
          %v4402 = vadd.f32 %v4146, %v3889
          %v4403 = vadd.f32 %v4147, %v3890
          %v4404 = vadd.f32 %v4148, %v3891
          %v4405 = vadd.f32 %v4149, %v3892
          %v4406 = vadd.f32 %v4150, %v3893
          %v4407 = vadd.f32 %v4151, %v3894
          %v4408 = vadd.f32 %v4152, %v3895
          %v4409 = vadd.f32 %v4153, %v3896
          %v4410 = vadd.f32 %v4154, %v3897
          %v4411 = vadd.f32 %v4155, %v3898
          %v4412 = vadd.f32 %v4156, %v3899
          %v4413 = vadd.f32 %v4157, %v3900
          %v4414 = vadd.f32 %v4158, %v3901
          %v4415 = vadd.f32 %v4159, %v3902
          %v4416 = vadd.f32 %v4160, %v3903
          %v4417 = vadd.f32 %v4161, %v3904
          %v4418 = vadd.f32 %v4162, %v3905
          %v4419 = vadd.f32 %v4163, %v3906
          %v4420 = vadd.f32 %v4164, %v3907
          %v4421 = vadd.f32 %v4165, %v3908
          %v4422 = vadd.f32 %v4166, %v3909
          %v4423 = vadd.f32 %v4167, %v3910
          %v4424 = vadd.f32 %v4168, %v3911
          %v4425 = vadd.f32 %v4169, %v3912
          %v4426 = vadd.f32 %v4170, %v3913
          %v4427 = vadd.f32 %v4171, %v3914
          %v4428 = vadd.f32 %v4172, %v3915
          %v4429 = vadd.f32 %v4173, %v3916
          %v4430 = vadd.f32 %v4174, %v3917
          %v4431 = vadd.f32 %v4175, %v3918
          %v4432 = vadd.f32 %v4176, %v3919
          %v4433 = vadd.f32 %v4177, %v3920
          %v4434 = vadd.f32 %v4178, %v3921
          %v4435 = vadd.f32 %v4179, %v3922
          %v4436 = vadd.f32 %v4180, %v3923
          %v4437 = vadd.f32 %v4181, %v3924
          %v4438 = vadd.f32 %v4182, %v3925
          %v4439 = vadd.f32 %v4183, %v3926
          %v4440 = vadd.f32 %v4184, %v3927
          %v4441 = vadd.f32 %v4185, %v3928
          %v4442 = vadd.f32 %v4186, %v3929
          %v4443 = vadd.f32 %v4187, %v3930
          %v4444 = vadd.f32 %v4188, %v3931
          %v4445 = vadd.f32 %v4189, %v3932
          %v4446 = vadd.f32 %v4190, %v3933
          %v4447 = vadd.f32 %v4191, %v3934
          %v4448 = vadd.f32 %v4192, %v3935
          %v4449 = vadd.f32 %v4193, %v3936
          %v4450 = vadd.f32 %v4194, %v3937
          %v4451 = vadd.f32 %v4195, %v3938
          %v4452 = vadd.f32 %v4196, %v3939
          %v4453 = vadd.f32 %v4197, %v3940
          %v4454 = vadd.f32 %v4198, %v3941
          %v4455 = vadd.f32 %v4199, %v3942
          %v4456 = vadd.f32 %v4200, %v3943
          %v4457 = vadd.f32 %v4201, %v3944
          %v4458 = vadd.f32 %v4202, %v3945
          %v4459 = vadd.f32 %v4203, %v3946
          %v4460 = vadd.f32 %v4204, %v3947
          %v4461 = vadd.f32 %v4205, %v3948
          %v4462 = vadd.f32 %v4206, %v3949
          %v4463 = vadd.f32 %v4207, %v3950
          %v4464 = vadd.f32 %v4208, %v3951
          %v4465 = vadd.f32 %v4209, %v3952
          %v4466 = vadd.f32 %v4210, %v3953
          %v4467 = vadd.f32 %v4211, %v3954
          %v4468 = vadd.f32 %v4212, %v3955
          %v4469 = vadd.f32 %v4213, %v3956
          %v4470 = vadd.f32 %v4214, %v3957
          %v4471 = vadd.f32 %v4215, %v3958
          %v4472 = vadd.f32 %v4216, %v3959
          %v4473 = vadd.f32 %v4217, %v3960
          %v4474 = vadd.f32 %v4218, %v3961
          %v4475 = vadd.f32 %v4219, %v3962
          %v4476 = vadd.f32 %v4220, %v3963
          %v4477 = vadd.f32 %v4221, %v3964
          %v4478 = vadd.f32 %v4222, %v3965
          %v4479 = vadd.f32 %v4223, %v3966
          %v4480 = vadd.f32 %v4224, %v3967
          %v4481 = vadd.f32 %v4225, %v3968
          %v4482 = vadd.f32 %v4226, %v3969
          %v4483 = vadd.f32 %v4227, %v3970
          %v4484 = vadd.f32 %v4228, %v3971
          %v4485 = vadd.f32 %v4229, %v3972
          %v4486 = vadd.f32 %v4230, %v3973
          %v4487 = vadd.f32 %v4231, %v3974
          %v4488 = vadd.f32 %v4232, %v3975
          %v4489 = vadd.f32 %v4233, %v3976
          %v4490 = vadd.f32 %v4234, %v3977
          %v4491 = vadd.f32 %v4235, %v3978
          %v4492 = vadd.f32 %v4236, %v3979
          %v4493 = vadd.f32 %v4237, %v3980
          %v4494 = vadd.f32 %v4238, %v3981
          %v4495 = vadd.f32 %v4239, %v3982
          %v4496 = vadd.f32 %v4240, %v3983
          %v4497 = vadd.f32 %v4241, %v3984
          %v4498 = vadd.f32 %v4242, %v3985
          %v4499 = vadd.f32 %v4243, %v3986
          %v4500 = vadd.f32 %v4244, %v3987
          %v4501 = vadd.f32 %v4245, %v3988
          %v4502 = vadd.f32 %v4246, %v3989
          %v4503 = vadd.f32 %v4247, %v3990
          %v4504 = vadd.f32 %v4248, %v3991
          %v4505 = vadd.f32 %v4249, %v3992
          %v4506 = vadd.f32 %v4250, %v3993
          %v4507 = vadd.f32 %v4251, %v3994
          %v4508 = vadd.f32 %v4252, %v3995
          %v4509 = vadd.f32 %v4253, %v3996
          %v4510 = vadd.f32 %v4254, %v3997
          %v4511 = vadd.f32 %v4255, %v3998
          %v4512 = vadd.f32 %v4256, %v3999
          %v4513 = vadd.f32 %v4257, %v4000
          %v4514 = vadd.f32 %v4258, %v4001
          %v4515 = vadd.f32 %v4259, %v4002
          %v4516 = vadd.f32 %v4260, %v4003
          %v4517 = vadd.f32 %v4261, %v4004
          %v4518 = vadd.f32 %v4262, %v4005
          %v4519 = vadd.f32 %v4263, %v4006
          %v4520 = vadd.f32 %v4264, %v4007
          %v4521 = vadd.f32 %v4265, %v4008
          %v4522 = vadd.f32 %v4266, %v4009
          %v4523 = vadd.f32 %v4267, %v4010
          %v4524 = vadd.f32 %v4268, %v4011
          %v4525 = vadd.f32 %v4269, %v4012
          %v4526 = vadd.f32 %v4270, %v4013
          %v4527 = vadd.f32 %v4271, %v4014
          %v4528 = vadd.f32 %v4272, %v4015
          %v4529 = vadd.f32 %v4273, %v4016
          %v4530 = vadd.f32 %v4274, %v4017
          %v4531 = vadd.f32 %v4275, %v4018
          %v4532 = vadd.f32 %v4276, %v4019
          %v4533 = vadd.f32 %v4277, %v4020
          %v4534 = vadd.f32 %v4278, %v4021
          %v4535 = vadd.f32 %v4279, %v4022
          %v4536 = vadd.f32 %v4280, %v4023
          %v4537 = vadd.f32 %v4281, %v4024
          %v4538 = vadd.f32 %v4282, %v4025
          %v4539 = vadd.f32 %v4283, %v4026
          %v4540 = vadd.f32 %v4284, %v4027
          %v4541 = vadd.f32 %v4285, %v4028
          %v4542 = vadd.f32 %v4286, %v4029
          %v4543 = vadd.f32 %v4287, %v4030
          %v4544 = vadd.f32 %v4288, %v4031
          %v4545 = vadd.f32 %v4289, %v4032
          %v4546 = vadd.f32 %v4290, %v4033
          %v4547 = vadd.f32 %v4291, %v4034
          %v4548 = vadd.f32 %v4292, %v4035
          %v4549 = vadd.f32 %v4293, %v4036
          %v4550 = vadd.f32 %v4294, %v4037
          %v4551 = vadd.f32 %v4295, %v4038
          %v4552 = vadd.f32 %v4296, %v4039
          %v4553 = vadd.f32 %v4297, %v4040
          %v4554 = vadd.f32 %v4298, %v4041
          %v4555 = vadd.f32 %v4299, %v4042
          %v4556 = vadd.f32 %v4300, %v4043
          %v4557 = vadd.f32 %v4301, %v4044
          %v4558 = vadd.f32 %v4302, %v4045
          %v4559 = vadd.f32 %v4303, %v4046
          %v4560 = vadd.f32 %v4304, %v4047
          %v4561 = vadd.f32 %v4305, %v4048
          %v4562 = vadd.f32 %v4306, %v4049
          %v4563 = vadd.f32 %v4307, %v4050
          %v4564 = vadd.f32 %v4308, %v4051
          %v4565 = vadd.f32 %v4309, %v4052
          %v4566 = vadd.f32 %v4310, %v4053
          %v4567 = vadd.f32 %v4311, %v4054
          %v4568 = vadd.f32 %v4312, %v4055
          %v4569 = vadd.f32 %v4313, %v4056
          %v4570 = vadd.f32 %v4314, %v4057
          %v4571 = vadd.f32 %v4315, %v4058
          %v4572 = vadd.f32 %v4316, %v4059
          %v4573 = vadd.f32 %v4317, %v4060
          %v4574 = vadd.f32 %v4318, %v4061
          %v4575 = vadd.f32 %v4319, %v4062
          %v4576 = vadd.f32 %v4320, %v4063
          %v4577 = vadd.f32 %v4321, %v4064
          %v4578 = vadd.f32 %v4322, %v4065
          %v4579 = vadd.f32 %v4323, %v4066
          %v4580 = vadd.f32 %v4324, %v4067
          %v4581 = vadd.f32 %v4325, %v4068
          %v4582 = vadd.f32 %v4326, %v4069
          %v4583 = vadd.f32 %v4327, %v4070
          %v4584 = vadd.f32 %v4328, %v4071
          %v4585 = vadd.f32 %v4329, %v4072
          %v4586 = vadd.f32 %v4330, %v4073
          %v4587 = vadd.f32 %v4331, %v4074
          %v4588 = vadd.f32 %v4332, %v4075
          %v4589 = vadd.f32 %v4333, %v4076
          %v4590 = vadd.f32 %v4334, %v4077
          %v4591 = vadd.f32 %v4335, %v4078
          %v4592 = vadd.f32 %v4336, %v4079
          %v4593 = vadd.f32 %v4337, %v4080
          %v4594 = vadd.f32 %v4338, %v4081
          %v4595 = vadd.f32 %v4339, %v4082
          %v4596 = vadd.f32 %v4340, %v4083
          %v4597 = vadd.f32 %v4341, %v4084
          %v4598 = vadd.f32 %v4342, %v4085
          %v4599 = vadd.f32 %v4343, %v4086
          %v4600 = vadd.f32 %v4344, %v4087
          %v4601 = vadd.f32 %v4345, %v4088
          %v4602 = vadd.f32 %v4346, %v4089
          %v4603 = vadd.f32 %v4347, %v4090
          %v4604 = vadd.f32 %v4348, %v4091
          %v4605 = vadd.f32 %v4349, %v4092
          %v4606 = vadd.f32 %v4350, %v4093
          %v4607 = vadd.f32 %v4351, %v4094
          %v4608 = vadd.f32 %v4352, %v4095
          %v4609 = vadd.f32 %v4353, %v4096
          %v4610 = vadd.f32 %v4354, %v4097
          %v4611 = vadd.f32 %v4355, %v4098
          %v4612 = vadd.f32 %v4356, %v4099
          %v4613 = vadd.f32 %v4357, %v4100
          %v4614 = vadd.f32 %v4358, %v4101
          %v4615 = vadd.f32 %v4359, %v4102
          %v4616 = vadd.f32 %v4360, %v4103
          %v4617 = vadd.f32 %v4361, %v4104
          %v4618 = vadd.f32 %v4362, %v4105
          %v4619 = vadd.f32 %v4363, %v4106
          %v4620 = vadd.f32 %v4364, %v4107
          %v4621 = vadd.f32 %v4365, %v4108
          %v4622 = vadd.f32 %v4366, %v4109
          %v4623 = vadd.f32 %v4367, %v4110
          %v4624 = vadd.f32 %v4368, %v4111
          %v4625 = vadd.f32 %v4369, %v4112
          %v4626 = vadd.f32 %v4370, %v4113
          %v4627 = vadd.f32 %v4371, %v4114
          %v4628 = vadd.f32 %v4372, %v4115
          %v4629 = vadd.f32 %v4373, %v4116
          %v4630 = vadd.f32 %v4374, %v4117
          %v4631 = vadd.f32 %v4375, %v4118
          %4632 = vst [vmem:[%s4119] sm:$0xff] %v4376
          %4633 = vst [vmem:[%s4119 + $0x8] sm:$0xff] %v4377
          %4634 = vst [vmem:[%s4119 + $0x10] sm:$0xff] %v4378
          %4635 = vst [vmem:[%s4119 + $0x18] sm:$0xff] %v4379
          %4636 = vst [vmem:[%s4119 + $0x20] sm:$0xff] %v4380
          %4637 = vst [vmem:[%s4119 + $0x28] sm:$0xff] %v4381
          %4638 = vst [vmem:[%s4119 + $0x30] sm:$0xff] %v4382
          %4639 = vst [vmem:[%s4119 + $0x38] sm:$0xff] %v4383
          %4640 = vst [vmem:[%s4119 + $0x40] sm:$0xff] %v4384
          %4641 = vst [vmem:[%s4119 + $0x48] sm:$0xff] %v4385
          %4642 = vst [vmem:[%s4119 + $0x50] sm:$0xff] %v4386
          %4643 = vst [vmem:[%s4119 + $0x58] sm:$0xff] %v4387
          %4644 = vst [vmem:[%s4119 + $0x60] sm:$0xff] %v4388
          %4645 = vst [vmem:[%s4119 + $0x68] sm:$0xff] %v4389
          %4646 = vst [vmem:[%s4119 + $0x70] sm:$0xff] %v4390
          %4647 = vst [vmem:[%s4119 + $0x78] sm:$0xff] %v4391
          %4648 = vst [vmem:[%s4119 + $0x80] sm:$0xff] %v4392
          %4649 = vst [vmem:[%s4119 + $0x88] sm:$0xff] %v4393
          %4650 = vst [vmem:[%s4119 + $0x90] sm:$0xff] %v4394
          %4651 = vst [vmem:[%s4119 + $0x98] sm:$0xff] %v4395
          %4652 = vst [vmem:[%s4119 + $0xa0] sm:$0xff] %v4396
          %4653 = vst [vmem:[%s4119 + $0xa8] sm:$0xff] %v4397
          %4654 = vst [vmem:[%s4119 + $0xb0] sm:$0xff] %v4398
          %4655 = vst [vmem:[%s4119 + $0xb8] sm:$0xff] %v4399
          %4656 = vst [vmem:[%s4119 + $0xc0] sm:$0xff] %v4400
          %4657 = vst [vmem:[%s4119 + $0xc8] sm:$0xff] %v4401
          %4658 = vst [vmem:[%s4119 + $0xd0] sm:$0xff] %v4402
          %4659 = vst [vmem:[%s4119 + $0xd8] sm:$0xff] %v4403
          %4660 = vst [vmem:[%s4119 + $0xe0] sm:$0xff] %v4404
          %4661 = vst [vmem:[%s4119 + $0xe8] sm:$0xff] %v4405
          %4662 = vst [vmem:[%s4119 + $0xf0] sm:$0xff] %v4406
          %4663 = vst [vmem:[%s4119 + $0xf8] sm:$0xff] %v4407
          %4664 = vst [vmem:[%s4119 + $0x100] sm:$0xff] %v4408
          %4665 = vst [vmem:[%s4119 + $0x108] sm:$0xff] %v4409
          %4666 = vst [vmem:[%s4119 + $0x110] sm:$0xff] %v4410
          %4667 = vst [vmem:[%s4119 + $0x118] sm:$0xff] %v4411
          %4668 = vst [vmem:[%s4119 + $0x120] sm:$0xff] %v4412
          %4669 = vst [vmem:[%s4119 + $0x128] sm:$0xff] %v4413
          %4670 = vst [vmem:[%s4119 + $0x130] sm:$0xff] %v4414
          %4671 = vst [vmem:[%s4119 + $0x138] sm:$0xff] %v4415
          %4672 = vst [vmem:[%s4119 + $0x140] sm:$0xff] %v4416
          %4673 = vst [vmem:[%s4119 + $0x148] sm:$0xff] %v4417
          %4674 = vst [vmem:[%s4119 + $0x150] sm:$0xff] %v4418
          %4675 = vst [vmem:[%s4119 + $0x158] sm:$0xff] %v4419
          %4676 = vst [vmem:[%s4119 + $0x160] sm:$0xff] %v4420
          %4677 = vst [vmem:[%s4119 + $0x168] sm:$0xff] %v4421
          %4678 = vst [vmem:[%s4119 + $0x170] sm:$0xff] %v4422
          %4679 = vst [vmem:[%s4119 + $0x178] sm:$0xff] %v4423
          %4680 = vst [vmem:[%s4119 + $0x180] sm:$0xff] %v4424
          %4681 = vst [vmem:[%s4119 + $0x188] sm:$0xff] %v4425
          %4682 = vst [vmem:[%s4119 + $0x190] sm:$0xff] %v4426
          %4683 = vst [vmem:[%s4119 + $0x198] sm:$0xff] %v4427
          %4684 = vst [vmem:[%s4119 + $0x1a0] sm:$0xff] %v4428
          %4685 = vst [vmem:[%s4119 + $0x1a8] sm:$0xff] %v4429
          %4686 = vst [vmem:[%s4119 + $0x1b0] sm:$0xff] %v4430
          %4687 = vst [vmem:[%s4119 + $0x1b8] sm:$0xff] %v4431
          %4688 = vst [vmem:[%s4119 + $0x1c0] sm:$0xff] %v4432
          %4689 = vst [vmem:[%s4119 + $0x1c8] sm:$0xff] %v4433
          %4690 = vst [vmem:[%s4119 + $0x1d0] sm:$0xff] %v4434
          %4691 = vst [vmem:[%s4119 + $0x1d8] sm:$0xff] %v4435
          %4692 = vst [vmem:[%s4119 + $0x1e0] sm:$0xff] %v4436
          %4693 = vst [vmem:[%s4119 + $0x1e8] sm:$0xff] %v4437
          %4694 = vst [vmem:[%s4119 + $0x1f0] sm:$0xff] %v4438
          %4695 = vst [vmem:[%s4119 + $0x1f8] sm:$0xff] %v4439
          %4696 = vst [vmem:[%s4119 + $0x200] sm:$0xff] %v4440
          %4697 = vst [vmem:[%s4119 + $0x208] sm:$0xff] %v4441
          %4698 = vst [vmem:[%s4119 + $0x210] sm:$0xff] %v4442
          %4699 = vst [vmem:[%s4119 + $0x218] sm:$0xff] %v4443
          %4700 = vst [vmem:[%s4119 + $0x220] sm:$0xff] %v4444
          %4701 = vst [vmem:[%s4119 + $0x228] sm:$0xff] %v4445
          %4702 = vst [vmem:[%s4119 + $0x230] sm:$0xff] %v4446
          %4703 = vst [vmem:[%s4119 + $0x238] sm:$0xff] %v4447
          %4704 = vst [vmem:[%s4119 + $0x240] sm:$0xff] %v4448
          %4705 = vst [vmem:[%s4119 + $0x248] sm:$0xff] %v4449
          %4706 = vst [vmem:[%s4119 + $0x250] sm:$0xff] %v4450
          %4707 = vst [vmem:[%s4119 + $0x258] sm:$0xff] %v4451
          %4708 = vst [vmem:[%s4119 + $0x260] sm:$0xff] %v4452
          %4709 = vst [vmem:[%s4119 + $0x268] sm:$0xff] %v4453
          %4710 = vst [vmem:[%s4119 + $0x270] sm:$0xff] %v4454
          %4711 = vst [vmem:[%s4119 + $0x278] sm:$0xff] %v4455
          %4712 = vst [vmem:[%s4119 + $0x280] sm:$0xff] %v4456
          %4713 = vst [vmem:[%s4119 + $0x288] sm:$0xff] %v4457
          %4714 = vst [vmem:[%s4119 + $0x290] sm:$0xff] %v4458
          %4715 = vst [vmem:[%s4119 + $0x298] sm:$0xff] %v4459
          %4716 = vst [vmem:[%s4119 + $0x2a0] sm:$0xff] %v4460
          %4717 = vst [vmem:[%s4119 + $0x2a8] sm:$0xff] %v4461
          %4718 = vst [vmem:[%s4119 + $0x2b0] sm:$0xff] %v4462
          %4719 = vst [vmem:[%s4119 + $0x2b8] sm:$0xff] %v4463
          %4720 = vst [vmem:[%s4119 + $0x2c0] sm:$0xff] %v4464
          %4721 = vst [vmem:[%s4119 + $0x2c8] sm:$0xff] %v4465
          %4722 = vst [vmem:[%s4119 + $0x2d0] sm:$0xff] %v4466
          %4723 = vst [vmem:[%s4119 + $0x2d8] sm:$0xff] %v4467
          %4724 = vst [vmem:[%s4119 + $0x2e0] sm:$0xff] %v4468
          %4725 = vst [vmem:[%s4119 + $0x2e8] sm:$0xff] %v4469
          %4726 = vst [vmem:[%s4119 + $0x2f0] sm:$0xff] %v4470
          %4727 = vst [vmem:[%s4119 + $0x2f8] sm:$0xff] %v4471
          %4728 = vst [vmem:[%s4119 + $0x300] sm:$0xff] %v4472
          %4729 = vst [vmem:[%s4119 + $0x308] sm:$0xff] %v4473
          %4730 = vst [vmem:[%s4119 + $0x310] sm:$0xff] %v4474
          %4731 = vst [vmem:[%s4119 + $0x318] sm:$0xff] %v4475
          %4732 = vst [vmem:[%s4119 + $0x320] sm:$0xff] %v4476
          %4733 = vst [vmem:[%s4119 + $0x328] sm:$0xff] %v4477
          %4734 = vst [vmem:[%s4119 + $0x330] sm:$0xff] %v4478
          %4735 = vst [vmem:[%s4119 + $0x338] sm:$0xff] %v4479
          %4736 = vst [vmem:[%s4119 + $0x340] sm:$0xff] %v4480
          %4737 = vst [vmem:[%s4119 + $0x348] sm:$0xff] %v4481
          %4738 = vst [vmem:[%s4119 + $0x350] sm:$0xff] %v4482
          %4739 = vst [vmem:[%s4119 + $0x358] sm:$0xff] %v4483
          %4740 = vst [vmem:[%s4119 + $0x360] sm:$0xff] %v4484
          %4741 = vst [vmem:[%s4119 + $0x368] sm:$0xff] %v4485
          %4742 = vst [vmem:[%s4119 + $0x370] sm:$0xff] %v4486
          %4743 = vst [vmem:[%s4119 + $0x378] sm:$0xff] %v4487
          %4744 = vst [vmem:[%s4119 + $0x380] sm:$0xff] %v4488
          %4745 = vst [vmem:[%s4119 + $0x388] sm:$0xff] %v4489
          %4746 = vst [vmem:[%s4119 + $0x390] sm:$0xff] %v4490
          %4747 = vst [vmem:[%s4119 + $0x398] sm:$0xff] %v4491
          %4748 = vst [vmem:[%s4119 + $0x3a0] sm:$0xff] %v4492
          %4749 = vst [vmem:[%s4119 + $0x3a8] sm:$0xff] %v4493
          %4750 = vst [vmem:[%s4119 + $0x3b0] sm:$0xff] %v4494
          %4751 = vst [vmem:[%s4119 + $0x3b8] sm:$0xff] %v4495
          %4752 = vst [vmem:[%s4119 + $0x3c0] sm:$0xff] %v4496
          %4753 = vst [vmem:[%s4119 + $0x3c8] sm:$0xff] %v4497
          %4754 = vst [vmem:[%s4119 + $0x3d0] sm:$0xff] %v4498
          %4755 = vst [vmem:[%s4119 + $0x3d8] sm:$0xff] %v4499
          %4756 = vst [vmem:[%s4119 + $0x3e0] sm:$0xff] %v4500
          %4757 = vst [vmem:[%s4119 + $0x3e8] sm:$0xff] %v4501
          %4758 = vst [vmem:[%s4119 + $0x3f0] sm:$0xff] %v4502
          %4759 = vst [vmem:[%s4119 + $0x3f8] sm:$0xff] %v4503
          %4760 = vst [vmem:[%s4119 + $0x400] sm:$0xff] %v4504
          %4761 = vst [vmem:[%s4119 + $0x408] sm:$0xff] %v4505
          %4762 = vst [vmem:[%s4119 + $0x410] sm:$0xff] %v4506
          %4763 = vst [vmem:[%s4119 + $0x418] sm:$0xff] %v4507
          %4764 = vst [vmem:[%s4119 + $0x420] sm:$0xff] %v4508
          %4765 = vst [vmem:[%s4119 + $0x428] sm:$0xff] %v4509
          %4766 = vst [vmem:[%s4119 + $0x430] sm:$0xff] %v4510
          %4767 = vst [vmem:[%s4119 + $0x438] sm:$0xff] %v4511
          %4768 = vst [vmem:[%s4119 + $0x440] sm:$0xff] %v4512
          %4769 = vst [vmem:[%s4119 + $0x448] sm:$0xff] %v4513
          %4770 = vst [vmem:[%s4119 + $0x450] sm:$0xff] %v4514
          %4771 = vst [vmem:[%s4119 + $0x458] sm:$0xff] %v4515
          %4772 = vst [vmem:[%s4119 + $0x460] sm:$0xff] %v4516
          %4773 = vst [vmem:[%s4119 + $0x468] sm:$0xff] %v4517
          %4774 = vst [vmem:[%s4119 + $0x470] sm:$0xff] %v4518
          %4775 = vst [vmem:[%s4119 + $0x478] sm:$0xff] %v4519
          %4776 = vst [vmem:[%s4119 + $0x480] sm:$0xff] %v4520
          %4777 = vst [vmem:[%s4119 + $0x488] sm:$0xff] %v4521
          %4778 = vst [vmem:[%s4119 + $0x490] sm:$0xff] %v4522
          %4779 = vst [vmem:[%s4119 + $0x498] sm:$0xff] %v4523
          %4780 = vst [vmem:[%s4119 + $0x4a0] sm:$0xff] %v4524
          %4781 = vst [vmem:[%s4119 + $0x4a8] sm:$0xff] %v4525
          %4782 = vst [vmem:[%s4119 + $0x4b0] sm:$0xff] %v4526
          %4783 = vst [vmem:[%s4119 + $0x4b8] sm:$0xff] %v4527
          %4784 = vst [vmem:[%s4119 + $0x4c0] sm:$0xff] %v4528
          %4785 = vst [vmem:[%s4119 + $0x4c8] sm:$0xff] %v4529
          %4786 = vst [vmem:[%s4119 + $0x4d0] sm:$0xff] %v4530
          %4787 = vst [vmem:[%s4119 + $0x4d8] sm:$0xff] %v4531
          %4788 = vst [vmem:[%s4119 + $0x4e0] sm:$0xff] %v4532
          %4789 = vst [vmem:[%s4119 + $0x4e8] sm:$0xff] %v4533
          %4790 = vst [vmem:[%s4119 + $0x4f0] sm:$0xff] %v4534
          %4791 = vst [vmem:[%s4119 + $0x4f8] sm:$0xff] %v4535
          %4792 = vst [vmem:[%s4119 + $0x500] sm:$0xff] %v4536
          %4793 = vst [vmem:[%s4119 + $0x508] sm:$0xff] %v4537
          %4794 = vst [vmem:[%s4119 + $0x510] sm:$0xff] %v4538
          %4795 = vst [vmem:[%s4119 + $0x518] sm:$0xff] %v4539
          %4796 = vst [vmem:[%s4119 + $0x520] sm:$0xff] %v4540
          %4797 = vst [vmem:[%s4119 + $0x528] sm:$0xff] %v4541
          %4798 = vst [vmem:[%s4119 + $0x530] sm:$0xff] %v4542
          %4799 = vst [vmem:[%s4119 + $0x538] sm:$0xff] %v4543
          %4800 = vst [vmem:[%s4119 + $0x540] sm:$0xff] %v4544
          %4801 = vst [vmem:[%s4119 + $0x548] sm:$0xff] %v4545
          %4802 = vst [vmem:[%s4119 + $0x550] sm:$0xff] %v4546
          %4803 = vst [vmem:[%s4119 + $0x558] sm:$0xff] %v4547
          %4804 = vst [vmem:[%s4119 + $0x560] sm:$0xff] %v4548
          %4805 = vst [vmem:[%s4119 + $0x568] sm:$0xff] %v4549
          %4806 = vst [vmem:[%s4119 + $0x570] sm:$0xff] %v4550
          %4807 = vst [vmem:[%s4119 + $0x578] sm:$0xff] %v4551
          %4808 = vst [vmem:[%s4119 + $0x580] sm:$0xff] %v4552
          %4809 = vst [vmem:[%s4119 + $0x588] sm:$0xff] %v4553
          %4810 = vst [vmem:[%s4119 + $0x590] sm:$0xff] %v4554
          %4811 = vst [vmem:[%s4119 + $0x598] sm:$0xff] %v4555
          %4812 = vst [vmem:[%s4119 + $0x5a0] sm:$0xff] %v4556
          %4813 = vst [vmem:[%s4119 + $0x5a8] sm:$0xff] %v4557
          %4814 = vst [vmem:[%s4119 + $0x5b0] sm:$0xff] %v4558
          %4815 = vst [vmem:[%s4119 + $0x5b8] sm:$0xff] %v4559
          %4816 = vst [vmem:[%s4119 + $0x5c0] sm:$0xff] %v4560
          %4817 = vst [vmem:[%s4119 + $0x5c8] sm:$0xff] %v4561
          %4818 = vst [vmem:[%s4119 + $0x5d0] sm:$0xff] %v4562
          %4819 = vst [vmem:[%s4119 + $0x5d8] sm:$0xff] %v4563
          %4820 = vst [vmem:[%s4119 + $0x5e0] sm:$0xff] %v4564
          %4821 = vst [vmem:[%s4119 + $0x5e8] sm:$0xff] %v4565
          %4822 = vst [vmem:[%s4119 + $0x5f0] sm:$0xff] %v4566
          %4823 = vst [vmem:[%s4119 + $0x5f8] sm:$0xff] %v4567
          %4824 = vst [vmem:[%s4119 + $0x600] sm:$0xff] %v4568
          %4825 = vst [vmem:[%s4119 + $0x608] sm:$0xff] %v4569
          %4826 = vst [vmem:[%s4119 + $0x610] sm:$0xff] %v4570
          %4827 = vst [vmem:[%s4119 + $0x618] sm:$0xff] %v4571
          %4828 = vst [vmem:[%s4119 + $0x620] sm:$0xff] %v4572
          %4829 = vst [vmem:[%s4119 + $0x628] sm:$0xff] %v4573
          %4830 = vst [vmem:[%s4119 + $0x630] sm:$0xff] %v4574
          %4831 = vst [vmem:[%s4119 + $0x638] sm:$0xff] %v4575
          %4832 = vst [vmem:[%s4119 + $0x640] sm:$0xff] %v4576
          %4833 = vst [vmem:[%s4119 + $0x648] sm:$0xff] %v4577
          %4834 = vst [vmem:[%s4119 + $0x650] sm:$0xff] %v4578
          %4835 = vst [vmem:[%s4119 + $0x658] sm:$0xff] %v4579
          %4836 = vst [vmem:[%s4119 + $0x660] sm:$0xff] %v4580
          %4837 = vst [vmem:[%s4119 + $0x668] sm:$0xff] %v4581
          %4838 = vst [vmem:[%s4119 + $0x670] sm:$0xff] %v4582
          %4839 = vst [vmem:[%s4119 + $0x678] sm:$0xff] %v4583
          %4840 = vst [vmem:[%s4119 + $0x680] sm:$0xff] %v4584
          %4841 = vst [vmem:[%s4119 + $0x688] sm:$0xff] %v4585
          %4842 = vst [vmem:[%s4119 + $0x690] sm:$0xff] %v4586
          %4843 = vst [vmem:[%s4119 + $0x698] sm:$0xff] %v4587
          %4844 = vst [vmem:[%s4119 + $0x6a0] sm:$0xff] %v4588
          %4845 = vst [vmem:[%s4119 + $0x6a8] sm:$0xff] %v4589
          %4846 = vst [vmem:[%s4119 + $0x6b0] sm:$0xff] %v4590
          %4847 = vst [vmem:[%s4119 + $0x6b8] sm:$0xff] %v4591
          %4848 = vst [vmem:[%s4119 + $0x6c0] sm:$0xff] %v4592
          %4849 = vst [vmem:[%s4119 + $0x6c8] sm:$0xff] %v4593
          %4850 = vst [vmem:[%s4119 + $0x6d0] sm:$0xff] %v4594
          %4851 = vst [vmem:[%s4119 + $0x6d8] sm:$0xff] %v4595
          %4852 = vst [vmem:[%s4119 + $0x6e0] sm:$0xff] %v4596
          %4853 = vst [vmem:[%s4119 + $0x6e8] sm:$0xff] %v4597
          %4854 = vst [vmem:[%s4119 + $0x6f0] sm:$0xff] %v4598
          %4855 = vst [vmem:[%s4119 + $0x6f8] sm:$0xff] %v4599
          %4856 = vst [vmem:[%s4119 + $0x700] sm:$0xff] %v4600
          %4857 = vst [vmem:[%s4119 + $0x708] sm:$0xff] %v4601
          %4858 = vst [vmem:[%s4119 + $0x710] sm:$0xff] %v4602
          %4859 = vst [vmem:[%s4119 + $0x718] sm:$0xff] %v4603
          %4860 = vst [vmem:[%s4119 + $0x720] sm:$0xff] %v4604
          %4861 = vst [vmem:[%s4119 + $0x728] sm:$0xff] %v4605
          %4862 = vst [vmem:[%s4119 + $0x730] sm:$0xff] %v4606
          %4863 = vst [vmem:[%s4119 + $0x738] sm:$0xff] %v4607
          %4864 = vst [vmem:[%s4119 + $0x740] sm:$0xff] %v4608
          %4865 = vst [vmem:[%s4119 + $0x748] sm:$0xff] %v4609
          %4866 = vst [vmem:[%s4119 + $0x750] sm:$0xff] %v4610
          %4867 = vst [vmem:[%s4119 + $0x758] sm:$0xff] %v4611
          %4868 = vst [vmem:[%s4119 + $0x760] sm:$0xff] %v4612
          %4869 = vst [vmem:[%s4119 + $0x768] sm:$0xff] %v4613
          %4870 = vst [vmem:[%s4119 + $0x770] sm:$0xff] %v4614
          %4871 = vst [vmem:[%s4119 + $0x778] sm:$0xff] %v4615
          %4872 = vst [vmem:[%s4119 + $0x780] sm:$0xff] %v4616
          %4873 = vst [vmem:[%s4119 + $0x788] sm:$0xff] %v4617
          %4874 = vst [vmem:[%s4119 + $0x790] sm:$0xff] %v4618
          %4875 = vst [vmem:[%s4119 + $0x798] sm:$0xff] %v4619
          %4876 = vst [vmem:[%s4119 + $0x7a0] sm:$0xff] %v4620
          %4877 = vst [vmem:[%s4119 + $0x7a8] sm:$0xff] %v4621
          %4878 = vst [vmem:[%s4119 + $0x7b0] sm:$0xff] %v4622
          %4879 = vst [vmem:[%s4119 + $0x7b8] sm:$0xff] %v4623
          %4880 = vst [vmem:[%s4119 + $0x7c0] sm:$0xff] %v4624
          %4881 = vst [vmem:[%s4119 + $0x7c8] sm:$0xff] %v4625
          %4882 = vst [vmem:[%s4119 + $0x7d0] sm:$0xff] %v4626
          %4883 = vst [vmem:[%s4119 + $0x7d8] sm:$0xff] %v4627
          %4884 = vst [vmem:[%s4119 + $0x7e0] sm:$0xff] %v4628
          %4885 = vst [vmem:[%s4119 + $0x7e8] sm:$0xff] %v4629
          %4886 = vst [vmem:[%s4119 + $0x7f0] sm:$0xff] %v4630
          %4887 = vst [vmem:[%s4119 + $0x7f8] sm:$0xff] %v4631
        $region64: #{tpu_custom_call.1} parent=50 // loop_footer
          %s870 = sadd.s32 1, %s866
        $region65: #{tpu_custom_call.1} parent=50 // loop_footer_branch
          %865 = sbr.rel target = $region61
        $region66: #{tpu_custom_call.1} parent=50 // loop_exit
          _
        // Predicated region
        $region67: #{tpu_custom_call.1} parent=50 // pred_check
          %p4888 = pneg %p221
        $region68: #{tpu_custom_call.1} parent=50 // pred_check_branch
          %4890 = sbr.rel (%p4888) target = $region70
        $region69: #{tpu_custom_call.1} parent=50 // pred_region
          %v4891 = vld [vmem:[#allocation2] sm:$0xff]
          %v4892 = vld [vmem:[#allocation2 + $0x8] sm:$0xff]
          %v4893 = vld [vmem:[#allocation2 + $0x10] sm:$0xff]
          %v4894 = vld [vmem:[#allocation2 + $0x18] sm:$0xff]
          %v4895 = vld [vmem:[#allocation2 + $0x20] sm:$0xff]
          %v4896 = vld [vmem:[#allocation2 + $0x28] sm:$0xff]
          %v4897 = vld [vmem:[#allocation2 + $0x30] sm:$0xff]
          %v4898 = vld [vmem:[#allocation2 + $0x38] sm:$0xff]
          %v4899 = vld [vmem:[#allocation2 + $0x40] sm:$0xff]
          %v4900 = vld [vmem:[#allocation2 + $0x48] sm:$0xff]
          %v4901 = vld [vmem:[#allocation2 + $0x50] sm:$0xff]
          %v4902 = vld [vmem:[#allocation2 + $0x58] sm:$0xff]
          %v4903 = vld [vmem:[#allocation2 + $0x60] sm:$0xff]
          %v4904 = vld [vmem:[#allocation2 + $0x68] sm:$0xff]
          %v4905 = vld [vmem:[#allocation2 + $0x70] sm:$0xff]
          %v4906 = vld [vmem:[#allocation2 + $0x78] sm:$0xff]
          %v4907 = vld [vmem:[#allocation2 + $0x80] sm:$0xff]
          %v4908 = vld [vmem:[#allocation2 + $0x88] sm:$0xff]
          %v4909 = vld [vmem:[#allocation2 + $0x90] sm:$0xff]
          %v4910 = vld [vmem:[#allocation2 + $0x98] sm:$0xff]
          %v4911 = vld [vmem:[#allocation2 + $0xa0] sm:$0xff]
          %v4912 = vld [vmem:[#allocation2 + $0xa8] sm:$0xff]
          %v4913 = vld [vmem:[#allocation2 + $0xb0] sm:$0xff]
          %v4914 = vld [vmem:[#allocation2 + $0xb8] sm:$0xff]
          %v4915 = vld [vmem:[#allocation2 + $0xc0] sm:$0xff]
          %v4916 = vld [vmem:[#allocation2 + $0xc8] sm:$0xff]
          %v4917 = vld [vmem:[#allocation2 + $0xd0] sm:$0xff]
          %v4918 = vld [vmem:[#allocation2 + $0xd8] sm:$0xff]
          %v4919 = vld [vmem:[#allocation2 + $0xe0] sm:$0xff]
          %v4920 = vld [vmem:[#allocation2 + $0xe8] sm:$0xff]
          %v4921 = vld [vmem:[#allocation2 + $0xf0] sm:$0xff]
          %v4922 = vld [vmem:[#allocation2 + $0xf8] sm:$0xff]
          %v4923 = vld [vmem:[#allocation2 + $0x100] sm:$0xff]
          %v4924 = vld [vmem:[#allocation2 + $0x108] sm:$0xff]
          %v4925 = vld [vmem:[#allocation2 + $0x110] sm:$0xff]
          %v4926 = vld [vmem:[#allocation2 + $0x118] sm:$0xff]
          %v4927 = vld [vmem:[#allocation2 + $0x120] sm:$0xff]
          %v4928 = vld [vmem:[#allocation2 + $0x128] sm:$0xff]
          %v4929 = vld [vmem:[#allocation2 + $0x130] sm:$0xff]
          %v4930 = vld [vmem:[#allocation2 + $0x138] sm:$0xff]
          %v4931 = vld [vmem:[#allocation2 + $0x140] sm:$0xff]
          %v4932 = vld [vmem:[#allocation2 + $0x148] sm:$0xff]
          %v4933 = vld [vmem:[#allocation2 + $0x150] sm:$0xff]
          %v4934 = vld [vmem:[#allocation2 + $0x158] sm:$0xff]
          %v4935 = vld [vmem:[#allocation2 + $0x160] sm:$0xff]
          %v4936 = vld [vmem:[#allocation2 + $0x168] sm:$0xff]
          %v4937 = vld [vmem:[#allocation2 + $0x170] sm:$0xff]
          %v4938 = vld [vmem:[#allocation2 + $0x178] sm:$0xff]
          %v4939 = vld [vmem:[#allocation2 + $0x180] sm:$0xff]
          %v4940 = vld [vmem:[#allocation2 + $0x188] sm:$0xff]
          %v4941 = vld [vmem:[#allocation2 + $0x190] sm:$0xff]
          %v4942 = vld [vmem:[#allocation2 + $0x198] sm:$0xff]
          %v4943 = vld [vmem:[#allocation2 + $0x1a0] sm:$0xff]
          %v4944 = vld [vmem:[#allocation2 + $0x1a8] sm:$0xff]
          %v4945 = vld [vmem:[#allocation2 + $0x1b0] sm:$0xff]
          %v4946 = vld [vmem:[#allocation2 + $0x1b8] sm:$0xff]
          %v4947 = vld [vmem:[#allocation2 + $0x1c0] sm:$0xff]
          %v4948 = vld [vmem:[#allocation2 + $0x1c8] sm:$0xff]
          %v4949 = vld [vmem:[#allocation2 + $0x1d0] sm:$0xff]
          %v4950 = vld [vmem:[#allocation2 + $0x1d8] sm:$0xff]
          %v4951 = vld [vmem:[#allocation2 + $0x1e0] sm:$0xff]
          %v4952 = vld [vmem:[#allocation2 + $0x1e8] sm:$0xff]
          %v4953 = vld [vmem:[#allocation2 + $0x1f0] sm:$0xff]
          %v4954 = vld [vmem:[#allocation2 + $0x1f8] sm:$0xff]
          %v4955 = vld [vmem:[#allocation2 + $0x200] sm:$0xff]
          %v4956 = vld [vmem:[#allocation2 + $0x208] sm:$0xff]
          %v4957 = vld [vmem:[#allocation2 + $0x210] sm:$0xff]
          %v4958 = vld [vmem:[#allocation2 + $0x218] sm:$0xff]
          %v4959 = vld [vmem:[#allocation2 + $0x220] sm:$0xff]
          %v4960 = vld [vmem:[#allocation2 + $0x228] sm:$0xff]
          %v4961 = vld [vmem:[#allocation2 + $0x230] sm:$0xff]
          %v4962 = vld [vmem:[#allocation2 + $0x238] sm:$0xff]
          %v4963 = vld [vmem:[#allocation2 + $0x240] sm:$0xff]
          %v4964 = vld [vmem:[#allocation2 + $0x248] sm:$0xff]
          %v4965 = vld [vmem:[#allocation2 + $0x250] sm:$0xff]
          %v4966 = vld [vmem:[#allocation2 + $0x258] sm:$0xff]
          %v4967 = vld [vmem:[#allocation2 + $0x260] sm:$0xff]
          %v4968 = vld [vmem:[#allocation2 + $0x268] sm:$0xff]
          %v4969 = vld [vmem:[#allocation2 + $0x270] sm:$0xff]
          %v4970 = vld [vmem:[#allocation2 + $0x278] sm:$0xff]
          %v4971 = vld [vmem:[#allocation2 + $0x280] sm:$0xff]
          %v4972 = vld [vmem:[#allocation2 + $0x288] sm:$0xff]
          %v4973 = vld [vmem:[#allocation2 + $0x290] sm:$0xff]
          %v4974 = vld [vmem:[#allocation2 + $0x298] sm:$0xff]
          %v4975 = vld [vmem:[#allocation2 + $0x2a0] sm:$0xff]
          %v4976 = vld [vmem:[#allocation2 + $0x2a8] sm:$0xff]
          %v4977 = vld [vmem:[#allocation2 + $0x2b0] sm:$0xff]
          %v4978 = vld [vmem:[#allocation2 + $0x2b8] sm:$0xff]
          %v4979 = vld [vmem:[#allocation2 + $0x2c0] sm:$0xff]
          %v4980 = vld [vmem:[#allocation2 + $0x2c8] sm:$0xff]
          %v4981 = vld [vmem:[#allocation2 + $0x2d0] sm:$0xff]
          %v4982 = vld [vmem:[#allocation2 + $0x2d8] sm:$0xff]
          %v4983 = vld [vmem:[#allocation2 + $0x2e0] sm:$0xff]
          %v4984 = vld [vmem:[#allocation2 + $0x2e8] sm:$0xff]
          %v4985 = vld [vmem:[#allocation2 + $0x2f0] sm:$0xff]
          %v4986 = vld [vmem:[#allocation2 + $0x2f8] sm:$0xff]
          %v4987 = vld [vmem:[#allocation2 + $0x300] sm:$0xff]
          %v4988 = vld [vmem:[#allocation2 + $0x308] sm:$0xff]
          %v4989 = vld [vmem:[#allocation2 + $0x310] sm:$0xff]
          %v4990 = vld [vmem:[#allocation2 + $0x318] sm:$0xff]
          %v4991 = vld [vmem:[#allocation2 + $0x320] sm:$0xff]
          %v4992 = vld [vmem:[#allocation2 + $0x328] sm:$0xff]
          %v4993 = vld [vmem:[#allocation2 + $0x330] sm:$0xff]
          %v4994 = vld [vmem:[#allocation2 + $0x338] sm:$0xff]
          %v4995 = vld [vmem:[#allocation2 + $0x340] sm:$0xff]
          %v4996 = vld [vmem:[#allocation2 + $0x348] sm:$0xff]
          %v4997 = vld [vmem:[#allocation2 + $0x350] sm:$0xff]
          %v4998 = vld [vmem:[#allocation2 + $0x358] sm:$0xff]
          %v4999 = vld [vmem:[#allocation2 + $0x360] sm:$0xff]
          %v5000 = vld [vmem:[#allocation2 + $0x368] sm:$0xff]
          %v5001 = vld [vmem:[#allocation2 + $0x370] sm:$0xff]
          %v5002 = vld [vmem:[#allocation2 + $0x378] sm:$0xff]
          %v5003 = vld [vmem:[#allocation2 + $0x380] sm:$0xff]
          %v5004 = vld [vmem:[#allocation2 + $0x388] sm:$0xff]
          %v5005 = vld [vmem:[#allocation2 + $0x390] sm:$0xff]
          %v5006 = vld [vmem:[#allocation2 + $0x398] sm:$0xff]
          %v5007 = vld [vmem:[#allocation2 + $0x3a0] sm:$0xff]
          %v5008 = vld [vmem:[#allocation2 + $0x3a8] sm:$0xff]
          %v5009 = vld [vmem:[#allocation2 + $0x3b0] sm:$0xff]
          %v5010 = vld [vmem:[#allocation2 + $0x3b8] sm:$0xff]
          %v5011 = vld [vmem:[#allocation2 + $0x3c0] sm:$0xff]
          %v5012 = vld [vmem:[#allocation2 + $0x3c8] sm:$0xff]
          %v5013 = vld [vmem:[#allocation2 + $0x3d0] sm:$0xff]
          %v5014 = vld [vmem:[#allocation2 + $0x3d8] sm:$0xff]
          %v5015 = vld [vmem:[#allocation2 + $0x3e0] sm:$0xff]
          %v5016 = vld [vmem:[#allocation2 + $0x3e8] sm:$0xff]
          %v5017 = vld [vmem:[#allocation2 + $0x3f0] sm:$0xff]
          %v5018 = vld [vmem:[#allocation2 + $0x3f8] sm:$0xff]
          %v5019 = vld [vmem:[#allocation2 + $0x400] sm:$0xff]
          %v5020 = vld [vmem:[#allocation2 + $0x408] sm:$0xff]
          %v5021 = vld [vmem:[#allocation2 + $0x410] sm:$0xff]
          %v5022 = vld [vmem:[#allocation2 + $0x418] sm:$0xff]
          %v5023 = vld [vmem:[#allocation2 + $0x420] sm:$0xff]
          %v5024 = vld [vmem:[#allocation2 + $0x428] sm:$0xff]
          %v5025 = vld [vmem:[#allocation2 + $0x430] sm:$0xff]
          %v5026 = vld [vmem:[#allocation2 + $0x438] sm:$0xff]
          %v5027 = vld [vmem:[#allocation2 + $0x440] sm:$0xff]
          %v5028 = vld [vmem:[#allocation2 + $0x448] sm:$0xff]
          %v5029 = vld [vmem:[#allocation2 + $0x450] sm:$0xff]
          %v5030 = vld [vmem:[#allocation2 + $0x458] sm:$0xff]
          %v5031 = vld [vmem:[#allocation2 + $0x460] sm:$0xff]
          %v5032 = vld [vmem:[#allocation2 + $0x468] sm:$0xff]
          %v5033 = vld [vmem:[#allocation2 + $0x470] sm:$0xff]
          %v5034 = vld [vmem:[#allocation2 + $0x478] sm:$0xff]
          %v5035 = vld [vmem:[#allocation2 + $0x480] sm:$0xff]
          %v5036 = vld [vmem:[#allocation2 + $0x488] sm:$0xff]
          %v5037 = vld [vmem:[#allocation2 + $0x490] sm:$0xff]
          %v5038 = vld [vmem:[#allocation2 + $0x498] sm:$0xff]
          %v5039 = vld [vmem:[#allocation2 + $0x4a0] sm:$0xff]
          %v5040 = vld [vmem:[#allocation2 + $0x4a8] sm:$0xff]
          %v5041 = vld [vmem:[#allocation2 + $0x4b0] sm:$0xff]
          %v5042 = vld [vmem:[#allocation2 + $0x4b8] sm:$0xff]
          %v5043 = vld [vmem:[#allocation2 + $0x4c0] sm:$0xff]
          %v5044 = vld [vmem:[#allocation2 + $0x4c8] sm:$0xff]
          %v5045 = vld [vmem:[#allocation2 + $0x4d0] sm:$0xff]
          %v5046 = vld [vmem:[#allocation2 + $0x4d8] sm:$0xff]
          %v5047 = vld [vmem:[#allocation2 + $0x4e0] sm:$0xff]
          %v5048 = vld [vmem:[#allocation2 + $0x4e8] sm:$0xff]
          %v5049 = vld [vmem:[#allocation2 + $0x4f0] sm:$0xff]
          %v5050 = vld [vmem:[#allocation2 + $0x4f8] sm:$0xff]
          %v5051 = vld [vmem:[#allocation2 + $0x500] sm:$0xff]
          %v5052 = vld [vmem:[#allocation2 + $0x508] sm:$0xff]
          %v5053 = vld [vmem:[#allocation2 + $0x510] sm:$0xff]
          %v5054 = vld [vmem:[#allocation2 + $0x518] sm:$0xff]
          %v5055 = vld [vmem:[#allocation2 + $0x520] sm:$0xff]
          %v5056 = vld [vmem:[#allocation2 + $0x528] sm:$0xff]
          %v5057 = vld [vmem:[#allocation2 + $0x530] sm:$0xff]
          %v5058 = vld [vmem:[#allocation2 + $0x538] sm:$0xff]
          %v5059 = vld [vmem:[#allocation2 + $0x540] sm:$0xff]
          %v5060 = vld [vmem:[#allocation2 + $0x548] sm:$0xff]
          %v5061 = vld [vmem:[#allocation2 + $0x550] sm:$0xff]
          %v5062 = vld [vmem:[#allocation2 + $0x558] sm:$0xff]
          %v5063 = vld [vmem:[#allocation2 + $0x560] sm:$0xff]
          %v5064 = vld [vmem:[#allocation2 + $0x568] sm:$0xff]
          %v5065 = vld [vmem:[#allocation2 + $0x570] sm:$0xff]
          %v5066 = vld [vmem:[#allocation2 + $0x578] sm:$0xff]
          %v5067 = vld [vmem:[#allocation2 + $0x580] sm:$0xff]
          %v5068 = vld [vmem:[#allocation2 + $0x588] sm:$0xff]
          %v5069 = vld [vmem:[#allocation2 + $0x590] sm:$0xff]
          %v5070 = vld [vmem:[#allocation2 + $0x598] sm:$0xff]
          %v5071 = vld [vmem:[#allocation2 + $0x5a0] sm:$0xff]
          %v5072 = vld [vmem:[#allocation2 + $0x5a8] sm:$0xff]
          %v5073 = vld [vmem:[#allocation2 + $0x5b0] sm:$0xff]
          %v5074 = vld [vmem:[#allocation2 + $0x5b8] sm:$0xff]
          %v5075 = vld [vmem:[#allocation2 + $0x5c0] sm:$0xff]
          %v5076 = vld [vmem:[#allocation2 + $0x5c8] sm:$0xff]
          %v5077 = vld [vmem:[#allocation2 + $0x5d0] sm:$0xff]
          %v5078 = vld [vmem:[#allocation2 + $0x5d8] sm:$0xff]
          %v5079 = vld [vmem:[#allocation2 + $0x5e0] sm:$0xff]
          %v5080 = vld [vmem:[#allocation2 + $0x5e8] sm:$0xff]
          %v5081 = vld [vmem:[#allocation2 + $0x5f0] sm:$0xff]
          %v5082 = vld [vmem:[#allocation2 + $0x5f8] sm:$0xff]
          %v5083 = vld [vmem:[#allocation2 + $0x600] sm:$0xff]
          %v5084 = vld [vmem:[#allocation2 + $0x608] sm:$0xff]
          %v5085 = vld [vmem:[#allocation2 + $0x610] sm:$0xff]
          %v5086 = vld [vmem:[#allocation2 + $0x618] sm:$0xff]
          %v5087 = vld [vmem:[#allocation2 + $0x620] sm:$0xff]
          %v5088 = vld [vmem:[#allocation2 + $0x628] sm:$0xff]
          %v5089 = vld [vmem:[#allocation2 + $0x630] sm:$0xff]
          %v5090 = vld [vmem:[#allocation2 + $0x638] sm:$0xff]
          %v5091 = vld [vmem:[#allocation2 + $0x640] sm:$0xff]
          %v5092 = vld [vmem:[#allocation2 + $0x648] sm:$0xff]
          %v5093 = vld [vmem:[#allocation2 + $0x650] sm:$0xff]
          %v5094 = vld [vmem:[#allocation2 + $0x658] sm:$0xff]
          %v5095 = vld [vmem:[#allocation2 + $0x660] sm:$0xff]
          %v5096 = vld [vmem:[#allocation2 + $0x668] sm:$0xff]
          %v5097 = vld [vmem:[#allocation2 + $0x670] sm:$0xff]
          %v5098 = vld [vmem:[#allocation2 + $0x678] sm:$0xff]
          %v5099 = vld [vmem:[#allocation2 + $0x680] sm:$0xff]
          %v5100 = vld [vmem:[#allocation2 + $0x688] sm:$0xff]
          %v5101 = vld [vmem:[#allocation2 + $0x690] sm:$0xff]
          %v5102 = vld [vmem:[#allocation2 + $0x698] sm:$0xff]
          %v5103 = vld [vmem:[#allocation2 + $0x6a0] sm:$0xff]
          %v5104 = vld [vmem:[#allocation2 + $0x6a8] sm:$0xff]
          %v5105 = vld [vmem:[#allocation2 + $0x6b0] sm:$0xff]
          %v5106 = vld [vmem:[#allocation2 + $0x6b8] sm:$0xff]
          %v5107 = vld [vmem:[#allocation2 + $0x6c0] sm:$0xff]
          %v5108 = vld [vmem:[#allocation2 + $0x6c8] sm:$0xff]
          %v5109 = vld [vmem:[#allocation2 + $0x6d0] sm:$0xff]
          %v5110 = vld [vmem:[#allocation2 + $0x6d8] sm:$0xff]
          %v5111 = vld [vmem:[#allocation2 + $0x6e0] sm:$0xff]
          %v5112 = vld [vmem:[#allocation2 + $0x6e8] sm:$0xff]
          %v5113 = vld [vmem:[#allocation2 + $0x6f0] sm:$0xff]
          %v5114 = vld [vmem:[#allocation2 + $0x6f8] sm:$0xff]
          %v5115 = vld [vmem:[#allocation2 + $0x700] sm:$0xff]
          %v5116 = vld [vmem:[#allocation2 + $0x708] sm:$0xff]
          %v5117 = vld [vmem:[#allocation2 + $0x710] sm:$0xff]
          %v5118 = vld [vmem:[#allocation2 + $0x718] sm:$0xff]
          %v5119 = vld [vmem:[#allocation2 + $0x720] sm:$0xff]
          %v5120 = vld [vmem:[#allocation2 + $0x728] sm:$0xff]
          %v5121 = vld [vmem:[#allocation2 + $0x730] sm:$0xff]
          %v5122 = vld [vmem:[#allocation2 + $0x738] sm:$0xff]
          %v5123 = vld [vmem:[#allocation2 + $0x740] sm:$0xff]
          %v5124 = vld [vmem:[#allocation2 + $0x748] sm:$0xff]
          %v5125 = vld [vmem:[#allocation2 + $0x750] sm:$0xff]
          %v5126 = vld [vmem:[#allocation2 + $0x758] sm:$0xff]
          %v5127 = vld [vmem:[#allocation2 + $0x760] sm:$0xff]
          %v5128 = vld [vmem:[#allocation2 + $0x768] sm:$0xff]
          %v5129 = vld [vmem:[#allocation2 + $0x770] sm:$0xff]
          %v5130 = vld [vmem:[#allocation2 + $0x778] sm:$0xff]
          %v5131 = vld [vmem:[#allocation2 + $0x780] sm:$0xff]
          %v5132 = vld [vmem:[#allocation2 + $0x788] sm:$0xff]
          %v5133 = vld [vmem:[#allocation2 + $0x790] sm:$0xff]
          %v5134 = vld [vmem:[#allocation2 + $0x798] sm:$0xff]
          %v5135 = vld [vmem:[#allocation2 + $0x7a0] sm:$0xff]
          %v5136 = vld [vmem:[#allocation2 + $0x7a8] sm:$0xff]
          %v5137 = vld [vmem:[#allocation2 + $0x7b0] sm:$0xff]
          %v5138 = vld [vmem:[#allocation2 + $0x7b8] sm:$0xff]
          %v5139 = vld [vmem:[#allocation2 + $0x7c0] sm:$0xff]
          %v5140 = vld [vmem:[#allocation2 + $0x7c8] sm:$0xff]
          %v5141 = vld [vmem:[#allocation2 + $0x7d0] sm:$0xff]
          %v5142 = vld [vmem:[#allocation2 + $0x7d8] sm:$0xff]
          %v5143 = vld [vmem:[#allocation2 + $0x7e0] sm:$0xff]
          %v5144 = vld [vmem:[#allocation2 + $0x7e8] sm:$0xff]
          %v5145 = vld [vmem:[#allocation2 + $0x7f0] sm:$0xff]
          %v5146 = vld [vmem:[#allocation2 + $0x7f8] sm:$0xff]
          %v5147 = vld [vmem:[#allocation2 + $0x800] sm:$0xff]
          %v5148 = vld [vmem:[#allocation2 + $0x808] sm:$0xff]
          %v5149 = vld [vmem:[#allocation2 + $0x810] sm:$0xff]
          %v5150 = vld [vmem:[#allocation2 + $0x818] sm:$0xff]
          %v5151 = vld [vmem:[#allocation2 + $0x820] sm:$0xff]
          %v5152 = vld [vmem:[#allocation2 + $0x828] sm:$0xff]
          %v5153 = vld [vmem:[#allocation2 + $0x830] sm:$0xff]
          %v5154 = vld [vmem:[#allocation2 + $0x838] sm:$0xff]
          %v5155 = vld [vmem:[#allocation2 + $0x840] sm:$0xff]
          %v5156 = vld [vmem:[#allocation2 + $0x848] sm:$0xff]
          %v5157 = vld [vmem:[#allocation2 + $0x850] sm:$0xff]
          %v5158 = vld [vmem:[#allocation2 + $0x858] sm:$0xff]
          %v5159 = vld [vmem:[#allocation2 + $0x860] sm:$0xff]
          %v5160 = vld [vmem:[#allocation2 + $0x868] sm:$0xff]
          %v5161 = vld [vmem:[#allocation2 + $0x870] sm:$0xff]
          %v5162 = vld [vmem:[#allocation2 + $0x878] sm:$0xff]
          %v5163 = vld [vmem:[#allocation2 + $0x880] sm:$0xff]
          %v5164 = vld [vmem:[#allocation2 + $0x888] sm:$0xff]
          %v5165 = vld [vmem:[#allocation2 + $0x890] sm:$0xff]
          %v5166 = vld [vmem:[#allocation2 + $0x898] sm:$0xff]
          %v5167 = vld [vmem:[#allocation2 + $0x8a0] sm:$0xff]
          %v5168 = vld [vmem:[#allocation2 + $0x8a8] sm:$0xff]
          %v5169 = vld [vmem:[#allocation2 + $0x8b0] sm:$0xff]
          %v5170 = vld [vmem:[#allocation2 + $0x8b8] sm:$0xff]
          %v5171 = vld [vmem:[#allocation2 + $0x8c0] sm:$0xff]
          %v5172 = vld [vmem:[#allocation2 + $0x8c8] sm:$0xff]
          %v5173 = vld [vmem:[#allocation2 + $0x8d0] sm:$0xff]
          %v5174 = vld [vmem:[#allocation2 + $0x8d8] sm:$0xff]
          %v5175 = vld [vmem:[#allocation2 + $0x8e0] sm:$0xff]
          %v5176 = vld [vmem:[#allocation2 + $0x8e8] sm:$0xff]
          %v5177 = vld [vmem:[#allocation2 + $0x8f0] sm:$0xff]
          %v5178 = vld [vmem:[#allocation2 + $0x8f8] sm:$0xff]
          %v5179 = vld [vmem:[#allocation2 + $0x900] sm:$0xff]
          %v5180 = vld [vmem:[#allocation2 + $0x908] sm:$0xff]
          %v5181 = vld [vmem:[#allocation2 + $0x910] sm:$0xff]
          %v5182 = vld [vmem:[#allocation2 + $0x918] sm:$0xff]
          %v5183 = vld [vmem:[#allocation2 + $0x920] sm:$0xff]
          %v5184 = vld [vmem:[#allocation2 + $0x928] sm:$0xff]
          %v5185 = vld [vmem:[#allocation2 + $0x930] sm:$0xff]
          %v5186 = vld [vmem:[#allocation2 + $0x938] sm:$0xff]
          %v5187 = vld [vmem:[#allocation2 + $0x940] sm:$0xff]
          %v5188 = vld [vmem:[#allocation2 + $0x948] sm:$0xff]
          %v5189 = vld [vmem:[#allocation2 + $0x950] sm:$0xff]
          %v5190 = vld [vmem:[#allocation2 + $0x958] sm:$0xff]
          %v5191 = vld [vmem:[#allocation2 + $0x960] sm:$0xff]
          %v5192 = vld [vmem:[#allocation2 + $0x968] sm:$0xff]
          %v5193 = vld [vmem:[#allocation2 + $0x970] sm:$0xff]
          %v5194 = vld [vmem:[#allocation2 + $0x978] sm:$0xff]
          %v5195 = vld [vmem:[#allocation2 + $0x980] sm:$0xff]
          %v5196 = vld [vmem:[#allocation2 + $0x988] sm:$0xff]
          %v5197 = vld [vmem:[#allocation2 + $0x990] sm:$0xff]
          %v5198 = vld [vmem:[#allocation2 + $0x998] sm:$0xff]
          %v5199 = vld [vmem:[#allocation2 + $0x9a0] sm:$0xff]
          %v5200 = vld [vmem:[#allocation2 + $0x9a8] sm:$0xff]
          %v5201 = vld [vmem:[#allocation2 + $0x9b0] sm:$0xff]
          %v5202 = vld [vmem:[#allocation2 + $0x9b8] sm:$0xff]
          %v5203 = vld [vmem:[#allocation2 + $0x9c0] sm:$0xff]
          %v5204 = vld [vmem:[#allocation2 + $0x9c8] sm:$0xff]
          %v5205 = vld [vmem:[#allocation2 + $0x9d0] sm:$0xff]
          %v5206 = vld [vmem:[#allocation2 + $0x9d8] sm:$0xff]
          %v5207 = vld [vmem:[#allocation2 + $0x9e0] sm:$0xff]
          %v5208 = vld [vmem:[#allocation2 + $0x9e8] sm:$0xff]
          %v5209 = vld [vmem:[#allocation2 + $0x9f0] sm:$0xff]
          %v5210 = vld [vmem:[#allocation2 + $0x9f8] sm:$0xff]
          %v5211 = vld [vmem:[#allocation2 + $0xa00] sm:$0xff]
          %v5212 = vld [vmem:[#allocation2 + $0xa08] sm:$0xff]
          %v5213 = vld [vmem:[#allocation2 + $0xa10] sm:$0xff]
          %v5214 = vld [vmem:[#allocation2 + $0xa18] sm:$0xff]
          %v5215 = vld [vmem:[#allocation2 + $0xa20] sm:$0xff]
          %v5216 = vld [vmem:[#allocation2 + $0xa28] sm:$0xff]
          %v5217 = vld [vmem:[#allocation2 + $0xa30] sm:$0xff]
          %v5218 = vld [vmem:[#allocation2 + $0xa38] sm:$0xff]
          %v5219 = vld [vmem:[#allocation2 + $0xa40] sm:$0xff]
          %v5220 = vld [vmem:[#allocation2 + $0xa48] sm:$0xff]
          %v5221 = vld [vmem:[#allocation2 + $0xa50] sm:$0xff]
          %v5222 = vld [vmem:[#allocation2 + $0xa58] sm:$0xff]
          %v5223 = vld [vmem:[#allocation2 + $0xa60] sm:$0xff]
          %v5224 = vld [vmem:[#allocation2 + $0xa68] sm:$0xff]
          %v5225 = vld [vmem:[#allocation2 + $0xa70] sm:$0xff]
          %v5226 = vld [vmem:[#allocation2 + $0xa78] sm:$0xff]
          %v5227 = vld [vmem:[#allocation2 + $0xa80] sm:$0xff]
          %v5228 = vld [vmem:[#allocation2 + $0xa88] sm:$0xff]
          %v5229 = vld [vmem:[#allocation2 + $0xa90] sm:$0xff]
          %v5230 = vld [vmem:[#allocation2 + $0xa98] sm:$0xff]
          %v5231 = vld [vmem:[#allocation2 + $0xaa0] sm:$0xff]
          %v5232 = vld [vmem:[#allocation2 + $0xaa8] sm:$0xff]
          %v5233 = vld [vmem:[#allocation2 + $0xab0] sm:$0xff]
          %v5234 = vld [vmem:[#allocation2 + $0xab8] sm:$0xff]
          %v5235 = vld [vmem:[#allocation2 + $0xac0] sm:$0xff]
          %v5236 = vld [vmem:[#allocation2 + $0xac8] sm:$0xff]
          %v5237 = vld [vmem:[#allocation2 + $0xad0] sm:$0xff]
          %v5238 = vld [vmem:[#allocation2 + $0xad8] sm:$0xff]
          %v5239 = vld [vmem:[#allocation2 + $0xae0] sm:$0xff]
          %v5240 = vld [vmem:[#allocation2 + $0xae8] sm:$0xff]
          %v5241 = vld [vmem:[#allocation2 + $0xaf0] sm:$0xff]
          %v5242 = vld [vmem:[#allocation2 + $0xaf8] sm:$0xff]
          %v5243 = vld [vmem:[#allocation2 + $0xb00] sm:$0xff]
          %v5244 = vld [vmem:[#allocation2 + $0xb08] sm:$0xff]
          %v5245 = vld [vmem:[#allocation2 + $0xb10] sm:$0xff]
          %v5246 = vld [vmem:[#allocation2 + $0xb18] sm:$0xff]
          %v5247 = vld [vmem:[#allocation2 + $0xb20] sm:$0xff]
          %v5248 = vld [vmem:[#allocation2 + $0xb28] sm:$0xff]
          %v5249 = vld [vmem:[#allocation2 + $0xb30] sm:$0xff]
          %v5250 = vld [vmem:[#allocation2 + $0xb38] sm:$0xff]
          %v5251 = vld [vmem:[#allocation2 + $0xb40] sm:$0xff]
          %v5252 = vld [vmem:[#allocation2 + $0xb48] sm:$0xff]
          %v5253 = vld [vmem:[#allocation2 + $0xb50] sm:$0xff]
          %v5254 = vld [vmem:[#allocation2 + $0xb58] sm:$0xff]
          %v5255 = vld [vmem:[#allocation2 + $0xb60] sm:$0xff]
          %v5256 = vld [vmem:[#allocation2 + $0xb68] sm:$0xff]
          %v5257 = vld [vmem:[#allocation2 + $0xb70] sm:$0xff]
          %v5258 = vld [vmem:[#allocation2 + $0xb78] sm:$0xff]
          %v5259 = vld [vmem:[#allocation2 + $0xb80] sm:$0xff]
          %v5260 = vld [vmem:[#allocation2 + $0xb88] sm:$0xff]
          %v5261 = vld [vmem:[#allocation2 + $0xb90] sm:$0xff]
          %v5262 = vld [vmem:[#allocation2 + $0xb98] sm:$0xff]
          %v5263 = vld [vmem:[#allocation2 + $0xba0] sm:$0xff]
          %v5264 = vld [vmem:[#allocation2 + $0xba8] sm:$0xff]
          %v5265 = vld [vmem:[#allocation2 + $0xbb0] sm:$0xff]
          %v5266 = vld [vmem:[#allocation2 + $0xbb8] sm:$0xff]
          %v5267 = vld [vmem:[#allocation2 + $0xbc0] sm:$0xff]
          %v5268 = vld [vmem:[#allocation2 + $0xbc8] sm:$0xff]
          %v5269 = vld [vmem:[#allocation2 + $0xbd0] sm:$0xff]
          %v5270 = vld [vmem:[#allocation2 + $0xbd8] sm:$0xff]
          %v5271 = vld [vmem:[#allocation2 + $0xbe0] sm:$0xff]
          %v5272 = vld [vmem:[#allocation2 + $0xbe8] sm:$0xff]
          %v5273 = vld [vmem:[#allocation2 + $0xbf0] sm:$0xff]
          %v5274 = vld [vmem:[#allocation2 + $0xbf8] sm:$0xff]
          %v5275 = vld [vmem:[#allocation2 + $0xc00] sm:$0xff]
          %v5276 = vld [vmem:[#allocation2 + $0xc08] sm:$0xff]
          %v5277 = vld [vmem:[#allocation2 + $0xc10] sm:$0xff]
          %v5278 = vld [vmem:[#allocation2 + $0xc18] sm:$0xff]
          %v5279 = vld [vmem:[#allocation2 + $0xc20] sm:$0xff]
          %v5280 = vld [vmem:[#allocation2 + $0xc28] sm:$0xff]
          %v5281 = vld [vmem:[#allocation2 + $0xc30] sm:$0xff]
          %v5282 = vld [vmem:[#allocation2 + $0xc38] sm:$0xff]
          %v5283 = vld [vmem:[#allocation2 + $0xc40] sm:$0xff]
          %v5284 = vld [vmem:[#allocation2 + $0xc48] sm:$0xff]
          %v5285 = vld [vmem:[#allocation2 + $0xc50] sm:$0xff]
          %v5286 = vld [vmem:[#allocation2 + $0xc58] sm:$0xff]
          %v5287 = vld [vmem:[#allocation2 + $0xc60] sm:$0xff]
          %v5288 = vld [vmem:[#allocation2 + $0xc68] sm:$0xff]
          %v5289 = vld [vmem:[#allocation2 + $0xc70] sm:$0xff]
          %v5290 = vld [vmem:[#allocation2 + $0xc78] sm:$0xff]
          %v5291 = vld [vmem:[#allocation2 + $0xc80] sm:$0xff]
          %v5292 = vld [vmem:[#allocation2 + $0xc88] sm:$0xff]
          %v5293 = vld [vmem:[#allocation2 + $0xc90] sm:$0xff]
          %v5294 = vld [vmem:[#allocation2 + $0xc98] sm:$0xff]
          %v5295 = vld [vmem:[#allocation2 + $0xca0] sm:$0xff]
          %v5296 = vld [vmem:[#allocation2 + $0xca8] sm:$0xff]
          %v5297 = vld [vmem:[#allocation2 + $0xcb0] sm:$0xff]
          %v5298 = vld [vmem:[#allocation2 + $0xcb8] sm:$0xff]
          %v5299 = vld [vmem:[#allocation2 + $0xcc0] sm:$0xff]
          %v5300 = vld [vmem:[#allocation2 + $0xcc8] sm:$0xff]
          %v5301 = vld [vmem:[#allocation2 + $0xcd0] sm:$0xff]
          %v5302 = vld [vmem:[#allocation2 + $0xcd8] sm:$0xff]
          %v5303 = vld [vmem:[#allocation2 + $0xce0] sm:$0xff]
          %v5304 = vld [vmem:[#allocation2 + $0xce8] sm:$0xff]
          %v5305 = vld [vmem:[#allocation2 + $0xcf0] sm:$0xff]
          %v5306 = vld [vmem:[#allocation2 + $0xcf8] sm:$0xff]
          %v5307 = vld [vmem:[#allocation2 + $0xd00] sm:$0xff]
          %v5308 = vld [vmem:[#allocation2 + $0xd08] sm:$0xff]
          %v5309 = vld [vmem:[#allocation2 + $0xd10] sm:$0xff]
          %v5310 = vld [vmem:[#allocation2 + $0xd18] sm:$0xff]
          %v5311 = vld [vmem:[#allocation2 + $0xd20] sm:$0xff]
          %v5312 = vld [vmem:[#allocation2 + $0xd28] sm:$0xff]
          %v5313 = vld [vmem:[#allocation2 + $0xd30] sm:$0xff]
          %v5314 = vld [vmem:[#allocation2 + $0xd38] sm:$0xff]
          %v5315 = vld [vmem:[#allocation2 + $0xd40] sm:$0xff]
          %v5316 = vld [vmem:[#allocation2 + $0xd48] sm:$0xff]
          %v5317 = vld [vmem:[#allocation2 + $0xd50] sm:$0xff]
          %v5318 = vld [vmem:[#allocation2 + $0xd58] sm:$0xff]
          %v5319 = vld [vmem:[#allocation2 + $0xd60] sm:$0xff]
          %v5320 = vld [vmem:[#allocation2 + $0xd68] sm:$0xff]
          %v5321 = vld [vmem:[#allocation2 + $0xd70] sm:$0xff]
          %v5322 = vld [vmem:[#allocation2 + $0xd78] sm:$0xff]
          %v5323 = vld [vmem:[#allocation2 + $0xd80] sm:$0xff]
          %v5324 = vld [vmem:[#allocation2 + $0xd88] sm:$0xff]
          %v5325 = vld [vmem:[#allocation2 + $0xd90] sm:$0xff]
          %v5326 = vld [vmem:[#allocation2 + $0xd98] sm:$0xff]
          %v5327 = vld [vmem:[#allocation2 + $0xda0] sm:$0xff]
          %v5328 = vld [vmem:[#allocation2 + $0xda8] sm:$0xff]
          %v5329 = vld [vmem:[#allocation2 + $0xdb0] sm:$0xff]
          %v5330 = vld [vmem:[#allocation2 + $0xdb8] sm:$0xff]
          %v5331 = vld [vmem:[#allocation2 + $0xdc0] sm:$0xff]
          %v5332 = vld [vmem:[#allocation2 + $0xdc8] sm:$0xff]
          %v5333 = vld [vmem:[#allocation2 + $0xdd0] sm:$0xff]
          %v5334 = vld [vmem:[#allocation2 + $0xdd8] sm:$0xff]
          %v5335 = vld [vmem:[#allocation2 + $0xde0] sm:$0xff]
          %v5336 = vld [vmem:[#allocation2 + $0xde8] sm:$0xff]
          %v5337 = vld [vmem:[#allocation2 + $0xdf0] sm:$0xff]
          %v5338 = vld [vmem:[#allocation2 + $0xdf8] sm:$0xff]
          %v5339 = vld [vmem:[#allocation2 + $0xe00] sm:$0xff]
          %v5340 = vld [vmem:[#allocation2 + $0xe08] sm:$0xff]
          %v5341 = vld [vmem:[#allocation2 + $0xe10] sm:$0xff]
          %v5342 = vld [vmem:[#allocation2 + $0xe18] sm:$0xff]
          %v5343 = vld [vmem:[#allocation2 + $0xe20] sm:$0xff]
          %v5344 = vld [vmem:[#allocation2 + $0xe28] sm:$0xff]
          %v5345 = vld [vmem:[#allocation2 + $0xe30] sm:$0xff]
          %v5346 = vld [vmem:[#allocation2 + $0xe38] sm:$0xff]
          %v5347 = vld [vmem:[#allocation2 + $0xe40] sm:$0xff]
          %v5348 = vld [vmem:[#allocation2 + $0xe48] sm:$0xff]
          %v5349 = vld [vmem:[#allocation2 + $0xe50] sm:$0xff]
          %v5350 = vld [vmem:[#allocation2 + $0xe58] sm:$0xff]
          %v5351 = vld [vmem:[#allocation2 + $0xe60] sm:$0xff]
          %v5352 = vld [vmem:[#allocation2 + $0xe68] sm:$0xff]
          %v5353 = vld [vmem:[#allocation2 + $0xe70] sm:$0xff]
          %v5354 = vld [vmem:[#allocation2 + $0xe78] sm:$0xff]
          %v5355 = vld [vmem:[#allocation2 + $0xe80] sm:$0xff]
          %v5356 = vld [vmem:[#allocation2 + $0xe88] sm:$0xff]
          %v5357 = vld [vmem:[#allocation2 + $0xe90] sm:$0xff]
          %v5358 = vld [vmem:[#allocation2 + $0xe98] sm:$0xff]
          %v5359 = vld [vmem:[#allocation2 + $0xea0] sm:$0xff]
          %v5360 = vld [vmem:[#allocation2 + $0xea8] sm:$0xff]
          %v5361 = vld [vmem:[#allocation2 + $0xeb0] sm:$0xff]
          %v5362 = vld [vmem:[#allocation2 + $0xeb8] sm:$0xff]
          %v5363 = vld [vmem:[#allocation2 + $0xec0] sm:$0xff]
          %v5364 = vld [vmem:[#allocation2 + $0xec8] sm:$0xff]
          %v5365 = vld [vmem:[#allocation2 + $0xed0] sm:$0xff]
          %v5366 = vld [vmem:[#allocation2 + $0xed8] sm:$0xff]
          %v5367 = vld [vmem:[#allocation2 + $0xee0] sm:$0xff]
          %v5368 = vld [vmem:[#allocation2 + $0xee8] sm:$0xff]
          %v5369 = vld [vmem:[#allocation2 + $0xef0] sm:$0xff]
          %v5370 = vld [vmem:[#allocation2 + $0xef8] sm:$0xff]
          %v5371 = vld [vmem:[#allocation2 + $0xf00] sm:$0xff]
          %v5372 = vld [vmem:[#allocation2 + $0xf08] sm:$0xff]
          %v5373 = vld [vmem:[#allocation2 + $0xf10] sm:$0xff]
          %v5374 = vld [vmem:[#allocation2 + $0xf18] sm:$0xff]
          %v5375 = vld [vmem:[#allocation2 + $0xf20] sm:$0xff]
          %v5376 = vld [vmem:[#allocation2 + $0xf28] sm:$0xff]
          %v5377 = vld [vmem:[#allocation2 + $0xf30] sm:$0xff]
          %v5378 = vld [vmem:[#allocation2 + $0xf38] sm:$0xff]
          %v5379 = vld [vmem:[#allocation2 + $0xf40] sm:$0xff]
          %v5380 = vld [vmem:[#allocation2 + $0xf48] sm:$0xff]
          %v5381 = vld [vmem:[#allocation2 + $0xf50] sm:$0xff]
          %v5382 = vld [vmem:[#allocation2 + $0xf58] sm:$0xff]
          %v5383 = vld [vmem:[#allocation2 + $0xf60] sm:$0xff]
          %v5384 = vld [vmem:[#allocation2 + $0xf68] sm:$0xff]
          %v5385 = vld [vmem:[#allocation2 + $0xf70] sm:$0xff]
          %v5386 = vld [vmem:[#allocation2 + $0xf78] sm:$0xff]
          %v5387 = vld [vmem:[#allocation2 + $0xf80] sm:$0xff]
          %v5388 = vld [vmem:[#allocation2 + $0xf88] sm:$0xff]
          %v5389 = vld [vmem:[#allocation2 + $0xf90] sm:$0xff]
          %v5390 = vld [vmem:[#allocation2 + $0xf98] sm:$0xff]
          %v5391 = vld [vmem:[#allocation2 + $0xfa0] sm:$0xff]
          %v5392 = vld [vmem:[#allocation2 + $0xfa8] sm:$0xff]
          %v5393 = vld [vmem:[#allocation2 + $0xfb0] sm:$0xff]
          %v5394 = vld [vmem:[#allocation2 + $0xfb8] sm:$0xff]
          %v5395 = vld [vmem:[#allocation2 + $0xfc0] sm:$0xff]
          %v5396 = vld [vmem:[#allocation2 + $0xfc8] sm:$0xff]
          %v5397 = vld [vmem:[#allocation2 + $0xfd0] sm:$0xff]
          %v5398 = vld [vmem:[#allocation2 + $0xfd8] sm:$0xff]
          %v5399 = vld [vmem:[#allocation2 + $0xfe0] sm:$0xff]
          %v5400 = vld [vmem:[#allocation2 + $0xfe8] sm:$0xff]
          %v5401 = vld [vmem:[#allocation2 + $0xff0] sm:$0xff]
          %v5402 = vld [vmem:[#allocation2 + $0xff8] sm:$0xff]
          %v5403 = vadd.f32 %v4891, %v4892
          %v5404 = vadd.f32 %v5403, %v4893
          %v5405 = vadd.f32 %v5404, %v4894
          %5406 = vadd.xlane.f32.xlu0 %v5405
          %v5407 = vpop.xlane.xlu0 %5406
          %v5408 = vadd.f32 %v4895, %v4896
          %v5409 = vadd.f32 %v5408, %v4897
          %v5410 = vadd.f32 %v5409, %v4898
          %5411 = vadd.xlane.f32.xlu0 %v5410
          %v5412 = vpop.xlane.xlu0 %5411
          %v5413 = vadd.f32 %v4899, %v4900
          %v5414 = vadd.f32 %v5413, %v4901
          %v5415 = vadd.f32 %v5414, %v4902
          %5416 = vadd.xlane.f32.xlu0 %v5415
          %v5417 = vpop.xlane.xlu0 %5416
          %v5418 = vadd.f32 %v4903, %v4904
          %v5419 = vadd.f32 %v5418, %v4905
          %v5420 = vadd.f32 %v5419, %v4906
          %5421 = vadd.xlane.f32.xlu0 %v5420
          %v5422 = vpop.xlane.xlu0 %5421
          %v5423 = vadd.f32 %v4907, %v4908
          %v5424 = vadd.f32 %v5423, %v4909
          %v5425 = vadd.f32 %v5424, %v4910
          %5426 = vadd.xlane.f32.xlu0 %v5425
          %v5427 = vpop.xlane.xlu0 %5426
          %v5428 = vadd.f32 %v4911, %v4912
          %v5429 = vadd.f32 %v5428, %v4913
          %v5430 = vadd.f32 %v5429, %v4914
          %5431 = vadd.xlane.f32.xlu0 %v5430
          %v5432 = vpop.xlane.xlu0 %5431
          %v5433 = vadd.f32 %v4915, %v4916
          %v5434 = vadd.f32 %v5433, %v4917
          %v5435 = vadd.f32 %v5434, %v4918
          %5436 = vadd.xlane.f32.xlu0 %v5435
          %v5437 = vpop.xlane.xlu0 %5436
          %v5438 = vadd.f32 %v4919, %v4920
          %v5439 = vadd.f32 %v5438, %v4921
          %v5440 = vadd.f32 %v5439, %v4922
          %5441 = vadd.xlane.f32.xlu0 %v5440
          %v5442 = vpop.xlane.xlu0 %5441
          %v5443 = vadd.f32 %v4923, %v4924
          %v5444 = vadd.f32 %v5443, %v4925
          %v5445 = vadd.f32 %v5444, %v4926
          %5446 = vadd.xlane.f32.xlu0 %v5445
          %v5447 = vpop.xlane.xlu0 %5446
          %v5448 = vadd.f32 %v4927, %v4928
          %v5449 = vadd.f32 %v5448, %v4929
          %v5450 = vadd.f32 %v5449, %v4930
          %5451 = vadd.xlane.f32.xlu0 %v5450
          %v5452 = vpop.xlane.xlu0 %5451
          %v5453 = vadd.f32 %v4931, %v4932
          %v5454 = vadd.f32 %v5453, %v4933
          %v5455 = vadd.f32 %v5454, %v4934
          %5456 = vadd.xlane.f32.xlu0 %v5455
          %v5457 = vpop.xlane.xlu0 %5456
          %v5458 = vadd.f32 %v4935, %v4936
          %v5459 = vadd.f32 %v5458, %v4937
          %v5460 = vadd.f32 %v5459, %v4938
          %5461 = vadd.xlane.f32.xlu0 %v5460
          %v5462 = vpop.xlane.xlu0 %5461
          %v5463 = vadd.f32 %v4939, %v4940
          %v5464 = vadd.f32 %v5463, %v4941
          %v5465 = vadd.f32 %v5464, %v4942
          %5466 = vadd.xlane.f32.xlu0 %v5465
          %v5467 = vpop.xlane.xlu0 %5466
          %v5468 = vadd.f32 %v4943, %v4944
          %v5469 = vadd.f32 %v5468, %v4945
          %v5470 = vadd.f32 %v5469, %v4946
          %5471 = vadd.xlane.f32.xlu0 %v5470
          %v5472 = vpop.xlane.xlu0 %5471
          %v5473 = vadd.f32 %v4947, %v4948
          %v5474 = vadd.f32 %v5473, %v4949
          %v5475 = vadd.f32 %v5474, %v4950
          %5476 = vadd.xlane.f32.xlu0 %v5475
          %v5477 = vpop.xlane.xlu0 %5476
          %v5478 = vadd.f32 %v4951, %v4952
          %v5479 = vadd.f32 %v5478, %v4953
          %v5480 = vadd.f32 %v5479, %v4954
          %5481 = vadd.xlane.f32.xlu0 %v5480
          %v5482 = vpop.xlane.xlu0 %5481
          %v5483 = vadd.f32 %v4955, %v4956
          %v5484 = vadd.f32 %v5483, %v4957
          %v5485 = vadd.f32 %v5484, %v4958
          %5486 = vadd.xlane.f32.xlu0 %v5485
          %v5487 = vpop.xlane.xlu0 %5486
          %v5488 = vadd.f32 %v4959, %v4960
          %v5489 = vadd.f32 %v5488, %v4961
          %v5490 = vadd.f32 %v5489, %v4962
          %5491 = vadd.xlane.f32.xlu0 %v5490
          %v5492 = vpop.xlane.xlu0 %5491
          %v5493 = vadd.f32 %v4963, %v4964
          %v5494 = vadd.f32 %v5493, %v4965
          %v5495 = vadd.f32 %v5494, %v4966
          %5496 = vadd.xlane.f32.xlu0 %v5495
          %v5497 = vpop.xlane.xlu0 %5496
          %v5498 = vadd.f32 %v4967, %v4968
          %v5499 = vadd.f32 %v5498, %v4969
          %v5500 = vadd.f32 %v5499, %v4970
          %5501 = vadd.xlane.f32.xlu0 %v5500
          %v5502 = vpop.xlane.xlu0 %5501
          %v5503 = vadd.f32 %v4971, %v4972
          %v5504 = vadd.f32 %v5503, %v4973
          %v5505 = vadd.f32 %v5504, %v4974
          %5506 = vadd.xlane.f32.xlu0 %v5505
          %v5507 = vpop.xlane.xlu0 %5506
          %v5508 = vadd.f32 %v4975, %v4976
          %v5509 = vadd.f32 %v5508, %v4977
          %v5510 = vadd.f32 %v5509, %v4978
          %5511 = vadd.xlane.f32.xlu0 %v5510
          %v5512 = vpop.xlane.xlu0 %5511
          %v5513 = vadd.f32 %v4979, %v4980
          %v5514 = vadd.f32 %v5513, %v4981
          %v5515 = vadd.f32 %v5514, %v4982
          %5516 = vadd.xlane.f32.xlu0 %v5515
          %v5517 = vpop.xlane.xlu0 %5516
          %v5518 = vadd.f32 %v4983, %v4984
          %v5519 = vadd.f32 %v5518, %v4985
          %v5520 = vadd.f32 %v5519, %v4986
          %5521 = vadd.xlane.f32.xlu0 %v5520
          %v5522 = vpop.xlane.xlu0 %5521
          %v5523 = vadd.f32 %v4987, %v4988
          %v5524 = vadd.f32 %v5523, %v4989
          %v5525 = vadd.f32 %v5524, %v4990
          %5526 = vadd.xlane.f32.xlu0 %v5525
          %v5527 = vpop.xlane.xlu0 %5526
          %v5528 = vadd.f32 %v4991, %v4992
          %v5529 = vadd.f32 %v5528, %v4993
          %v5530 = vadd.f32 %v5529, %v4994
          %5531 = vadd.xlane.f32.xlu0 %v5530
          %v5532 = vpop.xlane.xlu0 %5531
          %v5533 = vadd.f32 %v4995, %v4996
          %v5534 = vadd.f32 %v5533, %v4997
          %v5535 = vadd.f32 %v5534, %v4998
          %5536 = vadd.xlane.f32.xlu0 %v5535
          %v5537 = vpop.xlane.xlu0 %5536
          %v5538 = vadd.f32 %v4999, %v5000
          %v5539 = vadd.f32 %v5538, %v5001
          %v5540 = vadd.f32 %v5539, %v5002
          %5541 = vadd.xlane.f32.xlu0 %v5540
          %v5542 = vpop.xlane.xlu0 %5541
          %v5543 = vadd.f32 %v5003, %v5004
          %v5544 = vadd.f32 %v5543, %v5005
          %v5545 = vadd.f32 %v5544, %v5006
          %5546 = vadd.xlane.f32.xlu0 %v5545
          %v5547 = vpop.xlane.xlu0 %5546
          %v5548 = vadd.f32 %v5007, %v5008
          %v5549 = vadd.f32 %v5548, %v5009
          %v5550 = vadd.f32 %v5549, %v5010
          %5551 = vadd.xlane.f32.xlu0 %v5550
          %v5552 = vpop.xlane.xlu0 %5551
          %v5553 = vadd.f32 %v5011, %v5012
          %v5554 = vadd.f32 %v5553, %v5013
          %v5555 = vadd.f32 %v5554, %v5014
          %5556 = vadd.xlane.f32.xlu0 %v5555
          %v5557 = vpop.xlane.xlu0 %5556
          %v5558 = vadd.f32 %v5015, %v5016
          %v5559 = vadd.f32 %v5558, %v5017
          %v5560 = vadd.f32 %v5559, %v5018
          %5561 = vadd.xlane.f32.xlu0 %v5560
          %v5562 = vpop.xlane.xlu0 %5561
          %v5563 = vadd.f32 %v5019, %v5020
          %v5564 = vadd.f32 %v5563, %v5021
          %v5565 = vadd.f32 %v5564, %v5022
          %5566 = vadd.xlane.f32.xlu0 %v5565
          %v5567 = vpop.xlane.xlu0 %5566
          %v5568 = vadd.f32 %v5023, %v5024
          %v5569 = vadd.f32 %v5568, %v5025
          %v5570 = vadd.f32 %v5569, %v5026
          %5571 = vadd.xlane.f32.xlu0 %v5570
          %v5572 = vpop.xlane.xlu0 %5571
          %v5573 = vadd.f32 %v5027, %v5028
          %v5574 = vadd.f32 %v5573, %v5029
          %v5575 = vadd.f32 %v5574, %v5030
          %5576 = vadd.xlane.f32.xlu0 %v5575
          %v5577 = vpop.xlane.xlu0 %5576
          %v5578 = vadd.f32 %v5031, %v5032
          %v5579 = vadd.f32 %v5578, %v5033
          %v5580 = vadd.f32 %v5579, %v5034
          %5581 = vadd.xlane.f32.xlu0 %v5580
          %v5582 = vpop.xlane.xlu0 %5581
          %v5583 = vadd.f32 %v5035, %v5036
          %v5584 = vadd.f32 %v5583, %v5037
          %v5585 = vadd.f32 %v5584, %v5038
          %5586 = vadd.xlane.f32.xlu0 %v5585
          %v5587 = vpop.xlane.xlu0 %5586
          %v5588 = vadd.f32 %v5039, %v5040
          %v5589 = vadd.f32 %v5588, %v5041
          %v5590 = vadd.f32 %v5589, %v5042
          %5591 = vadd.xlane.f32.xlu0 %v5590
          %v5592 = vpop.xlane.xlu0 %5591
          %v5593 = vadd.f32 %v5043, %v5044
          %v5594 = vadd.f32 %v5593, %v5045
          %v5595 = vadd.f32 %v5594, %v5046
          %5596 = vadd.xlane.f32.xlu0 %v5595
          %v5597 = vpop.xlane.xlu0 %5596
          %v5598 = vadd.f32 %v5047, %v5048
          %v5599 = vadd.f32 %v5598, %v5049
          %v5600 = vadd.f32 %v5599, %v5050
          %5601 = vadd.xlane.f32.xlu0 %v5600
          %v5602 = vpop.xlane.xlu0 %5601
          %v5603 = vadd.f32 %v5051, %v5052
          %v5604 = vadd.f32 %v5603, %v5053
          %v5605 = vadd.f32 %v5604, %v5054
          %5606 = vadd.xlane.f32.xlu0 %v5605
          %v5607 = vpop.xlane.xlu0 %5606
          %v5608 = vadd.f32 %v5055, %v5056
          %v5609 = vadd.f32 %v5608, %v5057
          %v5610 = vadd.f32 %v5609, %v5058
          %5611 = vadd.xlane.f32.xlu0 %v5610
          %v5612 = vpop.xlane.xlu0 %5611
          %v5613 = vadd.f32 %v5059, %v5060
          %v5614 = vadd.f32 %v5613, %v5061
          %v5615 = vadd.f32 %v5614, %v5062
          %5616 = vadd.xlane.f32.xlu0 %v5615
          %v5617 = vpop.xlane.xlu0 %5616
          %v5618 = vadd.f32 %v5063, %v5064
          %v5619 = vadd.f32 %v5618, %v5065
          %v5620 = vadd.f32 %v5619, %v5066
          %5621 = vadd.xlane.f32.xlu0 %v5620
          %v5622 = vpop.xlane.xlu0 %5621
          %v5623 = vadd.f32 %v5067, %v5068
          %v5624 = vadd.f32 %v5623, %v5069
          %v5625 = vadd.f32 %v5624, %v5070
          %5626 = vadd.xlane.f32.xlu0 %v5625
          %v5627 = vpop.xlane.xlu0 %5626
          %v5628 = vadd.f32 %v5071, %v5072
          %v5629 = vadd.f32 %v5628, %v5073
          %v5630 = vadd.f32 %v5629, %v5074
          %5631 = vadd.xlane.f32.xlu0 %v5630
          %v5632 = vpop.xlane.xlu0 %5631
          %v5633 = vadd.f32 %v5075, %v5076
          %v5634 = vadd.f32 %v5633, %v5077
          %v5635 = vadd.f32 %v5634, %v5078
          %5636 = vadd.xlane.f32.xlu0 %v5635
          %v5637 = vpop.xlane.xlu0 %5636
          %v5638 = vadd.f32 %v5079, %v5080
          %v5639 = vadd.f32 %v5638, %v5081
          %v5640 = vadd.f32 %v5639, %v5082
          %5641 = vadd.xlane.f32.xlu0 %v5640
          %v5642 = vpop.xlane.xlu0 %5641
          %v5643 = vadd.f32 %v5083, %v5084
          %v5644 = vadd.f32 %v5643, %v5085
          %v5645 = vadd.f32 %v5644, %v5086
          %5646 = vadd.xlane.f32.xlu0 %v5645
          %v5647 = vpop.xlane.xlu0 %5646
          %v5648 = vadd.f32 %v5087, %v5088
          %v5649 = vadd.f32 %v5648, %v5089
          %v5650 = vadd.f32 %v5649, %v5090
          %5651 = vadd.xlane.f32.xlu0 %v5650
          %v5652 = vpop.xlane.xlu0 %5651
          %v5653 = vadd.f32 %v5091, %v5092
          %v5654 = vadd.f32 %v5653, %v5093
          %v5655 = vadd.f32 %v5654, %v5094
          %5656 = vadd.xlane.f32.xlu0 %v5655
          %v5657 = vpop.xlane.xlu0 %5656
          %v5658 = vadd.f32 %v5095, %v5096
          %v5659 = vadd.f32 %v5658, %v5097
          %v5660 = vadd.f32 %v5659, %v5098
          %5661 = vadd.xlane.f32.xlu0 %v5660
          %v5662 = vpop.xlane.xlu0 %5661
          %v5663 = vadd.f32 %v5099, %v5100
          %v5664 = vadd.f32 %v5663, %v5101
          %v5665 = vadd.f32 %v5664, %v5102
          %5666 = vadd.xlane.f32.xlu0 %v5665
          %v5667 = vpop.xlane.xlu0 %5666
          %v5668 = vadd.f32 %v5103, %v5104
          %v5669 = vadd.f32 %v5668, %v5105
          %v5670 = vadd.f32 %v5669, %v5106
          %5671 = vadd.xlane.f32.xlu0 %v5670
          %v5672 = vpop.xlane.xlu0 %5671
          %v5673 = vadd.f32 %v5107, %v5108
          %v5674 = vadd.f32 %v5673, %v5109
          %v5675 = vadd.f32 %v5674, %v5110
          %5676 = vadd.xlane.f32.xlu0 %v5675
          %v5677 = vpop.xlane.xlu0 %5676
          %v5678 = vadd.f32 %v5111, %v5112
          %v5679 = vadd.f32 %v5678, %v5113
          %v5680 = vadd.f32 %v5679, %v5114
          %5681 = vadd.xlane.f32.xlu0 %v5680
          %v5682 = vpop.xlane.xlu0 %5681
          %v5683 = vadd.f32 %v5115, %v5116
          %v5684 = vadd.f32 %v5683, %v5117
          %v5685 = vadd.f32 %v5684, %v5118
          %5686 = vadd.xlane.f32.xlu0 %v5685
          %v5687 = vpop.xlane.xlu0 %5686
          %v5688 = vadd.f32 %v5119, %v5120
          %v5689 = vadd.f32 %v5688, %v5121
          %v5690 = vadd.f32 %v5689, %v5122
          %5691 = vadd.xlane.f32.xlu0 %v5690
          %v5692 = vpop.xlane.xlu0 %5691
          %v5693 = vadd.f32 %v5123, %v5124
          %v5694 = vadd.f32 %v5693, %v5125
          %v5695 = vadd.f32 %v5694, %v5126
          %5696 = vadd.xlane.f32.xlu0 %v5695
          %v5697 = vpop.xlane.xlu0 %5696
          %v5698 = vadd.f32 %v5127, %v5128
          %v5699 = vadd.f32 %v5698, %v5129
          %v5700 = vadd.f32 %v5699, %v5130
          %5701 = vadd.xlane.f32.xlu0 %v5700
          %v5702 = vpop.xlane.xlu0 %5701
          %v5703 = vadd.f32 %v5131, %v5132
          %v5704 = vadd.f32 %v5703, %v5133
          %v5705 = vadd.f32 %v5704, %v5134
          %5706 = vadd.xlane.f32.xlu0 %v5705
          %v5707 = vpop.xlane.xlu0 %5706
          %v5708 = vadd.f32 %v5135, %v5136
          %v5709 = vadd.f32 %v5708, %v5137
          %v5710 = vadd.f32 %v5709, %v5138
          %5711 = vadd.xlane.f32.xlu0 %v5710
          %v5712 = vpop.xlane.xlu0 %5711
          %v5713 = vadd.f32 %v5139, %v5140
          %v5714 = vadd.f32 %v5713, %v5141
          %v5715 = vadd.f32 %v5714, %v5142
          %5716 = vadd.xlane.f32.xlu0 %v5715
          %v5717 = vpop.xlane.xlu0 %5716
          %v5718 = vadd.f32 %v5143, %v5144
          %v5719 = vadd.f32 %v5718, %v5145
          %v5720 = vadd.f32 %v5719, %v5146
          %5721 = vadd.xlane.f32.xlu0 %v5720
          %v5722 = vpop.xlane.xlu0 %5721
          %v5723 = vadd.f32 %v5147, %v5148
          %v5724 = vadd.f32 %v5723, %v5149
          %v5725 = vadd.f32 %v5724, %v5150
          %5726 = vadd.xlane.f32.xlu0 %v5725
          %v5727 = vpop.xlane.xlu0 %5726
          %v5728 = vadd.f32 %v5151, %v5152
          %v5729 = vadd.f32 %v5728, %v5153
          %v5730 = vadd.f32 %v5729, %v5154
          %5731 = vadd.xlane.f32.xlu0 %v5730
          %v5732 = vpop.xlane.xlu0 %5731
          %v5733 = vadd.f32 %v5155, %v5156
          %v5734 = vadd.f32 %v5733, %v5157
          %v5735 = vadd.f32 %v5734, %v5158
          %5736 = vadd.xlane.f32.xlu0 %v5735
          %v5737 = vpop.xlane.xlu0 %5736
          %v5738 = vadd.f32 %v5159, %v5160
          %v5739 = vadd.f32 %v5738, %v5161
          %v5740 = vadd.f32 %v5739, %v5162
          %5741 = vadd.xlane.f32.xlu0 %v5740
          %v5742 = vpop.xlane.xlu0 %5741
          %v5743 = vadd.f32 %v5163, %v5164
          %v5744 = vadd.f32 %v5743, %v5165
          %v5745 = vadd.f32 %v5744, %v5166
          %5746 = vadd.xlane.f32.xlu0 %v5745
          %v5747 = vpop.xlane.xlu0 %5746
          %v5748 = vadd.f32 %v5167, %v5168
          %v5749 = vadd.f32 %v5748, %v5169
          %v5750 = vadd.f32 %v5749, %v5170
          %5751 = vadd.xlane.f32.xlu0 %v5750
          %v5752 = vpop.xlane.xlu0 %5751
          %v5753 = vadd.f32 %v5171, %v5172
          %v5754 = vadd.f32 %v5753, %v5173
          %v5755 = vadd.f32 %v5754, %v5174
          %5756 = vadd.xlane.f32.xlu0 %v5755
          %v5757 = vpop.xlane.xlu0 %5756
          %v5758 = vadd.f32 %v5175, %v5176
          %v5759 = vadd.f32 %v5758, %v5177
          %v5760 = vadd.f32 %v5759, %v5178
          %5761 = vadd.xlane.f32.xlu0 %v5760
          %v5762 = vpop.xlane.xlu0 %5761
          %v5763 = vadd.f32 %v5179, %v5180
          %v5764 = vadd.f32 %v5763, %v5181
          %v5765 = vadd.f32 %v5764, %v5182
          %5766 = vadd.xlane.f32.xlu0 %v5765
          %v5767 = vpop.xlane.xlu0 %5766
          %v5768 = vadd.f32 %v5183, %v5184
          %v5769 = vadd.f32 %v5768, %v5185
          %v5770 = vadd.f32 %v5769, %v5186
          %5771 = vadd.xlane.f32.xlu0 %v5770
          %v5772 = vpop.xlane.xlu0 %5771
          %v5773 = vadd.f32 %v5187, %v5188
          %v5774 = vadd.f32 %v5773, %v5189
          %v5775 = vadd.f32 %v5774, %v5190
          %5776 = vadd.xlane.f32.xlu0 %v5775
          %v5777 = vpop.xlane.xlu0 %5776
          %v5778 = vadd.f32 %v5191, %v5192
          %v5779 = vadd.f32 %v5778, %v5193
          %v5780 = vadd.f32 %v5779, %v5194
          %5781 = vadd.xlane.f32.xlu0 %v5780
          %v5782 = vpop.xlane.xlu0 %5781
          %v5783 = vadd.f32 %v5195, %v5196
          %v5784 = vadd.f32 %v5783, %v5197
          %v5785 = vadd.f32 %v5784, %v5198
          %5786 = vadd.xlane.f32.xlu0 %v5785
          %v5787 = vpop.xlane.xlu0 %5786
          %v5788 = vadd.f32 %v5199, %v5200
          %v5789 = vadd.f32 %v5788, %v5201
          %v5790 = vadd.f32 %v5789, %v5202
          %5791 = vadd.xlane.f32.xlu0 %v5790
          %v5792 = vpop.xlane.xlu0 %5791
          %v5793 = vadd.f32 %v5203, %v5204
          %v5794 = vadd.f32 %v5793, %v5205
          %v5795 = vadd.f32 %v5794, %v5206
          %5796 = vadd.xlane.f32.xlu0 %v5795
          %v5797 = vpop.xlane.xlu0 %5796
          %v5798 = vadd.f32 %v5207, %v5208
          %v5799 = vadd.f32 %v5798, %v5209
          %v5800 = vadd.f32 %v5799, %v5210
          %5801 = vadd.xlane.f32.xlu0 %v5800
          %v5802 = vpop.xlane.xlu0 %5801
          %v5803 = vadd.f32 %v5211, %v5212
          %v5804 = vadd.f32 %v5803, %v5213
          %v5805 = vadd.f32 %v5804, %v5214
          %5806 = vadd.xlane.f32.xlu0 %v5805
          %v5807 = vpop.xlane.xlu0 %5806
          %v5808 = vadd.f32 %v5215, %v5216
          %v5809 = vadd.f32 %v5808, %v5217
          %v5810 = vadd.f32 %v5809, %v5218
          %5811 = vadd.xlane.f32.xlu0 %v5810
          %v5812 = vpop.xlane.xlu0 %5811
          %v5813 = vadd.f32 %v5219, %v5220
          %v5814 = vadd.f32 %v5813, %v5221
          %v5815 = vadd.f32 %v5814, %v5222
          %5816 = vadd.xlane.f32.xlu0 %v5815
          %v5817 = vpop.xlane.xlu0 %5816
          %v5818 = vadd.f32 %v5223, %v5224
          %v5819 = vadd.f32 %v5818, %v5225
          %v5820 = vadd.f32 %v5819, %v5226
          %5821 = vadd.xlane.f32.xlu0 %v5820
          %v5822 = vpop.xlane.xlu0 %5821
          %v5823 = vadd.f32 %v5227, %v5228
          %v5824 = vadd.f32 %v5823, %v5229
          %v5825 = vadd.f32 %v5824, %v5230
          %5826 = vadd.xlane.f32.xlu0 %v5825
          %v5827 = vpop.xlane.xlu0 %5826
          %v5828 = vadd.f32 %v5231, %v5232
          %v5829 = vadd.f32 %v5828, %v5233
          %v5830 = vadd.f32 %v5829, %v5234
          %5831 = vadd.xlane.f32.xlu0 %v5830
          %v5832 = vpop.xlane.xlu0 %5831
          %v5833 = vadd.f32 %v5235, %v5236
          %v5834 = vadd.f32 %v5833, %v5237
          %v5835 = vadd.f32 %v5834, %v5238
          %5836 = vadd.xlane.f32.xlu0 %v5835
          %v5837 = vpop.xlane.xlu0 %5836
          %v5838 = vadd.f32 %v5239, %v5240
          %v5839 = vadd.f32 %v5838, %v5241
          %v5840 = vadd.f32 %v5839, %v5242
          %5841 = vadd.xlane.f32.xlu0 %v5840
          %v5842 = vpop.xlane.xlu0 %5841
          %v5843 = vadd.f32 %v5243, %v5244
          %v5844 = vadd.f32 %v5843, %v5245
          %v5845 = vadd.f32 %v5844, %v5246
          %5846 = vadd.xlane.f32.xlu0 %v5845
          %v5847 = vpop.xlane.xlu0 %5846
          %v5848 = vadd.f32 %v5247, %v5248
          %v5849 = vadd.f32 %v5848, %v5249
          %v5850 = vadd.f32 %v5849, %v5250
          %5851 = vadd.xlane.f32.xlu0 %v5850
          %v5852 = vpop.xlane.xlu0 %5851
          %v5853 = vadd.f32 %v5251, %v5252
          %v5854 = vadd.f32 %v5853, %v5253
          %v5855 = vadd.f32 %v5854, %v5254
          %5856 = vadd.xlane.f32.xlu0 %v5855
          %v5857 = vpop.xlane.xlu0 %5856
          %v5858 = vadd.f32 %v5255, %v5256
          %v5859 = vadd.f32 %v5858, %v5257
          %v5860 = vadd.f32 %v5859, %v5258
          %5861 = vadd.xlane.f32.xlu0 %v5860
          %v5862 = vpop.xlane.xlu0 %5861
          %v5863 = vadd.f32 %v5259, %v5260
          %v5864 = vadd.f32 %v5863, %v5261
          %v5865 = vadd.f32 %v5864, %v5262
          %5866 = vadd.xlane.f32.xlu0 %v5865
          %v5867 = vpop.xlane.xlu0 %5866
          %v5868 = vadd.f32 %v5263, %v5264
          %v5869 = vadd.f32 %v5868, %v5265
          %v5870 = vadd.f32 %v5869, %v5266
          %5871 = vadd.xlane.f32.xlu0 %v5870
          %v5872 = vpop.xlane.xlu0 %5871
          %v5873 = vadd.f32 %v5267, %v5268
          %v5874 = vadd.f32 %v5873, %v5269
          %v5875 = vadd.f32 %v5874, %v5270
          %5876 = vadd.xlane.f32.xlu0 %v5875
          %v5877 = vpop.xlane.xlu0 %5876
          %v5878 = vadd.f32 %v5271, %v5272
          %v5879 = vadd.f32 %v5878, %v5273
          %v5880 = vadd.f32 %v5879, %v5274
          %5881 = vadd.xlane.f32.xlu0 %v5880
          %v5882 = vpop.xlane.xlu0 %5881
          %v5883 = vadd.f32 %v5275, %v5276
          %v5884 = vadd.f32 %v5883, %v5277
          %v5885 = vadd.f32 %v5884, %v5278
          %5886 = vadd.xlane.f32.xlu0 %v5885
          %v5887 = vpop.xlane.xlu0 %5886
          %v5888 = vadd.f32 %v5279, %v5280
          %v5889 = vadd.f32 %v5888, %v5281
          %v5890 = vadd.f32 %v5889, %v5282
          %5891 = vadd.xlane.f32.xlu0 %v5890
          %v5892 = vpop.xlane.xlu0 %5891
          %v5893 = vadd.f32 %v5283, %v5284
          %v5894 = vadd.f32 %v5893, %v5285
          %v5895 = vadd.f32 %v5894, %v5286
          %5896 = vadd.xlane.f32.xlu0 %v5895
          %v5897 = vpop.xlane.xlu0 %5896
          %v5898 = vadd.f32 %v5287, %v5288
          %v5899 = vadd.f32 %v5898, %v5289
          %v5900 = vadd.f32 %v5899, %v5290
          %5901 = vadd.xlane.f32.xlu0 %v5900
          %v5902 = vpop.xlane.xlu0 %5901
          %v5903 = vadd.f32 %v5291, %v5292
          %v5904 = vadd.f32 %v5903, %v5293
          %v5905 = vadd.f32 %v5904, %v5294
          %5906 = vadd.xlane.f32.xlu0 %v5905
          %v5907 = vpop.xlane.xlu0 %5906
          %v5908 = vadd.f32 %v5295, %v5296
          %v5909 = vadd.f32 %v5908, %v5297
          %v5910 = vadd.f32 %v5909, %v5298
          %5911 = vadd.xlane.f32.xlu0 %v5910
          %v5912 = vpop.xlane.xlu0 %5911
          %v5913 = vadd.f32 %v5299, %v5300
          %v5914 = vadd.f32 %v5913, %v5301
          %v5915 = vadd.f32 %v5914, %v5302
          %5916 = vadd.xlane.f32.xlu0 %v5915
          %v5917 = vpop.xlane.xlu0 %5916
          %v5918 = vadd.f32 %v5303, %v5304
          %v5919 = vadd.f32 %v5918, %v5305
          %v5920 = vadd.f32 %v5919, %v5306
          %5921 = vadd.xlane.f32.xlu0 %v5920
          %v5922 = vpop.xlane.xlu0 %5921
          %v5923 = vadd.f32 %v5307, %v5308
          %v5924 = vadd.f32 %v5923, %v5309
          %v5925 = vadd.f32 %v5924, %v5310
          %5926 = vadd.xlane.f32.xlu0 %v5925
          %v5927 = vpop.xlane.xlu0 %5926
          %v5928 = vadd.f32 %v5311, %v5312
          %v5929 = vadd.f32 %v5928, %v5313
          %v5930 = vadd.f32 %v5929, %v5314
          %5931 = vadd.xlane.f32.xlu0 %v5930
          %v5932 = vpop.xlane.xlu0 %5931
          %v5933 = vadd.f32 %v5315, %v5316
          %v5934 = vadd.f32 %v5933, %v5317
          %v5935 = vadd.f32 %v5934, %v5318
          %5936 = vadd.xlane.f32.xlu0 %v5935
          %v5937 = vpop.xlane.xlu0 %5936
          %v5938 = vadd.f32 %v5319, %v5320
          %v5939 = vadd.f32 %v5938, %v5321
          %v5940 = vadd.f32 %v5939, %v5322
          %5941 = vadd.xlane.f32.xlu0 %v5940
          %v5942 = vpop.xlane.xlu0 %5941
          %v5943 = vadd.f32 %v5323, %v5324
          %v5944 = vadd.f32 %v5943, %v5325
          %v5945 = vadd.f32 %v5944, %v5326
          %5946 = vadd.xlane.f32.xlu0 %v5945
          %v5947 = vpop.xlane.xlu0 %5946
          %v5948 = vadd.f32 %v5327, %v5328
          %v5949 = vadd.f32 %v5948, %v5329
          %v5950 = vadd.f32 %v5949, %v5330
          %5951 = vadd.xlane.f32.xlu0 %v5950
          %v5952 = vpop.xlane.xlu0 %5951
          %v5953 = vadd.f32 %v5331, %v5332
          %v5954 = vadd.f32 %v5953, %v5333
          %v5955 = vadd.f32 %v5954, %v5334
          %5956 = vadd.xlane.f32.xlu0 %v5955
          %v5957 = vpop.xlane.xlu0 %5956
          %v5958 = vadd.f32 %v5335, %v5336
          %v5959 = vadd.f32 %v5958, %v5337
          %v5960 = vadd.f32 %v5959, %v5338
          %5961 = vadd.xlane.f32.xlu0 %v5960
          %v5962 = vpop.xlane.xlu0 %5961
          %v5963 = vadd.f32 %v5339, %v5340
          %v5964 = vadd.f32 %v5963, %v5341
          %v5965 = vadd.f32 %v5964, %v5342
          %5966 = vadd.xlane.f32.xlu0 %v5965
          %v5967 = vpop.xlane.xlu0 %5966
          %v5968 = vadd.f32 %v5343, %v5344
          %v5969 = vadd.f32 %v5968, %v5345
          %v5970 = vadd.f32 %v5969, %v5346
          %5971 = vadd.xlane.f32.xlu0 %v5970
          %v5972 = vpop.xlane.xlu0 %5971
          %v5973 = vadd.f32 %v5347, %v5348
          %v5974 = vadd.f32 %v5973, %v5349
          %v5975 = vadd.f32 %v5974, %v5350
          %5976 = vadd.xlane.f32.xlu0 %v5975
          %v5977 = vpop.xlane.xlu0 %5976
          %v5978 = vadd.f32 %v5351, %v5352
          %v5979 = vadd.f32 %v5978, %v5353
          %v5980 = vadd.f32 %v5979, %v5354
          %5981 = vadd.xlane.f32.xlu0 %v5980
          %v5982 = vpop.xlane.xlu0 %5981
          %v5983 = vadd.f32 %v5355, %v5356
          %v5984 = vadd.f32 %v5983, %v5357
          %v5985 = vadd.f32 %v5984, %v5358
          %5986 = vadd.xlane.f32.xlu0 %v5985
          %v5987 = vpop.xlane.xlu0 %5986
          %v5988 = vadd.f32 %v5359, %v5360
          %v5989 = vadd.f32 %v5988, %v5361
          %v5990 = vadd.f32 %v5989, %v5362
          %5991 = vadd.xlane.f32.xlu0 %v5990
          %v5992 = vpop.xlane.xlu0 %5991
          %v5993 = vadd.f32 %v5363, %v5364
          %v5994 = vadd.f32 %v5993, %v5365
          %v5995 = vadd.f32 %v5994, %v5366
          %5996 = vadd.xlane.f32.xlu0 %v5995
          %v5997 = vpop.xlane.xlu0 %5996
          %v5998 = vadd.f32 %v5367, %v5368
          %v5999 = vadd.f32 %v5998, %v5369
          %v6000 = vadd.f32 %v5999, %v5370
          %6001 = vadd.xlane.f32.xlu0 %v6000
          %v6002 = vpop.xlane.xlu0 %6001
          %v6003 = vadd.f32 %v5371, %v5372
          %v6004 = vadd.f32 %v6003, %v5373
          %v6005 = vadd.f32 %v6004, %v5374
          %6006 = vadd.xlane.f32.xlu0 %v6005
          %v6007 = vpop.xlane.xlu0 %6006
          %v6008 = vadd.f32 %v5375, %v5376
          %v6009 = vadd.f32 %v6008, %v5377
          %v6010 = vadd.f32 %v6009, %v5378
          %6011 = vadd.xlane.f32.xlu0 %v6010
          %v6012 = vpop.xlane.xlu0 %6011
          %v6013 = vadd.f32 %v5379, %v5380
          %v6014 = vadd.f32 %v6013, %v5381
          %v6015 = vadd.f32 %v6014, %v5382
          %6016 = vadd.xlane.f32.xlu0 %v6015
          %v6017 = vpop.xlane.xlu0 %6016
          %v6018 = vadd.f32 %v5383, %v5384
          %v6019 = vadd.f32 %v6018, %v5385
          %v6020 = vadd.f32 %v6019, %v5386
          %6021 = vadd.xlane.f32.xlu0 %v6020
          %v6022 = vpop.xlane.xlu0 %6021
          %v6023 = vadd.f32 %v5387, %v5388
          %v6024 = vadd.f32 %v6023, %v5389
          %v6025 = vadd.f32 %v6024, %v5390
          %6026 = vadd.xlane.f32.xlu0 %v6025
          %v6027 = vpop.xlane.xlu0 %6026
          %v6028 = vadd.f32 %v5391, %v5392
          %v6029 = vadd.f32 %v6028, %v5393
          %v6030 = vadd.f32 %v6029, %v5394
          %6031 = vadd.xlane.f32.xlu0 %v6030
          %v6032 = vpop.xlane.xlu0 %6031
          %v6033 = vadd.f32 %v5395, %v5396
          %v6034 = vadd.f32 %v6033, %v5397
          %v6035 = vadd.f32 %v6034, %v5398
          %6036 = vadd.xlane.f32.xlu0 %v6035
          %v6037 = vpop.xlane.xlu0 %6036
          %v6038 = vadd.f32 %v5399, %v5400
          %v6039 = vadd.f32 %v6038, %v5401
          %v6040 = vadd.f32 %v6039, %v5402
          %6041 = vadd.xlane.f32.xlu0 %v6040
          %v6042 = vpop.xlane.xlu0 %6041
          %v6172 = vunpack.c.l.s4 269488144
          %v6173 = vunpack.c.0.s8 %v6172
          %v6174 = vperm.slane %v5407, %v6173
          %v6176 = vunpack.c.l.s4 842150450
          %v6177 = vunpack.c.0.s8 %v6176
          %v6178 = vperm.slane %v5407, %v6177
          %v6180 = vunpack.c.l.s4 1414812756
          %v6181 = vunpack.c.0.s8 %v6180
          %v6182 = vperm.slane %v5407, %v6181
          %v6184 = vunpack.c.l.s4 1987475062
          %v6185 = vunpack.c.0.s8 %v6184
          %v6186 = vperm.slane %v5407, %v6185
          %v6188 = vunpack.c.l.s4 269488144
          %v6189 = vunpack.c.0.s8 %v6188
          %v6190 = vperm.slane %v5412, %v6189
          %v6192 = vunpack.c.l.s4 842150450
          %v6193 = vunpack.c.0.s8 %v6192
          %v6194 = vperm.slane %v5412, %v6193
          %v6196 = vunpack.c.l.s4 1414812756
          %v6197 = vunpack.c.0.s8 %v6196
          %v6198 = vperm.slane %v5412, %v6197
          %v6200 = vunpack.c.l.s4 1987475062
          %v6201 = vunpack.c.0.s8 %v6200
          %v6202 = vperm.slane %v5412, %v6201
          %v6204 = vunpack.c.l.s4 269488144
          %v6205 = vunpack.c.0.s8 %v6204
          %v6206 = vperm.slane %v5417, %v6205
          %v6208 = vunpack.c.l.s4 842150450
          %v6209 = vunpack.c.0.s8 %v6208
          %v6210 = vperm.slane %v5417, %v6209
          %v6212 = vunpack.c.l.s4 1414812756
          %v6213 = vunpack.c.0.s8 %v6212
          %v6214 = vperm.slane %v5417, %v6213
          %v6216 = vunpack.c.l.s4 1987475062
          %v6217 = vunpack.c.0.s8 %v6216
          %v6218 = vperm.slane %v5417, %v6217
          %v6220 = vunpack.c.l.s4 269488144
          %v6221 = vunpack.c.0.s8 %v6220
          %v6222 = vperm.slane %v5422, %v6221
          %v6224 = vunpack.c.l.s4 842150450
          %v6225 = vunpack.c.0.s8 %v6224
          %v6226 = vperm.slane %v5422, %v6225
          %v6228 = vunpack.c.l.s4 1414812756
          %v6229 = vunpack.c.0.s8 %v6228
          %v6230 = vperm.slane %v5422, %v6229
          %v6232 = vunpack.c.l.s4 1987475062
          %v6233 = vunpack.c.0.s8 %v6232
          %v6234 = vperm.slane %v5422, %v6233
          %v6236 = vunpack.c.l.s4 269488144
          %v6237 = vunpack.c.0.s8 %v6236
          %v6238 = vperm.slane %v5427, %v6237
          %v6240 = vunpack.c.l.s4 842150450
          %v6241 = vunpack.c.0.s8 %v6240
          %v6242 = vperm.slane %v5427, %v6241
          %v6244 = vunpack.c.l.s4 1414812756
          %v6245 = vunpack.c.0.s8 %v6244
          %v6246 = vperm.slane %v5427, %v6245
          %v6248 = vunpack.c.l.s4 1987475062
          %v6249 = vunpack.c.0.s8 %v6248
          %v6250 = vperm.slane %v5427, %v6249
          %v6252 = vunpack.c.l.s4 269488144
          %v6253 = vunpack.c.0.s8 %v6252
          %v6254 = vperm.slane %v5432, %v6253
          %v6256 = vunpack.c.l.s4 842150450
          %v6257 = vunpack.c.0.s8 %v6256
          %v6258 = vperm.slane %v5432, %v6257
          %v6260 = vunpack.c.l.s4 1414812756
          %v6261 = vunpack.c.0.s8 %v6260
          %v6262 = vperm.slane %v5432, %v6261
          %v6264 = vunpack.c.l.s4 1987475062
          %v6265 = vunpack.c.0.s8 %v6264
          %v6266 = vperm.slane %v5432, %v6265
          %v6268 = vunpack.c.l.s4 269488144
          %v6269 = vunpack.c.0.s8 %v6268
          %v6270 = vperm.slane %v5437, %v6269
          %v6272 = vunpack.c.l.s4 842150450
          %v6273 = vunpack.c.0.s8 %v6272
          %v6274 = vperm.slane %v5437, %v6273
          %v6276 = vunpack.c.l.s4 1414812756
          %v6277 = vunpack.c.0.s8 %v6276
          %v6278 = vperm.slane %v5437, %v6277
          %v6280 = vunpack.c.l.s4 1987475062
          %v6281 = vunpack.c.0.s8 %v6280
          %v6282 = vperm.slane %v5437, %v6281
          %v6284 = vunpack.c.l.s4 269488144
          %v6285 = vunpack.c.0.s8 %v6284
          %v6286 = vperm.slane %v5442, %v6285
          %v6288 = vunpack.c.l.s4 842150450
          %v6289 = vunpack.c.0.s8 %v6288
          %v6290 = vperm.slane %v5442, %v6289
          %v6292 = vunpack.c.l.s4 1414812756
          %v6293 = vunpack.c.0.s8 %v6292
          %v6294 = vperm.slane %v5442, %v6293
          %v6296 = vunpack.c.l.s4 1987475062
          %v6297 = vunpack.c.0.s8 %v6296
          %v6298 = vperm.slane %v5442, %v6297
          %v6300 = vunpack.c.l.s4 269488144
          %v6301 = vunpack.c.0.s8 %v6300
          %v6302 = vperm.slane %v5447, %v6301
          %v6304 = vunpack.c.l.s4 842150450
          %v6305 = vunpack.c.0.s8 %v6304
          %v6306 = vperm.slane %v5447, %v6305
          %v6308 = vunpack.c.l.s4 1414812756
          %v6309 = vunpack.c.0.s8 %v6308
          %v6310 = vperm.slane %v5447, %v6309
          %v6312 = vunpack.c.l.s4 1987475062
          %v6313 = vunpack.c.0.s8 %v6312
          %v6314 = vperm.slane %v5447, %v6313
          %v6316 = vunpack.c.l.s4 269488144
          %v6317 = vunpack.c.0.s8 %v6316
          %v6318 = vperm.slane %v5452, %v6317
          %v6320 = vunpack.c.l.s4 842150450
          %v6321 = vunpack.c.0.s8 %v6320
          %v6322 = vperm.slane %v5452, %v6321
          %v6324 = vunpack.c.l.s4 1414812756
          %v6325 = vunpack.c.0.s8 %v6324
          %v6326 = vperm.slane %v5452, %v6325
          %v6328 = vunpack.c.l.s4 1987475062
          %v6329 = vunpack.c.0.s8 %v6328
          %v6330 = vperm.slane %v5452, %v6329
          %v6332 = vunpack.c.l.s4 269488144
          %v6333 = vunpack.c.0.s8 %v6332
          %v6334 = vperm.slane %v5457, %v6333
          %v6336 = vunpack.c.l.s4 842150450
          %v6337 = vunpack.c.0.s8 %v6336
          %v6338 = vperm.slane %v5457, %v6337
          %v6340 = vunpack.c.l.s4 1414812756
          %v6341 = vunpack.c.0.s8 %v6340
          %v6342 = vperm.slane %v5457, %v6341
          %v6344 = vunpack.c.l.s4 1987475062
          %v6345 = vunpack.c.0.s8 %v6344
          %v6346 = vperm.slane %v5457, %v6345
          %v6348 = vunpack.c.l.s4 269488144
          %v6349 = vunpack.c.0.s8 %v6348
          %v6350 = vperm.slane %v5462, %v6349
          %v6352 = vunpack.c.l.s4 842150450
          %v6353 = vunpack.c.0.s8 %v6352
          %v6354 = vperm.slane %v5462, %v6353
          %v6356 = vunpack.c.l.s4 1414812756
          %v6357 = vunpack.c.0.s8 %v6356
          %v6358 = vperm.slane %v5462, %v6357
          %v6360 = vunpack.c.l.s4 1987475062
          %v6361 = vunpack.c.0.s8 %v6360
          %v6362 = vperm.slane %v5462, %v6361
          %v6364 = vunpack.c.l.s4 269488144
          %v6365 = vunpack.c.0.s8 %v6364
          %v6366 = vperm.slane %v5467, %v6365
          %v6368 = vunpack.c.l.s4 842150450
          %v6369 = vunpack.c.0.s8 %v6368
          %v6370 = vperm.slane %v5467, %v6369
          %v6372 = vunpack.c.l.s4 1414812756
          %v6373 = vunpack.c.0.s8 %v6372
          %v6374 = vperm.slane %v5467, %v6373
          %v6376 = vunpack.c.l.s4 1987475062
          %v6377 = vunpack.c.0.s8 %v6376
          %v6378 = vperm.slane %v5467, %v6377
          %v6380 = vunpack.c.l.s4 269488144
          %v6381 = vunpack.c.0.s8 %v6380
          %v6382 = vperm.slane %v5472, %v6381
          %v6384 = vunpack.c.l.s4 842150450
          %v6385 = vunpack.c.0.s8 %v6384
          %v6386 = vperm.slane %v5472, %v6385
          %v6388 = vunpack.c.l.s4 1414812756
          %v6389 = vunpack.c.0.s8 %v6388
          %v6390 = vperm.slane %v5472, %v6389
          %v6392 = vunpack.c.l.s4 1987475062
          %v6393 = vunpack.c.0.s8 %v6392
          %v6394 = vperm.slane %v5472, %v6393
          %v6396 = vunpack.c.l.s4 269488144
          %v6397 = vunpack.c.0.s8 %v6396
          %v6398 = vperm.slane %v5477, %v6397
          %v6400 = vunpack.c.l.s4 842150450
          %v6401 = vunpack.c.0.s8 %v6400
          %v6402 = vperm.slane %v5477, %v6401
          %v6404 = vunpack.c.l.s4 1414812756
          %v6405 = vunpack.c.0.s8 %v6404
          %v6406 = vperm.slane %v5477, %v6405
          %v6408 = vunpack.c.l.s4 1987475062
          %v6409 = vunpack.c.0.s8 %v6408
          %v6410 = vperm.slane %v5477, %v6409
          %v6412 = vunpack.c.l.s4 269488144
          %v6413 = vunpack.c.0.s8 %v6412
          %v6414 = vperm.slane %v5482, %v6413
          %v6416 = vunpack.c.l.s4 842150450
          %v6417 = vunpack.c.0.s8 %v6416
          %v6418 = vperm.slane %v5482, %v6417
          %v6420 = vunpack.c.l.s4 1414812756
          %v6421 = vunpack.c.0.s8 %v6420
          %v6422 = vperm.slane %v5482, %v6421
          %v6424 = vunpack.c.l.s4 1987475062
          %v6425 = vunpack.c.0.s8 %v6424
          %v6426 = vperm.slane %v5482, %v6425
          %v6428 = vunpack.c.l.s4 269488144
          %v6429 = vunpack.c.0.s8 %v6428
          %v6430 = vperm.slane %v5487, %v6429
          %v6432 = vunpack.c.l.s4 842150450
          %v6433 = vunpack.c.0.s8 %v6432
          %v6434 = vperm.slane %v5487, %v6433
          %v6436 = vunpack.c.l.s4 1414812756
          %v6437 = vunpack.c.0.s8 %v6436
          %v6438 = vperm.slane %v5487, %v6437
          %v6440 = vunpack.c.l.s4 1987475062
          %v6441 = vunpack.c.0.s8 %v6440
          %v6442 = vperm.slane %v5487, %v6441
          %v6444 = vunpack.c.l.s4 269488144
          %v6445 = vunpack.c.0.s8 %v6444
          %v6446 = vperm.slane %v5492, %v6445
          %v6448 = vunpack.c.l.s4 842150450
          %v6449 = vunpack.c.0.s8 %v6448
          %v6450 = vperm.slane %v5492, %v6449
          %v6452 = vunpack.c.l.s4 1414812756
          %v6453 = vunpack.c.0.s8 %v6452
          %v6454 = vperm.slane %v5492, %v6453
          %v6456 = vunpack.c.l.s4 1987475062
          %v6457 = vunpack.c.0.s8 %v6456
          %v6458 = vperm.slane %v5492, %v6457
          %v6460 = vunpack.c.l.s4 269488144
          %v6461 = vunpack.c.0.s8 %v6460
          %v6462 = vperm.slane %v5497, %v6461
          %v6464 = vunpack.c.l.s4 842150450
          %v6465 = vunpack.c.0.s8 %v6464
          %v6466 = vperm.slane %v5497, %v6465
          %v6468 = vunpack.c.l.s4 1414812756
          %v6469 = vunpack.c.0.s8 %v6468
          %v6470 = vperm.slane %v5497, %v6469
          %v6472 = vunpack.c.l.s4 1987475062
          %v6473 = vunpack.c.0.s8 %v6472
          %v6474 = vperm.slane %v5497, %v6473
          %v6476 = vunpack.c.l.s4 269488144
          %v6477 = vunpack.c.0.s8 %v6476
          %v6478 = vperm.slane %v5502, %v6477
          %v6480 = vunpack.c.l.s4 842150450
          %v6481 = vunpack.c.0.s8 %v6480
          %v6482 = vperm.slane %v5502, %v6481
          %v6484 = vunpack.c.l.s4 1414812756
          %v6485 = vunpack.c.0.s8 %v6484
          %v6486 = vperm.slane %v5502, %v6485
          %v6488 = vunpack.c.l.s4 1987475062
          %v6489 = vunpack.c.0.s8 %v6488
          %v6490 = vperm.slane %v5502, %v6489
          %v6492 = vunpack.c.l.s4 269488144
          %v6493 = vunpack.c.0.s8 %v6492
          %v6494 = vperm.slane %v5507, %v6493
          %v6496 = vunpack.c.l.s4 842150450
          %v6497 = vunpack.c.0.s8 %v6496
          %v6498 = vperm.slane %v5507, %v6497
          %v6500 = vunpack.c.l.s4 1414812756
          %v6501 = vunpack.c.0.s8 %v6500
          %v6502 = vperm.slane %v5507, %v6501
          %v6504 = vunpack.c.l.s4 1987475062
          %v6505 = vunpack.c.0.s8 %v6504
          %v6506 = vperm.slane %v5507, %v6505
          %v6508 = vunpack.c.l.s4 269488144
          %v6509 = vunpack.c.0.s8 %v6508
          %v6510 = vperm.slane %v5512, %v6509
          %v6512 = vunpack.c.l.s4 842150450
          %v6513 = vunpack.c.0.s8 %v6512
          %v6514 = vperm.slane %v5512, %v6513
          %v6516 = vunpack.c.l.s4 1414812756
          %v6517 = vunpack.c.0.s8 %v6516
          %v6518 = vperm.slane %v5512, %v6517
          %v6520 = vunpack.c.l.s4 1987475062
          %v6521 = vunpack.c.0.s8 %v6520
          %v6522 = vperm.slane %v5512, %v6521
          %v6524 = vunpack.c.l.s4 269488144
          %v6525 = vunpack.c.0.s8 %v6524
          %v6526 = vperm.slane %v5517, %v6525
          %v6528 = vunpack.c.l.s4 842150450
          %v6529 = vunpack.c.0.s8 %v6528
          %v6530 = vperm.slane %v5517, %v6529
          %v6532 = vunpack.c.l.s4 1414812756
          %v6533 = vunpack.c.0.s8 %v6532
          %v6534 = vperm.slane %v5517, %v6533
          %v6536 = vunpack.c.l.s4 1987475062
          %v6537 = vunpack.c.0.s8 %v6536
          %v6538 = vperm.slane %v5517, %v6537
          %v6540 = vunpack.c.l.s4 269488144
          %v6541 = vunpack.c.0.s8 %v6540
          %v6542 = vperm.slane %v5522, %v6541
          %v6544 = vunpack.c.l.s4 842150450
          %v6545 = vunpack.c.0.s8 %v6544
          %v6546 = vperm.slane %v5522, %v6545
          %v6548 = vunpack.c.l.s4 1414812756
          %v6549 = vunpack.c.0.s8 %v6548
          %v6550 = vperm.slane %v5522, %v6549
          %v6552 = vunpack.c.l.s4 1987475062
          %v6553 = vunpack.c.0.s8 %v6552
          %v6554 = vperm.slane %v5522, %v6553
          %v6556 = vunpack.c.l.s4 269488144
          %v6557 = vunpack.c.0.s8 %v6556
          %v6558 = vperm.slane %v5527, %v6557
          %v6560 = vunpack.c.l.s4 842150450
          %v6561 = vunpack.c.0.s8 %v6560
          %v6562 = vperm.slane %v5527, %v6561
          %v6564 = vunpack.c.l.s4 1414812756
          %v6565 = vunpack.c.0.s8 %v6564
          %v6566 = vperm.slane %v5527, %v6565
          %v6568 = vunpack.c.l.s4 1987475062
          %v6569 = vunpack.c.0.s8 %v6568
          %v6570 = vperm.slane %v5527, %v6569
          %v6572 = vunpack.c.l.s4 269488144
          %v6573 = vunpack.c.0.s8 %v6572
          %v6574 = vperm.slane %v5532, %v6573
          %v6576 = vunpack.c.l.s4 842150450
          %v6577 = vunpack.c.0.s8 %v6576
          %v6578 = vperm.slane %v5532, %v6577
          %v6580 = vunpack.c.l.s4 1414812756
          %v6581 = vunpack.c.0.s8 %v6580
          %v6582 = vperm.slane %v5532, %v6581
          %v6584 = vunpack.c.l.s4 1987475062
          %v6585 = vunpack.c.0.s8 %v6584
          %v6586 = vperm.slane %v5532, %v6585
          %v6588 = vunpack.c.l.s4 269488144
          %v6589 = vunpack.c.0.s8 %v6588
          %v6590 = vperm.slane %v5537, %v6589
          %v6592 = vunpack.c.l.s4 842150450
          %v6593 = vunpack.c.0.s8 %v6592
          %v6594 = vperm.slane %v5537, %v6593
          %v6596 = vunpack.c.l.s4 1414812756
          %v6597 = vunpack.c.0.s8 %v6596
          %v6598 = vperm.slane %v5537, %v6597
          %v6600 = vunpack.c.l.s4 1987475062
          %v6601 = vunpack.c.0.s8 %v6600
          %v6602 = vperm.slane %v5537, %v6601
          %v6604 = vunpack.c.l.s4 269488144
          %v6605 = vunpack.c.0.s8 %v6604
          %v6606 = vperm.slane %v5542, %v6605
          %v6608 = vunpack.c.l.s4 842150450
          %v6609 = vunpack.c.0.s8 %v6608
          %v6610 = vperm.slane %v5542, %v6609
          %v6612 = vunpack.c.l.s4 1414812756
          %v6613 = vunpack.c.0.s8 %v6612
          %v6614 = vperm.slane %v5542, %v6613
          %v6616 = vunpack.c.l.s4 1987475062
          %v6617 = vunpack.c.0.s8 %v6616
          %v6618 = vperm.slane %v5542, %v6617
          %v6620 = vunpack.c.l.s4 269488144
          %v6621 = vunpack.c.0.s8 %v6620
          %v6622 = vperm.slane %v5547, %v6621
          %v6624 = vunpack.c.l.s4 842150450
          %v6625 = vunpack.c.0.s8 %v6624
          %v6626 = vperm.slane %v5547, %v6625
          %v6628 = vunpack.c.l.s4 1414812756
          %v6629 = vunpack.c.0.s8 %v6628
          %v6630 = vperm.slane %v5547, %v6629
          %v6632 = vunpack.c.l.s4 1987475062
          %v6633 = vunpack.c.0.s8 %v6632
          %v6634 = vperm.slane %v5547, %v6633
          %v6636 = vunpack.c.l.s4 269488144
          %v6637 = vunpack.c.0.s8 %v6636
          %v6638 = vperm.slane %v5552, %v6637
          %v6640 = vunpack.c.l.s4 842150450
          %v6641 = vunpack.c.0.s8 %v6640
          %v6642 = vperm.slane %v5552, %v6641
          %v6644 = vunpack.c.l.s4 1414812756
          %v6645 = vunpack.c.0.s8 %v6644
          %v6646 = vperm.slane %v5552, %v6645
          %v6648 = vunpack.c.l.s4 1987475062
          %v6649 = vunpack.c.0.s8 %v6648
          %v6650 = vperm.slane %v5552, %v6649
          %v6652 = vunpack.c.l.s4 269488144
          %v6653 = vunpack.c.0.s8 %v6652
          %v6654 = vperm.slane %v5557, %v6653
          %v6656 = vunpack.c.l.s4 842150450
          %v6657 = vunpack.c.0.s8 %v6656
          %v6658 = vperm.slane %v5557, %v6657
          %v6660 = vunpack.c.l.s4 1414812756
          %v6661 = vunpack.c.0.s8 %v6660
          %v6662 = vperm.slane %v5557, %v6661
          %v6664 = vunpack.c.l.s4 1987475062
          %v6665 = vunpack.c.0.s8 %v6664
          %v6666 = vperm.slane %v5557, %v6665
          %v6668 = vunpack.c.l.s4 269488144
          %v6669 = vunpack.c.0.s8 %v6668
          %v6670 = vperm.slane %v5562, %v6669
          %v6672 = vunpack.c.l.s4 842150450
          %v6673 = vunpack.c.0.s8 %v6672
          %v6674 = vperm.slane %v5562, %v6673
          %v6676 = vunpack.c.l.s4 1414812756
          %v6677 = vunpack.c.0.s8 %v6676
          %v6678 = vperm.slane %v5562, %v6677
          %v6680 = vunpack.c.l.s4 1987475062
          %v6681 = vunpack.c.0.s8 %v6680
          %v6682 = vperm.slane %v5562, %v6681
          %v6684 = vunpack.c.l.s4 269488144
          %v6685 = vunpack.c.0.s8 %v6684
          %v6686 = vperm.slane %v5567, %v6685
          %v6688 = vunpack.c.l.s4 842150450
          %v6689 = vunpack.c.0.s8 %v6688
          %v6690 = vperm.slane %v5567, %v6689
          %v6692 = vunpack.c.l.s4 1414812756
          %v6693 = vunpack.c.0.s8 %v6692
          %v6694 = vperm.slane %v5567, %v6693
          %v6696 = vunpack.c.l.s4 1987475062
          %v6697 = vunpack.c.0.s8 %v6696
          %v6698 = vperm.slane %v5567, %v6697
          %v6700 = vunpack.c.l.s4 269488144
          %v6701 = vunpack.c.0.s8 %v6700
          %v6702 = vperm.slane %v5572, %v6701
          %v6704 = vunpack.c.l.s4 842150450
          %v6705 = vunpack.c.0.s8 %v6704
          %v6706 = vperm.slane %v5572, %v6705
          %v6708 = vunpack.c.l.s4 1414812756
          %v6709 = vunpack.c.0.s8 %v6708
          %v6710 = vperm.slane %v5572, %v6709
          %v6712 = vunpack.c.l.s4 1987475062
          %v6713 = vunpack.c.0.s8 %v6712
          %v6714 = vperm.slane %v5572, %v6713
          %v6716 = vunpack.c.l.s4 269488144
          %v6717 = vunpack.c.0.s8 %v6716
          %v6718 = vperm.slane %v5577, %v6717
          %v6720 = vunpack.c.l.s4 842150450
          %v6721 = vunpack.c.0.s8 %v6720
          %v6722 = vperm.slane %v5577, %v6721
          %v6724 = vunpack.c.l.s4 1414812756
          %v6725 = vunpack.c.0.s8 %v6724
          %v6726 = vperm.slane %v5577, %v6725
          %v6728 = vunpack.c.l.s4 1987475062
          %v6729 = vunpack.c.0.s8 %v6728
          %v6730 = vperm.slane %v5577, %v6729
          %v6732 = vunpack.c.l.s4 269488144
          %v6733 = vunpack.c.0.s8 %v6732
          %v6734 = vperm.slane %v5582, %v6733
          %v6736 = vunpack.c.l.s4 842150450
          %v6737 = vunpack.c.0.s8 %v6736
          %v6738 = vperm.slane %v5582, %v6737
          %v6740 = vunpack.c.l.s4 1414812756
          %v6741 = vunpack.c.0.s8 %v6740
          %v6742 = vperm.slane %v5582, %v6741
          %v6744 = vunpack.c.l.s4 1987475062
          %v6745 = vunpack.c.0.s8 %v6744
          %v6746 = vperm.slane %v5582, %v6745
          %v6748 = vunpack.c.l.s4 269488144
          %v6749 = vunpack.c.0.s8 %v6748
          %v6750 = vperm.slane %v5587, %v6749
          %v6752 = vunpack.c.l.s4 842150450
          %v6753 = vunpack.c.0.s8 %v6752
          %v6754 = vperm.slane %v5587, %v6753
          %v6756 = vunpack.c.l.s4 1414812756
          %v6757 = vunpack.c.0.s8 %v6756
          %v6758 = vperm.slane %v5587, %v6757
          %v6760 = vunpack.c.l.s4 1987475062
          %v6761 = vunpack.c.0.s8 %v6760
          %v6762 = vperm.slane %v5587, %v6761
          %v6764 = vunpack.c.l.s4 269488144
          %v6765 = vunpack.c.0.s8 %v6764
          %v6766 = vperm.slane %v5592, %v6765
          %v6768 = vunpack.c.l.s4 842150450
          %v6769 = vunpack.c.0.s8 %v6768
          %v6770 = vperm.slane %v5592, %v6769
          %v6772 = vunpack.c.l.s4 1414812756
          %v6773 = vunpack.c.0.s8 %v6772
          %v6774 = vperm.slane %v5592, %v6773
          %v6776 = vunpack.c.l.s4 1987475062
          %v6777 = vunpack.c.0.s8 %v6776
          %v6778 = vperm.slane %v5592, %v6777
          %v6780 = vunpack.c.l.s4 269488144
          %v6781 = vunpack.c.0.s8 %v6780
          %v6782 = vperm.slane %v5597, %v6781
          %v6784 = vunpack.c.l.s4 842150450
          %v6785 = vunpack.c.0.s8 %v6784
          %v6786 = vperm.slane %v5597, %v6785
          %v6788 = vunpack.c.l.s4 1414812756
          %v6789 = vunpack.c.0.s8 %v6788
          %v6790 = vperm.slane %v5597, %v6789
          %v6792 = vunpack.c.l.s4 1987475062
          %v6793 = vunpack.c.0.s8 %v6792
          %v6794 = vperm.slane %v5597, %v6793
          %v6796 = vunpack.c.l.s4 269488144
          %v6797 = vunpack.c.0.s8 %v6796
          %v6798 = vperm.slane %v5602, %v6797
          %v6800 = vunpack.c.l.s4 842150450
          %v6801 = vunpack.c.0.s8 %v6800
          %v6802 = vperm.slane %v5602, %v6801
          %v6804 = vunpack.c.l.s4 1414812756
          %v6805 = vunpack.c.0.s8 %v6804
          %v6806 = vperm.slane %v5602, %v6805
          %v6808 = vunpack.c.l.s4 1987475062
          %v6809 = vunpack.c.0.s8 %v6808
          %v6810 = vperm.slane %v5602, %v6809
          %v6812 = vunpack.c.l.s4 269488144
          %v6813 = vunpack.c.0.s8 %v6812
          %v6814 = vperm.slane %v5607, %v6813
          %v6816 = vunpack.c.l.s4 842150450
          %v6817 = vunpack.c.0.s8 %v6816
          %v6818 = vperm.slane %v5607, %v6817
          %v6820 = vunpack.c.l.s4 1414812756
          %v6821 = vunpack.c.0.s8 %v6820
          %v6822 = vperm.slane %v5607, %v6821
          %v6824 = vunpack.c.l.s4 1987475062
          %v6825 = vunpack.c.0.s8 %v6824
          %v6826 = vperm.slane %v5607, %v6825
          %v6828 = vunpack.c.l.s4 269488144
          %v6829 = vunpack.c.0.s8 %v6828
          %v6830 = vperm.slane %v5612, %v6829
          %v6832 = vunpack.c.l.s4 842150450
          %v6833 = vunpack.c.0.s8 %v6832
          %v6834 = vperm.slane %v5612, %v6833
          %v6836 = vunpack.c.l.s4 1414812756
          %v6837 = vunpack.c.0.s8 %v6836
          %v6838 = vperm.slane %v5612, %v6837
          %v6840 = vunpack.c.l.s4 1987475062
          %v6841 = vunpack.c.0.s8 %v6840
          %v6842 = vperm.slane %v5612, %v6841
          %v6844 = vunpack.c.l.s4 269488144
          %v6845 = vunpack.c.0.s8 %v6844
          %v6846 = vperm.slane %v5617, %v6845
          %v6848 = vunpack.c.l.s4 842150450
          %v6849 = vunpack.c.0.s8 %v6848
          %v6850 = vperm.slane %v5617, %v6849
          %v6852 = vunpack.c.l.s4 1414812756
          %v6853 = vunpack.c.0.s8 %v6852
          %v6854 = vperm.slane %v5617, %v6853
          %v6856 = vunpack.c.l.s4 1987475062
          %v6857 = vunpack.c.0.s8 %v6856
          %v6858 = vperm.slane %v5617, %v6857
          %v6860 = vunpack.c.l.s4 269488144
          %v6861 = vunpack.c.0.s8 %v6860
          %v6862 = vperm.slane %v5622, %v6861
          %v6864 = vunpack.c.l.s4 842150450
          %v6865 = vunpack.c.0.s8 %v6864
          %v6866 = vperm.slane %v5622, %v6865
          %v6868 = vunpack.c.l.s4 1414812756
          %v6869 = vunpack.c.0.s8 %v6868
          %v6870 = vperm.slane %v5622, %v6869
          %v6872 = vunpack.c.l.s4 1987475062
          %v6873 = vunpack.c.0.s8 %v6872
          %v6874 = vperm.slane %v5622, %v6873
          %v6876 = vunpack.c.l.s4 269488144
          %v6877 = vunpack.c.0.s8 %v6876
          %v6878 = vperm.slane %v5627, %v6877
          %v6880 = vunpack.c.l.s4 842150450
          %v6881 = vunpack.c.0.s8 %v6880
          %v6882 = vperm.slane %v5627, %v6881
          %v6884 = vunpack.c.l.s4 1414812756
          %v6885 = vunpack.c.0.s8 %v6884
          %v6886 = vperm.slane %v5627, %v6885
          %v6888 = vunpack.c.l.s4 1987475062
          %v6889 = vunpack.c.0.s8 %v6888
          %v6890 = vperm.slane %v5627, %v6889
          %v6892 = vunpack.c.l.s4 269488144
          %v6893 = vunpack.c.0.s8 %v6892
          %v6894 = vperm.slane %v5632, %v6893
          %v6896 = vunpack.c.l.s4 842150450
          %v6897 = vunpack.c.0.s8 %v6896
          %v6898 = vperm.slane %v5632, %v6897
          %v6900 = vunpack.c.l.s4 1414812756
          %v6901 = vunpack.c.0.s8 %v6900
          %v6902 = vperm.slane %v5632, %v6901
          %v6904 = vunpack.c.l.s4 1987475062
          %v6905 = vunpack.c.0.s8 %v6904
          %v6906 = vperm.slane %v5632, %v6905
          %v6908 = vunpack.c.l.s4 269488144
          %v6909 = vunpack.c.0.s8 %v6908
          %v6910 = vperm.slane %v5637, %v6909
          %v6912 = vunpack.c.l.s4 842150450
          %v6913 = vunpack.c.0.s8 %v6912
          %v6914 = vperm.slane %v5637, %v6913
          %v6916 = vunpack.c.l.s4 1414812756
          %v6917 = vunpack.c.0.s8 %v6916
          %v6918 = vperm.slane %v5637, %v6917
          %v6920 = vunpack.c.l.s4 1987475062
          %v6921 = vunpack.c.0.s8 %v6920
          %v6922 = vperm.slane %v5637, %v6921
          %v6924 = vunpack.c.l.s4 269488144
          %v6925 = vunpack.c.0.s8 %v6924
          %v6926 = vperm.slane %v5642, %v6925
          %v6928 = vunpack.c.l.s4 842150450
          %v6929 = vunpack.c.0.s8 %v6928
          %v6930 = vperm.slane %v5642, %v6929
          %v6932 = vunpack.c.l.s4 1414812756
          %v6933 = vunpack.c.0.s8 %v6932
          %v6934 = vperm.slane %v5642, %v6933
          %v6936 = vunpack.c.l.s4 1987475062
          %v6937 = vunpack.c.0.s8 %v6936
          %v6938 = vperm.slane %v5642, %v6937
          %v6940 = vunpack.c.l.s4 269488144
          %v6941 = vunpack.c.0.s8 %v6940
          %v6942 = vperm.slane %v5647, %v6941
          %v6944 = vunpack.c.l.s4 842150450
          %v6945 = vunpack.c.0.s8 %v6944
          %v6946 = vperm.slane %v5647, %v6945
          %v6948 = vunpack.c.l.s4 1414812756
          %v6949 = vunpack.c.0.s8 %v6948
          %v6950 = vperm.slane %v5647, %v6949
          %v6952 = vunpack.c.l.s4 1987475062
          %v6953 = vunpack.c.0.s8 %v6952
          %v6954 = vperm.slane %v5647, %v6953
          %v6956 = vunpack.c.l.s4 269488144
          %v6957 = vunpack.c.0.s8 %v6956
          %v6958 = vperm.slane %v5652, %v6957
          %v6960 = vunpack.c.l.s4 842150450
          %v6961 = vunpack.c.0.s8 %v6960
          %v6962 = vperm.slane %v5652, %v6961
          %v6964 = vunpack.c.l.s4 1414812756
          %v6965 = vunpack.c.0.s8 %v6964
          %v6966 = vperm.slane %v5652, %v6965
          %v6968 = vunpack.c.l.s4 1987475062
          %v6969 = vunpack.c.0.s8 %v6968
          %v6970 = vperm.slane %v5652, %v6969
          %v6972 = vunpack.c.l.s4 269488144
          %v6973 = vunpack.c.0.s8 %v6972
          %v6974 = vperm.slane %v5657, %v6973
          %v6976 = vunpack.c.l.s4 842150450
          %v6977 = vunpack.c.0.s8 %v6976
          %v6978 = vperm.slane %v5657, %v6977
          %v6980 = vunpack.c.l.s4 1414812756
          %v6981 = vunpack.c.0.s8 %v6980
          %v6982 = vperm.slane %v5657, %v6981
          %v6984 = vunpack.c.l.s4 1987475062
          %v6985 = vunpack.c.0.s8 %v6984
          %v6986 = vperm.slane %v5657, %v6985
          %v6988 = vunpack.c.l.s4 269488144
          %v6989 = vunpack.c.0.s8 %v6988
          %v6990 = vperm.slane %v5662, %v6989
          %v6992 = vunpack.c.l.s4 842150450
          %v6993 = vunpack.c.0.s8 %v6992
          %v6994 = vperm.slane %v5662, %v6993
          %v6996 = vunpack.c.l.s4 1414812756
          %v6997 = vunpack.c.0.s8 %v6996
          %v6998 = vperm.slane %v5662, %v6997
          %v7000 = vunpack.c.l.s4 1987475062
          %v7001 = vunpack.c.0.s8 %v7000
          %v7002 = vperm.slane %v5662, %v7001
          %v7004 = vunpack.c.l.s4 269488144
          %v7005 = vunpack.c.0.s8 %v7004
          %v7006 = vperm.slane %v5667, %v7005
          %v7008 = vunpack.c.l.s4 842150450
          %v7009 = vunpack.c.0.s8 %v7008
          %v7010 = vperm.slane %v5667, %v7009
          %v7012 = vunpack.c.l.s4 1414812756
          %v7013 = vunpack.c.0.s8 %v7012
          %v7014 = vperm.slane %v5667, %v7013
          %v7016 = vunpack.c.l.s4 1987475062
          %v7017 = vunpack.c.0.s8 %v7016
          %v7018 = vperm.slane %v5667, %v7017
          %v7020 = vunpack.c.l.s4 269488144
          %v7021 = vunpack.c.0.s8 %v7020
          %v7022 = vperm.slane %v5672, %v7021
          %v7024 = vunpack.c.l.s4 842150450
          %v7025 = vunpack.c.0.s8 %v7024
          %v7026 = vperm.slane %v5672, %v7025
          %v7028 = vunpack.c.l.s4 1414812756
          %v7029 = vunpack.c.0.s8 %v7028
          %v7030 = vperm.slane %v5672, %v7029
          %v7032 = vunpack.c.l.s4 1987475062
          %v7033 = vunpack.c.0.s8 %v7032
          %v7034 = vperm.slane %v5672, %v7033
          %v7036 = vunpack.c.l.s4 269488144
          %v7037 = vunpack.c.0.s8 %v7036
          %v7038 = vperm.slane %v5677, %v7037
          %v7040 = vunpack.c.l.s4 842150450
          %v7041 = vunpack.c.0.s8 %v7040
          %v7042 = vperm.slane %v5677, %v7041
          %v7044 = vunpack.c.l.s4 1414812756
          %v7045 = vunpack.c.0.s8 %v7044
          %v7046 = vperm.slane %v5677, %v7045
          %v7048 = vunpack.c.l.s4 1987475062
          %v7049 = vunpack.c.0.s8 %v7048
          %v7050 = vperm.slane %v5677, %v7049
          %v7052 = vunpack.c.l.s4 269488144
          %v7053 = vunpack.c.0.s8 %v7052
          %v7054 = vperm.slane %v5682, %v7053
          %v7056 = vunpack.c.l.s4 842150450
          %v7057 = vunpack.c.0.s8 %v7056
          %v7058 = vperm.slane %v5682, %v7057
          %v7060 = vunpack.c.l.s4 1414812756
          %v7061 = vunpack.c.0.s8 %v7060
          %v7062 = vperm.slane %v5682, %v7061
          %v7064 = vunpack.c.l.s4 1987475062
          %v7065 = vunpack.c.0.s8 %v7064
          %v7066 = vperm.slane %v5682, %v7065
          %v7068 = vunpack.c.l.s4 269488144
          %v7069 = vunpack.c.0.s8 %v7068
          %v7070 = vperm.slane %v5687, %v7069
          %v7072 = vunpack.c.l.s4 842150450
          %v7073 = vunpack.c.0.s8 %v7072
          %v7074 = vperm.slane %v5687, %v7073
          %v7076 = vunpack.c.l.s4 1414812756
          %v7077 = vunpack.c.0.s8 %v7076
          %v7078 = vperm.slane %v5687, %v7077
          %v7080 = vunpack.c.l.s4 1987475062
          %v7081 = vunpack.c.0.s8 %v7080
          %v7082 = vperm.slane %v5687, %v7081
          %v7084 = vunpack.c.l.s4 269488144
          %v7085 = vunpack.c.0.s8 %v7084
          %v7086 = vperm.slane %v5692, %v7085
          %v7088 = vunpack.c.l.s4 842150450
          %v7089 = vunpack.c.0.s8 %v7088
          %v7090 = vperm.slane %v5692, %v7089
          %v7092 = vunpack.c.l.s4 1414812756
          %v7093 = vunpack.c.0.s8 %v7092
          %v7094 = vperm.slane %v5692, %v7093
          %v7096 = vunpack.c.l.s4 1987475062
          %v7097 = vunpack.c.0.s8 %v7096
          %v7098 = vperm.slane %v5692, %v7097
          %v7100 = vunpack.c.l.s4 269488144
          %v7101 = vunpack.c.0.s8 %v7100
          %v7102 = vperm.slane %v5697, %v7101
          %v7104 = vunpack.c.l.s4 842150450
          %v7105 = vunpack.c.0.s8 %v7104
          %v7106 = vperm.slane %v5697, %v7105
          %v7108 = vunpack.c.l.s4 1414812756
          %v7109 = vunpack.c.0.s8 %v7108
          %v7110 = vperm.slane %v5697, %v7109
          %v7112 = vunpack.c.l.s4 1987475062
          %v7113 = vunpack.c.0.s8 %v7112
          %v7114 = vperm.slane %v5697, %v7113
          %v7116 = vunpack.c.l.s4 269488144
          %v7117 = vunpack.c.0.s8 %v7116
          %v7118 = vperm.slane %v5702, %v7117
          %v7120 = vunpack.c.l.s4 842150450
          %v7121 = vunpack.c.0.s8 %v7120
          %v7122 = vperm.slane %v5702, %v7121
          %v7124 = vunpack.c.l.s4 1414812756
          %v7125 = vunpack.c.0.s8 %v7124
          %v7126 = vperm.slane %v5702, %v7125
          %v7128 = vunpack.c.l.s4 1987475062
          %v7129 = vunpack.c.0.s8 %v7128
          %v7130 = vperm.slane %v5702, %v7129
          %v7132 = vunpack.c.l.s4 269488144
          %v7133 = vunpack.c.0.s8 %v7132
          %v7134 = vperm.slane %v5707, %v7133
          %v7136 = vunpack.c.l.s4 842150450
          %v7137 = vunpack.c.0.s8 %v7136
          %v7138 = vperm.slane %v5707, %v7137
          %v7140 = vunpack.c.l.s4 1414812756
          %v7141 = vunpack.c.0.s8 %v7140
          %v7142 = vperm.slane %v5707, %v7141
          %v7144 = vunpack.c.l.s4 1987475062
          %v7145 = vunpack.c.0.s8 %v7144
          %v7146 = vperm.slane %v5707, %v7145
          %v7148 = vunpack.c.l.s4 269488144
          %v7149 = vunpack.c.0.s8 %v7148
          %v7150 = vperm.slane %v5712, %v7149
          %v7152 = vunpack.c.l.s4 842150450
          %v7153 = vunpack.c.0.s8 %v7152
          %v7154 = vperm.slane %v5712, %v7153
          %v7156 = vunpack.c.l.s4 1414812756
          %v7157 = vunpack.c.0.s8 %v7156
          %v7158 = vperm.slane %v5712, %v7157
          %v7160 = vunpack.c.l.s4 1987475062
          %v7161 = vunpack.c.0.s8 %v7160
          %v7162 = vperm.slane %v5712, %v7161
          %v7164 = vunpack.c.l.s4 269488144
          %v7165 = vunpack.c.0.s8 %v7164
          %v7166 = vperm.slane %v5717, %v7165
          %v7168 = vunpack.c.l.s4 842150450
          %v7169 = vunpack.c.0.s8 %v7168
          %v7170 = vperm.slane %v5717, %v7169
          %v7172 = vunpack.c.l.s4 1414812756
          %v7173 = vunpack.c.0.s8 %v7172
          %v7174 = vperm.slane %v5717, %v7173
          %v7176 = vunpack.c.l.s4 1987475062
          %v7177 = vunpack.c.0.s8 %v7176
          %v7178 = vperm.slane %v5717, %v7177
          %v7180 = vunpack.c.l.s4 269488144
          %v7181 = vunpack.c.0.s8 %v7180
          %v7182 = vperm.slane %v5722, %v7181
          %v7184 = vunpack.c.l.s4 842150450
          %v7185 = vunpack.c.0.s8 %v7184
          %v7186 = vperm.slane %v5722, %v7185
          %v7188 = vunpack.c.l.s4 1414812756
          %v7189 = vunpack.c.0.s8 %v7188
          %v7190 = vperm.slane %v5722, %v7189
          %v7192 = vunpack.c.l.s4 1987475062
          %v7193 = vunpack.c.0.s8 %v7192
          %v7194 = vperm.slane %v5722, %v7193
          %v7196 = vunpack.c.l.s4 269488144
          %v7197 = vunpack.c.0.s8 %v7196
          %v7198 = vperm.slane %v5727, %v7197
          %v7200 = vunpack.c.l.s4 842150450
          %v7201 = vunpack.c.0.s8 %v7200
          %v7202 = vperm.slane %v5727, %v7201
          %v7204 = vunpack.c.l.s4 1414812756
          %v7205 = vunpack.c.0.s8 %v7204
          %v7206 = vperm.slane %v5727, %v7205
          %v7208 = vunpack.c.l.s4 1987475062
          %v7209 = vunpack.c.0.s8 %v7208
          %v7210 = vperm.slane %v5727, %v7209
          %v7212 = vunpack.c.l.s4 269488144
          %v7213 = vunpack.c.0.s8 %v7212
          %v7214 = vperm.slane %v5732, %v7213
          %v7216 = vunpack.c.l.s4 842150450
          %v7217 = vunpack.c.0.s8 %v7216
          %v7218 = vperm.slane %v5732, %v7217
          %v7220 = vunpack.c.l.s4 1414812756
          %v7221 = vunpack.c.0.s8 %v7220
          %v7222 = vperm.slane %v5732, %v7221
          %v7224 = vunpack.c.l.s4 1987475062
          %v7225 = vunpack.c.0.s8 %v7224
          %v7226 = vperm.slane %v5732, %v7225
          %v7228 = vunpack.c.l.s4 269488144
          %v7229 = vunpack.c.0.s8 %v7228
          %v7230 = vperm.slane %v5737, %v7229
          %v7232 = vunpack.c.l.s4 842150450
          %v7233 = vunpack.c.0.s8 %v7232
          %v7234 = vperm.slane %v5737, %v7233
          %v7236 = vunpack.c.l.s4 1414812756
          %v7237 = vunpack.c.0.s8 %v7236
          %v7238 = vperm.slane %v5737, %v7237
          %v7240 = vunpack.c.l.s4 1987475062
          %v7241 = vunpack.c.0.s8 %v7240
          %v7242 = vperm.slane %v5737, %v7241
          %v7244 = vunpack.c.l.s4 269488144
          %v7245 = vunpack.c.0.s8 %v7244
          %v7246 = vperm.slane %v5742, %v7245
          %v7248 = vunpack.c.l.s4 842150450
          %v7249 = vunpack.c.0.s8 %v7248
          %v7250 = vperm.slane %v5742, %v7249
          %v7252 = vunpack.c.l.s4 1414812756
          %v7253 = vunpack.c.0.s8 %v7252
          %v7254 = vperm.slane %v5742, %v7253
          %v7256 = vunpack.c.l.s4 1987475062
          %v7257 = vunpack.c.0.s8 %v7256
          %v7258 = vperm.slane %v5742, %v7257
          %v7260 = vunpack.c.l.s4 269488144
          %v7261 = vunpack.c.0.s8 %v7260
          %v7262 = vperm.slane %v5747, %v7261
          %v7264 = vunpack.c.l.s4 842150450
          %v7265 = vunpack.c.0.s8 %v7264
          %v7266 = vperm.slane %v5747, %v7265
          %v7268 = vunpack.c.l.s4 1414812756
          %v7269 = vunpack.c.0.s8 %v7268
          %v7270 = vperm.slane %v5747, %v7269
          %v7272 = vunpack.c.l.s4 1987475062
          %v7273 = vunpack.c.0.s8 %v7272
          %v7274 = vperm.slane %v5747, %v7273
          %v7276 = vunpack.c.l.s4 269488144
          %v7277 = vunpack.c.0.s8 %v7276
          %v7278 = vperm.slane %v5752, %v7277
          %v7280 = vunpack.c.l.s4 842150450
          %v7281 = vunpack.c.0.s8 %v7280
          %v7282 = vperm.slane %v5752, %v7281
          %v7284 = vunpack.c.l.s4 1414812756
          %v7285 = vunpack.c.0.s8 %v7284
          %v7286 = vperm.slane %v5752, %v7285
          %v7288 = vunpack.c.l.s4 1987475062
          %v7289 = vunpack.c.0.s8 %v7288
          %v7290 = vperm.slane %v5752, %v7289
          %v7292 = vunpack.c.l.s4 269488144
          %v7293 = vunpack.c.0.s8 %v7292
          %v7294 = vperm.slane %v5757, %v7293
          %v7296 = vunpack.c.l.s4 842150450
          %v7297 = vunpack.c.0.s8 %v7296
          %v7298 = vperm.slane %v5757, %v7297
          %v7300 = vunpack.c.l.s4 1414812756
          %v7301 = vunpack.c.0.s8 %v7300
          %v7302 = vperm.slane %v5757, %v7301
          %v7304 = vunpack.c.l.s4 1987475062
          %v7305 = vunpack.c.0.s8 %v7304
          %v7306 = vperm.slane %v5757, %v7305
          %v7308 = vunpack.c.l.s4 269488144
          %v7309 = vunpack.c.0.s8 %v7308
          %v7310 = vperm.slane %v5762, %v7309
          %v7312 = vunpack.c.l.s4 842150450
          %v7313 = vunpack.c.0.s8 %v7312
          %v7314 = vperm.slane %v5762, %v7313
          %v7316 = vunpack.c.l.s4 1414812756
          %v7317 = vunpack.c.0.s8 %v7316
          %v7318 = vperm.slane %v5762, %v7317
          %v7320 = vunpack.c.l.s4 1987475062
          %v7321 = vunpack.c.0.s8 %v7320
          %v7322 = vperm.slane %v5762, %v7321
          %v7324 = vunpack.c.l.s4 269488144
          %v7325 = vunpack.c.0.s8 %v7324
          %v7326 = vperm.slane %v5767, %v7325
          %v7328 = vunpack.c.l.s4 842150450
          %v7329 = vunpack.c.0.s8 %v7328
          %v7330 = vperm.slane %v5767, %v7329
          %v7332 = vunpack.c.l.s4 1414812756
          %v7333 = vunpack.c.0.s8 %v7332
          %v7334 = vperm.slane %v5767, %v7333
          %v7336 = vunpack.c.l.s4 1987475062
          %v7337 = vunpack.c.0.s8 %v7336
          %v7338 = vperm.slane %v5767, %v7337
          %v7340 = vunpack.c.l.s4 269488144
          %v7341 = vunpack.c.0.s8 %v7340
          %v7342 = vperm.slane %v5772, %v7341
          %v7344 = vunpack.c.l.s4 842150450
          %v7345 = vunpack.c.0.s8 %v7344
          %v7346 = vperm.slane %v5772, %v7345
          %v7348 = vunpack.c.l.s4 1414812756
          %v7349 = vunpack.c.0.s8 %v7348
          %v7350 = vperm.slane %v5772, %v7349
          %v7352 = vunpack.c.l.s4 1987475062
          %v7353 = vunpack.c.0.s8 %v7352
          %v7354 = vperm.slane %v5772, %v7353
          %v7356 = vunpack.c.l.s4 269488144
          %v7357 = vunpack.c.0.s8 %v7356
          %v7358 = vperm.slane %v5777, %v7357
          %v7360 = vunpack.c.l.s4 842150450
          %v7361 = vunpack.c.0.s8 %v7360
          %v7362 = vperm.slane %v5777, %v7361
          %v7364 = vunpack.c.l.s4 1414812756
          %v7365 = vunpack.c.0.s8 %v7364
          %v7366 = vperm.slane %v5777, %v7365
          %v7368 = vunpack.c.l.s4 1987475062
          %v7369 = vunpack.c.0.s8 %v7368
          %v7370 = vperm.slane %v5777, %v7369
          %v7372 = vunpack.c.l.s4 269488144
          %v7373 = vunpack.c.0.s8 %v7372
          %v7374 = vperm.slane %v5782, %v7373
          %v7376 = vunpack.c.l.s4 842150450
          %v7377 = vunpack.c.0.s8 %v7376
          %v7378 = vperm.slane %v5782, %v7377
          %v7380 = vunpack.c.l.s4 1414812756
          %v7381 = vunpack.c.0.s8 %v7380
          %v7382 = vperm.slane %v5782, %v7381
          %v7384 = vunpack.c.l.s4 1987475062
          %v7385 = vunpack.c.0.s8 %v7384
          %v7386 = vperm.slane %v5782, %v7385
          %v7388 = vunpack.c.l.s4 269488144
          %v7389 = vunpack.c.0.s8 %v7388
          %v7390 = vperm.slane %v5787, %v7389
          %v7392 = vunpack.c.l.s4 842150450
          %v7393 = vunpack.c.0.s8 %v7392
          %v7394 = vperm.slane %v5787, %v7393
          %v7396 = vunpack.c.l.s4 1414812756
          %v7397 = vunpack.c.0.s8 %v7396
          %v7398 = vperm.slane %v5787, %v7397
          %v7400 = vunpack.c.l.s4 1987475062
          %v7401 = vunpack.c.0.s8 %v7400
          %v7402 = vperm.slane %v5787, %v7401
          %v7404 = vunpack.c.l.s4 269488144
          %v7405 = vunpack.c.0.s8 %v7404
          %v7406 = vperm.slane %v5792, %v7405
          %v7408 = vunpack.c.l.s4 842150450
          %v7409 = vunpack.c.0.s8 %v7408
          %v7410 = vperm.slane %v5792, %v7409
          %v7412 = vunpack.c.l.s4 1414812756
          %v7413 = vunpack.c.0.s8 %v7412
          %v7414 = vperm.slane %v5792, %v7413
          %v7416 = vunpack.c.l.s4 1987475062
          %v7417 = vunpack.c.0.s8 %v7416
          %v7418 = vperm.slane %v5792, %v7417
          %v7420 = vunpack.c.l.s4 269488144
          %v7421 = vunpack.c.0.s8 %v7420
          %v7422 = vperm.slane %v5797, %v7421
          %v7424 = vunpack.c.l.s4 842150450
          %v7425 = vunpack.c.0.s8 %v7424
          %v7426 = vperm.slane %v5797, %v7425
          %v7428 = vunpack.c.l.s4 1414812756
          %v7429 = vunpack.c.0.s8 %v7428
          %v7430 = vperm.slane %v5797, %v7429
          %v7432 = vunpack.c.l.s4 1987475062
          %v7433 = vunpack.c.0.s8 %v7432
          %v7434 = vperm.slane %v5797, %v7433
          %v7436 = vunpack.c.l.s4 269488144
          %v7437 = vunpack.c.0.s8 %v7436
          %v7438 = vperm.slane %v5802, %v7437
          %v7440 = vunpack.c.l.s4 842150450
          %v7441 = vunpack.c.0.s8 %v7440
          %v7442 = vperm.slane %v5802, %v7441
          %v7444 = vunpack.c.l.s4 1414812756
          %v7445 = vunpack.c.0.s8 %v7444
          %v7446 = vperm.slane %v5802, %v7445
          %v7448 = vunpack.c.l.s4 1987475062
          %v7449 = vunpack.c.0.s8 %v7448
          %v7450 = vperm.slane %v5802, %v7449
          %v7452 = vunpack.c.l.s4 269488144
          %v7453 = vunpack.c.0.s8 %v7452
          %v7454 = vperm.slane %v5807, %v7453
          %v7456 = vunpack.c.l.s4 842150450
          %v7457 = vunpack.c.0.s8 %v7456
          %v7458 = vperm.slane %v5807, %v7457
          %v7460 = vunpack.c.l.s4 1414812756
          %v7461 = vunpack.c.0.s8 %v7460
          %v7462 = vperm.slane %v5807, %v7461
          %v7464 = vunpack.c.l.s4 1987475062
          %v7465 = vunpack.c.0.s8 %v7464
          %v7466 = vperm.slane %v5807, %v7465
          %v7468 = vunpack.c.l.s4 269488144
          %v7469 = vunpack.c.0.s8 %v7468
          %v7470 = vperm.slane %v5812, %v7469
          %v7472 = vunpack.c.l.s4 842150450
          %v7473 = vunpack.c.0.s8 %v7472
          %v7474 = vperm.slane %v5812, %v7473
          %v7476 = vunpack.c.l.s4 1414812756
          %v7477 = vunpack.c.0.s8 %v7476
          %v7478 = vperm.slane %v5812, %v7477
          %v7480 = vunpack.c.l.s4 1987475062
          %v7481 = vunpack.c.0.s8 %v7480
          %v7482 = vperm.slane %v5812, %v7481
          %v7484 = vunpack.c.l.s4 269488144
          %v7485 = vunpack.c.0.s8 %v7484
          %v7486 = vperm.slane %v5817, %v7485
          %v7488 = vunpack.c.l.s4 842150450
          %v7489 = vunpack.c.0.s8 %v7488
          %v7490 = vperm.slane %v5817, %v7489
          %v7492 = vunpack.c.l.s4 1414812756
          %v7493 = vunpack.c.0.s8 %v7492
          %v7494 = vperm.slane %v5817, %v7493
          %v7496 = vunpack.c.l.s4 1987475062
          %v7497 = vunpack.c.0.s8 %v7496
          %v7498 = vperm.slane %v5817, %v7497
          %v7500 = vunpack.c.l.s4 269488144
          %v7501 = vunpack.c.0.s8 %v7500
          %v7502 = vperm.slane %v5822, %v7501
          %v7504 = vunpack.c.l.s4 842150450
          %v7505 = vunpack.c.0.s8 %v7504
          %v7506 = vperm.slane %v5822, %v7505
          %v7508 = vunpack.c.l.s4 1414812756
          %v7509 = vunpack.c.0.s8 %v7508
          %v7510 = vperm.slane %v5822, %v7509
          %v7512 = vunpack.c.l.s4 1987475062
          %v7513 = vunpack.c.0.s8 %v7512
          %v7514 = vperm.slane %v5822, %v7513
          %v7516 = vunpack.c.l.s4 269488144
          %v7517 = vunpack.c.0.s8 %v7516
          %v7518 = vperm.slane %v5827, %v7517
          %v7520 = vunpack.c.l.s4 842150450
          %v7521 = vunpack.c.0.s8 %v7520
          %v7522 = vperm.slane %v5827, %v7521
          %v7524 = vunpack.c.l.s4 1414812756
          %v7525 = vunpack.c.0.s8 %v7524
          %v7526 = vperm.slane %v5827, %v7525
          %v7528 = vunpack.c.l.s4 1987475062
          %v7529 = vunpack.c.0.s8 %v7528
          %v7530 = vperm.slane %v5827, %v7529
          %v7532 = vunpack.c.l.s4 269488144
          %v7533 = vunpack.c.0.s8 %v7532
          %v7534 = vperm.slane %v5832, %v7533
          %v7536 = vunpack.c.l.s4 842150450
          %v7537 = vunpack.c.0.s8 %v7536
          %v7538 = vperm.slane %v5832, %v7537
          %v7540 = vunpack.c.l.s4 1414812756
          %v7541 = vunpack.c.0.s8 %v7540
          %v7542 = vperm.slane %v5832, %v7541
          %v7544 = vunpack.c.l.s4 1987475062
          %v7545 = vunpack.c.0.s8 %v7544
          %v7546 = vperm.slane %v5832, %v7545
          %v7548 = vunpack.c.l.s4 269488144
          %v7549 = vunpack.c.0.s8 %v7548
          %v7550 = vperm.slane %v5837, %v7549
          %v7552 = vunpack.c.l.s4 842150450
          %v7553 = vunpack.c.0.s8 %v7552
          %v7554 = vperm.slane %v5837, %v7553
          %v7556 = vunpack.c.l.s4 1414812756
          %v7557 = vunpack.c.0.s8 %v7556
          %v7558 = vperm.slane %v5837, %v7557
          %v7560 = vunpack.c.l.s4 1987475062
          %v7561 = vunpack.c.0.s8 %v7560
          %v7562 = vperm.slane %v5837, %v7561
          %v7564 = vunpack.c.l.s4 269488144
          %v7565 = vunpack.c.0.s8 %v7564
          %v7566 = vperm.slane %v5842, %v7565
          %v7568 = vunpack.c.l.s4 842150450
          %v7569 = vunpack.c.0.s8 %v7568
          %v7570 = vperm.slane %v5842, %v7569
          %v7572 = vunpack.c.l.s4 1414812756
          %v7573 = vunpack.c.0.s8 %v7572
          %v7574 = vperm.slane %v5842, %v7573
          %v7576 = vunpack.c.l.s4 1987475062
          %v7577 = vunpack.c.0.s8 %v7576
          %v7578 = vperm.slane %v5842, %v7577
          %v7580 = vunpack.c.l.s4 269488144
          %v7581 = vunpack.c.0.s8 %v7580
          %v7582 = vperm.slane %v5847, %v7581
          %v7584 = vunpack.c.l.s4 842150450
          %v7585 = vunpack.c.0.s8 %v7584
          %v7586 = vperm.slane %v5847, %v7585
          %v7588 = vunpack.c.l.s4 1414812756
          %v7589 = vunpack.c.0.s8 %v7588
          %v7590 = vperm.slane %v5847, %v7589
          %v7592 = vunpack.c.l.s4 1987475062
          %v7593 = vunpack.c.0.s8 %v7592
          %v7594 = vperm.slane %v5847, %v7593
          %v7596 = vunpack.c.l.s4 269488144
          %v7597 = vunpack.c.0.s8 %v7596
          %v7598 = vperm.slane %v5852, %v7597
          %v7600 = vunpack.c.l.s4 842150450
          %v7601 = vunpack.c.0.s8 %v7600
          %v7602 = vperm.slane %v5852, %v7601
          %v7604 = vunpack.c.l.s4 1414812756
          %v7605 = vunpack.c.0.s8 %v7604
          %v7606 = vperm.slane %v5852, %v7605
          %v7608 = vunpack.c.l.s4 1987475062
          %v7609 = vunpack.c.0.s8 %v7608
          %v7610 = vperm.slane %v5852, %v7609
          %v7612 = vunpack.c.l.s4 269488144
          %v7613 = vunpack.c.0.s8 %v7612
          %v7614 = vperm.slane %v5857, %v7613
          %v7616 = vunpack.c.l.s4 842150450
          %v7617 = vunpack.c.0.s8 %v7616
          %v7618 = vperm.slane %v5857, %v7617
          %v7620 = vunpack.c.l.s4 1414812756
          %v7621 = vunpack.c.0.s8 %v7620
          %v7622 = vperm.slane %v5857, %v7621
          %v7624 = vunpack.c.l.s4 1987475062
          %v7625 = vunpack.c.0.s8 %v7624
          %v7626 = vperm.slane %v5857, %v7625
          %v7628 = vunpack.c.l.s4 269488144
          %v7629 = vunpack.c.0.s8 %v7628
          %v7630 = vperm.slane %v5862, %v7629
          %v7632 = vunpack.c.l.s4 842150450
          %v7633 = vunpack.c.0.s8 %v7632
          %v7634 = vperm.slane %v5862, %v7633
          %v7636 = vunpack.c.l.s4 1414812756
          %v7637 = vunpack.c.0.s8 %v7636
          %v7638 = vperm.slane %v5862, %v7637
          %v7640 = vunpack.c.l.s4 1987475062
          %v7641 = vunpack.c.0.s8 %v7640
          %v7642 = vperm.slane %v5862, %v7641
          %v7644 = vunpack.c.l.s4 269488144
          %v7645 = vunpack.c.0.s8 %v7644
          %v7646 = vperm.slane %v5867, %v7645
          %v7648 = vunpack.c.l.s4 842150450
          %v7649 = vunpack.c.0.s8 %v7648
          %v7650 = vperm.slane %v5867, %v7649
          %v7652 = vunpack.c.l.s4 1414812756
          %v7653 = vunpack.c.0.s8 %v7652
          %v7654 = vperm.slane %v5867, %v7653
          %v7656 = vunpack.c.l.s4 1987475062
          %v7657 = vunpack.c.0.s8 %v7656
          %v7658 = vperm.slane %v5867, %v7657
          %v7660 = vunpack.c.l.s4 269488144
          %v7661 = vunpack.c.0.s8 %v7660
          %v7662 = vperm.slane %v5872, %v7661
          %v7664 = vunpack.c.l.s4 842150450
          %v7665 = vunpack.c.0.s8 %v7664
          %v7666 = vperm.slane %v5872, %v7665
          %v7668 = vunpack.c.l.s4 1414812756
          %v7669 = vunpack.c.0.s8 %v7668
          %v7670 = vperm.slane %v5872, %v7669
          %v7672 = vunpack.c.l.s4 1987475062
          %v7673 = vunpack.c.0.s8 %v7672
          %v7674 = vperm.slane %v5872, %v7673
          %v7676 = vunpack.c.l.s4 269488144
          %v7677 = vunpack.c.0.s8 %v7676
          %v7678 = vperm.slane %v5877, %v7677
          %v7680 = vunpack.c.l.s4 842150450
          %v7681 = vunpack.c.0.s8 %v7680
          %v7682 = vperm.slane %v5877, %v7681
          %v7684 = vunpack.c.l.s4 1414812756
          %v7685 = vunpack.c.0.s8 %v7684
          %v7686 = vperm.slane %v5877, %v7685
          %v7688 = vunpack.c.l.s4 1987475062
          %v7689 = vunpack.c.0.s8 %v7688
          %v7690 = vperm.slane %v5877, %v7689
          %v7692 = vunpack.c.l.s4 269488144
          %v7693 = vunpack.c.0.s8 %v7692
          %v7694 = vperm.slane %v5882, %v7693
          %v7696 = vunpack.c.l.s4 842150450
          %v7697 = vunpack.c.0.s8 %v7696
          %v7698 = vperm.slane %v5882, %v7697
          %v7700 = vunpack.c.l.s4 1414812756
          %v7701 = vunpack.c.0.s8 %v7700
          %v7702 = vperm.slane %v5882, %v7701
          %v7704 = vunpack.c.l.s4 1987475062
          %v7705 = vunpack.c.0.s8 %v7704
          %v7706 = vperm.slane %v5882, %v7705
          %v7708 = vunpack.c.l.s4 269488144
          %v7709 = vunpack.c.0.s8 %v7708
          %v7710 = vperm.slane %v5887, %v7709
          %v7712 = vunpack.c.l.s4 842150450
          %v7713 = vunpack.c.0.s8 %v7712
          %v7714 = vperm.slane %v5887, %v7713
          %v7716 = vunpack.c.l.s4 1414812756
          %v7717 = vunpack.c.0.s8 %v7716
          %v7718 = vperm.slane %v5887, %v7717
          %v7720 = vunpack.c.l.s4 1987475062
          %v7721 = vunpack.c.0.s8 %v7720
          %v7722 = vperm.slane %v5887, %v7721
          %v7724 = vunpack.c.l.s4 269488144
          %v7725 = vunpack.c.0.s8 %v7724
          %v7726 = vperm.slane %v5892, %v7725
          %v7728 = vunpack.c.l.s4 842150450
          %v7729 = vunpack.c.0.s8 %v7728
          %v7730 = vperm.slane %v5892, %v7729
          %v7732 = vunpack.c.l.s4 1414812756
          %v7733 = vunpack.c.0.s8 %v7732
          %v7734 = vperm.slane %v5892, %v7733
          %v7736 = vunpack.c.l.s4 1987475062
          %v7737 = vunpack.c.0.s8 %v7736
          %v7738 = vperm.slane %v5892, %v7737
          %v7740 = vunpack.c.l.s4 269488144
          %v7741 = vunpack.c.0.s8 %v7740
          %v7742 = vperm.slane %v5897, %v7741
          %v7744 = vunpack.c.l.s4 842150450
          %v7745 = vunpack.c.0.s8 %v7744
          %v7746 = vperm.slane %v5897, %v7745
          %v7748 = vunpack.c.l.s4 1414812756
          %v7749 = vunpack.c.0.s8 %v7748
          %v7750 = vperm.slane %v5897, %v7749
          %v7752 = vunpack.c.l.s4 1987475062
          %v7753 = vunpack.c.0.s8 %v7752
          %v7754 = vperm.slane %v5897, %v7753
          %v7756 = vunpack.c.l.s4 269488144
          %v7757 = vunpack.c.0.s8 %v7756
          %v7758 = vperm.slane %v5902, %v7757
          %v7760 = vunpack.c.l.s4 842150450
          %v7761 = vunpack.c.0.s8 %v7760
          %v7762 = vperm.slane %v5902, %v7761
          %v7764 = vunpack.c.l.s4 1414812756
          %v7765 = vunpack.c.0.s8 %v7764
          %v7766 = vperm.slane %v5902, %v7765
          %v7768 = vunpack.c.l.s4 1987475062
          %v7769 = vunpack.c.0.s8 %v7768
          %v7770 = vperm.slane %v5902, %v7769
          %v7772 = vunpack.c.l.s4 269488144
          %v7773 = vunpack.c.0.s8 %v7772
          %v7774 = vperm.slane %v5907, %v7773
          %v7776 = vunpack.c.l.s4 842150450
          %v7777 = vunpack.c.0.s8 %v7776
          %v7778 = vperm.slane %v5907, %v7777
          %v7780 = vunpack.c.l.s4 1414812756
          %v7781 = vunpack.c.0.s8 %v7780
          %v7782 = vperm.slane %v5907, %v7781
          %v7784 = vunpack.c.l.s4 1987475062
          %v7785 = vunpack.c.0.s8 %v7784
          %v7786 = vperm.slane %v5907, %v7785
          %v7788 = vunpack.c.l.s4 269488144
          %v7789 = vunpack.c.0.s8 %v7788
          %v7790 = vperm.slane %v5912, %v7789
          %v7792 = vunpack.c.l.s4 842150450
          %v7793 = vunpack.c.0.s8 %v7792
          %v7794 = vperm.slane %v5912, %v7793
          %v7796 = vunpack.c.l.s4 1414812756
          %v7797 = vunpack.c.0.s8 %v7796
          %v7798 = vperm.slane %v5912, %v7797
          %v7800 = vunpack.c.l.s4 1987475062
          %v7801 = vunpack.c.0.s8 %v7800
          %v7802 = vperm.slane %v5912, %v7801
          %v7804 = vunpack.c.l.s4 269488144
          %v7805 = vunpack.c.0.s8 %v7804
          %v7806 = vperm.slane %v5917, %v7805
          %v7808 = vunpack.c.l.s4 842150450
          %v7809 = vunpack.c.0.s8 %v7808
          %v7810 = vperm.slane %v5917, %v7809
          %v7812 = vunpack.c.l.s4 1414812756
          %v7813 = vunpack.c.0.s8 %v7812
          %v7814 = vperm.slane %v5917, %v7813
          %v7816 = vunpack.c.l.s4 1987475062
          %v7817 = vunpack.c.0.s8 %v7816
          %v7818 = vperm.slane %v5917, %v7817
          %v7820 = vunpack.c.l.s4 269488144
          %v7821 = vunpack.c.0.s8 %v7820
          %v7822 = vperm.slane %v5922, %v7821
          %v7824 = vunpack.c.l.s4 842150450
          %v7825 = vunpack.c.0.s8 %v7824
          %v7826 = vperm.slane %v5922, %v7825
          %v7828 = vunpack.c.l.s4 1414812756
          %v7829 = vunpack.c.0.s8 %v7828
          %v7830 = vperm.slane %v5922, %v7829
          %v7832 = vunpack.c.l.s4 1987475062
          %v7833 = vunpack.c.0.s8 %v7832
          %v7834 = vperm.slane %v5922, %v7833
          %v7836 = vunpack.c.l.s4 269488144
          %v7837 = vunpack.c.0.s8 %v7836
          %v7838 = vperm.slane %v5927, %v7837
          %v7840 = vunpack.c.l.s4 842150450
          %v7841 = vunpack.c.0.s8 %v7840
          %v7842 = vperm.slane %v5927, %v7841
          %v7844 = vunpack.c.l.s4 1414812756
          %v7845 = vunpack.c.0.s8 %v7844
          %v7846 = vperm.slane %v5927, %v7845
          %v7848 = vunpack.c.l.s4 1987475062
          %v7849 = vunpack.c.0.s8 %v7848
          %v7850 = vperm.slane %v5927, %v7849
          %v7852 = vunpack.c.l.s4 269488144
          %v7853 = vunpack.c.0.s8 %v7852
          %v7854 = vperm.slane %v5932, %v7853
          %v7856 = vunpack.c.l.s4 842150450
          %v7857 = vunpack.c.0.s8 %v7856
          %v7858 = vperm.slane %v5932, %v7857
          %v7860 = vunpack.c.l.s4 1414812756
          %v7861 = vunpack.c.0.s8 %v7860
          %v7862 = vperm.slane %v5932, %v7861
          %v7864 = vunpack.c.l.s4 1987475062
          %v7865 = vunpack.c.0.s8 %v7864
          %v7866 = vperm.slane %v5932, %v7865
          %v7868 = vunpack.c.l.s4 269488144
          %v7869 = vunpack.c.0.s8 %v7868
          %v7870 = vperm.slane %v5937, %v7869
          %v7872 = vunpack.c.l.s4 842150450
          %v7873 = vunpack.c.0.s8 %v7872
          %v7874 = vperm.slane %v5937, %v7873
          %v7876 = vunpack.c.l.s4 1414812756
          %v7877 = vunpack.c.0.s8 %v7876
          %v7878 = vperm.slane %v5937, %v7877
          %v7880 = vunpack.c.l.s4 1987475062
          %v7881 = vunpack.c.0.s8 %v7880
          %v7882 = vperm.slane %v5937, %v7881
          %v7884 = vunpack.c.l.s4 269488144
          %v7885 = vunpack.c.0.s8 %v7884
          %v7886 = vperm.slane %v5942, %v7885
          %v7888 = vunpack.c.l.s4 842150450
          %v7889 = vunpack.c.0.s8 %v7888
          %v7890 = vperm.slane %v5942, %v7889
          %v7892 = vunpack.c.l.s4 1414812756
          %v7893 = vunpack.c.0.s8 %v7892
          %v7894 = vperm.slane %v5942, %v7893
          %v7896 = vunpack.c.l.s4 1987475062
          %v7897 = vunpack.c.0.s8 %v7896
          %v7898 = vperm.slane %v5942, %v7897
          %v7900 = vunpack.c.l.s4 269488144
          %v7901 = vunpack.c.0.s8 %v7900
          %v7902 = vperm.slane %v5947, %v7901
          %v7904 = vunpack.c.l.s4 842150450
          %v7905 = vunpack.c.0.s8 %v7904
          %v7906 = vperm.slane %v5947, %v7905
          %v7908 = vunpack.c.l.s4 1414812756
          %v7909 = vunpack.c.0.s8 %v7908
          %v7910 = vperm.slane %v5947, %v7909
          %v7912 = vunpack.c.l.s4 1987475062
          %v7913 = vunpack.c.0.s8 %v7912
          %v7914 = vperm.slane %v5947, %v7913
          %v7916 = vunpack.c.l.s4 269488144
          %v7917 = vunpack.c.0.s8 %v7916
          %v7918 = vperm.slane %v5952, %v7917
          %v7920 = vunpack.c.l.s4 842150450
          %v7921 = vunpack.c.0.s8 %v7920
          %v7922 = vperm.slane %v5952, %v7921
          %v7924 = vunpack.c.l.s4 1414812756
          %v7925 = vunpack.c.0.s8 %v7924
          %v7926 = vperm.slane %v5952, %v7925
          %v7928 = vunpack.c.l.s4 1987475062
          %v7929 = vunpack.c.0.s8 %v7928
          %v7930 = vperm.slane %v5952, %v7929
          %v7932 = vunpack.c.l.s4 269488144
          %v7933 = vunpack.c.0.s8 %v7932
          %v7934 = vperm.slane %v5957, %v7933
          %v7936 = vunpack.c.l.s4 842150450
          %v7937 = vunpack.c.0.s8 %v7936
          %v7938 = vperm.slane %v5957, %v7937
          %v7940 = vunpack.c.l.s4 1414812756
          %v7941 = vunpack.c.0.s8 %v7940
          %v7942 = vperm.slane %v5957, %v7941
          %v7944 = vunpack.c.l.s4 1987475062
          %v7945 = vunpack.c.0.s8 %v7944
          %v7946 = vperm.slane %v5957, %v7945
          %v7948 = vunpack.c.l.s4 269488144
          %v7949 = vunpack.c.0.s8 %v7948
          %v7950 = vperm.slane %v5962, %v7949
          %v7952 = vunpack.c.l.s4 842150450
          %v7953 = vunpack.c.0.s8 %v7952
          %v7954 = vperm.slane %v5962, %v7953
          %v7956 = vunpack.c.l.s4 1414812756
          %v7957 = vunpack.c.0.s8 %v7956
          %v7958 = vperm.slane %v5962, %v7957
          %v7960 = vunpack.c.l.s4 1987475062
          %v7961 = vunpack.c.0.s8 %v7960
          %v7962 = vperm.slane %v5962, %v7961
          %v7964 = vunpack.c.l.s4 269488144
          %v7965 = vunpack.c.0.s8 %v7964
          %v7966 = vperm.slane %v5967, %v7965
          %v7968 = vunpack.c.l.s4 842150450
          %v7969 = vunpack.c.0.s8 %v7968
          %v7970 = vperm.slane %v5967, %v7969
          %v7972 = vunpack.c.l.s4 1414812756
          %v7973 = vunpack.c.0.s8 %v7972
          %v7974 = vperm.slane %v5967, %v7973
          %v7976 = vunpack.c.l.s4 1987475062
          %v7977 = vunpack.c.0.s8 %v7976
          %v7978 = vperm.slane %v5967, %v7977
          %v7980 = vunpack.c.l.s4 269488144
          %v7981 = vunpack.c.0.s8 %v7980
          %v7982 = vperm.slane %v5972, %v7981
          %v7984 = vunpack.c.l.s4 842150450
          %v7985 = vunpack.c.0.s8 %v7984
          %v7986 = vperm.slane %v5972, %v7985
          %v7988 = vunpack.c.l.s4 1414812756
          %v7989 = vunpack.c.0.s8 %v7988
          %v7990 = vperm.slane %v5972, %v7989
          %v7992 = vunpack.c.l.s4 1987475062
          %v7993 = vunpack.c.0.s8 %v7992
          %v7994 = vperm.slane %v5972, %v7993
          %v7996 = vunpack.c.l.s4 269488144
          %v7997 = vunpack.c.0.s8 %v7996
          %v7998 = vperm.slane %v5977, %v7997
          %v8000 = vunpack.c.l.s4 842150450
          %v8001 = vunpack.c.0.s8 %v8000
          %v8002 = vperm.slane %v5977, %v8001
          %v8004 = vunpack.c.l.s4 1414812756
          %v8005 = vunpack.c.0.s8 %v8004
          %v8006 = vperm.slane %v5977, %v8005
          %v8008 = vunpack.c.l.s4 1987475062
          %v8009 = vunpack.c.0.s8 %v8008
          %v8010 = vperm.slane %v5977, %v8009
          %v8012 = vunpack.c.l.s4 269488144
          %v8013 = vunpack.c.0.s8 %v8012
          %v8014 = vperm.slane %v5982, %v8013
          %v8016 = vunpack.c.l.s4 842150450
          %v8017 = vunpack.c.0.s8 %v8016
          %v8018 = vperm.slane %v5982, %v8017
          %v8020 = vunpack.c.l.s4 1414812756
          %v8021 = vunpack.c.0.s8 %v8020
          %v8022 = vperm.slane %v5982, %v8021
          %v8024 = vunpack.c.l.s4 1987475062
          %v8025 = vunpack.c.0.s8 %v8024
          %v8026 = vperm.slane %v5982, %v8025
          %v8028 = vunpack.c.l.s4 269488144
          %v8029 = vunpack.c.0.s8 %v8028
          %v8030 = vperm.slane %v5987, %v8029
          %v8032 = vunpack.c.l.s4 842150450
          %v8033 = vunpack.c.0.s8 %v8032
          %v8034 = vperm.slane %v5987, %v8033
          %v8036 = vunpack.c.l.s4 1414812756
          %v8037 = vunpack.c.0.s8 %v8036
          %v8038 = vperm.slane %v5987, %v8037
          %v8040 = vunpack.c.l.s4 1987475062
          %v8041 = vunpack.c.0.s8 %v8040
          %v8042 = vperm.slane %v5987, %v8041
          %v8044 = vunpack.c.l.s4 269488144
          %v8045 = vunpack.c.0.s8 %v8044
          %v8046 = vperm.slane %v5992, %v8045
          %v8048 = vunpack.c.l.s4 842150450
          %v8049 = vunpack.c.0.s8 %v8048
          %v8050 = vperm.slane %v5992, %v8049
          %v8052 = vunpack.c.l.s4 1414812756
          %v8053 = vunpack.c.0.s8 %v8052
          %v8054 = vperm.slane %v5992, %v8053
          %v8056 = vunpack.c.l.s4 1987475062
          %v8057 = vunpack.c.0.s8 %v8056
          %v8058 = vperm.slane %v5992, %v8057
          %v8060 = vunpack.c.l.s4 269488144
          %v8061 = vunpack.c.0.s8 %v8060
          %v8062 = vperm.slane %v5997, %v8061
          %v8064 = vunpack.c.l.s4 842150450
          %v8065 = vunpack.c.0.s8 %v8064
          %v8066 = vperm.slane %v5997, %v8065
          %v8068 = vunpack.c.l.s4 1414812756
          %v8069 = vunpack.c.0.s8 %v8068
          %v8070 = vperm.slane %v5997, %v8069
          %v8072 = vunpack.c.l.s4 1987475062
          %v8073 = vunpack.c.0.s8 %v8072
          %v8074 = vperm.slane %v5997, %v8073
          %v8076 = vunpack.c.l.s4 269488144
          %v8077 = vunpack.c.0.s8 %v8076
          %v8078 = vperm.slane %v6002, %v8077
          %v8080 = vunpack.c.l.s4 842150450
          %v8081 = vunpack.c.0.s8 %v8080
          %v8082 = vperm.slane %v6002, %v8081
          %v8084 = vunpack.c.l.s4 1414812756
          %v8085 = vunpack.c.0.s8 %v8084
          %v8086 = vperm.slane %v6002, %v8085
          %v8088 = vunpack.c.l.s4 1987475062
          %v8089 = vunpack.c.0.s8 %v8088
          %v8090 = vperm.slane %v6002, %v8089
          %v8092 = vunpack.c.l.s4 269488144
          %v8093 = vunpack.c.0.s8 %v8092
          %v8094 = vperm.slane %v6007, %v8093
          %v8096 = vunpack.c.l.s4 842150450
          %v8097 = vunpack.c.0.s8 %v8096
          %v8098 = vperm.slane %v6007, %v8097
          %v8100 = vunpack.c.l.s4 1414812756
          %v8101 = vunpack.c.0.s8 %v8100
          %v8102 = vperm.slane %v6007, %v8101
          %v8104 = vunpack.c.l.s4 1987475062
          %v8105 = vunpack.c.0.s8 %v8104
          %v8106 = vperm.slane %v6007, %v8105
          %v8108 = vunpack.c.l.s4 269488144
          %v8109 = vunpack.c.0.s8 %v8108
          %v8110 = vperm.slane %v6012, %v8109
          %v8112 = vunpack.c.l.s4 842150450
          %v8113 = vunpack.c.0.s8 %v8112
          %v8114 = vperm.slane %v6012, %v8113
          %v8116 = vunpack.c.l.s4 1414812756
          %v8117 = vunpack.c.0.s8 %v8116
          %v8118 = vperm.slane %v6012, %v8117
          %v8120 = vunpack.c.l.s4 1987475062
          %v8121 = vunpack.c.0.s8 %v8120
          %v8122 = vperm.slane %v6012, %v8121
          %v8124 = vunpack.c.l.s4 269488144
          %v8125 = vunpack.c.0.s8 %v8124
          %v8126 = vperm.slane %v6017, %v8125
          %v8128 = vunpack.c.l.s4 842150450
          %v8129 = vunpack.c.0.s8 %v8128
          %v8130 = vperm.slane %v6017, %v8129
          %v8132 = vunpack.c.l.s4 1414812756
          %v8133 = vunpack.c.0.s8 %v8132
          %v8134 = vperm.slane %v6017, %v8133
          %v8136 = vunpack.c.l.s4 1987475062
          %v8137 = vunpack.c.0.s8 %v8136
          %v8138 = vperm.slane %v6017, %v8137
          %v8140 = vunpack.c.l.s4 269488144
          %v8141 = vunpack.c.0.s8 %v8140
          %v8142 = vperm.slane %v6022, %v8141
          %v8144 = vunpack.c.l.s4 842150450
          %v8145 = vunpack.c.0.s8 %v8144
          %v8146 = vperm.slane %v6022, %v8145
          %v8148 = vunpack.c.l.s4 1414812756
          %v8149 = vunpack.c.0.s8 %v8148
          %v8150 = vperm.slane %v6022, %v8149
          %v8152 = vunpack.c.l.s4 1987475062
          %v8153 = vunpack.c.0.s8 %v8152
          %v8154 = vperm.slane %v6022, %v8153
          %v8156 = vunpack.c.l.s4 269488144
          %v8157 = vunpack.c.0.s8 %v8156
          %v8158 = vperm.slane %v6027, %v8157
          %v8160 = vunpack.c.l.s4 842150450
          %v8161 = vunpack.c.0.s8 %v8160
          %v8162 = vperm.slane %v6027, %v8161
          %v8164 = vunpack.c.l.s4 1414812756
          %v8165 = vunpack.c.0.s8 %v8164
          %v8166 = vperm.slane %v6027, %v8165
          %v8168 = vunpack.c.l.s4 1987475062
          %v8169 = vunpack.c.0.s8 %v8168
          %v8170 = vperm.slane %v6027, %v8169
          %v8172 = vunpack.c.l.s4 269488144
          %v8173 = vunpack.c.0.s8 %v8172
          %v8174 = vperm.slane %v6032, %v8173
          %v8176 = vunpack.c.l.s4 842150450
          %v8177 = vunpack.c.0.s8 %v8176
          %v8178 = vperm.slane %v6032, %v8177
          %v8180 = vunpack.c.l.s4 1414812756
          %v8181 = vunpack.c.0.s8 %v8180
          %v8182 = vperm.slane %v6032, %v8181
          %v8184 = vunpack.c.l.s4 1987475062
          %v8185 = vunpack.c.0.s8 %v8184
          %v8186 = vperm.slane %v6032, %v8185
          %v8188 = vunpack.c.l.s4 269488144
          %v8189 = vunpack.c.0.s8 %v8188
          %v8190 = vperm.slane %v6037, %v8189
          %v8192 = vunpack.c.l.s4 842150450
          %v8193 = vunpack.c.0.s8 %v8192
          %v8194 = vperm.slane %v6037, %v8193
          %v8196 = vunpack.c.l.s4 1414812756
          %v8197 = vunpack.c.0.s8 %v8196
          %v8198 = vperm.slane %v6037, %v8197
          %v8200 = vunpack.c.l.s4 1987475062
          %v8201 = vunpack.c.0.s8 %v8200
          %v8202 = vperm.slane %v6037, %v8201
          %v8204 = vunpack.c.l.s4 269488144
          %v8205 = vunpack.c.0.s8 %v8204
          %v8206 = vperm.slane %v6042, %v8205
          %v8208 = vunpack.c.l.s4 842150450
          %v8209 = vunpack.c.0.s8 %v8208
          %v8210 = vperm.slane %v6042, %v8209
          %v8212 = vunpack.c.l.s4 1414812756
          %v8213 = vunpack.c.0.s8 %v8212
          %v8214 = vperm.slane %v6042, %v8213
          %v8216 = vunpack.c.l.s4 1987475062
          %v8217 = vunpack.c.0.s8 %v8216
          %v8218 = vperm.slane %v6042, %v8217
          %8219 = vst [vmem:[#allocation1] ss:$4 sm:$0xff] %v6174
          %s8220 = scalar_lea.vmem [#allocation1], 1
          %8221 = vst [vmem:[%s8220] ss:$4 sm:$0xff] %v6178
          %s8222 = scalar_lea.vmem [#allocation1], 2
          %8223 = vst [vmem:[%s8222] ss:$4 sm:$0xff] %v6182
          %s8224 = scalar_lea.vmem [#allocation1], 3
          %8225 = vst [vmem:[%s8224] ss:$4 sm:$0xff] %v6186
          %s8226 = scalar_lea.vmem [#allocation1], 32
          %8227 = vst [vmem:[%s8226] ss:$4 sm:$0xff] %v6190
          %s8228 = scalar_lea.vmem [#allocation1], 33
          %8229 = vst [vmem:[%s8228] ss:$4 sm:$0xff] %v6194
          %s8230 = scalar_lea.vmem [#allocation1], 34
          %8231 = vst [vmem:[%s8230] ss:$4 sm:$0xff] %v6198
          %s8232 = scalar_lea.vmem [#allocation1], 35
          %8233 = vst [vmem:[%s8232] ss:$4 sm:$0xff] %v6202
          %v8234 = vld.sshfl [vmem:[#allocation1] sm:$0xff pattern:$0x73625140]
          %v8235 = vld.sshfl [vmem:[#allocation1 + $0x20] sm:$0xff pattern:$0x73625140]
          %8236 = vst [vmem:[#allocation1] ss:$4 sm:$0xff] %v6206
          %8237 = vst [vmem:[%s8220] ss:$4 sm:$0xff] %v6210
          %8238 = vst [vmem:[%s8222] ss:$4 sm:$0xff] %v6214
          %8239 = vst [vmem:[%s8224] ss:$4 sm:$0xff] %v6218
          %8240 = vst [vmem:[%s8226] ss:$4 sm:$0xff] %v6222
          %8241 = vst [vmem:[%s8228] ss:$4 sm:$0xff] %v6226
          %8242 = vst [vmem:[%s8230] ss:$4 sm:$0xff] %v6230
          %8243 = vst [vmem:[%s8232] ss:$4 sm:$0xff] %v6234
          %v8244 = vld.sshfl [vmem:[#allocation1] sm:$0xff pattern:$0x73625140]
          %v8245 = vld.sshfl [vmem:[#allocation1 + $0x20] sm:$0xff pattern:$0x73625140]
          %8246 = vst [vmem:[#allocation1] ss:$4 sm:$0xff] %v6238
          %8247 = vst [vmem:[%s8220] ss:$4 sm:$0xff] %v6242
          %8248 = vst [vmem:[%s8222] ss:$4 sm:$0xff] %v6246
          %8249 = vst [vmem:[%s8224] ss:$4 sm:$0xff] %v6250
          %8250 = vst [vmem:[%s8226] ss:$4 sm:$0xff] %v6254
          %8251 = vst [vmem:[%s8228] ss:$4 sm:$0xff] %v6258
          %8252 = vst [vmem:[%s8230] ss:$4 sm:$0xff] %v6262
          %8253 = vst [vmem:[%s8232] ss:$4 sm:$0xff] %v6266
          %v8254 = vld.sshfl [vmem:[#allocation1] sm:$0xff pattern:$0x73625140]
          %v8255 = vld.sshfl [vmem:[#allocation1 + $0x20] sm:$0xff pattern:$0x73625140]
          %8256 = vst [vmem:[#allocation1] ss:$4 sm:$0xff] %v6270
          %8257 = vst [vmem:[%s8220] ss:$4 sm:$0xff] %v6274
          %8258 = vst [vmem:[%s8222] ss:$4 sm:$0xff] %v6278
          %8259 = vst [vmem:[%s8224] ss:$4 sm:$0xff] %v6282
          %8260 = vst [vmem:[%s8226] ss:$4 sm:$0xff] %v6286
          %8261 = vst [vmem:[%s8228] ss:$4 sm:$0xff] %v6290
          %8262 = vst [vmem:[%s8230] ss:$4 sm:$0xff] %v6294
          %8263 = vst [vmem:[%s8232] ss:$4 sm:$0xff] %v6298
          %v8264 = vld.sshfl [vmem:[#allocation1] sm:$0xff pattern:$0x73625140]
          %v8265 = vld.sshfl [vmem:[#allocation1 + $0x20] sm:$0xff pattern:$0x73625140]
          %8266 = vst [vmem:[#allocation1] ss:$4 sm:$0xff] %v6302
          %8267 = vst [vmem:[%s8220] ss:$4 sm:$0xff] %v6306
          %8268 = vst [vmem:[%s8222] ss:$4 sm:$0xff] %v6310
          %8269 = vst [vmem:[%s8224] ss:$4 sm:$0xff] %v6314
          %8270 = vst [vmem:[%s8226] ss:$4 sm:$0xff] %v6318
          %8271 = vst [vmem:[%s8228] ss:$4 sm:$0xff] %v6322
          %8272 = vst [vmem:[%s8230] ss:$4 sm:$0xff] %v6326
          %8273 = vst [vmem:[%s8232] ss:$4 sm:$0xff] %v6330
          %v8274 = vld.sshfl [vmem:[#allocation1] sm:$0xff pattern:$0x73625140]
          %v8275 = vld.sshfl [vmem:[#allocation1 + $0x20] sm:$0xff pattern:$0x73625140]
          %8276 = vst [vmem:[#allocation1] ss:$4 sm:$0xff] %v6334
          %8277 = vst [vmem:[%s8220] ss:$4 sm:$0xff] %v6338
          %8278 = vst [vmem:[%s8222] ss:$4 sm:$0xff] %v6342
          %8279 = vst [vmem:[%s8224] ss:$4 sm:$0xff] %v6346
          %8280 = vst [vmem:[%s8226] ss:$4 sm:$0xff] %v6350
          %8281 = vst [vmem:[%s8228] ss:$4 sm:$0xff] %v6354
          %8282 = vst [vmem:[%s8230] ss:$4 sm:$0xff] %v6358
          %8283 = vst [vmem:[%s8232] ss:$4 sm:$0xff] %v6362
          %v8284 = vld.sshfl [vmem:[#allocation1] sm:$0xff pattern:$0x73625140]
          %v8285 = vld.sshfl [vmem:[#allocation1 + $0x20] sm:$0xff pattern:$0x73625140]
          %8286 = vst [vmem:[#allocation1] ss:$4 sm:$0xff] %v6366
          %8287 = vst [vmem:[%s8220] ss:$4 sm:$0xff] %v6370
          %8288 = vst [vmem:[%s8222] ss:$4 sm:$0xff] %v6374
          %8289 = vst [vmem:[%s8224] ss:$4 sm:$0xff] %v6378
          %8290 = vst [vmem:[%s8226] ss:$4 sm:$0xff] %v6382
          %8291 = vst [vmem:[%s8228] ss:$4 sm:$0xff] %v6386
          %8292 = vst [vmem:[%s8230] ss:$4 sm:$0xff] %v6390
          %8293 = vst [vmem:[%s8232] ss:$4 sm:$0xff] %v6394
          %v8294 = vld.sshfl [vmem:[#allocation1] sm:$0xff pattern:$0x73625140]
          %v8295 = vld.sshfl [vmem:[#allocation1 + $0x20] sm:$0xff pattern:$0x73625140]
          %8296 = vst [vmem:[#allocation1] ss:$4 sm:$0xff] %v6398
          %8297 = vst [vmem:[%s8220] ss:$4 sm:$0xff] %v6402
          %8298 = vst [vmem:[%s8222] ss:$4 sm:$0xff] %v6406
          %8299 = vst [vmem:[%s8224] ss:$4 sm:$0xff] %v6410
          %8300 = vst [vmem:[%s8226] ss:$4 sm:$0xff] %v6414
          %8301 = vst [vmem:[%s8228] ss:$4 sm:$0xff] %v6418
          %8302 = vst [vmem:[%s8230] ss:$4 sm:$0xff] %v6422
          %8303 = vst [vmem:[%s8232] ss:$4 sm:$0xff] %v6426
          %v8304 = vld.sshfl [vmem:[#allocation1] sm:$0xff pattern:$0x73625140]
          %v8305 = vld.sshfl [vmem:[#allocation1 + $0x20] sm:$0xff pattern:$0x73625140]
          %8306 = vst [vmem:[#allocation1] ss:$4 sm:$0xff] %v6430
          %8307 = vst [vmem:[%s8220] ss:$4 sm:$0xff] %v6434
          %8308 = vst [vmem:[%s8222] ss:$4 sm:$0xff] %v6438
          %8309 = vst [vmem:[%s8224] ss:$4 sm:$0xff] %v6442
          %8310 = vst [vmem:[%s8226] ss:$4 sm:$0xff] %v6446
          %8311 = vst [vmem:[%s8228] ss:$4 sm:$0xff] %v6450
          %8312 = vst [vmem:[%s8230] ss:$4 sm:$0xff] %v6454
          %8313 = vst [vmem:[%s8232] ss:$4 sm:$0xff] %v6458
          %v8314 = vld.sshfl [vmem:[#allocation1] sm:$0xff pattern:$0x73625140]
          %v8315 = vld.sshfl [vmem:[#allocation1 + $0x20] sm:$0xff pattern:$0x73625140]
          %8316 = vst [vmem:[#allocation1] ss:$4 sm:$0xff] %v6462
          %8317 = vst [vmem:[%s8220] ss:$4 sm:$0xff] %v6466
          %8318 = vst [vmem:[%s8222] ss:$4 sm:$0xff] %v6470
          %8319 = vst [vmem:[%s8224] ss:$4 sm:$0xff] %v6474
          %8320 = vst [vmem:[%s8226] ss:$4 sm:$0xff] %v6478
          %8321 = vst [vmem:[%s8228] ss:$4 sm:$0xff] %v6482
          %8322 = vst [vmem:[%s8230] ss:$4 sm:$0xff] %v6486
          %8323 = vst [vmem:[%s8232] ss:$4 sm:$0xff] %v6490
          %v8324 = vld.sshfl [vmem:[#allocation1] sm:$0xff pattern:$0x73625140]
          %v8325 = vld.sshfl [vmem:[#allocation1 + $0x20] sm:$0xff pattern:$0x73625140]
          %8326 = vst [vmem:[#allocation1] ss:$4 sm:$0xff] %v6494
          %8327 = vst [vmem:[%s8220] ss:$4 sm:$0xff] %v6498
          %8328 = vst [vmem:[%s8222] ss:$4 sm:$0xff] %v6502
          %8329 = vst [vmem:[%s8224] ss:$4 sm:$0xff] %v6506
          %8330 = vst [vmem:[%s8226] ss:$4 sm:$0xff] %v6510
          %8331 = vst [vmem:[%s8228] ss:$4 sm:$0xff] %v6514
          %8332 = vst [vmem:[%s8230] ss:$4 sm:$0xff] %v6518
          %8333 = vst [vmem:[%s8232] ss:$4 sm:$0xff] %v6522
          %v8334 = vld.sshfl [vmem:[#allocation1] sm:$0xff pattern:$0x73625140]
          %v8335 = vld.sshfl [vmem:[#allocation1 + $0x20] sm:$0xff pattern:$0x73625140]
          %8336 = vst [vmem:[#allocation1] ss:$4 sm:$0xff] %v6526
          %8337 = vst [vmem:[%s8220] ss:$4 sm:$0xff] %v6530
          %8338 = vst [vmem:[%s8222] ss:$4 sm:$0xff] %v6534
          %8339 = vst [vmem:[%s8224] ss:$4 sm:$0xff] %v6538
          %8340 = vst [vmem:[%s8226] ss:$4 sm:$0xff] %v6542
          %8341 = vst [vmem:[%s8228] ss:$4 sm:$0xff] %v6546
          %8342 = vst [vmem:[%s8230] ss:$4 sm:$0xff] %v6550
          %8343 = vst [vmem:[%s8232] ss:$4 sm:$0xff] %v6554
          %v8344 = vld.sshfl [vmem:[#allocation1] sm:$0xff pattern:$0x73625140]
          %v8345 = vld.sshfl [vmem:[#allocation1 + $0x20] sm:$0xff pattern:$0x73625140]
          %8346 = vst [vmem:[#allocation1] ss:$4 sm:$0xff] %v6558
          %8347 = vst [vmem:[%s8220] ss:$4 sm:$0xff] %v6562
          %8348 = vst [vmem:[%s8222] ss:$4 sm:$0xff] %v6566
          %8349 = vst [vmem:[%s8224] ss:$4 sm:$0xff] %v6570
          %8350 = vst [vmem:[%s8226] ss:$4 sm:$0xff] %v6574
          %8351 = vst [vmem:[%s8228] ss:$4 sm:$0xff] %v6578
          %8352 = vst [vmem:[%s8230] ss:$4 sm:$0xff] %v6582
          %8353 = vst [vmem:[%s8232] ss:$4 sm:$0xff] %v6586
          %v8354 = vld.sshfl [vmem:[#allocation1] sm:$0xff pattern:$0x73625140]
          %v8355 = vld.sshfl [vmem:[#allocation1 + $0x20] sm:$0xff pattern:$0x73625140]
          %8356 = vst [vmem:[#allocation1] ss:$4 sm:$0xff] %v6590
          %8357 = vst [vmem:[%s8220] ss:$4 sm:$0xff] %v6594
          %8358 = vst [vmem:[%s8222] ss:$4 sm:$0xff] %v6598
          %8359 = vst [vmem:[%s8224] ss:$4 sm:$0xff] %v6602
          %8360 = vst [vmem:[%s8226] ss:$4 sm:$0xff] %v6606
          %8361 = vst [vmem:[%s8228] ss:$4 sm:$0xff] %v6610
          %8362 = vst [vmem:[%s8230] ss:$4 sm:$0xff] %v6614
          %8363 = vst [vmem:[%s8232] ss:$4 sm:$0xff] %v6618
          %v8364 = vld.sshfl [vmem:[#allocation1] sm:$0xff pattern:$0x73625140]
          %v8365 = vld.sshfl [vmem:[#allocation1 + $0x20] sm:$0xff pattern:$0x73625140]
          %8366 = vst [vmem:[#allocation1] ss:$4 sm:$0xff] %v6622
          %8367 = vst [vmem:[%s8220] ss:$4 sm:$0xff] %v6626
          %8368 = vst [vmem:[%s8222] ss:$4 sm:$0xff] %v6630
          %8369 = vst [vmem:[%s8224] ss:$4 sm:$0xff] %v6634
          %8370 = vst [vmem:[%s8226] ss:$4 sm:$0xff] %v6638
          %8371 = vst [vmem:[%s8228] ss:$4 sm:$0xff] %v6642
          %8372 = vst [vmem:[%s8230] ss:$4 sm:$0xff] %v6646
          %8373 = vst [vmem:[%s8232] ss:$4 sm:$0xff] %v6650
          %v8374 = vld.sshfl [vmem:[#allocation1] sm:$0xff pattern:$0x73625140]
          %v8375 = vld.sshfl [vmem:[#allocation1 + $0x20] sm:$0xff pattern:$0x73625140]
          %8376 = vst [vmem:[#allocation1] ss:$4 sm:$0xff] %v6654
          %8377 = vst [vmem:[%s8220] ss:$4 sm:$0xff] %v6658
          %8378 = vst [vmem:[%s8222] ss:$4 sm:$0xff] %v6662
          %8379 = vst [vmem:[%s8224] ss:$4 sm:$0xff] %v6666
          %8380 = vst [vmem:[%s8226] ss:$4 sm:$0xff] %v6670
          %8381 = vst [vmem:[%s8228] ss:$4 sm:$0xff] %v6674
          %8382 = vst [vmem:[%s8230] ss:$4 sm:$0xff] %v6678
          %8383 = vst [vmem:[%s8232] ss:$4 sm:$0xff] %v6682
          %v8384 = vld.sshfl [vmem:[#allocation1] sm:$0xff pattern:$0x73625140]
          %v8385 = vld.sshfl [vmem:[#allocation1 + $0x20] sm:$0xff pattern:$0x73625140]
          %8386 = vst [vmem:[#allocation1] ss:$4 sm:$0xff] %v6686
          %8387 = vst [vmem:[%s8220] ss:$4 sm:$0xff] %v6690
          %8388 = vst [vmem:[%s8222] ss:$4 sm:$0xff] %v6694
          %8389 = vst [vmem:[%s8224] ss:$4 sm:$0xff] %v6698
          %8390 = vst [vmem:[%s8226] ss:$4 sm:$0xff] %v6702
          %8391 = vst [vmem:[%s8228] ss:$4 sm:$0xff] %v6706
          %8392 = vst [vmem:[%s8230] ss:$4 sm:$0xff] %v6710
          %8393 = vst [vmem:[%s8232] ss:$4 sm:$0xff] %v6714
          %v8394 = vld.sshfl [vmem:[#allocation1] sm:$0xff pattern:$0x73625140]
          %v8395 = vld.sshfl [vmem:[#allocation1 + $0x20] sm:$0xff pattern:$0x73625140]
          %8396 = vst [vmem:[#allocation1] ss:$4 sm:$0xff] %v6718
          %8397 = vst [vmem:[%s8220] ss:$4 sm:$0xff] %v6722
          %8398 = vst [vmem:[%s8222] ss:$4 sm:$0xff] %v6726
          %8399 = vst [vmem:[%s8224] ss:$4 sm:$0xff] %v6730
          %8400 = vst [vmem:[%s8226] ss:$4 sm:$0xff] %v6734
          %8401 = vst [vmem:[%s8228] ss:$4 sm:$0xff] %v6738
          %8402 = vst [vmem:[%s8230] ss:$4 sm:$0xff] %v6742
          %8403 = vst [vmem:[%s8232] ss:$4 sm:$0xff] %v6746
          %v8404 = vld.sshfl [vmem:[#allocation1] sm:$0xff pattern:$0x73625140]
          %v8405 = vld.sshfl [vmem:[#allocation1 + $0x20] sm:$0xff pattern:$0x73625140]
          %8406 = vst [vmem:[#allocation1] ss:$4 sm:$0xff] %v6750
          %8407 = vst [vmem:[%s8220] ss:$4 sm:$0xff] %v6754
          %8408 = vst [vmem:[%s8222] ss:$4 sm:$0xff] %v6758
          %8409 = vst [vmem:[%s8224] ss:$4 sm:$0xff] %v6762
          %8410 = vst [vmem:[%s8226] ss:$4 sm:$0xff] %v6766
          %8411 = vst [vmem:[%s8228] ss:$4 sm:$0xff] %v6770
          %8412 = vst [vmem:[%s8230] ss:$4 sm:$0xff] %v6774
          %8413 = vst [vmem:[%s8232] ss:$4 sm:$0xff] %v6778
          %v8414 = vld.sshfl [vmem:[#allocation1] sm:$0xff pattern:$0x73625140]
          %v8415 = vld.sshfl [vmem:[#allocation1 + $0x20] sm:$0xff pattern:$0x73625140]
          %8416 = vst [vmem:[#allocation1] ss:$4 sm:$0xff] %v6782
          %8417 = vst [vmem:[%s8220] ss:$4 sm:$0xff] %v6786
          %8418 = vst [vmem:[%s8222] ss:$4 sm:$0xff] %v6790
          %8419 = vst [vmem:[%s8224] ss:$4 sm:$0xff] %v6794
          %8420 = vst [vmem:[%s8226] ss:$4 sm:$0xff] %v6798
          %8421 = vst [vmem:[%s8228] ss:$4 sm:$0xff] %v6802
          %8422 = vst [vmem:[%s8230] ss:$4 sm:$0xff] %v6806
          %8423 = vst [vmem:[%s8232] ss:$4 sm:$0xff] %v6810
          %v8424 = vld.sshfl [vmem:[#allocation1] sm:$0xff pattern:$0x73625140]
          %v8425 = vld.sshfl [vmem:[#allocation1 + $0x20] sm:$0xff pattern:$0x73625140]
          %8426 = vst [vmem:[#allocation1] ss:$4 sm:$0xff] %v6814
          %8427 = vst [vmem:[%s8220] ss:$4 sm:$0xff] %v6818
          %8428 = vst [vmem:[%s8222] ss:$4 sm:$0xff] %v6822
          %8429 = vst [vmem:[%s8224] ss:$4 sm:$0xff] %v6826
          %8430 = vst [vmem:[%s8226] ss:$4 sm:$0xff] %v6830
          %8431 = vst [vmem:[%s8228] ss:$4 sm:$0xff] %v6834
          %8432 = vst [vmem:[%s8230] ss:$4 sm:$0xff] %v6838
          %8433 = vst [vmem:[%s8232] ss:$4 sm:$0xff] %v6842
          %v8434 = vld.sshfl [vmem:[#allocation1] sm:$0xff pattern:$0x73625140]
          %v8435 = vld.sshfl [vmem:[#allocation1 + $0x20] sm:$0xff pattern:$0x73625140]
          %8436 = vst [vmem:[#allocation1] ss:$4 sm:$0xff] %v6846
          %8437 = vst [vmem:[%s8220] ss:$4 sm:$0xff] %v6850
          %8438 = vst [vmem:[%s8222] ss:$4 sm:$0xff] %v6854
          %8439 = vst [vmem:[%s8224] ss:$4 sm:$0xff] %v6858
          %8440 = vst [vmem:[%s8226] ss:$4 sm:$0xff] %v6862
          %8441 = vst [vmem:[%s8228] ss:$4 sm:$0xff] %v6866
          %8442 = vst [vmem:[%s8230] ss:$4 sm:$0xff] %v6870
          %8443 = vst [vmem:[%s8232] ss:$4 sm:$0xff] %v6874
          %v8444 = vld.sshfl [vmem:[#allocation1] sm:$0xff pattern:$0x73625140]
          %v8445 = vld.sshfl [vmem:[#allocation1 + $0x20] sm:$0xff pattern:$0x73625140]
          %8446 = vst [vmem:[#allocation1] ss:$4 sm:$0xff] %v6878
          %8447 = vst [vmem:[%s8220] ss:$4 sm:$0xff] %v6882
          %8448 = vst [vmem:[%s8222] ss:$4 sm:$0xff] %v6886
          %8449 = vst [vmem:[%s8224] ss:$4 sm:$0xff] %v6890
          %8450 = vst [vmem:[%s8226] ss:$4 sm:$0xff] %v6894
          %8451 = vst [vmem:[%s8228] ss:$4 sm:$0xff] %v6898
          %8452 = vst [vmem:[%s8230] ss:$4 sm:$0xff] %v6902
          %8453 = vst [vmem:[%s8232] ss:$4 sm:$0xff] %v6906
          %v8454 = vld.sshfl [vmem:[#allocation1] sm:$0xff pattern:$0x73625140]
          %v8455 = vld.sshfl [vmem:[#allocation1 + $0x20] sm:$0xff pattern:$0x73625140]
          %8456 = vst [vmem:[#allocation1] ss:$4 sm:$0xff] %v6910
          %8457 = vst [vmem:[%s8220] ss:$4 sm:$0xff] %v6914
          %8458 = vst [vmem:[%s8222] ss:$4 sm:$0xff] %v6918
          %8459 = vst [vmem:[%s8224] ss:$4 sm:$0xff] %v6922
          %8460 = vst [vmem:[%s8226] ss:$4 sm:$0xff] %v6926
          %8461 = vst [vmem:[%s8228] ss:$4 sm:$0xff] %v6930
          %8462 = vst [vmem:[%s8230] ss:$4 sm:$0xff] %v6934
          %8463 = vst [vmem:[%s8232] ss:$4 sm:$0xff] %v6938
          %v8464 = vld.sshfl [vmem:[#allocation1] sm:$0xff pattern:$0x73625140]
          %v8465 = vld.sshfl [vmem:[#allocation1 + $0x20] sm:$0xff pattern:$0x73625140]
          %8466 = vst [vmem:[#allocation1] ss:$4 sm:$0xff] %v6942
          %8467 = vst [vmem:[%s8220] ss:$4 sm:$0xff] %v6946
          %8468 = vst [vmem:[%s8222] ss:$4 sm:$0xff] %v6950
          %8469 = vst [vmem:[%s8224] ss:$4 sm:$0xff] %v6954
          %8470 = vst [vmem:[%s8226] ss:$4 sm:$0xff] %v6958
          %8471 = vst [vmem:[%s8228] ss:$4 sm:$0xff] %v6962
          %8472 = vst [vmem:[%s8230] ss:$4 sm:$0xff] %v6966
          %8473 = vst [vmem:[%s8232] ss:$4 sm:$0xff] %v6970
          %v8474 = vld.sshfl [vmem:[#allocation1] sm:$0xff pattern:$0x73625140]
          %v8475 = vld.sshfl [vmem:[#allocation1 + $0x20] sm:$0xff pattern:$0x73625140]
          %8476 = vst [vmem:[#allocation1] ss:$4 sm:$0xff] %v6974
          %8477 = vst [vmem:[%s8220] ss:$4 sm:$0xff] %v6978
          %8478 = vst [vmem:[%s8222] ss:$4 sm:$0xff] %v6982
          %8479 = vst [vmem:[%s8224] ss:$4 sm:$0xff] %v6986
          %8480 = vst [vmem:[%s8226] ss:$4 sm:$0xff] %v6990
          %8481 = vst [vmem:[%s8228] ss:$4 sm:$0xff] %v6994
          %8482 = vst [vmem:[%s8230] ss:$4 sm:$0xff] %v6998
          %8483 = vst [vmem:[%s8232] ss:$4 sm:$0xff] %v7002
          %v8484 = vld.sshfl [vmem:[#allocation1] sm:$0xff pattern:$0x73625140]
          %v8485 = vld.sshfl [vmem:[#allocation1 + $0x20] sm:$0xff pattern:$0x73625140]
          %8486 = vst [vmem:[#allocation1] ss:$4 sm:$0xff] %v7006
          %8487 = vst [vmem:[%s8220] ss:$4 sm:$0xff] %v7010
          %8488 = vst [vmem:[%s8222] ss:$4 sm:$0xff] %v7014
          %8489 = vst [vmem:[%s8224] ss:$4 sm:$0xff] %v7018
          %8490 = vst [vmem:[%s8226] ss:$4 sm:$0xff] %v7022
          %8491 = vst [vmem:[%s8228] ss:$4 sm:$0xff] %v7026
          %8492 = vst [vmem:[%s8230] ss:$4 sm:$0xff] %v7030
          %8493 = vst [vmem:[%s8232] ss:$4 sm:$0xff] %v7034
          %v8494 = vld.sshfl [vmem:[#allocation1] sm:$0xff pattern:$0x73625140]
          %v8495 = vld.sshfl [vmem:[#allocation1 + $0x20] sm:$0xff pattern:$0x73625140]
          %8496 = vst [vmem:[#allocation1] ss:$4 sm:$0xff] %v7038
          %8497 = vst [vmem:[%s8220] ss:$4 sm:$0xff] %v7042
          %8498 = vst [vmem:[%s8222] ss:$4 sm:$0xff] %v7046
          %8499 = vst [vmem:[%s8224] ss:$4 sm:$0xff] %v7050
          %8500 = vst [vmem:[%s8226] ss:$4 sm:$0xff] %v7054
          %8501 = vst [vmem:[%s8228] ss:$4 sm:$0xff] %v7058
          %8502 = vst [vmem:[%s8230] ss:$4 sm:$0xff] %v7062
          %8503 = vst [vmem:[%s8232] ss:$4 sm:$0xff] %v7066
          %v8504 = vld.sshfl [vmem:[#allocation1] sm:$0xff pattern:$0x73625140]
          %v8505 = vld.sshfl [vmem:[#allocation1 + $0x20] sm:$0xff pattern:$0x73625140]
          %8506 = vst [vmem:[#allocation1] ss:$4 sm:$0xff] %v7070
          %8507 = vst [vmem:[%s8220] ss:$4 sm:$0xff] %v7074
          %8508 = vst [vmem:[%s8222] ss:$4 sm:$0xff] %v7078
          %8509 = vst [vmem:[%s8224] ss:$4 sm:$0xff] %v7082
          %8510 = vst [vmem:[%s8226] ss:$4 sm:$0xff] %v7086
          %8511 = vst [vmem:[%s8228] ss:$4 sm:$0xff] %v7090
          %8512 = vst [vmem:[%s8230] ss:$4 sm:$0xff] %v7094
          %8513 = vst [vmem:[%s8232] ss:$4 sm:$0xff] %v7098
          %v8514 = vld.sshfl [vmem:[#allocation1] sm:$0xff pattern:$0x73625140]
          %v8515 = vld.sshfl [vmem:[#allocation1 + $0x20] sm:$0xff pattern:$0x73625140]
          %8516 = vst [vmem:[#allocation1] ss:$4 sm:$0xff] %v7102
          %8517 = vst [vmem:[%s8220] ss:$4 sm:$0xff] %v7106
          %8518 = vst [vmem:[%s8222] ss:$4 sm:$0xff] %v7110
          %8519 = vst [vmem:[%s8224] ss:$4 sm:$0xff] %v7114
          %8520 = vst [vmem:[%s8226] ss:$4 sm:$0xff] %v7118
          %8521 = vst [vmem:[%s8228] ss:$4 sm:$0xff] %v7122
          %8522 = vst [vmem:[%s8230] ss:$4 sm:$0xff] %v7126
          %8523 = vst [vmem:[%s8232] ss:$4 sm:$0xff] %v7130
          %v8524 = vld.sshfl [vmem:[#allocation1] sm:$0xff pattern:$0x73625140]
          %v8525 = vld.sshfl [vmem:[#allocation1 + $0x20] sm:$0xff pattern:$0x73625140]
          %8526 = vst [vmem:[#allocation1] ss:$4 sm:$0xff] %v7134
          %8527 = vst [vmem:[%s8220] ss:$4 sm:$0xff] %v7138
          %8528 = vst [vmem:[%s8222] ss:$4 sm:$0xff] %v7142
          %8529 = vst [vmem:[%s8224] ss:$4 sm:$0xff] %v7146
          %8530 = vst [vmem:[%s8226] ss:$4 sm:$0xff] %v7150
          %8531 = vst [vmem:[%s8228] ss:$4 sm:$0xff] %v7154
          %8532 = vst [vmem:[%s8230] ss:$4 sm:$0xff] %v7158
          %8533 = vst [vmem:[%s8232] ss:$4 sm:$0xff] %v7162
          %v8534 = vld.sshfl [vmem:[#allocation1] sm:$0xff pattern:$0x73625140]
          %v8535 = vld.sshfl [vmem:[#allocation1 + $0x20] sm:$0xff pattern:$0x73625140]
          %8536 = vst [vmem:[#allocation1] ss:$4 sm:$0xff] %v7166
          %8537 = vst [vmem:[%s8220] ss:$4 sm:$0xff] %v7170
          %8538 = vst [vmem:[%s8222] ss:$4 sm:$0xff] %v7174
          %8539 = vst [vmem:[%s8224] ss:$4 sm:$0xff] %v7178
          %8540 = vst [vmem:[%s8226] ss:$4 sm:$0xff] %v7182
          %8541 = vst [vmem:[%s8228] ss:$4 sm:$0xff] %v7186
          %8542 = vst [vmem:[%s8230] ss:$4 sm:$0xff] %v7190
          %8543 = vst [vmem:[%s8232] ss:$4 sm:$0xff] %v7194
          %v8544 = vld.sshfl [vmem:[#allocation1] sm:$0xff pattern:$0x73625140]
          %v8545 = vld.sshfl [vmem:[#allocation1 + $0x20] sm:$0xff pattern:$0x73625140]
          %8546 = vst [vmem:[#allocation1] ss:$4 sm:$0xff] %v7198
          %8547 = vst [vmem:[%s8220] ss:$4 sm:$0xff] %v7202
          %8548 = vst [vmem:[%s8222] ss:$4 sm:$0xff] %v7206
          %8549 = vst [vmem:[%s8224] ss:$4 sm:$0xff] %v7210
          %8550 = vst [vmem:[%s8226] ss:$4 sm:$0xff] %v7214
          %8551 = vst [vmem:[%s8228] ss:$4 sm:$0xff] %v7218
          %8552 = vst [vmem:[%s8230] ss:$4 sm:$0xff] %v7222
          %8553 = vst [vmem:[%s8232] ss:$4 sm:$0xff] %v7226
          %v8554 = vld.sshfl [vmem:[#allocation1] sm:$0xff pattern:$0x73625140]
          %v8555 = vld.sshfl [vmem:[#allocation1 + $0x20] sm:$0xff pattern:$0x73625140]
          %8556 = vst [vmem:[#allocation1] ss:$4 sm:$0xff] %v7230
          %8557 = vst [vmem:[%s8220] ss:$4 sm:$0xff] %v7234
          %8558 = vst [vmem:[%s8222] ss:$4 sm:$0xff] %v7238
          %8559 = vst [vmem:[%s8224] ss:$4 sm:$0xff] %v7242
          %8560 = vst [vmem:[%s8226] ss:$4 sm:$0xff] %v7246
          %8561 = vst [vmem:[%s8228] ss:$4 sm:$0xff] %v7250
          %8562 = vst [vmem:[%s8230] ss:$4 sm:$0xff] %v7254
          %8563 = vst [vmem:[%s8232] ss:$4 sm:$0xff] %v7258
          %v8564 = vld.sshfl [vmem:[#allocation1] sm:$0xff pattern:$0x73625140]
          %v8565 = vld.sshfl [vmem:[#allocation1 + $0x20] sm:$0xff pattern:$0x73625140]
          %8566 = vst [vmem:[#allocation1] ss:$4 sm:$0xff] %v7262
          %8567 = vst [vmem:[%s8220] ss:$4 sm:$0xff] %v7266
          %8568 = vst [vmem:[%s8222] ss:$4 sm:$0xff] %v7270
          %8569 = vst [vmem:[%s8224] ss:$4 sm:$0xff] %v7274
          %8570 = vst [vmem:[%s8226] ss:$4 sm:$0xff] %v7278
          %8571 = vst [vmem:[%s8228] ss:$4 sm:$0xff] %v7282
          %8572 = vst [vmem:[%s8230] ss:$4 sm:$0xff] %v7286
          %8573 = vst [vmem:[%s8232] ss:$4 sm:$0xff] %v7290
          %v8574 = vld.sshfl [vmem:[#allocation1] sm:$0xff pattern:$0x73625140]
          %v8575 = vld.sshfl [vmem:[#allocation1 + $0x20] sm:$0xff pattern:$0x73625140]
          %8576 = vst [vmem:[#allocation1] ss:$4 sm:$0xff] %v7294
          %8577 = vst [vmem:[%s8220] ss:$4 sm:$0xff] %v7298
          %8578 = vst [vmem:[%s8222] ss:$4 sm:$0xff] %v7302
          %8579 = vst [vmem:[%s8224] ss:$4 sm:$0xff] %v7306
          %8580 = vst [vmem:[%s8226] ss:$4 sm:$0xff] %v7310
          %8581 = vst [vmem:[%s8228] ss:$4 sm:$0xff] %v7314
          %8582 = vst [vmem:[%s8230] ss:$4 sm:$0xff] %v7318
          %8583 = vst [vmem:[%s8232] ss:$4 sm:$0xff] %v7322
          %v8584 = vld.sshfl [vmem:[#allocation1] sm:$0xff pattern:$0x73625140]
          %v8585 = vld.sshfl [vmem:[#allocation1 + $0x20] sm:$0xff pattern:$0x73625140]
          %8586 = vst [vmem:[#allocation1] ss:$4 sm:$0xff] %v7326
          %8587 = vst [vmem:[%s8220] ss:$4 sm:$0xff] %v7330
          %8588 = vst [vmem:[%s8222] ss:$4 sm:$0xff] %v7334
          %8589 = vst [vmem:[%s8224] ss:$4 sm:$0xff] %v7338
          %8590 = vst [vmem:[%s8226] ss:$4 sm:$0xff] %v7342
          %8591 = vst [vmem:[%s8228] ss:$4 sm:$0xff] %v7346
          %8592 = vst [vmem:[%s8230] ss:$4 sm:$0xff] %v7350
          %8593 = vst [vmem:[%s8232] ss:$4 sm:$0xff] %v7354
          %v8594 = vld.sshfl [vmem:[#allocation1] sm:$0xff pattern:$0x73625140]
          %v8595 = vld.sshfl [vmem:[#allocation1 + $0x20] sm:$0xff pattern:$0x73625140]
          %8596 = vst [vmem:[#allocation1] ss:$4 sm:$0xff] %v7358
          %8597 = vst [vmem:[%s8220] ss:$4 sm:$0xff] %v7362
          %8598 = vst [vmem:[%s8222] ss:$4 sm:$0xff] %v7366
          %8599 = vst [vmem:[%s8224] ss:$4 sm:$0xff] %v7370
          %8600 = vst [vmem:[%s8226] ss:$4 sm:$0xff] %v7374
          %8601 = vst [vmem:[%s8228] ss:$4 sm:$0xff] %v7378
          %8602 = vst [vmem:[%s8230] ss:$4 sm:$0xff] %v7382
          %8603 = vst [vmem:[%s8232] ss:$4 sm:$0xff] %v7386
          %v8604 = vld.sshfl [vmem:[#allocation1] sm:$0xff pattern:$0x73625140]
          %v8605 = vld.sshfl [vmem:[#allocation1 + $0x20] sm:$0xff pattern:$0x73625140]
          %8606 = vst [vmem:[#allocation1] ss:$4 sm:$0xff] %v7390
          %8607 = vst [vmem:[%s8220] ss:$4 sm:$0xff] %v7394
          %8608 = vst [vmem:[%s8222] ss:$4 sm:$0xff] %v7398
          %8609 = vst [vmem:[%s8224] ss:$4 sm:$0xff] %v7402
          %8610 = vst [vmem:[%s8226] ss:$4 sm:$0xff] %v7406
          %8611 = vst [vmem:[%s8228] ss:$4 sm:$0xff] %v7410
          %8612 = vst [vmem:[%s8230] ss:$4 sm:$0xff] %v7414
          %8613 = vst [vmem:[%s8232] ss:$4 sm:$0xff] %v7418
          %v8614 = vld.sshfl [vmem:[#allocation1] sm:$0xff pattern:$0x73625140]
          %v8615 = vld.sshfl [vmem:[#allocation1 + $0x20] sm:$0xff pattern:$0x73625140]
          %8616 = vst [vmem:[#allocation1] ss:$4 sm:$0xff] %v7422
          %8617 = vst [vmem:[%s8220] ss:$4 sm:$0xff] %v7426
          %8618 = vst [vmem:[%s8222] ss:$4 sm:$0xff] %v7430
          %8619 = vst [vmem:[%s8224] ss:$4 sm:$0xff] %v7434
          %8620 = vst [vmem:[%s8226] ss:$4 sm:$0xff] %v7438
          %8621 = vst [vmem:[%s8228] ss:$4 sm:$0xff] %v7442
          %8622 = vst [vmem:[%s8230] ss:$4 sm:$0xff] %v7446
          %8623 = vst [vmem:[%s8232] ss:$4 sm:$0xff] %v7450
          %v8624 = vld.sshfl [vmem:[#allocation1] sm:$0xff pattern:$0x73625140]
          %v8625 = vld.sshfl [vmem:[#allocation1 + $0x20] sm:$0xff pattern:$0x73625140]
          %8626 = vst [vmem:[#allocation1] ss:$4 sm:$0xff] %v7454
          %8627 = vst [vmem:[%s8220] ss:$4 sm:$0xff] %v7458
          %8628 = vst [vmem:[%s8222] ss:$4 sm:$0xff] %v7462
          %8629 = vst [vmem:[%s8224] ss:$4 sm:$0xff] %v7466
          %8630 = vst [vmem:[%s8226] ss:$4 sm:$0xff] %v7470
          %8631 = vst [vmem:[%s8228] ss:$4 sm:$0xff] %v7474
          %8632 = vst [vmem:[%s8230] ss:$4 sm:$0xff] %v7478
          %8633 = vst [vmem:[%s8232] ss:$4 sm:$0xff] %v7482
          %v8634 = vld.sshfl [vmem:[#allocation1] sm:$0xff pattern:$0x73625140]
          %v8635 = vld.sshfl [vmem:[#allocation1 + $0x20] sm:$0xff pattern:$0x73625140]
          %8636 = vst [vmem:[#allocation1] ss:$4 sm:$0xff] %v7486
          %8637 = vst [vmem:[%s8220] ss:$4 sm:$0xff] %v7490
          %8638 = vst [vmem:[%s8222] ss:$4 sm:$0xff] %v7494
          %8639 = vst [vmem:[%s8224] ss:$4 sm:$0xff] %v7498
          %8640 = vst [vmem:[%s8226] ss:$4 sm:$0xff] %v7502
          %8641 = vst [vmem:[%s8228] ss:$4 sm:$0xff] %v7506
          %8642 = vst [vmem:[%s8230] ss:$4 sm:$0xff] %v7510
          %8643 = vst [vmem:[%s8232] ss:$4 sm:$0xff] %v7514
          %v8644 = vld.sshfl [vmem:[#allocation1] sm:$0xff pattern:$0x73625140]
          %v8645 = vld.sshfl [vmem:[#allocation1 + $0x20] sm:$0xff pattern:$0x73625140]
          %8646 = vst [vmem:[#allocation1] ss:$4 sm:$0xff] %v7518
          %8647 = vst [vmem:[%s8220] ss:$4 sm:$0xff] %v7522
          %8648 = vst [vmem:[%s8222] ss:$4 sm:$0xff] %v7526
          %8649 = vst [vmem:[%s8224] ss:$4 sm:$0xff] %v7530
          %8650 = vst [vmem:[%s8226] ss:$4 sm:$0xff] %v7534
          %8651 = vst [vmem:[%s8228] ss:$4 sm:$0xff] %v7538
          %8652 = vst [vmem:[%s8230] ss:$4 sm:$0xff] %v7542
          %8653 = vst [vmem:[%s8232] ss:$4 sm:$0xff] %v7546
          %v8654 = vld.sshfl [vmem:[#allocation1] sm:$0xff pattern:$0x73625140]
          %v8655 = vld.sshfl [vmem:[#allocation1 + $0x20] sm:$0xff pattern:$0x73625140]
          %8656 = vst [vmem:[#allocation1] ss:$4 sm:$0xff] %v7550
          %8657 = vst [vmem:[%s8220] ss:$4 sm:$0xff] %v7554
          %8658 = vst [vmem:[%s8222] ss:$4 sm:$0xff] %v7558
          %8659 = vst [vmem:[%s8224] ss:$4 sm:$0xff] %v7562
          %8660 = vst [vmem:[%s8226] ss:$4 sm:$0xff] %v7566
          %8661 = vst [vmem:[%s8228] ss:$4 sm:$0xff] %v7570
          %8662 = vst [vmem:[%s8230] ss:$4 sm:$0xff] %v7574
          %8663 = vst [vmem:[%s8232] ss:$4 sm:$0xff] %v7578
          %v8664 = vld.sshfl [vmem:[#allocation1] sm:$0xff pattern:$0x73625140]
          %v8665 = vld.sshfl [vmem:[#allocation1 + $0x20] sm:$0xff pattern:$0x73625140]
          %8666 = vst [vmem:[#allocation1] ss:$4 sm:$0xff] %v7582
          %8667 = vst [vmem:[%s8220] ss:$4 sm:$0xff] %v7586
          %8668 = vst [vmem:[%s8222] ss:$4 sm:$0xff] %v7590
          %8669 = vst [vmem:[%s8224] ss:$4 sm:$0xff] %v7594
          %8670 = vst [vmem:[%s8226] ss:$4 sm:$0xff] %v7598
          %8671 = vst [vmem:[%s8228] ss:$4 sm:$0xff] %v7602
          %8672 = vst [vmem:[%s8230] ss:$4 sm:$0xff] %v7606
          %8673 = vst [vmem:[%s8232] ss:$4 sm:$0xff] %v7610
          %v8674 = vld.sshfl [vmem:[#allocation1] sm:$0xff pattern:$0x73625140]
          %v8675 = vld.sshfl [vmem:[#allocation1 + $0x20] sm:$0xff pattern:$0x73625140]
          %8676 = vst [vmem:[#allocation1] ss:$4 sm:$0xff] %v7614
          %8677 = vst [vmem:[%s8220] ss:$4 sm:$0xff] %v7618
          %8678 = vst [vmem:[%s8222] ss:$4 sm:$0xff] %v7622
          %8679 = vst [vmem:[%s8224] ss:$4 sm:$0xff] %v7626
          %8680 = vst [vmem:[%s8226] ss:$4 sm:$0xff] %v7630
          %8681 = vst [vmem:[%s8228] ss:$4 sm:$0xff] %v7634
          %8682 = vst [vmem:[%s8230] ss:$4 sm:$0xff] %v7638
          %8683 = vst [vmem:[%s8232] ss:$4 sm:$0xff] %v7642
          %v8684 = vld.sshfl [vmem:[#allocation1] sm:$0xff pattern:$0x73625140]
          %v8685 = vld.sshfl [vmem:[#allocation1 + $0x20] sm:$0xff pattern:$0x73625140]
          %8686 = vst [vmem:[#allocation1] ss:$4 sm:$0xff] %v7646
          %8687 = vst [vmem:[%s8220] ss:$4 sm:$0xff] %v7650
          %8688 = vst [vmem:[%s8222] ss:$4 sm:$0xff] %v7654
          %8689 = vst [vmem:[%s8224] ss:$4 sm:$0xff] %v7658
          %8690 = vst [vmem:[%s8226] ss:$4 sm:$0xff] %v7662
          %8691 = vst [vmem:[%s8228] ss:$4 sm:$0xff] %v7666
          %8692 = vst [vmem:[%s8230] ss:$4 sm:$0xff] %v7670
          %8693 = vst [vmem:[%s8232] ss:$4 sm:$0xff] %v7674
          %v8694 = vld.sshfl [vmem:[#allocation1] sm:$0xff pattern:$0x73625140]
          %v8695 = vld.sshfl [vmem:[#allocation1 + $0x20] sm:$0xff pattern:$0x73625140]
          %8696 = vst [vmem:[#allocation1] ss:$4 sm:$0xff] %v7678
          %8697 = vst [vmem:[%s8220] ss:$4 sm:$0xff] %v7682
          %8698 = vst [vmem:[%s8222] ss:$4 sm:$0xff] %v7686
          %8699 = vst [vmem:[%s8224] ss:$4 sm:$0xff] %v7690
          %8700 = vst [vmem:[%s8226] ss:$4 sm:$0xff] %v7694
          %8701 = vst [vmem:[%s8228] ss:$4 sm:$0xff] %v7698
          %8702 = vst [vmem:[%s8230] ss:$4 sm:$0xff] %v7702
          %8703 = vst [vmem:[%s8232] ss:$4 sm:$0xff] %v7706
          %v8704 = vld.sshfl [vmem:[#allocation1] sm:$0xff pattern:$0x73625140]
          %v8705 = vld.sshfl [vmem:[#allocation1 + $0x20] sm:$0xff pattern:$0x73625140]
          %8706 = vst [vmem:[#allocation1] ss:$4 sm:$0xff] %v7710
          %8707 = vst [vmem:[%s8220] ss:$4 sm:$0xff] %v7714
          %8708 = vst [vmem:[%s8222] ss:$4 sm:$0xff] %v7718
          %8709 = vst [vmem:[%s8224] ss:$4 sm:$0xff] %v7722
          %8710 = vst [vmem:[%s8226] ss:$4 sm:$0xff] %v7726
          %8711 = vst [vmem:[%s8228] ss:$4 sm:$0xff] %v7730
          %8712 = vst [vmem:[%s8230] ss:$4 sm:$0xff] %v7734
          %8713 = vst [vmem:[%s8232] ss:$4 sm:$0xff] %v7738
          %v8714 = vld.sshfl [vmem:[#allocation1] sm:$0xff pattern:$0x73625140]
          %v8715 = vld.sshfl [vmem:[#allocation1 + $0x20] sm:$0xff pattern:$0x73625140]
          %8716 = vst [vmem:[#allocation1] ss:$4 sm:$0xff] %v7742
          %8717 = vst [vmem:[%s8220] ss:$4 sm:$0xff] %v7746
          %8718 = vst [vmem:[%s8222] ss:$4 sm:$0xff] %v7750
          %8719 = vst [vmem:[%s8224] ss:$4 sm:$0xff] %v7754
          %8720 = vst [vmem:[%s8226] ss:$4 sm:$0xff] %v7758
          %8721 = vst [vmem:[%s8228] ss:$4 sm:$0xff] %v7762
          %8722 = vst [vmem:[%s8230] ss:$4 sm:$0xff] %v7766
          %8723 = vst [vmem:[%s8232] ss:$4 sm:$0xff] %v7770
          %v8724 = vld.sshfl [vmem:[#allocation1] sm:$0xff pattern:$0x73625140]
          %v8725 = vld.sshfl [vmem:[#allocation1 + $0x20] sm:$0xff pattern:$0x73625140]
          %8726 = vst [vmem:[#allocation1] ss:$4 sm:$0xff] %v7774
          %8727 = vst [vmem:[%s8220] ss:$4 sm:$0xff] %v7778
          %8728 = vst [vmem:[%s8222] ss:$4 sm:$0xff] %v7782
          %8729 = vst [vmem:[%s8224] ss:$4 sm:$0xff] %v7786
          %8730 = vst [vmem:[%s8226] ss:$4 sm:$0xff] %v7790
          %8731 = vst [vmem:[%s8228] ss:$4 sm:$0xff] %v7794
          %8732 = vst [vmem:[%s8230] ss:$4 sm:$0xff] %v7798
          %8733 = vst [vmem:[%s8232] ss:$4 sm:$0xff] %v7802
          %v8734 = vld.sshfl [vmem:[#allocation1] sm:$0xff pattern:$0x73625140]
          %v8735 = vld.sshfl [vmem:[#allocation1 + $0x20] sm:$0xff pattern:$0x73625140]
          %8736 = vst [vmem:[#allocation1] ss:$4 sm:$0xff] %v7806
          %8737 = vst [vmem:[%s8220] ss:$4 sm:$0xff] %v7810
          %8738 = vst [vmem:[%s8222] ss:$4 sm:$0xff] %v7814
          %8739 = vst [vmem:[%s8224] ss:$4 sm:$0xff] %v7818
          %8740 = vst [vmem:[%s8226] ss:$4 sm:$0xff] %v7822
          %8741 = vst [vmem:[%s8228] ss:$4 sm:$0xff] %v7826
          %8742 = vst [vmem:[%s8230] ss:$4 sm:$0xff] %v7830
          %8743 = vst [vmem:[%s8232] ss:$4 sm:$0xff] %v7834
          %v8744 = vld.sshfl [vmem:[#allocation1] sm:$0xff pattern:$0x73625140]
          %v8745 = vld.sshfl [vmem:[#allocation1 + $0x20] sm:$0xff pattern:$0x73625140]
          %8746 = vst [vmem:[#allocation1] ss:$4 sm:$0xff] %v7838
          %8747 = vst [vmem:[%s8220] ss:$4 sm:$0xff] %v7842
          %8748 = vst [vmem:[%s8222] ss:$4 sm:$0xff] %v7846
          %8749 = vst [vmem:[%s8224] ss:$4 sm:$0xff] %v7850
          %8750 = vst [vmem:[%s8226] ss:$4 sm:$0xff] %v7854
          %8751 = vst [vmem:[%s8228] ss:$4 sm:$0xff] %v7858
          %8752 = vst [vmem:[%s8230] ss:$4 sm:$0xff] %v7862
          %8753 = vst [vmem:[%s8232] ss:$4 sm:$0xff] %v7866
          %v8754 = vld.sshfl [vmem:[#allocation1] sm:$0xff pattern:$0x73625140]
          %v8755 = vld.sshfl [vmem:[#allocation1 + $0x20] sm:$0xff pattern:$0x73625140]
          %8756 = vst [vmem:[#allocation1] ss:$4 sm:$0xff] %v7870
          %8757 = vst [vmem:[%s8220] ss:$4 sm:$0xff] %v7874
          %8758 = vst [vmem:[%s8222] ss:$4 sm:$0xff] %v7878
          %8759 = vst [vmem:[%s8224] ss:$4 sm:$0xff] %v7882
          %8760 = vst [vmem:[%s8226] ss:$4 sm:$0xff] %v7886
          %8761 = vst [vmem:[%s8228] ss:$4 sm:$0xff] %v7890
          %8762 = vst [vmem:[%s8230] ss:$4 sm:$0xff] %v7894
          %8763 = vst [vmem:[%s8232] ss:$4 sm:$0xff] %v7898
          %v8764 = vld.sshfl [vmem:[#allocation1] sm:$0xff pattern:$0x73625140]
          %v8765 = vld.sshfl [vmem:[#allocation1 + $0x20] sm:$0xff pattern:$0x73625140]
          %8766 = vst [vmem:[#allocation1] ss:$4 sm:$0xff] %v7902
          %8767 = vst [vmem:[%s8220] ss:$4 sm:$0xff] %v7906
          %8768 = vst [vmem:[%s8222] ss:$4 sm:$0xff] %v7910
          %8769 = vst [vmem:[%s8224] ss:$4 sm:$0xff] %v7914
          %8770 = vst [vmem:[%s8226] ss:$4 sm:$0xff] %v7918
          %8771 = vst [vmem:[%s8228] ss:$4 sm:$0xff] %v7922
          %8772 = vst [vmem:[%s8230] ss:$4 sm:$0xff] %v7926
          %8773 = vst [vmem:[%s8232] ss:$4 sm:$0xff] %v7930
          %v8774 = vld.sshfl [vmem:[#allocation1] sm:$0xff pattern:$0x73625140]
          %v8775 = vld.sshfl [vmem:[#allocation1 + $0x20] sm:$0xff pattern:$0x73625140]
          %8776 = vst [vmem:[#allocation1] ss:$4 sm:$0xff] %v7934
          %8777 = vst [vmem:[%s8220] ss:$4 sm:$0xff] %v7938
          %8778 = vst [vmem:[%s8222] ss:$4 sm:$0xff] %v7942
          %8779 = vst [vmem:[%s8224] ss:$4 sm:$0xff] %v7946
          %8780 = vst [vmem:[%s8226] ss:$4 sm:$0xff] %v7950
          %8781 = vst [vmem:[%s8228] ss:$4 sm:$0xff] %v7954
          %8782 = vst [vmem:[%s8230] ss:$4 sm:$0xff] %v7958
          %8783 = vst [vmem:[%s8232] ss:$4 sm:$0xff] %v7962
          %v8784 = vld.sshfl [vmem:[#allocation1] sm:$0xff pattern:$0x73625140]
          %v8785 = vld.sshfl [vmem:[#allocation1 + $0x20] sm:$0xff pattern:$0x73625140]
          %8786 = vst [vmem:[#allocation1] ss:$4 sm:$0xff] %v7966
          %8787 = vst [vmem:[%s8220] ss:$4 sm:$0xff] %v7970
          %8788 = vst [vmem:[%s8222] ss:$4 sm:$0xff] %v7974
          %8789 = vst [vmem:[%s8224] ss:$4 sm:$0xff] %v7978
          %8790 = vst [vmem:[%s8226] ss:$4 sm:$0xff] %v7982
          %8791 = vst [vmem:[%s8228] ss:$4 sm:$0xff] %v7986
          %8792 = vst [vmem:[%s8230] ss:$4 sm:$0xff] %v7990
          %8793 = vst [vmem:[%s8232] ss:$4 sm:$0xff] %v7994
          %v8794 = vld.sshfl [vmem:[#allocation1] sm:$0xff pattern:$0x73625140]
          %v8795 = vld.sshfl [vmem:[#allocation1 + $0x20] sm:$0xff pattern:$0x73625140]
          %8796 = vst [vmem:[#allocation1] ss:$4 sm:$0xff] %v7998
          %8797 = vst [vmem:[%s8220] ss:$4 sm:$0xff] %v8002
          %8798 = vst [vmem:[%s8222] ss:$4 sm:$0xff] %v8006
          %8799 = vst [vmem:[%s8224] ss:$4 sm:$0xff] %v8010
          %8800 = vst [vmem:[%s8226] ss:$4 sm:$0xff] %v8014
          %8801 = vst [vmem:[%s8228] ss:$4 sm:$0xff] %v8018
          %8802 = vst [vmem:[%s8230] ss:$4 sm:$0xff] %v8022
          %8803 = vst [vmem:[%s8232] ss:$4 sm:$0xff] %v8026
          %v8804 = vld.sshfl [vmem:[#allocation1] sm:$0xff pattern:$0x73625140]
          %v8805 = vld.sshfl [vmem:[#allocation1 + $0x20] sm:$0xff pattern:$0x73625140]
          %8806 = vst [vmem:[#allocation1] ss:$4 sm:$0xff] %v8030
          %8807 = vst [vmem:[%s8220] ss:$4 sm:$0xff] %v8034
          %8808 = vst [vmem:[%s8222] ss:$4 sm:$0xff] %v8038
          %8809 = vst [vmem:[%s8224] ss:$4 sm:$0xff] %v8042
          %8810 = vst [vmem:[%s8226] ss:$4 sm:$0xff] %v8046
          %8811 = vst [vmem:[%s8228] ss:$4 sm:$0xff] %v8050
          %8812 = vst [vmem:[%s8230] ss:$4 sm:$0xff] %v8054
          %8813 = vst [vmem:[%s8232] ss:$4 sm:$0xff] %v8058
          %v8814 = vld.sshfl [vmem:[#allocation1] sm:$0xff pattern:$0x73625140]
          %v8815 = vld.sshfl [vmem:[#allocation1 + $0x20] sm:$0xff pattern:$0x73625140]
          %8816 = vst [vmem:[#allocation1] ss:$4 sm:$0xff] %v8062
          %8817 = vst [vmem:[%s8220] ss:$4 sm:$0xff] %v8066
          %8818 = vst [vmem:[%s8222] ss:$4 sm:$0xff] %v8070
          %8819 = vst [vmem:[%s8224] ss:$4 sm:$0xff] %v8074
          %8820 = vst [vmem:[%s8226] ss:$4 sm:$0xff] %v8078
          %8821 = vst [vmem:[%s8228] ss:$4 sm:$0xff] %v8082
          %8822 = vst [vmem:[%s8230] ss:$4 sm:$0xff] %v8086
          %8823 = vst [vmem:[%s8232] ss:$4 sm:$0xff] %v8090
          %v8824 = vld.sshfl [vmem:[#allocation1] sm:$0xff pattern:$0x73625140]
          %v8825 = vld.sshfl [vmem:[#allocation1 + $0x20] sm:$0xff pattern:$0x73625140]
          %8826 = vst [vmem:[#allocation1] ss:$4 sm:$0xff] %v8094
          %8827 = vst [vmem:[%s8220] ss:$4 sm:$0xff] %v8098
          %8828 = vst [vmem:[%s8222] ss:$4 sm:$0xff] %v8102
          %8829 = vst [vmem:[%s8224] ss:$4 sm:$0xff] %v8106
          %8830 = vst [vmem:[%s8226] ss:$4 sm:$0xff] %v8110
          %8831 = vst [vmem:[%s8228] ss:$4 sm:$0xff] %v8114
          %8832 = vst [vmem:[%s8230] ss:$4 sm:$0xff] %v8118
          %8833 = vst [vmem:[%s8232] ss:$4 sm:$0xff] %v8122
          %v8834 = vld.sshfl [vmem:[#allocation1] sm:$0xff pattern:$0x73625140]
          %v8835 = vld.sshfl [vmem:[#allocation1 + $0x20] sm:$0xff pattern:$0x73625140]
          %8836 = vst [vmem:[#allocation1] ss:$4 sm:$0xff] %v8126
          %8837 = vst [vmem:[%s8220] ss:$4 sm:$0xff] %v8130
          %8838 = vst [vmem:[%s8222] ss:$4 sm:$0xff] %v8134
          %8839 = vst [vmem:[%s8224] ss:$4 sm:$0xff] %v8138
          %8840 = vst [vmem:[%s8226] ss:$4 sm:$0xff] %v8142
          %8841 = vst [vmem:[%s8228] ss:$4 sm:$0xff] %v8146
          %8842 = vst [vmem:[%s8230] ss:$4 sm:$0xff] %v8150
          %8843 = vst [vmem:[%s8232] ss:$4 sm:$0xff] %v8154
          %v8844 = vld.sshfl [vmem:[#allocation1] sm:$0xff pattern:$0x73625140]
          %v8845 = vld.sshfl [vmem:[#allocation1 + $0x20] sm:$0xff pattern:$0x73625140]
          %8846 = vst [vmem:[#allocation1] ss:$4 sm:$0xff] %v8158
          %8847 = vst [vmem:[%s8220] ss:$4 sm:$0xff] %v8162
          %8848 = vst [vmem:[%s8222] ss:$4 sm:$0xff] %v8166
          %8849 = vst [vmem:[%s8224] ss:$4 sm:$0xff] %v8170
          %8850 = vst [vmem:[%s8226] ss:$4 sm:$0xff] %v8174
          %8851 = vst [vmem:[%s8228] ss:$4 sm:$0xff] %v8178
          %8852 = vst [vmem:[%s8230] ss:$4 sm:$0xff] %v8182
          %8853 = vst [vmem:[%s8232] ss:$4 sm:$0xff] %v8186
          %v8854 = vld.sshfl [vmem:[#allocation1] sm:$0xff pattern:$0x73625140]
          %v8855 = vld.sshfl [vmem:[#allocation1 + $0x20] sm:$0xff pattern:$0x73625140]
          %8856 = vst [vmem:[#allocation1] ss:$4 sm:$0xff] %v8190
          %8857 = vst [vmem:[%s8220] ss:$4 sm:$0xff] %v8194
          %8858 = vst [vmem:[%s8222] ss:$4 sm:$0xff] %v8198
          %8859 = vst [vmem:[%s8224] ss:$4 sm:$0xff] %v8202
          %8860 = vst [vmem:[%s8226] ss:$4 sm:$0xff] %v8206
          %8861 = vst [vmem:[%s8228] ss:$4 sm:$0xff] %v8210
          %8862 = vst [vmem:[%s8230] ss:$4 sm:$0xff] %v8214
          %8863 = vst [vmem:[%s8232] ss:$4 sm:$0xff] %v8218
          %v8864 = vld.sshfl [vmem:[#allocation1] sm:$0xff pattern:$0x73625140]
          %v8865 = vld.sshfl [vmem:[#allocation1 + $0x20] sm:$0xff pattern:$0x73625140]
          %8866 = vset.pattern.permute.xlu0 0
          %8867 = vperm.xlu0 %8866, %v8234
          %v8868 = vpop.permute.xlu0 %8867
          %8869 = vset.pattern.permute.xlu0 0
          %8870 = vperm.xlu0 %8869, %v8235
          %v8871 = vpop.permute.xlu0 %8870
          %8872 = vset.pattern.permute.xlu0 0
          %8873 = vperm.xlu0 %8872, %v8244
          %v8874 = vpop.permute.xlu0 %8873
          %8875 = vset.pattern.permute.xlu0 0
          %8876 = vperm.xlu0 %8875, %v8245
          %v8877 = vpop.permute.xlu0 %8876
          %8878 = vset.pattern.permute.xlu0 0
          %8879 = vperm.xlu0 %8878, %v8254
          %v8880 = vpop.permute.xlu0 %8879
          %8881 = vset.pattern.permute.xlu0 0
          %8882 = vperm.xlu0 %8881, %v8255
          %v8883 = vpop.permute.xlu0 %8882
          %8884 = vset.pattern.permute.xlu0 0
          %8885 = vperm.xlu0 %8884, %v8264
          %v8886 = vpop.permute.xlu0 %8885
          %8887 = vset.pattern.permute.xlu0 0
          %8888 = vperm.xlu0 %8887, %v8265
          %v8889 = vpop.permute.xlu0 %8888
          %8890 = vset.pattern.permute.xlu0 0
          %8891 = vperm.xlu0 %8890, %v8274
          %v8892 = vpop.permute.xlu0 %8891
          %8893 = vset.pattern.permute.xlu0 0
          %8894 = vperm.xlu0 %8893, %v8275
          %v8895 = vpop.permute.xlu0 %8894
          %8896 = vset.pattern.permute.xlu0 0
          %8897 = vperm.xlu0 %8896, %v8284
          %v8898 = vpop.permute.xlu0 %8897
          %8899 = vset.pattern.permute.xlu0 0
          %8900 = vperm.xlu0 %8899, %v8285
          %v8901 = vpop.permute.xlu0 %8900
          %8902 = vset.pattern.permute.xlu0 0
          %8903 = vperm.xlu0 %8902, %v8294
          %v8904 = vpop.permute.xlu0 %8903
          %8905 = vset.pattern.permute.xlu0 0
          %8906 = vperm.xlu0 %8905, %v8295
          %v8907 = vpop.permute.xlu0 %8906
          %8908 = vset.pattern.permute.xlu0 0
          %8909 = vperm.xlu0 %8908, %v8304
          %v8910 = vpop.permute.xlu0 %8909
          %8911 = vset.pattern.permute.xlu0 0
          %8912 = vperm.xlu0 %8911, %v8305
          %v8913 = vpop.permute.xlu0 %8912
          %8914 = vset.pattern.permute.xlu0 0
          %8915 = vperm.xlu0 %8914, %v8314
          %v8916 = vpop.permute.xlu0 %8915
          %8917 = vset.pattern.permute.xlu0 0
          %8918 = vperm.xlu0 %8917, %v8315
          %v8919 = vpop.permute.xlu0 %8918
          %8920 = vset.pattern.permute.xlu0 0
          %8921 = vperm.xlu0 %8920, %v8324
          %v8922 = vpop.permute.xlu0 %8921
          %8923 = vset.pattern.permute.xlu0 0
          %8924 = vperm.xlu0 %8923, %v8325
          %v8925 = vpop.permute.xlu0 %8924
          %8926 = vset.pattern.permute.xlu0 0
          %8927 = vperm.xlu0 %8926, %v8334
          %v8928 = vpop.permute.xlu0 %8927
          %8929 = vset.pattern.permute.xlu0 0
          %8930 = vperm.xlu0 %8929, %v8335
          %v8931 = vpop.permute.xlu0 %8930
          %8932 = vset.pattern.permute.xlu0 0
          %8933 = vperm.xlu0 %8932, %v8344
          %v8934 = vpop.permute.xlu0 %8933
          %8935 = vset.pattern.permute.xlu0 0
          %8936 = vperm.xlu0 %8935, %v8345
          %v8937 = vpop.permute.xlu0 %8936
          %8938 = vset.pattern.permute.xlu0 0
          %8939 = vperm.xlu0 %8938, %v8354
          %v8940 = vpop.permute.xlu0 %8939
          %8941 = vset.pattern.permute.xlu0 0
          %8942 = vperm.xlu0 %8941, %v8355
          %v8943 = vpop.permute.xlu0 %8942
          %8944 = vset.pattern.permute.xlu0 0
          %8945 = vperm.xlu0 %8944, %v8364
          %v8946 = vpop.permute.xlu0 %8945
          %8947 = vset.pattern.permute.xlu0 0
          %8948 = vperm.xlu0 %8947, %v8365
          %v8949 = vpop.permute.xlu0 %8948
          %8950 = vset.pattern.permute.xlu0 0
          %8951 = vperm.xlu0 %8950, %v8374
          %v8952 = vpop.permute.xlu0 %8951
          %8953 = vset.pattern.permute.xlu0 0
          %8954 = vperm.xlu0 %8953, %v8375
          %v8955 = vpop.permute.xlu0 %8954
          %8956 = vset.pattern.permute.xlu0 0
          %8957 = vperm.xlu0 %8956, %v8384
          %v8958 = vpop.permute.xlu0 %8957
          %8959 = vset.pattern.permute.xlu0 0
          %8960 = vperm.xlu0 %8959, %v8385
          %v8961 = vpop.permute.xlu0 %8960
          %8962 = vset.pattern.permute.xlu0 0
          %8963 = vperm.xlu0 %8962, %v8394
          %v8964 = vpop.permute.xlu0 %8963
          %8965 = vset.pattern.permute.xlu0 0
          %8966 = vperm.xlu0 %8965, %v8395
          %v8967 = vpop.permute.xlu0 %8966
          %8968 = vset.pattern.permute.xlu0 0
          %8969 = vperm.xlu0 %8968, %v8404
          %v8970 = vpop.permute.xlu0 %8969
          %8971 = vset.pattern.permute.xlu0 0
          %8972 = vperm.xlu0 %8971, %v8405
          %v8973 = vpop.permute.xlu0 %8972
          %8974 = vset.pattern.permute.xlu0 0
          %8975 = vperm.xlu0 %8974, %v8414
          %v8976 = vpop.permute.xlu0 %8975
          %8977 = vset.pattern.permute.xlu0 0
          %8978 = vperm.xlu0 %8977, %v8415
          %v8979 = vpop.permute.xlu0 %8978
          %8980 = vset.pattern.permute.xlu0 0
          %8981 = vperm.xlu0 %8980, %v8424
          %v8982 = vpop.permute.xlu0 %8981
          %8983 = vset.pattern.permute.xlu0 0
          %8984 = vperm.xlu0 %8983, %v8425
          %v8985 = vpop.permute.xlu0 %8984
          %8986 = vset.pattern.permute.xlu0 0
          %8987 = vperm.xlu0 %8986, %v8434
          %v8988 = vpop.permute.xlu0 %8987
          %8989 = vset.pattern.permute.xlu0 0
          %8990 = vperm.xlu0 %8989, %v8435
          %v8991 = vpop.permute.xlu0 %8990
          %8992 = vset.pattern.permute.xlu0 0
          %8993 = vperm.xlu0 %8992, %v8444
          %v8994 = vpop.permute.xlu0 %8993
          %8995 = vset.pattern.permute.xlu0 0
          %8996 = vperm.xlu0 %8995, %v8445
          %v8997 = vpop.permute.xlu0 %8996
          %8998 = vset.pattern.permute.xlu0 0
          %8999 = vperm.xlu0 %8998, %v8454
          %v9000 = vpop.permute.xlu0 %8999
          %9001 = vset.pattern.permute.xlu0 0
          %9002 = vperm.xlu0 %9001, %v8455
          %v9003 = vpop.permute.xlu0 %9002
          %9004 = vset.pattern.permute.xlu0 0
          %9005 = vperm.xlu0 %9004, %v8464
          %v9006 = vpop.permute.xlu0 %9005
          %9007 = vset.pattern.permute.xlu0 0
          %9008 = vperm.xlu0 %9007, %v8465
          %v9009 = vpop.permute.xlu0 %9008
          %9010 = vset.pattern.permute.xlu0 0
          %9011 = vperm.xlu0 %9010, %v8474
          %v9012 = vpop.permute.xlu0 %9011
          %9013 = vset.pattern.permute.xlu0 0
          %9014 = vperm.xlu0 %9013, %v8475
          %v9015 = vpop.permute.xlu0 %9014
          %9016 = vset.pattern.permute.xlu0 0
          %9017 = vperm.xlu0 %9016, %v8484
          %v9018 = vpop.permute.xlu0 %9017
          %9019 = vset.pattern.permute.xlu0 0
          %9020 = vperm.xlu0 %9019, %v8485
          %v9021 = vpop.permute.xlu0 %9020
          %9022 = vset.pattern.permute.xlu0 0
          %9023 = vperm.xlu0 %9022, %v8494
          %v9024 = vpop.permute.xlu0 %9023
          %9025 = vset.pattern.permute.xlu0 0
          %9026 = vperm.xlu0 %9025, %v8495
          %v9027 = vpop.permute.xlu0 %9026
          %9028 = vset.pattern.permute.xlu0 0
          %9029 = vperm.xlu0 %9028, %v8504
          %v9030 = vpop.permute.xlu0 %9029
          %9031 = vset.pattern.permute.xlu0 0
          %9032 = vperm.xlu0 %9031, %v8505
          %v9033 = vpop.permute.xlu0 %9032
          %9034 = vset.pattern.permute.xlu0 0
          %9035 = vperm.xlu0 %9034, %v8514
          %v9036 = vpop.permute.xlu0 %9035
          %9037 = vset.pattern.permute.xlu0 0
          %9038 = vperm.xlu0 %9037, %v8515
          %v9039 = vpop.permute.xlu0 %9038
          %9040 = vset.pattern.permute.xlu0 0
          %9041 = vperm.xlu0 %9040, %v8524
          %v9042 = vpop.permute.xlu0 %9041
          %9043 = vset.pattern.permute.xlu0 0
          %9044 = vperm.xlu0 %9043, %v8525
          %v9045 = vpop.permute.xlu0 %9044
          %9046 = vset.pattern.permute.xlu0 0
          %9047 = vperm.xlu0 %9046, %v8534
          %v9048 = vpop.permute.xlu0 %9047
          %9049 = vset.pattern.permute.xlu0 0
          %9050 = vperm.xlu0 %9049, %v8535
          %v9051 = vpop.permute.xlu0 %9050
          %9052 = vset.pattern.permute.xlu0 0
          %9053 = vperm.xlu0 %9052, %v8544
          %v9054 = vpop.permute.xlu0 %9053
          %9055 = vset.pattern.permute.xlu0 0
          %9056 = vperm.xlu0 %9055, %v8545
          %v9057 = vpop.permute.xlu0 %9056
          %9058 = vset.pattern.permute.xlu0 0
          %9059 = vperm.xlu0 %9058, %v8554
          %v9060 = vpop.permute.xlu0 %9059
          %9061 = vset.pattern.permute.xlu0 0
          %9062 = vperm.xlu0 %9061, %v8555
          %v9063 = vpop.permute.xlu0 %9062
          %9064 = vset.pattern.permute.xlu0 0
          %9065 = vperm.xlu0 %9064, %v8564
          %v9066 = vpop.permute.xlu0 %9065
          %9067 = vset.pattern.permute.xlu0 0
          %9068 = vperm.xlu0 %9067, %v8565
          %v9069 = vpop.permute.xlu0 %9068
          %9070 = vset.pattern.permute.xlu0 0
          %9071 = vperm.xlu0 %9070, %v8574
          %v9072 = vpop.permute.xlu0 %9071
          %9073 = vset.pattern.permute.xlu0 0
          %9074 = vperm.xlu0 %9073, %v8575
          %v9075 = vpop.permute.xlu0 %9074
          %9076 = vset.pattern.permute.xlu0 0
          %9077 = vperm.xlu0 %9076, %v8584
          %v9078 = vpop.permute.xlu0 %9077
          %9079 = vset.pattern.permute.xlu0 0
          %9080 = vperm.xlu0 %9079, %v8585
          %v9081 = vpop.permute.xlu0 %9080
          %9082 = vset.pattern.permute.xlu0 0
          %9083 = vperm.xlu0 %9082, %v8594
          %v9084 = vpop.permute.xlu0 %9083
          %9085 = vset.pattern.permute.xlu0 0
          %9086 = vperm.xlu0 %9085, %v8595
          %v9087 = vpop.permute.xlu0 %9086
          %9088 = vset.pattern.permute.xlu0 0
          %9089 = vperm.xlu0 %9088, %v8604
          %v9090 = vpop.permute.xlu0 %9089
          %9091 = vset.pattern.permute.xlu0 0
          %9092 = vperm.xlu0 %9091, %v8605
          %v9093 = vpop.permute.xlu0 %9092
          %9094 = vset.pattern.permute.xlu0 0
          %9095 = vperm.xlu0 %9094, %v8614
          %v9096 = vpop.permute.xlu0 %9095
          %9097 = vset.pattern.permute.xlu0 0
          %9098 = vperm.xlu0 %9097, %v8615
          %v9099 = vpop.permute.xlu0 %9098
          %9100 = vset.pattern.permute.xlu0 0
          %9101 = vperm.xlu0 %9100, %v8624
          %v9102 = vpop.permute.xlu0 %9101
          %9103 = vset.pattern.permute.xlu0 0
          %9104 = vperm.xlu0 %9103, %v8625
          %v9105 = vpop.permute.xlu0 %9104
          %9106 = vset.pattern.permute.xlu0 0
          %9107 = vperm.xlu0 %9106, %v8634
          %v9108 = vpop.permute.xlu0 %9107
          %9109 = vset.pattern.permute.xlu0 0
          %9110 = vperm.xlu0 %9109, %v8635
          %v9111 = vpop.permute.xlu0 %9110
          %9112 = vset.pattern.permute.xlu0 0
          %9113 = vperm.xlu0 %9112, %v8644
          %v9114 = vpop.permute.xlu0 %9113
          %9115 = vset.pattern.permute.xlu0 0
          %9116 = vperm.xlu0 %9115, %v8645
          %v9117 = vpop.permute.xlu0 %9116
          %9118 = vset.pattern.permute.xlu0 0
          %9119 = vperm.xlu0 %9118, %v8654
          %v9120 = vpop.permute.xlu0 %9119
          %9121 = vset.pattern.permute.xlu0 0
          %9122 = vperm.xlu0 %9121, %v8655
          %v9123 = vpop.permute.xlu0 %9122
          %9124 = vset.pattern.permute.xlu0 0
          %9125 = vperm.xlu0 %9124, %v8664
          %v9126 = vpop.permute.xlu0 %9125
          %9127 = vset.pattern.permute.xlu0 0
          %9128 = vperm.xlu0 %9127, %v8665
          %v9129 = vpop.permute.xlu0 %9128
          %9130 = vset.pattern.permute.xlu0 0
          %9131 = vperm.xlu0 %9130, %v8674
          %v9132 = vpop.permute.xlu0 %9131
          %9133 = vset.pattern.permute.xlu0 0
          %9134 = vperm.xlu0 %9133, %v8675
          %v9135 = vpop.permute.xlu0 %9134
          %9136 = vset.pattern.permute.xlu0 0
          %9137 = vperm.xlu0 %9136, %v8684
          %v9138 = vpop.permute.xlu0 %9137
          %9139 = vset.pattern.permute.xlu0 0
          %9140 = vperm.xlu0 %9139, %v8685
          %v9141 = vpop.permute.xlu0 %9140
          %9142 = vset.pattern.permute.xlu0 0
          %9143 = vperm.xlu0 %9142, %v8694
          %v9144 = vpop.permute.xlu0 %9143
          %9145 = vset.pattern.permute.xlu0 0
          %9146 = vperm.xlu0 %9145, %v8695
          %v9147 = vpop.permute.xlu0 %9146
          %9148 = vset.pattern.permute.xlu0 0
          %9149 = vperm.xlu0 %9148, %v8704
          %v9150 = vpop.permute.xlu0 %9149
          %9151 = vset.pattern.permute.xlu0 0
          %9152 = vperm.xlu0 %9151, %v8705
          %v9153 = vpop.permute.xlu0 %9152
          %9154 = vset.pattern.permute.xlu0 0
          %9155 = vperm.xlu0 %9154, %v8714
          %v9156 = vpop.permute.xlu0 %9155
          %9157 = vset.pattern.permute.xlu0 0
          %9158 = vperm.xlu0 %9157, %v8715
          %v9159 = vpop.permute.xlu0 %9158
          %9160 = vset.pattern.permute.xlu0 0
          %9161 = vperm.xlu0 %9160, %v8724
          %v9162 = vpop.permute.xlu0 %9161
          %9163 = vset.pattern.permute.xlu0 0
          %9164 = vperm.xlu0 %9163, %v8725
          %v9165 = vpop.permute.xlu0 %9164
          %9166 = vset.pattern.permute.xlu0 0
          %9167 = vperm.xlu0 %9166, %v8734
          %v9168 = vpop.permute.xlu0 %9167
          %9169 = vset.pattern.permute.xlu0 0
          %9170 = vperm.xlu0 %9169, %v8735
          %v9171 = vpop.permute.xlu0 %9170
          %9172 = vset.pattern.permute.xlu0 0
          %9173 = vperm.xlu0 %9172, %v8744
          %v9174 = vpop.permute.xlu0 %9173
          %9175 = vset.pattern.permute.xlu0 0
          %9176 = vperm.xlu0 %9175, %v8745
          %v9177 = vpop.permute.xlu0 %9176
          %9178 = vset.pattern.permute.xlu0 0
          %9179 = vperm.xlu0 %9178, %v8754
          %v9180 = vpop.permute.xlu0 %9179
          %9181 = vset.pattern.permute.xlu0 0
          %9182 = vperm.xlu0 %9181, %v8755
          %v9183 = vpop.permute.xlu0 %9182
          %9184 = vset.pattern.permute.xlu0 0
          %9185 = vperm.xlu0 %9184, %v8764
          %v9186 = vpop.permute.xlu0 %9185
          %9187 = vset.pattern.permute.xlu0 0
          %9188 = vperm.xlu0 %9187, %v8765
          %v9189 = vpop.permute.xlu0 %9188
          %9190 = vset.pattern.permute.xlu0 0
          %9191 = vperm.xlu0 %9190, %v8774
          %v9192 = vpop.permute.xlu0 %9191
          %9193 = vset.pattern.permute.xlu0 0
          %9194 = vperm.xlu0 %9193, %v8775
          %v9195 = vpop.permute.xlu0 %9194
          %9196 = vset.pattern.permute.xlu0 0
          %9197 = vperm.xlu0 %9196, %v8784
          %v9198 = vpop.permute.xlu0 %9197
          %9199 = vset.pattern.permute.xlu0 0
          %9200 = vperm.xlu0 %9199, %v8785
          %v9201 = vpop.permute.xlu0 %9200
          %9202 = vset.pattern.permute.xlu0 0
          %9203 = vperm.xlu0 %9202, %v8794
          %v9204 = vpop.permute.xlu0 %9203
          %9205 = vset.pattern.permute.xlu0 0
          %9206 = vperm.xlu0 %9205, %v8795
          %v9207 = vpop.permute.xlu0 %9206
          %9208 = vset.pattern.permute.xlu0 0
          %9209 = vperm.xlu0 %9208, %v8804
          %v9210 = vpop.permute.xlu0 %9209
          %9211 = vset.pattern.permute.xlu0 0
          %9212 = vperm.xlu0 %9211, %v8805
          %v9213 = vpop.permute.xlu0 %9212
          %9214 = vset.pattern.permute.xlu0 0
          %9215 = vperm.xlu0 %9214, %v8814
          %v9216 = vpop.permute.xlu0 %9215
          %9217 = vset.pattern.permute.xlu0 0
          %9218 = vperm.xlu0 %9217, %v8815
          %v9219 = vpop.permute.xlu0 %9218
          %9220 = vset.pattern.permute.xlu0 0
          %9221 = vperm.xlu0 %9220, %v8824
          %v9222 = vpop.permute.xlu0 %9221
          %9223 = vset.pattern.permute.xlu0 0
          %9224 = vperm.xlu0 %9223, %v8825
          %v9225 = vpop.permute.xlu0 %9224
          %9226 = vset.pattern.permute.xlu0 0
          %9227 = vperm.xlu0 %9226, %v8834
          %v9228 = vpop.permute.xlu0 %9227
          %9229 = vset.pattern.permute.xlu0 0
          %9230 = vperm.xlu0 %9229, %v8835
          %v9231 = vpop.permute.xlu0 %9230
          %9232 = vset.pattern.permute.xlu0 0
          %9233 = vperm.xlu0 %9232, %v8844
          %v9234 = vpop.permute.xlu0 %9233
          %9235 = vset.pattern.permute.xlu0 0
          %9236 = vperm.xlu0 %9235, %v8845
          %v9237 = vpop.permute.xlu0 %9236
          %9238 = vset.pattern.permute.xlu0 0
          %9239 = vperm.xlu0 %9238, %v8854
          %v9240 = vpop.permute.xlu0 %9239
          %9241 = vset.pattern.permute.xlu0 0
          %9242 = vperm.xlu0 %9241, %v8855
          %v9243 = vpop.permute.xlu0 %9242
          %9244 = vset.pattern.permute.xlu0 0
          %9245 = vperm.xlu0 %9244, %v8864
          %v9246 = vpop.permute.xlu0 %9245
          %9247 = vset.pattern.permute.xlu0 0
          %9248 = vperm.xlu0 %9247, %v8865
          %v9249 = vpop.permute.xlu0 %9248
          %v9250 = vlaneseq
          %v9251 = vand.u32 %v9250, 127
          %v9252 = vperm.slane %v8868, %v9251
          %v9253 = vadd.s32 %v9251, 4294967288
          %v9254 = vperm.slane %v8871, %v9253
          %vm9255 = vcmask 130112
          %v9256 = vsel %vm9255, %v9254, %v9252
          %v9257 = vadd.s32 %v9251, 4294967280
          %v9258 = vperm.slane %v8874, %v9257
          %vm9259 = vcmask 195712
          %v9260 = vsel %vm9259, %v9258, %v9256
          %v9261 = vadd.s32 %v9251, 4294967272
          %v9262 = vperm.slane %v8877, %v9261
          %vm9263 = vcmask 261312
          %v9264 = vsel %vm9263, %v9262, %v9260
          %v9265 = vadd.s32 %v9251, 4294967264
          %v9266 = vperm.slane %v8880, %v9265
          %vm9267 = vcmask 326912
          %v9268 = vsel %vm9267, %v9266, %v9264
          %v9269 = vadd.s32 %v9251, 4294967256
          %v9270 = vperm.slane %v8883, %v9269
          %vm9271 = vcmask 392512
          %v9272 = vsel %vm9271, %v9270, %v9268
          %v9273 = vadd.s32 %v9251, 4294967248
          %v9274 = vperm.slane %v8886, %v9273
          %vm9275 = vcmask 458112
          %v9276 = vsel %vm9275, %v9274, %v9272
          %v9277 = vadd.s32 %v9251, 4294967240
          %v9278 = vperm.slane %v8889, %v9277
          %vm9279 = vcmask 523712
          %v9280 = vsel %vm9279, %v9278, %v9276
          %v9281 = vadd.s32 %v9251, 4294967232
          %v9282 = vperm.slane %v8892, %v9281
          %vm9283 = vcmask 589312
          %v9284 = vsel %vm9283, %v9282, %v9280
          %v9285 = vadd.s32 %v9251, 4294967224
          %v9286 = vperm.slane %v8895, %v9285
          %vm9287 = vcmask 654912
          %v9288 = vsel %vm9287, %v9286, %v9284
          %v9289 = vadd.s32 %v9251, 4294967216
          %v9290 = vperm.slane %v8898, %v9289
          %vm9291 = vcmask 720512
          %v9292 = vsel %vm9291, %v9290, %v9288
          %v9293 = vadd.s32 %v9251, 4294967208
          %v9294 = vperm.slane %v8901, %v9293
          %vm9295 = vcmask 786112
          %v9296 = vsel %vm9295, %v9294, %v9292
          %v9297 = vadd.s32 %v9251, 4294967200
          %v9298 = vperm.slane %v8904, %v9297
          %vm9299 = vcmask 851712
          %v9300 = vsel %vm9299, %v9298, %v9296
          %v9301 = vadd.s32 %v9251, 4294967192
          %v9302 = vperm.slane %v8907, %v9301
          %vm9303 = vcmask 917312
          %v9304 = vsel %vm9303, %v9302, %v9300
          %v9305 = vadd.s32 %v9251, 4294967184
          %v9306 = vperm.slane %v8910, %v9305
          %vm9307 = vcmask 982912
          %v9308 = vsel %vm9307, %v9306, %v9304
          %v9309 = vadd.s32 %v9251, 4294967176
          %v9310 = vperm.slane %v8913, %v9309
          %vm9311 = vcmask 1048512
          %v9312 = vsel %vm9311, %v9310, %v9308
          %v9313 = vperm.slane %v8916, %v9251
          %v9314 = vperm.slane %v8919, %v9253
          %v9315 = vsel %vm9255, %v9314, %v9313
          %v9316 = vperm.slane %v8922, %v9257
          %v9317 = vsel %vm9259, %v9316, %v9315
          %v9318 = vperm.slane %v8925, %v9261
          %v9319 = vsel %vm9263, %v9318, %v9317
          %v9320 = vperm.slane %v8928, %v9265
          %v9321 = vsel %vm9267, %v9320, %v9319
          %v9322 = vperm.slane %v8931, %v9269
          %v9323 = vsel %vm9271, %v9322, %v9321
          %v9324 = vperm.slane %v8934, %v9273
          %v9325 = vsel %vm9275, %v9324, %v9323
          %v9326 = vperm.slane %v8937, %v9277
          %v9327 = vsel %vm9279, %v9326, %v9325
          %v9328 = vperm.slane %v8940, %v9281
          %v9329 = vsel %vm9283, %v9328, %v9327
          %v9330 = vperm.slane %v8943, %v9285
          %v9331 = vsel %vm9287, %v9330, %v9329
          %v9332 = vperm.slane %v8946, %v9289
          %v9333 = vsel %vm9291, %v9332, %v9331
          %v9334 = vperm.slane %v8949, %v9293
          %v9335 = vsel %vm9295, %v9334, %v9333
          %v9336 = vperm.slane %v8952, %v9297
          %v9337 = vsel %vm9299, %v9336, %v9335
          %v9338 = vperm.slane %v8955, %v9301
          %v9339 = vsel %vm9303, %v9338, %v9337
          %v9340 = vperm.slane %v8958, %v9305
          %v9341 = vsel %vm9307, %v9340, %v9339
          %v9342 = vperm.slane %v8961, %v9309
          %v9343 = vsel %vm9311, %v9342, %v9341
          %v9344 = vperm.slane %v8964, %v9251
          %v9345 = vperm.slane %v8967, %v9253
          %v9346 = vsel %vm9255, %v9345, %v9344
          %v9347 = vperm.slane %v8970, %v9257
          %v9348 = vsel %vm9259, %v9347, %v9346
          %v9349 = vperm.slane %v8973, %v9261
          %v9350 = vsel %vm9263, %v9349, %v9348
          %v9351 = vperm.slane %v8976, %v9265
          %v9352 = vsel %vm9267, %v9351, %v9350
          %v9353 = vperm.slane %v8979, %v9269
          %v9354 = vsel %vm9271, %v9353, %v9352
          %v9355 = vperm.slane %v8982, %v9273
          %v9356 = vsel %vm9275, %v9355, %v9354
          %v9357 = vperm.slane %v8985, %v9277
          %v9358 = vsel %vm9279, %v9357, %v9356
          %v9359 = vperm.slane %v8988, %v9281
          %v9360 = vsel %vm9283, %v9359, %v9358
          %v9361 = vperm.slane %v8991, %v9285
          %v9362 = vsel %vm9287, %v9361, %v9360
          %v9363 = vperm.slane %v8994, %v9289
          %v9364 = vsel %vm9291, %v9363, %v9362
          %v9365 = vperm.slane %v8997, %v9293
          %v9366 = vsel %vm9295, %v9365, %v9364
          %v9367 = vperm.slane %v9000, %v9297
          %v9368 = vsel %vm9299, %v9367, %v9366
          %v9369 = vperm.slane %v9003, %v9301
          %v9370 = vsel %vm9303, %v9369, %v9368
          %v9371 = vperm.slane %v9006, %v9305
          %v9372 = vsel %vm9307, %v9371, %v9370
          %v9373 = vperm.slane %v9009, %v9309
          %v9374 = vsel %vm9311, %v9373, %v9372
          %v9375 = vperm.slane %v9012, %v9251
          %v9376 = vperm.slane %v9015, %v9253
          %v9377 = vsel %vm9255, %v9376, %v9375
          %v9378 = vperm.slane %v9018, %v9257
          %v9379 = vsel %vm9259, %v9378, %v9377
          %v9380 = vperm.slane %v9021, %v9261
          %v9381 = vsel %vm9263, %v9380, %v9379
          %v9382 = vperm.slane %v9024, %v9265
          %v9383 = vsel %vm9267, %v9382, %v9381
          %v9384 = vperm.slane %v9027, %v9269
          %v9385 = vsel %vm9271, %v9384, %v9383
          %v9386 = vperm.slane %v9030, %v9273
          %v9387 = vsel %vm9275, %v9386, %v9385
          %v9388 = vperm.slane %v9033, %v9277
          %v9389 = vsel %vm9279, %v9388, %v9387
          %v9390 = vperm.slane %v9036, %v9281
          %v9391 = vsel %vm9283, %v9390, %v9389
          %v9392 = vperm.slane %v9039, %v9285
          %v9393 = vsel %vm9287, %v9392, %v9391
          %v9394 = vperm.slane %v9042, %v9289
          %v9395 = vsel %vm9291, %v9394, %v9393
          %v9396 = vperm.slane %v9045, %v9293
          %v9397 = vsel %vm9295, %v9396, %v9395
          %v9398 = vperm.slane %v9048, %v9297
          %v9399 = vsel %vm9299, %v9398, %v9397
          %v9400 = vperm.slane %v9051, %v9301
          %v9401 = vsel %vm9303, %v9400, %v9399
          %v9402 = vperm.slane %v9054, %v9305
          %v9403 = vsel %vm9307, %v9402, %v9401
          %v9404 = vperm.slane %v9057, %v9309
          %v9405 = vsel %vm9311, %v9404, %v9403
          %v9406 = vperm.slane %v9060, %v9251
          %v9407 = vperm.slane %v9063, %v9253
          %v9408 = vsel %vm9255, %v9407, %v9406
          %v9409 = vperm.slane %v9066, %v9257
          %v9410 = vsel %vm9259, %v9409, %v9408
          %v9411 = vperm.slane %v9069, %v9261
          %v9412 = vsel %vm9263, %v9411, %v9410
          %v9413 = vperm.slane %v9072, %v9265
          %v9414 = vsel %vm9267, %v9413, %v9412
          %v9415 = vperm.slane %v9075, %v9269
          %v9416 = vsel %vm9271, %v9415, %v9414
          %v9417 = vperm.slane %v9078, %v9273
          %v9418 = vsel %vm9275, %v9417, %v9416
          %v9419 = vperm.slane %v9081, %v9277
          %v9420 = vsel %vm9279, %v9419, %v9418
          %v9421 = vperm.slane %v9084, %v9281
          %v9422 = vsel %vm9283, %v9421, %v9420
          %v9423 = vperm.slane %v9087, %v9285
          %v9424 = vsel %vm9287, %v9423, %v9422
          %v9425 = vperm.slane %v9090, %v9289
          %v9426 = vsel %vm9291, %v9425, %v9424
          %v9427 = vperm.slane %v9093, %v9293
          %v9428 = vsel %vm9295, %v9427, %v9426
          %v9429 = vperm.slane %v9096, %v9297
          %v9430 = vsel %vm9299, %v9429, %v9428
          %v9431 = vperm.slane %v9099, %v9301
          %v9432 = vsel %vm9303, %v9431, %v9430
          %v9433 = vperm.slane %v9102, %v9305
          %v9434 = vsel %vm9307, %v9433, %v9432
          %v9435 = vperm.slane %v9105, %v9309
          %v9436 = vsel %vm9311, %v9435, %v9434
          %v9437 = vperm.slane %v9108, %v9251
          %v9438 = vperm.slane %v9111, %v9253
          %v9439 = vsel %vm9255, %v9438, %v9437
          %v9440 = vperm.slane %v9114, %v9257
          %v9441 = vsel %vm9259, %v9440, %v9439
          %v9442 = vperm.slane %v9117, %v9261
          %v9443 = vsel %vm9263, %v9442, %v9441
          %v9444 = vperm.slane %v9120, %v9265
          %v9445 = vsel %vm9267, %v9444, %v9443
          %v9446 = vperm.slane %v9123, %v9269
          %v9447 = vsel %vm9271, %v9446, %v9445
          %v9448 = vperm.slane %v9126, %v9273
          %v9449 = vsel %vm9275, %v9448, %v9447
          %v9450 = vperm.slane %v9129, %v9277
          %v9451 = vsel %vm9279, %v9450, %v9449
          %v9452 = vperm.slane %v9132, %v9281
          %v9453 = vsel %vm9283, %v9452, %v9451
          %v9454 = vperm.slane %v9135, %v9285
          %v9455 = vsel %vm9287, %v9454, %v9453
          %v9456 = vperm.slane %v9138, %v9289
          %v9457 = vsel %vm9291, %v9456, %v9455
          %v9458 = vperm.slane %v9141, %v9293
          %v9459 = vsel %vm9295, %v9458, %v9457
          %v9460 = vperm.slane %v9144, %v9297
          %v9461 = vsel %vm9299, %v9460, %v9459
          %v9462 = vperm.slane %v9147, %v9301
          %v9463 = vsel %vm9303, %v9462, %v9461
          %v9464 = vperm.slane %v9150, %v9305
          %v9465 = vsel %vm9307, %v9464, %v9463
          %v9466 = vperm.slane %v9153, %v9309
          %v9467 = vsel %vm9311, %v9466, %v9465
          %v9468 = vperm.slane %v9156, %v9251
          %v9469 = vperm.slane %v9159, %v9253
          %v9470 = vsel %vm9255, %v9469, %v9468
          %v9471 = vperm.slane %v9162, %v9257
          %v9472 = vsel %vm9259, %v9471, %v9470
          %v9473 = vperm.slane %v9165, %v9261
          %v9474 = vsel %vm9263, %v9473, %v9472
          %v9475 = vperm.slane %v9168, %v9265
          %v9476 = vsel %vm9267, %v9475, %v9474
          %v9477 = vperm.slane %v9171, %v9269
          %v9478 = vsel %vm9271, %v9477, %v9476
          %v9479 = vperm.slane %v9174, %v9273
          %v9480 = vsel %vm9275, %v9479, %v9478
          %v9481 = vperm.slane %v9177, %v9277
          %v9482 = vsel %vm9279, %v9481, %v9480
          %v9483 = vperm.slane %v9180, %v9281
          %v9484 = vsel %vm9283, %v9483, %v9482
          %v9485 = vperm.slane %v9183, %v9285
          %v9486 = vsel %vm9287, %v9485, %v9484
          %v9487 = vperm.slane %v9186, %v9289
          %v9488 = vsel %vm9291, %v9487, %v9486
          %v9489 = vperm.slane %v9189, %v9293
          %v9490 = vsel %vm9295, %v9489, %v9488
          %v9491 = vperm.slane %v9192, %v9297
          %v9492 = vsel %vm9299, %v9491, %v9490
          %v9493 = vperm.slane %v9195, %v9301
          %v9494 = vsel %vm9303, %v9493, %v9492
          %v9495 = vperm.slane %v9198, %v9305
          %v9496 = vsel %vm9307, %v9495, %v9494
          %v9497 = vperm.slane %v9201, %v9309
          %v9498 = vsel %vm9311, %v9497, %v9496
          %v9499 = vperm.slane %v9204, %v9251
          %v9500 = vperm.slane %v9207, %v9253
          %v9501 = vsel %vm9255, %v9500, %v9499
          %v9502 = vperm.slane %v9210, %v9257
          %v9503 = vsel %vm9259, %v9502, %v9501
          %v9504 = vperm.slane %v9213, %v9261
          %v9505 = vsel %vm9263, %v9504, %v9503
          %v9506 = vperm.slane %v9216, %v9265
          %v9507 = vsel %vm9267, %v9506, %v9505
          %v9508 = vperm.slane %v9219, %v9269
          %v9509 = vsel %vm9271, %v9508, %v9507
          %v9510 = vperm.slane %v9222, %v9273
          %v9511 = vsel %vm9275, %v9510, %v9509
          %v9512 = vperm.slane %v9225, %v9277
          %v9513 = vsel %vm9279, %v9512, %v9511
          %v9514 = vperm.slane %v9228, %v9281
          %v9515 = vsel %vm9283, %v9514, %v9513
          %v9516 = vperm.slane %v9231, %v9285
          %v9517 = vsel %vm9287, %v9516, %v9515
          %v9518 = vperm.slane %v9234, %v9289
          %v9519 = vsel %vm9291, %v9518, %v9517
          %v9520 = vperm.slane %v9237, %v9293
          %v9521 = vsel %vm9295, %v9520, %v9519
          %v9522 = vperm.slane %v9240, %v9297
          %v9523 = vsel %vm9299, %v9522, %v9521
          %v9524 = vperm.slane %v9243, %v9301
          %v9525 = vsel %vm9303, %v9524, %v9523
          %v9526 = vperm.slane %v9246, %v9305
          %v9527 = vsel %vm9307, %v9526, %v9525
          %v9528 = vperm.slane %v9249, %v9309
          %v9529 = vsel %vm9311, %v9528, %v9527
          %vm9530 = vcmask 1041409
          %v9531 = vsel %vm9530, %v9436, %v9312
          %v9532 = vsel %vm9530, %v9467, %v9343
          %v9533 = vsel %vm9530, %v9498, %v9374
          %v9534 = vsel %vm9530, %v9529, %v9405
          %v9535 = vrot.slane %v9532, 6
          %v9536 = vrot.slane %v9533, 4
          %v9537 = vrot.slane %v9534, 2
          %vm9538 = vcmask 1041408
          %v9539 = vsel %vm9538, %v9531, %v9535
          %vm9540 = vcmask 1045508
          %v9541 = vsel %vm9540, %v9536, %v9537
          %vm9542 = vcmask 1043456
          %v9543 = vsel %vm9542, %v9539, %v9541
          %9545 = vst [vmem:[%s217] sm:$0xff] %v9543
        $region70: #{tpu_custom_call.1} parent=50 // pred_fallthru
          _
        %s9546 = sand.u32 %s107, 1
        %s9547 = scalar_lea.sflag [#allocation5], %s9546
        %s9548 = sand.u32 %s107, 1
        %s9549 = smul.addr %s9548, 8
        %s9550 = scalar_lea.vmem [#allocation4], %s9549
        // Predicated region
        $region71: #{tpu_custom_call.1} parent=50 // pred_check
          %p9551 = pneg %p117
        $region72: #{tpu_custom_call.1} parent=50 // pred_check_branch
          %9553 = sbr.rel (%p9551) target = $region74
        $region73: #{tpu_custom_call.1} parent=50 // pred_region
          %9555 = vsyncadd %s9547, 0
          %s9556 = smul.addr %s21, 4
          %s9557 = smul.addr %s9556, 2
          %s9558 = scalar_lea.hbm %s3, %s9557
          %s9560 = sshll.u32 %s9550, 4
          %s9561 = int_to_ptr.vmem [resolvable:$true] %s9560
          %s9562 = sshll.u32 %s9558, 4
          %s9563 = int_to_ptr.hbm [resolvable:$true] %s9562
          %9565 = dma.vmem_to_hbm [thread:$0]  %s9561, 128, %s9563, %s9547
        $region74: #{tpu_custom_call.1} parent=50 // pred_fallthru
          _
      $region51: #{tpu_custom_call.1} parent=5 // pred_fallthru
        _
      %p9566 = scmp.le.s32.totalorder 2, %s12
      // Predicated region
      $region75: #{tpu_custom_call.1} parent=5 // pred_check
        %p9567 = pneg %p9566
      $region76: #{tpu_custom_call.1} parent=5 // pred_check_branch
        %9569 = sbr.rel (%p9567) target = $region78
      $region77: #{tpu_custom_call.1} parent=5 // pred_region
        %s9570 = ssub.s32 %s12, 2
        // Predicated region
        $region79: #{tpu_custom_call.1} parent=77 // pred_check
          %p9571 = pneg %p123
        $region80: #{tpu_custom_call.1} parent=77 // pred_check_branch
          %9573 = sbr.rel (%p9571) target = $region82
        $region81: #{tpu_custom_call.1} parent=77 // pred_region
          %s9574 = sand.u32 %s108, 1
          %s9575 = scalar_lea.sflag [#allocation5], %s9574
          %s9576 = sand.u32 %s108, 1
          %s9577 = smul.addr %s9576, 8
          %s9578 = scalar_lea.vmem [#allocation4], %s9577
          %9580 = dma.done %s9575, 128
        $region82: #{tpu_custom_call.1} parent=77 // pred_fallthru
          _
      $region78: #{tpu_custom_call.1} parent=5 // pred_fallthru
        _
    $region6: #{tpu_custom_call.1} parent=1 // loop_footer
      %s16 = sadd.s32 1, %s12
    $region7: #{tpu_custom_call.1} parent=1 // loop_footer_branch
      %11 = sbr.rel target = $region3
    $region8: #{tpu_custom_call.1} parent=1 // loop_exit
      _
    %9581 = vsyncpa [#allocation5], 1
    %s9582 = scalar_lea.sflag [#allocation5], 1
    %9583 = vsyncpa %s9582, 1

</llo_original>
